<compile_context>
chip_gen: v7x
topology: tpu7x:2x2x1
jax: 0.10.0
libtpu: 0.0.40
codegen_flags: <defaults>
</compile_context>

<pallas_src>
import functools

import jax
import jax.numpy as jnp
from jax.experimental import pallas as pl
from jax.experimental.pallas import tpu as pltpu


# ---------------------------------------------------------------------------
# Fused forward kernel (one grid step == one image)
# ---------------------------------------------------------------------------

def _fused_forward_kernel(xs_ref, w1_ref, b1_ref, w2_ref, b2_ref,
                          wf1_ref, bf1_ref, wf2_ref, bf2_ref,
                          o_ref, pad_ref, *, hp, wp, k, pad):
    m = hp * wp                       # pooled spatial size (8*8 = 64)
    cin = w1_ref.shape[-2]            # 3
    c1 = w1_ref.shape[-1]             # 32
    c2 = w2_ref.shape[-1]             # 64

    # ---- layer1: Conv2d(3,32,5,pad=2) + ReLU + MaxPool2d(2,2), fully fused ----
    # xs_ref holds the padded input split by (row parity, col parity):
    #   xs_ref[2*ph + pw, i, j, c] == x_pad[2*i + ph, 2*j + pw, c]
    # The four pool phases (hl, wl) are stacked as 4 row blocks of one
    # (4*m, cin) LHS so each of the 25 taps is a single bf16 MXU matmul.
    acc1 = jnp.zeros((4 * m, c1), jnp.float32)
    for kh in range(k):
        for kw in range(k):
            rows = []
            for hl in (0, 1):
                for wl in (0, 1):
                    a = hl + kh
                    b = wl + kw
                    win = xs_ref[(a % 2) * 2 + (b % 2),
                                 a // 2:a // 2 + hp,
                                 b // 2:b // 2 + wp, :]          # (hp, wp, cin)
                    rows.append(win.reshape(m, cin))
            lhs = jnp.concatenate(rows, axis=0).astype(jnp.bfloat16)   # (4m, cin)
            acc1 = acc1 + jnp.dot(lhs, w1_ref[kh * k + kw],
                                  preferred_element_type=jnp.float32)
    h1 = jnp.maximum(acc1 + b1_ref[...], 0.0)                          # (4m, c1)
    pooled = jnp.maximum(jnp.maximum(h1[0 * m:1 * m], h1[1 * m:2 * m]),
                         jnp.maximum(h1[2 * m:3 * m], h1[3 * m:4 * m]))  # (m, c1)

    # ---- zero-padded pooled map in VMEM scratch so conv2 taps are window loads
    pad_ref[...] = jnp.zeros_like(pad_ref)
    pad_ref[pad:pad + hp, pad:pad + wp, :] = pooled.reshape(hp, wp, c1)

    # ---- layer2: Conv2d(32,64,5,pad=2) + ReLU ----
    acc2 = jnp.zeros((m, c2), jnp.float32)
    for kh in range(k):
        for kw in range(k):
            win = pad_ref[kh:kh + hp, kw:kw + wp, :]                   # (hp, wp, c1)
            lhs = win.reshape(m, c1).astype(jnp.bfloat16)
            acc2 = acc2 + jnp.dot(lhs, w2_ref[kh * k + kw],
                                  preferred_element_type=jnp.float32)
    h2 = jnp.maximum(acc2 + b2_ref[...], 0.0)                          # (m, c2)

    # ---- AdaptiveAvgPool2d(1) -> flatten -> Dropout -> fc1 -> fc2 ----
    # TODO(synk): training-mode Dropout(p=0.5) not implemented (eval semantics,
    #             i.e. identity, matching model.eval()).
    feat = jnp.mean(h2, axis=0, keepdims=True)                         # (1, c2)
    f1 = jnp.dot(feat, wf1_ref[...],
                 preferred_element_type=jnp.float32) + bf1_ref[...]    # (1, hid)
    out = jnp.dot(f1, wf2_ref[...],
                  preferred_element_type=jnp.float32) + bf2_ref[...]   # (1, co)
    o_ref[...] = out.reshape(o_ref.shape).astype(o_ref.dtype)


# ---------------------------------------------------------------------------
# Wrapper: layout prep (pad + parity split, one tiny XLA op) + single pallas_call
# ---------------------------------------------------------------------------

def my_model_forward(x_nchw, params):
    n, c, h, w = x_nchw.shape
    k, pad = 5, 2
    assert h % 2 == 0 and w % 2 == 0, "MaxPool2d(2,2) path assumes even H/W"
    hp, wp = h // 2, w // 2
    hh, wh = (h + 2 * pad) // 2, (w + 2 * pad) // 2

    c1 = params["w_conv1"].shape[-1]
    c2 = params["w_conv2"].shape[-1]
    hid = params["w_fc1"].shape[-1]
    co = params["w_fc2"].shape[-1]

    # NCHW -> NHWC, zero-pad, split H/W into (parity, half):
    #   xs[n*4 + ph*2 + pw, i, j, c] == x_pad[n, 2*i + ph, 2*j + pw, c]
    x = jnp.transpose(x_nchw, (0, 2, 3, 1)).astype(jnp.float32)
    xp = jnp.pad(x, ((0, 0), (pad, pad), (pad, pad), (0, 0)))
    xs = (xp.reshape(n, hh, 2, wh, 2, c)
            .transpose(0, 2, 4, 1, 3, 5)
            .reshape(n * 4, hh, wh, c))

    w1 = params["w_conv1"].reshape(k * k, c, c1).astype(jnp.bfloat16)
    w2 = params["w_conv2"].reshape(k * k, c1, c2).astype(jnp.bfloat16)
    b1 = params["b_conv1"].reshape(1, c1).astype(jnp.float32)
    b2 = params["b_conv2"].reshape(1, c2).astype(jnp.float32)
    wf1 = params["w_fc1"].astype(jnp.float32)
    bf1 = params["b_fc1"].reshape(1, hid).astype(jnp.float32)
    wf2 = params["w_fc2"].astype(jnp.float32)
    bf2 = params["b_fc2"].reshape(1, co).astype(jnp.float32)

    kernel = functools.partial(_fused_forward_kernel, hp=hp, wp=wp, k=k, pad=pad)

    flops = 2 * n * (h * w * k * k * c * c1
                     + hp * wp * k * k * c1 * c2
                     + c2 * hid + hid * co)
    bytes_accessed = sum(int(a.size) * a.dtype.itemsize
                         for a in (xs, w1, b1, w2, b2, wf1, bf1, wf2, bf2))
    bytes_accessed += n * co * 4

    out = pl.pallas_call(
        kernel,
        grid=(n,),
        in_specs=[
            pl.BlockSpec((4, hh, wh, c), lambda i: (i, 0, 0, 0)),
            pl.BlockSpec((k * k, c, c1), lambda i: (0, 0, 0)),
            pl.BlockSpec((1, c1), lambda i: (0, 0)),
            pl.BlockSpec((k * k, c1, c2), lambda i: (0, 0, 0)),
            pl.BlockSpec((1, c2), lambda i: (0, 0)),
            pl.BlockSpec((c2, hid), lambda i: (0, 0)),
            pl.BlockSpec((1, hid), lambda i: (0, 0)),
            pl.BlockSpec((hid, co), lambda i: (0, 0)),
            pl.BlockSpec((1, co), lambda i: (0, 0)),
        ],
        out_specs=pl.BlockSpec((1, 1, co), lambda i: (i, 0, 0)),
        out_shape=jax.ShapeDtypeStruct((n, 1, co), jnp.float32),
        scratch_shapes=[
            pltpu.VMEM((hp + 2 * pad, wp + 2 * pad, c1), jnp.float32),
        ],
        compiler_params=pltpu.CompilerParams(
            dimension_semantics=("parallel",)),
        cost_estimate=pl.CostEstimate(flops=flops, transcendentals=0,
                                      bytes_accessed=bytes_accessed),
    )(xs, w1, b1, w2, b2, wf1, bf1, wf2, bf2)
    return out.reshape(n, co)


# ---------------------------------------------------------------------------
# Pure-JAX (XLA) reference of the same forward pass, for correctness checking
# ---------------------------------------------------------------------------

def reference_forward(x_nchw, params):
    x = jnp.transpose(x_nchw, (0, 2, 3, 1)).astype(jnp.float32)   # NHWC
    y = jax.lax.conv_general_dilated(
        x, params["w_conv1"], window_strides=(1, 1),
        padding=((2, 2), (2, 2)),
        dimension_numbers=("NHWC", "HWIO", "NHWC"))
    y = jax.nn.relu(y + params["b_conv1"])
    y = jax.lax.reduce_window(y, -jnp.inf, jax.lax.max,
                              (1, 2, 2, 1), (1, 2, 2, 1), "VALID")
    y = jax.lax.conv_general_dilated(
        y, params["w_conv2"], window_strides=(1, 1),
        padding=((2, 2), (2, 2)),
        dimension_numbers=("NHWC", "HWIO", "NHWC"))
    y = jax.nn.relu(y + params["b_conv2"])
    feat = jnp.mean(y, axis=(1, 2))                                # AdaptiveAvgPool(1)
    f1 = feat @ params["w_fc1"] + params["b_fc1"]                  # Dropout -> identity (eval)
    return f1 @ params["w_fc2"] + params["b_fc2"]


# ---------------------------------------------------------------------------
# Deterministic parameter init (PyTorch-style uniform(-1/sqrt(fan_in), +))
# ---------------------------------------------------------------------------

def init_params(key):
    ks = jax.random.split(key, 8)

    def u(k, shape, fan_in):
        bound = 1.0 / float(fan_in) ** 0.5
        return jax.random.uniform(k, shape, jnp.float32, -bound, bound)

    return {
        # conv weights stored as (KH, KW, Cin, Cout)  (HWIO)
        "w_conv1": u(ks[0], (5, 5, 3, 32), 5 * 5 * 3),
        "b_conv1": u(ks[1], (32,), 5 * 5 * 3),
        "w_conv2": u(ks[2], (5, 5, 32, 64), 5 * 5 * 32),
        "b_conv2": u(ks[3], (64,), 5 * 5 * 32),
        # fc weights stored as (in, out) (transpose of torch Linear.weight)
        "w_fc1": u(ks[4], (64, 100), 64),
        "b_fc1": u(ks[5], (100,), 64),
        "w_fc2": u(ks[6], (100, 64), 100),
        "b_fc2": u(ks[7], (64,), 100),
    }


if __name__ == "__main__":
    key = jax.random.PRNGKey(0)
    k_x, k_p = jax.random.split(key)
    x = jax.random.normal(k_x, (2, 3, 16, 16), dtype=jnp.float32)  # NCHW input
    params = init_params(k_p)

    out = jax.jit(my_model_forward)(x, params)
    out = jax.block_until_ready(out)

    assert out.shape == (2, 64), out.shape
    assert out.dtype == jnp.float32
    assert bool(jnp.all(jnp.isfinite(out)))

    # Correctness vs an XLA reference (bf16 conv path -> loose tolerance).
    ref = jax.block_until_ready(jax.jit(reference_forward)(x, params))
    max_diff = float(jnp.max(jnp.abs(out - ref)))
    assert max_diff < 0.05, f"kernel/reference mismatch: max|diff|={max_diff}"

    print("KERNEL_OK")
</pallas_src>

<mosaic_0001>
module attributes {stable_mosaic.version = 11 : i64} {
  func.func @_fused_forward_kernel(%arg0: i32, %arg1: memref<4x10x10x3xf32, #tpu.memory_space<vmem>>, %arg2: memref<25x3x32xbf16, #tpu.memory_space<vmem>>, %arg3: memref<1x32xf32, #tpu.memory_space<vmem>>, %arg4: memref<25x32x64xbf16, #tpu.memory_space<vmem>>, %arg5: memref<1x64xf32, #tpu.memory_space<vmem>>, %arg6: memref<64x100xf32, #tpu.memory_space<vmem>>, %arg7: memref<1x100xf32, #tpu.memory_space<vmem>>, %arg8: memref<100x64xf32, #tpu.memory_space<vmem>>, %arg9: memref<1x64xf32, #tpu.memory_space<vmem>>, %arg10: memref<1x1x64xf32, #tpu.memory_space<vmem>>, %arg11: memref<12x12x32xf32, #tpu.memory_space<vmem>>) attributes {dimension_semantics = [#tpu.dimension_semantics<parallel>], iteration_bounds = array<i64: 2>, scalar_prefetch = 0 : i64, scratch_operands = 1 : i64, tpu.core_type = #tpu.core_type<tc>, window_params = [{transform_indices = @transform_0, window_bounds = array<i64: 4, 10, 10, 3>}, {pipeline_mode = #tpu.pipeline_mode<synchronous>, transform_indices = @transform_1, window_bounds = array<i64: 25, 3, 32>}, {pipeline_mode = #tpu.pipeline_mode<synchronous>, transform_indices = @transform_2, window_bounds = array<i64: 1, 32>}, {pipeline_mode = #tpu.pipeline_mode<synchronous>, transform_indices = @transform_3, window_bounds = array<i64: 25, 32, 64>}, {pipeline_mode = #tpu.pipeline_mode<synchronous>, transform_indices = @transform_4, window_bounds = array<i64: 1, 64>}, {pipeline_mode = #tpu.pipeline_mode<synchronous>, transform_indices = @transform_5, window_bounds = array<i64: 64, 100>}, {pipeline_mode = #tpu.pipeline_mode<synchronous>, transform_indices = @transform_6, window_bounds = array<i64: 1, 100>}, {pipeline_mode = #tpu.pipeline_mode<synchronous>, transform_indices = @transform_7, window_bounds = array<i64: 100, 64>}, {pipeline_mode = #tpu.pipeline_mode<synchronous>, transform_indices = @transform_8, window_bounds = array<i64: 1, 64>}, {transform_indices = @transform_9, window_bounds = array<i64: 1, 1, 64>}]} {
    %cst = arith.constant 0.000000e+00 : f32
    %0 = vector.broadcast %cst : f32 to vector<256x32xf32>
    %c0 = arith.constant 0 : index
    %c0_0 = arith.constant 0 : index
    %c0_1 = arith.constant 0 : index
    %c0_2 = arith.constant 0 : index
    %1 = vector.load %arg1[%c0, %c0_0, %c0_1, %c0_2] : memref<4x10x10x3xf32, #tpu.memory_space<vmem>>, vector<1x8x8x3xf32>
    %2 = vector.shape_cast %1 : vector<1x8x8x3xf32> to vector<8x8x3xf32>
    %3 = vector.shape_cast %2 : vector<8x8x3xf32> to vector<64x3xf32>
    %c1 = arith.constant 1 : index
    %c0_3 = arith.constant 0 : index
    %c0_4 = arith.constant 0 : index
    %c0_5 = arith.constant 0 : index
    %4 = vector.load %arg1[%c1, %c0_3, %c0_4, %c0_5] : memref<4x10x10x3xf32, #tpu.memory_space<vmem>>, vector<1x8x8x3xf32>
    %5 = vector.shape_cast %4 : vector<1x8x8x3xf32> to vector<8x8x3xf32>
    %6 = vector.shape_cast %5 : vector<8x8x3xf32> to vector<64x3xf32>
    %c2 = arith.constant 2 : index
    %c0_6 = arith.constant 0 : index
    %c0_7 = arith.constant 0 : index
    %c0_8 = arith.constant 0 : index
    %7 = vector.load %arg1[%c2, %c0_6, %c0_7, %c0_8] : memref<4x10x10x3xf32, #tpu.memory_space<vmem>>, vector<1x8x8x3xf32>
    %8 = vector.shape_cast %7 : vector<1x8x8x3xf32> to vector<8x8x3xf32>
    %9 = vector.shape_cast %8 : vector<8x8x3xf32> to vector<64x3xf32>
    %c3 = arith.constant 3 : index
    %c0_9 = arith.constant 0 : index
    %c0_10 = arith.constant 0 : index
    %c0_11 = arith.constant 0 : index
    %10 = vector.load %arg1[%c3, %c0_9, %c0_10, %c0_11] : memref<4x10x10x3xf32, #tpu.memory_space<vmem>>, vector<1x8x8x3xf32>
    %11 = vector.shape_cast %10 : vector<1x8x8x3xf32> to vector<8x8x3xf32>
    %12 = vector.shape_cast %11 : vector<8x8x3xf32> to vector<64x3xf32>
    %13 = tpu.concatenate %3, %6, %9, %12 in 0 : vector<64x3xf32>, vector<64x3xf32>, vector<64x3xf32>, vector<64x3xf32> -> vector<256x3xf32>
    %14 = arith.truncf %13 : vector<256x3xf32> to vector<256x3xbf16>
    %c0_12 = arith.constant 0 : index
    %c0_13 = arith.constant 0 : index
    %c0_14 = arith.constant 0 : index
    %15 = vector.load %arg2[%c0_12, %c0_13, %c0_14] : memref<25x3x32xbf16, #tpu.memory_space<vmem>>, vector<1x3x32xbf16>
    %16 = vector.shape_cast %15 : vector<1x3x32xbf16> to vector<3x32xbf16>
    %cst_15 = arith.constant dense<0.000000e+00> : vector<256x32xf32>
    %17 = tpu.matmul %14, %16, %cst_15 {dimension_numbers = #tpu.dot_dimension_numbers<[1], [0], [0], [1], [0, 0, 1, 1], [], []>} : vector<256x3xbf16>, vector<3x32xbf16>, vector<256x32xf32> -> vector<256x32xf32>
    %18 = arith.addf %0, %17 : vector<256x32xf32>
    %c1_16 = arith.constant 1 : index
    %c0_17 = arith.constant 0 : index
    %c0_18 = arith.constant 0 : index
    %c0_19 = arith.constant 0 : index
    %19 = vector.load %arg1[%c1_16, %c0_17, %c0_18, %c0_19] : memref<4x10x10x3xf32, #tpu.memory_space<vmem>>, vector<1x8x8x3xf32>
    %20 = vector.shape_cast %19 : vector<1x8x8x3xf32> to vector<8x8x3xf32>
    %21 = vector.shape_cast %20 : vector<8x8x3xf32> to vector<64x3xf32>
    %c0_20 = arith.constant 0 : index
    %c0_21 = arith.constant 0 : index
    %c1_22 = arith.constant 1 : index
    %c0_23 = arith.constant 0 : index
    %22 = vector.load %arg1[%c0_20, %c0_21, %c1_22, %c0_23] : memref<4x10x10x3xf32, #tpu.memory_space<vmem>>, vector<1x8x8x3xf32>
    %23 = vector.shape_cast %22 : vector<1x8x8x3xf32> to vector<8x8x3xf32>
    %24 = vector.shape_cast %23 : vector<8x8x3xf32> to vector<64x3xf32>
    %c3_24 = arith.constant 3 : index
    %c0_25 = arith.constant 0 : index
    %c0_26 = arith.constant 0 : index
    %c0_27 = arith.constant 0 : index
    %25 = vector.load %arg1[%c3_24, %c0_25, %c0_26, %c0_27] : memref<4x10x10x3xf32, #tpu.memory_space<vmem>>, vector<1x8x8x3xf32>
    %26 = vector.shape_cast %25 : vector<1x8x8x3xf32> to vector<8x8x3xf32>
    %27 = vector.shape_cast %26 : vector<8x8x3xf32> to vector<64x3xf32>
    %c2_28 = arith.constant 2 : index
    %c0_29 = arith.constant 0 : index
    %c1_30 = arith.constant 1 : index
    %c0_31 = arith.constant 0 : index
    %28 = vector.load %arg1[%c2_28, %c0_29, %c1_30, %c0_31] : memref<4x10x10x3xf32, #tpu.memory_space<vmem>>, vector<1x8x8x3xf32>
    %29 = vector.shape_cast %28 : vector<1x8x8x3xf32> to vector<8x8x3xf32>
    %30 = vector.shape_cast %29 : vector<8x8x3xf32> to vector<64x3xf32>
    %31 = tpu.concatenate %21, %24, %27, %30 in 0 : vector<64x3xf32>, vector<64x3xf32>, vector<64x3xf32>, vector<64x3xf32> -> vector<256x3xf32>
    %32 = arith.truncf %31 : vector<256x3xf32> to vector<256x3xbf16>
    %c1_32 = arith.constant 1 : index
    %c0_33 = arith.constant 0 : index
    %c0_34 = arith.constant 0 : index
    %33 = vector.load %arg2[%c1_32, %c0_33, %c0_34] : memref<25x3x32xbf16, #tpu.memory_space<vmem>>, vector<1x3x32xbf16>
    %34 = vector.shape_cast %33 : vector<1x3x32xbf16> to vector<3x32xbf16>
    %cst_35 = arith.constant dense<0.000000e+00> : vector<256x32xf32>
    %35 = tpu.matmul %32, %34, %cst_35 {dimension_numbers = #tpu.dot_dimension_numbers<[1], [0], [0], [1], [0, 0, 1, 1], [], []>} : vector<256x3xbf16>, vector<3x32xbf16>, vector<256x32xf32> -> vector<256x32xf32>
    %36 = arith.addf %18, %35 : vector<256x32xf32>
    %c0_36 = arith.constant 0 : index
    %c0_37 = arith.constant 0 : index
    %c1_38 = arith.constant 1 : index
    %c0_39 = arith.constant 0 : index
    %37 = vector.load %arg1[%c0_36, %c0_37, %c1_38, %c0_39] : memref<4x10x10x3xf32, #tpu.memory_space<vmem>>, vector<1x8x8x3xf32>
    %38 = vector.shape_cast %37 : vector<1x8x8x3xf32> to vector<8x8x3xf32>
    %39 = vector.shape_cast %38 : vector<8x8x3xf32> to vector<64x3xf32>
    %c1_40 = arith.constant 1 : index
    %c0_41 = arith.constant 0 : index
    %c1_42 = arith.constant 1 : index
    %c0_43 = arith.constant 0 : index
    %40 = vector.load %arg1[%c1_40, %c0_41, %c1_42, %c0_43] : memref<4x10x10x3xf32, #tpu.memory_space<vmem>>, vector<1x8x8x3xf32>
    %41 = vector.shape_cast %40 : vector<1x8x8x3xf32> to vector<8x8x3xf32>
    %42 = vector.shape_cast %41 : vector<8x8x3xf32> to vector<64x3xf32>
    %c2_44 = arith.constant 2 : index
    %c0_45 = arith.constant 0 : index
    %c1_46 = arith.constant 1 : index
    %c0_47 = arith.constant 0 : index
    %43 = vector.load %arg1[%c2_44, %c0_45, %c1_46, %c0_47] : memref<4x10x10x3xf32, #tpu.memory_space<vmem>>, vector<1x8x8x3xf32>
    %44 = vector.shape_cast %43 : vector<1x8x8x3xf32> to vector<8x8x3xf32>
    %45 = vector.shape_cast %44 : vector<8x8x3xf32> to vector<64x3xf32>
    %c3_48 = arith.constant 3 : index
    %c0_49 = arith.constant 0 : index
    %c1_50 = arith.constant 1 : index
    %c0_51 = arith.constant 0 : index
    %46 = vector.load %arg1[%c3_48, %c0_49, %c1_50, %c0_51] : memref<4x10x10x3xf32, #tpu.memory_space<vmem>>, vector<1x8x8x3xf32>
    %47 = vector.shape_cast %46 : vector<1x8x8x3xf32> to vector<8x8x3xf32>
    %48 = vector.shape_cast %47 : vector<8x8x3xf32> to vector<64x3xf32>
    %49 = tpu.concatenate %39, %42, %45, %48 in 0 : vector<64x3xf32>, vector<64x3xf32>, vector<64x3xf32>, vector<64x3xf32> -> vector<256x3xf32>
    %50 = arith.truncf %49 : vector<256x3xf32> to vector<256x3xbf16>
    %c2_52 = arith.constant 2 : index
    %c0_53 = arith.constant 0 : index
    %c0_54 = arith.constant 0 : index
    %51 = vector.load %arg2[%c2_52, %c0_53, %c0_54] : memref<25x3x32xbf16, #tpu.memory_space<vmem>>, vector<1x3x32xbf16>
    %52 = vector.shape_cast %51 : vector<1x3x32xbf16> to vector<3x32xbf16>
    %cst_55 = arith.constant dense<0.000000e+00> : vector<256x32xf32>
    %53 = tpu.matmul %50, %52, %cst_55 {dimension_numbers = #tpu.dot_dimension_numbers<[1], [0], [0], [1], [0, 0, 1, 1], [], []>} : vector<256x3xbf16>, vector<3x32xbf16>, vector<256x32xf32> -> vector<256x32xf32>
    %54 = arith.addf %36, %53 : vector<256x32xf32>
    %c1_56 = arith.constant 1 : index
    %c0_57 = arith.constant 0 : index
    %c1_58 = arith.constant 1 : index
    %c0_59 = arith.constant 0 : index
    %55 = vector.load %arg1[%c1_56, %c0_57, %c1_58, %c0_59] : memref<4x10x10x3xf32, #tpu.memory_space<vmem>>, vector<1x8x8x3xf32>
    %56 = vector.shape_cast %55 : vector<1x8x8x3xf32> to vector<8x8x3xf32>
    %57 = vector.shape_cast %56 : vector<8x8x3xf32> to vector<64x3xf32>
    %c0_60 = arith.constant 0 : index
    %c0_61 = arith.constant 0 : index
    %c2_62 = arith.constant 2 : index
    %c0_63 = arith.constant 0 : index
    %58 = vector.load %arg1[%c0_60, %c0_61, %c2_62, %c0_63] : memref<4x10x10x3xf32, #tpu.memory_space<vmem>>, vector<1x8x8x3xf32>
    %59 = vector.shape_cast %58 : vector<1x8x8x3xf32> to vector<8x8x3xf32>
    %60 = vector.shape_cast %59 : vector<8x8x3xf32> to vector<64x3xf32>
    %c3_64 = arith.constant 3 : index
    %c0_65 = arith.constant 0 : index
    %c1_66 = arith.constant 1 : index
    %c0_67 = arith.constant 0 : index
    %61 = vector.load %arg1[%c3_64, %c0_65, %c1_66, %c0_67] : memref<4x10x10x3xf32, #tpu.memory_space<vmem>>, vector<1x8x8x3xf32>
    %62 = vector.shape_cast %61 : vector<1x8x8x3xf32> to vector<8x8x3xf32>
    %63 = vector.shape_cast %62 : vector<8x8x3xf32> to vector<64x3xf32>
    %c2_68 = arith.constant 2 : index
    %c0_69 = arith.constant 0 : index
    %c2_70 = arith.constant 2 : index
    %c0_71 = arith.constant 0 : index
    %64 = vector.load %arg1[%c2_68, %c0_69, %c2_70, %c0_71] : memref<4x10x10x3xf32, #tpu.memory_space<vmem>>, vector<1x8x8x3xf32>
    %65 = vector.shape_cast %64 : vector<1x8x8x3xf32> to vector<8x8x3xf32>
    %66 = vector.shape_cast %65 : vector<8x8x3xf32> to vector<64x3xf32>
    %67 = tpu.concatenate %57, %60, %63, %66 in 0 : vector<64x3xf32>, vector<64x3xf32>, vector<64x3xf32>, vector<64x3xf32> -> vector<256x3xf32>
    %68 = arith.truncf %67 : vector<256x3xf32> to vector<256x3xbf16>
    %c3_72 = arith.constant 3 : index
    %c0_73 = arith.constant 0 : index
    %c0_74 = arith.constant 0 : index
    %69 = vector.load %arg2[%c3_72, %c0_73, %c0_74] : memref<25x3x32xbf16, #tpu.memory_space<vmem>>, vector<1x3x32xbf16>
    %70 = vector.shape_cast %69 : vector<1x3x32xbf16> to vector<3x32xbf16>
    %cst_75 = arith.constant dense<0.000000e+00> : vector<256x32xf32>
    %71 = tpu.matmul %68, %70, %cst_75 {dimension_numbers = #tpu.dot_dimension_numbers<[1], [0], [0], [1], [0, 0, 1, 1], [], []>} : vector<256x3xbf16>, vector<3x32xbf16>, vector<256x32xf32> -> vector<256x32xf32>
    %72 = arith.addf %54, %71 : vector<256x32xf32>
    %c0_76 = arith.constant 0 : index
    %c0_77 = arith.constant 0 : index
    %c2_78 = arith.constant 2 : index
    %c0_79 = arith.constant 0 : index
    %73 = vector.load %arg1[%c0_76, %c0_77, %c2_78, %c0_79] : memref<4x10x10x3xf32, #tpu.memory_space<vmem>>, vector<1x8x8x3xf32>
    %74 = vector.shape_cast %73 : vector<1x8x8x3xf32> to vector<8x8x3xf32>
    %75 = vector.shape_cast %74 : vector<8x8x3xf32> to vector<64x3xf32>
    %c1_80 = arith.constant 1 : index
    %c0_81 = arith.constant 0 : index
    %c2_82 = arith.constant 2 : index
    %c0_83 = arith.constant 0 : index
    %76 = vector.load %arg1[%c1_80, %c0_81, %c2_82, %c0_83] : memref<4x10x10x3xf32, #tpu.memory_space<vmem>>, vector<1x8x8x3xf32>
    %77 = vector.shape_cast %76 : vector<1x8x8x3xf32> to vector<8x8x3xf32>
    %78 = vector.shape_cast %77 : vector<8x8x3xf32> to vector<64x3xf32>
    %c2_84 = arith.constant 2 : index
    %c0_85 = arith.constant 0 : index
    %c2_86 = arith.constant 2 : index
    %c0_87 = arith.constant 0 : index
    %79 = vector.load %arg1[%c2_84, %c0_85, %c2_86, %c0_87] : memref<4x10x10x3xf32, #tpu.memory_space<vmem>>, vector<1x8x8x3xf32>
    %80 = vector.shape_cast %79 : vector<1x8x8x3xf32> to vector<8x8x3xf32>
    %81 = vector.shape_cast %80 : vector<8x8x3xf32> to vector<64x3xf32>
    %c3_88 = arith.constant 3 : index
    %c0_89 = arith.constant 0 : index
    %c2_90 = arith.constant 2 : index
    %c0_91 = arith.constant 0 : index
    %82 = vector.load %arg1[%c3_88, %c0_89, %c2_90, %c0_91] : memref<4x10x10x3xf32, #tpu.memory_space<vmem>>, vector<1x8x8x3xf32>
    %83 = vector.shape_cast %82 : vector<1x8x8x3xf32> to vector<8x8x3xf32>
    %84 = vector.shape_cast %83 : vector<8x8x3xf32> to vector<64x3xf32>
    %85 = tpu.concatenate %75, %78, %81, %84 in 0 : vector<64x3xf32>, vector<64x3xf32>, vector<64x3xf32>, vector<64x3xf32> -> vector<256x3xf32>
    %86 = arith.truncf %85 : vector<256x3xf32> to vector<256x3xbf16>
    %c4 = arith.constant 4 : index
    %c0_92 = arith.constant 0 : index
    %c0_93 = arith.constant 0 : index
    %87 = vector.load %arg2[%c4, %c0_92, %c0_93] : memref<25x3x32xbf16, #tpu.memory_space<vmem>>, vector<1x3x32xbf16>
    %88 = vector.shape_cast %87 : vector<1x3x32xbf16> to vector<3x32xbf16>
    %cst_94 = arith.constant dense<0.000000e+00> : vector<256x32xf32>
    %89 = tpu.matmul %86, %88, %cst_94 {dimension_numbers = #tpu.dot_dimension_numbers<[1], [0], [0], [1], [0, 0, 1, 1], [], []>} : vector<256x3xbf16>, vector<3x32xbf16>, vector<256x32xf32> -> vector<256x32xf32>
    %90 = arith.addf %72, %89 : vector<256x32xf32>
    %c2_95 = arith.constant 2 : index
    %c0_96 = arith.constant 0 : index
    %c0_97 = arith.constant 0 : index
    %c0_98 = arith.constant 0 : index
    %91 = vector.load %arg1[%c2_95, %c0_96, %c0_97, %c0_98] : memref<4x10x10x3xf32, #tpu.memory_space<vmem>>, vector<1x8x8x3xf32>
    %92 = vector.shape_cast %91 : vector<1x8x8x3xf32> to vector<8x8x3xf32>
    %93 = vector.shape_cast %92 : vector<8x8x3xf32> to vector<64x3xf32>
    %c3_99 = arith.constant 3 : index
    %c0_100 = arith.constant 0 : index
    %c0_101 = arith.constant 0 : index
    %c0_102 = arith.constant 0 : index
    %94 = vector.load %arg1[%c3_99, %c0_100, %c0_101, %c0_102] : memref<4x10x10x3xf32, #tpu.memory_space<vmem>>, vector<1x8x8x3xf32>
    %95 = vector.shape_cast %94 : vector<1x8x8x3xf32> to vector<8x8x3xf32>
    %96 = vector.shape_cast %95 : vector<8x8x3xf32> to vector<64x3xf32>
    %c0_103 = arith.constant 0 : index
    %c1_104 = arith.constant 1 : index
    %c0_105 = arith.constant 0 : index
    %c0_106 = arith.constant 0 : index
    %97 = vector.load %arg1[%c0_103, %c1_104, %c0_105, %c0_106] : memref<4x10x10x3xf32, #tpu.memory_space<vmem>>, vector<1x8x8x3xf32>
    %98 = vector.shape_cast %97 : vector<1x8x8x3xf32> to vector<8x8x3xf32>
    %99 = vector.shape_cast %98 : vector<8x8x3xf32> to vector<64x3xf32>
    %c1_107 = arith.constant 1 : index
    %c1_108 = arith.constant 1 : index
    %c0_109 = arith.constant 0 : index
    %c0_110 = arith.constant 0 : index
    %100 = vector.load %arg1[%c1_107, %c1_108, %c0_109, %c0_110] : memref<4x10x10x3xf32, #tpu.memory_space<vmem>>, vector<1x8x8x3xf32>
    %101 = vector.shape_cast %100 : vector<1x8x8x3xf32> to vector<8x8x3xf32>
    %102 = vector.shape_cast %101 : vector<8x8x3xf32> to vector<64x3xf32>
    %103 = tpu.concatenate %93, %96, %99, %102 in 0 : vector<64x3xf32>, vector<64x3xf32>, vector<64x3xf32>, vector<64x3xf32> -> vector<256x3xf32>
    %104 = arith.truncf %103 : vector<256x3xf32> to vector<256x3xbf16>
    %c5 = arith.constant 5 : index
    %c0_111 = arith.constant 0 : index
    %c0_112 = arith.constant 0 : index
    %105 = vector.load %arg2[%c5, %c0_111, %c0_112] : memref<25x3x32xbf16, #tpu.memory_space<vmem>>, vector<1x3x32xbf16>
    %106 = vector.shape_cast %105 : vector<1x3x32xbf16> to vector<3x32xbf16>
    %cst_113 = arith.constant dense<0.000000e+00> : vector<256x32xf32>
    %107 = tpu.matmul %104, %106, %cst_113 {dimension_numbers = #tpu.dot_dimension_numbers<[1], [0], [0], [1], [0, 0, 1, 1], [], []>} : vector<256x3xbf16>, vector<3x32xbf16>, vector<256x32xf32> -> vector<256x32xf32>
    %108 = arith.addf %90, %107 : vector<256x32xf32>
    %c3_114 = arith.constant 3 : index
    %c0_115 = arith.constant 0 : index
    %c0_116 = arith.constant 0 : index
    %c0_117 = arith.constant 0 : index
    %109 = vector.load %arg1[%c3_114, %c0_115, %c0_116, %c0_117] : memref<4x10x10x3xf32, #tpu.memory_space<vmem>>, vector<1x8x8x3xf32>
    %110 = vector.shape_cast %109 : vector<1x8x8x3xf32> to vector<8x8x3xf32>
    %111 = vector.shape_cast %110 : vector<8x8x3xf32> to vector<64x3xf32>
    %c2_118 = arith.constant 2 : index
    %c0_119 = arith.constant 0 : index
    %c1_120 = arith.constant 1 : index
    %c0_121 = arith.constant 0 : index
    %112 = vector.load %arg1[%c2_118, %c0_119, %c1_120, %c0_121] : memref<4x10x10x3xf32, #tpu.memory_space<vmem>>, vector<1x8x8x3xf32>
    %113 = vector.shape_cast %112 : vector<1x8x8x3xf32> to vector<8x8x3xf32>
    %114 = vector.shape_cast %113 : vector<8x8x3xf32> to vector<64x3xf32>
    %c1_122 = arith.constant 1 : index
    %c1_123 = arith.constant 1 : index
    %c0_124 = arith.constant 0 : index
    %c0_125 = arith.constant 0 : index
    %115 = vector.load %arg1[%c1_122, %c1_123, %c0_124, %c0_125] : memref<4x10x10x3xf32, #tpu.memory_space<vmem>>, vector<1x8x8x3xf32>
    %116 = vector.shape_cast %115 : vector<1x8x8x3xf32> to vector<8x8x3xf32>
    %117 = vector.shape_cast %116 : vector<8x8x3xf32> to vector<64x3xf32>
    %c0_126 = arith.constant 0 : index
    %c1_127 = arith.constant 1 : index
    %c1_128 = arith.constant 1 : index
    %c0_129 = arith.constant 0 : index
    %118 = vector.load %arg1[%c0_126, %c1_127, %c1_128, %c0_129] : memref<4x10x10x3xf32, #tpu.memory_space<vmem>>, vector<1x8x8x3xf32>
    %119 = vector.shape_cast %118 : vector<1x8x8x3xf32> to vector<8x8x3xf32>
    %120 = vector.shape_cast %119 : vector<8x8x3xf32> to vector<64x3xf32>
    %121 = tpu.concatenate %111, %114, %117, %120 in 0 : vector<64x3xf32>, vector<64x3xf32>, vector<64x3xf32>, vector<64x3xf32> -> vector<256x3xf32>
    %122 = arith.truncf %121 : vector<256x3xf32> to vector<256x3xbf16>
    %c6 = arith.constant 6 : index
    %c0_130 = arith.constant 0 : index
    %c0_131 = arith.constant 0 : index
    %123 = vector.load %arg2[%c6, %c0_130, %c0_131] : memref<25x3x32xbf16, #tpu.memory_space<vmem>>, vector<1x3x32xbf16>
    %124 = vector.shape_cast %123 : vector<1x3x32xbf16> to vector<3x32xbf16>
    %cst_132 = arith.constant dense<0.000000e+00> : vector<256x32xf32>
    %125 = tpu.matmul %122, %124, %cst_132 {dimension_numbers = #tpu.dot_dimension_numbers<[1], [0], [0], [1], [0, 0, 1, 1], [], []>} : vector<256x3xbf16>, vector<3x32xbf16>, vector<256x32xf32> -> vector<256x32xf32>
    %126 = arith.addf %108, %125 : vector<256x32xf32>
    %c2_133 = arith.constant 2 : index
    %c0_134 = arith.constant 0 : index
    %c1_135 = arith.constant 1 : index
    %c0_136 = arith.constant 0 : index
    %127 = vector.load %arg1[%c2_133, %c0_134, %c1_135, %c0_136] : memref<4x10x10x3xf32, #tpu.memory_space<vmem>>, vector<1x8x8x3xf32>
    %128 = vector.shape_cast %127 : vector<1x8x8x3xf32> to vector<8x8x3xf32>
    %129 = vector.shape_cast %128 : vector<8x8x3xf32> to vector<64x3xf32>
    %c3_137 = arith.constant 3 : index
    %c0_138 = arith.constant 0 : index
    %c1_139 = arith.constant 1 : index
    %c0_140 = arith.constant 0 : index
    %130 = vector.load %arg1[%c3_137, %c0_138, %c1_139, %c0_140] : memref<4x10x10x3xf32, #tpu.memory_space<vmem>>, vector<1x8x8x3xf32>
    %131 = vector.shape_cast %130 : vector<1x8x8x3xf32> to vector<8x8x3xf32>
    %132 = vector.shape_cast %131 : vector<8x8x3xf32> to vector<64x3xf32>
    %c0_141 = arith.constant 0 : index
    %c1_142 = arith.constant 1 : index
    %c1_143 = arith.constant 1 : index
    %c0_144 = arith.constant 0 : index
    %133 = vector.load %arg1[%c0_141, %c1_142, %c1_143, %c0_144] : memref<4x10x10x3xf32, #tpu.memory_space<vmem>>, vector<1x8x8x3xf32>
    %134 = vector.shape_cast %133 : vector<1x8x8x3xf32> to vector<8x8x3xf32>
    %135 = vector.shape_cast %134 : vector<8x8x3xf32> to vector<64x3xf32>
    %c1_145 = arith.constant 1 : index
    %c1_146 = arith.constant 1 : index
    %c1_147 = arith.constant 1 : index
    %c0_148 = arith.constant 0 : index
    %136 = vector.load %arg1[%c1_145, %c1_146, %c1_147, %c0_148] : memref<4x10x10x3xf32, #tpu.memory_space<vmem>>, vector<1x8x8x3xf32>
    %137 = vector.shape_cast %136 : vector<1x8x8x3xf32> to vector<8x8x3xf32>
    %138 = vector.shape_cast %137 : vector<8x8x3xf32> to vector<64x3xf32>
    %139 = tpu.concatenate %129, %132, %135, %138 in 0 : vector<64x3xf32>, vector<64x3xf32>, vector<64x3xf32>, vector<64x3xf32> -> vector<256x3xf32>
    %140 = arith.truncf %139 : vector<256x3xf32> to vector<256x3xbf16>
    %c7 = arith.constant 7 : index
    %c0_149 = arith.constant 0 : index
    %c0_150 = arith.constant 0 : index
    %141 = vector.load %arg2[%c7, %c0_149, %c0_150] : memref<25x3x32xbf16, #tpu.memory_space<vmem>>, vector<1x3x32xbf16>
    %142 = vector.shape_cast %141 : vector<1x3x32xbf16> to vector<3x32xbf16>
    %cst_151 = arith.constant dense<0.000000e+00> : vector<256x32xf32>
    %143 = tpu.matmul %140, %142, %cst_151 {dimension_numbers = #tpu.dot_dimension_numbers<[1], [0], [0], [1], [0, 0, 1, 1], [], []>} : vector<256x3xbf16>, vector<3x32xbf16>, vector<256x32xf32> -> vector<256x32xf32>
    %144 = arith.addf %126, %143 : vector<256x32xf32>
    %c3_152 = arith.constant 3 : index
    %c0_153 = arith.constant 0 : index
    %c1_154 = arith.constant 1 : index
    %c0_155 = arith.constant 0 : index
    %145 = vector.load %arg1[%c3_152, %c0_153, %c1_154, %c0_155] : memref<4x10x10x3xf32, #tpu.memory_space<vmem>>, vector<1x8x8x3xf32>
    %146 = vector.shape_cast %145 : vector<1x8x8x3xf32> to vector<8x8x3xf32>
    %147 = vector.shape_cast %146 : vector<8x8x3xf32> to vector<64x3xf32>
    %c2_156 = arith.constant 2 : index
    %c0_157 = arith.constant 0 : index
    %c2_158 = arith.constant 2 : index
    %c0_159 = arith.constant 0 : index
    %148 = vector.load %arg1[%c2_156, %c0_157, %c2_158, %c0_159] : memref<4x10x10x3xf32, #tpu.memory_space<vmem>>, vector<1x8x8x3xf32>
    %149 = vector.shape_cast %148 : vector<1x8x8x3xf32> to vector<8x8x3xf32>
    %150 = vector.shape_cast %149 : vector<8x8x3xf32> to vector<64x3xf32>
    %c1_160 = arith.constant 1 : index
    %c1_161 = arith.constant 1 : index
    %c1_162 = arith.constant 1 : index
    %c0_163 = arith.constant 0 : index
    %151 = vector.load %arg1[%c1_160, %c1_161, %c1_162, %c0_163] : memref<4x10x10x3xf32, #tpu.memory_space<vmem>>, vector<1x8x8x3xf32>
    %152 = vector.shape_cast %151 : vector<1x8x8x3xf32> to vector<8x8x3xf32>
    %153 = vector.shape_cast %152 : vector<8x8x3xf32> to vector<64x3xf32>
    %c0_164 = arith.constant 0 : index
    %c1_165 = arith.constant 1 : index
    %c2_166 = arith.constant 2 : index
    %c0_167 = arith.constant 0 : index
    %154 = vector.load %arg1[%c0_164, %c1_165, %c2_166, %c0_167] : memref<4x10x10x3xf32, #tpu.memory_space<vmem>>, vector<1x8x8x3xf32>
    %155 = vector.shape_cast %154 : vector<1x8x8x3xf32> to vector<8x8x3xf32>
    %156 = vector.shape_cast %155 : vector<8x8x3xf32> to vector<64x3xf32>
    %157 = tpu.concatenate %147, %150, %153, %156 in 0 : vector<64x3xf32>, vector<64x3xf32>, vector<64x3xf32>, vector<64x3xf32> -> vector<256x3xf32>
    %158 = arith.truncf %157 : vector<256x3xf32> to vector<256x3xbf16>
    %c8 = arith.constant 8 : index
    %c0_168 = arith.constant 0 : index
    %c0_169 = arith.constant 0 : index
    %159 = vector.load %arg2[%c8, %c0_168, %c0_169] : memref<25x3x32xbf16, #tpu.memory_space<vmem>>, vector<1x3x32xbf16>
    %160 = vector.shape_cast %159 : vector<1x3x32xbf16> to vector<3x32xbf16>
    %cst_170 = arith.constant dense<0.000000e+00> : vector<256x32xf32>
    %161 = tpu.matmul %158, %160, %cst_170 {dimension_numbers = #tpu.dot_dimension_numbers<[1], [0], [0], [1], [0, 0, 1, 1], [], []>} : vector<256x3xbf16>, vector<3x32xbf16>, vector<256x32xf32> -> vector<256x32xf32>
    %162 = arith.addf %144, %161 : vector<256x32xf32>
    %c2_171 = arith.constant 2 : index
    %c0_172 = arith.constant 0 : index
    %c2_173 = arith.constant 2 : index
    %c0_174 = arith.constant 0 : index
    %163 = vector.load %arg1[%c2_171, %c0_172, %c2_173, %c0_174] : memref<4x10x10x3xf32, #tpu.memory_space<vmem>>, vector<1x8x8x3xf32>
    %164 = vector.shape_cast %163 : vector<1x8x8x3xf32> to vector<8x8x3xf32>
    %165 = vector.shape_cast %164 : vector<8x8x3xf32> to vector<64x3xf32>
    %c3_175 = arith.constant 3 : index
    %c0_176 = arith.constant 0 : index
    %c2_177 = arith.constant 2 : index
    %c0_178 = arith.constant 0 : index
    %166 = vector.load %arg1[%c3_175, %c0_176, %c2_177, %c0_178] : memref<4x10x10x3xf32, #tpu.memory_space<vmem>>, vector<1x8x8x3xf32>
    %167 = vector.shape_cast %166 : vector<1x8x8x3xf32> to vector<8x8x3xf32>
    %168 = vector.shape_cast %167 : vector<8x8x3xf32> to vector<64x3xf32>
    %c0_179 = arith.constant 0 : index
    %c1_180 = arith.constant 1 : index
    %c2_181 = arith.constant 2 : index
    %c0_182 = arith.constant 0 : index
    %169 = vector.load %arg1[%c0_179, %c1_180, %c2_181, %c0_182] : memref<4x10x10x3xf32, #tpu.memory_space<vmem>>, vector<1x8x8x3xf32>
    %170 = vector.shape_cast %169 : vector<1x8x8x3xf32> to vector<8x8x3xf32>
    %171 = vector.shape_cast %170 : vector<8x8x3xf32> to vector<64x3xf32>
    %c1_183 = arith.constant 1 : index
    %c1_184 = arith.constant 1 : index
    %c2_185 = arith.constant 2 : index
    %c0_186 = arith.constant 0 : index
    %172 = vector.load %arg1[%c1_183, %c1_184, %c2_185, %c0_186] : memref<4x10x10x3xf32, #tpu.memory_space<vmem>>, vector<1x8x8x3xf32>
    %173 = vector.shape_cast %172 : vector<1x8x8x3xf32> to vector<8x8x3xf32>
    %174 = vector.shape_cast %173 : vector<8x8x3xf32> to vector<64x3xf32>
    %175 = tpu.concatenate %165, %168, %171, %174 in 0 : vector<64x3xf32>, vector<64x3xf32>, vector<64x3xf32>, vector<64x3xf32> -> vector<256x3xf32>
    %176 = arith.truncf %175 : vector<256x3xf32> to vector<256x3xbf16>
    %c9 = arith.constant 9 : index
    %c0_187 = arith.constant 0 : index
    %c0_188 = arith.constant 0 : index
    %177 = vector.load %arg2[%c9, %c0_187, %c0_188] : memref<25x3x32xbf16, #tpu.memory_space<vmem>>, vector<1x3x32xbf16>
    %178 = vector.shape_cast %177 : vector<1x3x32xbf16> to vector<3x32xbf16>
    %cst_189 = arith.constant dense<0.000000e+00> : vector<256x32xf32>
    %179 = tpu.matmul %176, %178, %cst_189 {dimension_numbers = #tpu.dot_dimension_numbers<[1], [0], [0], [1], [0, 0, 1, 1], [], []>} : vector<256x3xbf16>, vector<3x32xbf16>, vector<256x32xf32> -> vector<256x32xf32>
    %180 = arith.addf %162, %179 : vector<256x32xf32>
    %c0_190 = arith.constant 0 : index
    %c1_191 = arith.constant 1 : index
    %c0_192 = arith.constant 0 : index
    %c0_193 = arith.constant 0 : index
    %181 = vector.load %arg1[%c0_190, %c1_191, %c0_192, %c0_193] : memref<4x10x10x3xf32, #tpu.memory_space<vmem>>, vector<1x8x8x3xf32>
    %182 = vector.shape_cast %181 : vector<1x8x8x3xf32> to vector<8x8x3xf32>
    %183 = vector.shape_cast %182 : vector<8x8x3xf32> to vector<64x3xf32>
    %c1_194 = arith.constant 1 : index
    %c1_195 = arith.constant 1 : index
    %c0_196 = arith.constant 0 : index
    %c0_197 = arith.constant 0 : index
    %184 = vector.load %arg1[%c1_194, %c1_195, %c0_196, %c0_197] : memref<4x10x10x3xf32, #tpu.memory_space<vmem>>, vector<1x8x8x3xf32>
    %185 = vector.shape_cast %184 : vector<1x8x8x3xf32> to vector<8x8x3xf32>
    %186 = vector.shape_cast %185 : vector<8x8x3xf32> to vector<64x3xf32>
    %c2_198 = arith.constant 2 : index
    %c1_199 = arith.constant 1 : index
    %c0_200 = arith.constant 0 : index
    %c0_201 = arith.constant 0 : index
    %187 = vector.load %arg1[%c2_198, %c1_199, %c0_200, %c0_201] : memref<4x10x10x3xf32, #tpu.memory_space<vmem>>, vector<1x8x8x3xf32>
    %188 = vector.shape_cast %187 : vector<1x8x8x3xf32> to vector<8x8x3xf32>
    %189 = vector.shape_cast %188 : vector<8x8x3xf32> to vector<64x3xf32>
    %c3_202 = arith.constant 3 : index
    %c1_203 = arith.constant 1 : index
    %c0_204 = arith.constant 0 : index
    %c0_205 = arith.constant 0 : index
    %190 = vector.load %arg1[%c3_202, %c1_203, %c0_204, %c0_205] : memref<4x10x10x3xf32, #tpu.memory_space<vmem>>, vector<1x8x8x3xf32>
    %191 = vector.shape_cast %190 : vector<1x8x8x3xf32> to vector<8x8x3xf32>
    %192 = vector.shape_cast %191 : vector<8x8x3xf32> to vector<64x3xf32>
    %193 = tpu.concatenate %183, %186, %189, %192 in 0 : vector<64x3xf32>, vector<64x3xf32>, vector<64x3xf32>, vector<64x3xf32> -> vector<256x3xf32>
    %194 = arith.truncf %193 : vector<256x3xf32> to vector<256x3xbf16>
    %c10 = arith.constant 10 : index
    %c0_206 = arith.constant 0 : index
    %c0_207 = arith.constant 0 : index
    %195 = vector.load %arg2[%c10, %c0_206, %c0_207] : memref<25x3x32xbf16, #tpu.memory_space<vmem>>, vector<1x3x32xbf16>
    %196 = vector.shape_cast %195 : vector<1x3x32xbf16> to vector<3x32xbf16>
    %cst_208 = arith.constant dense<0.000000e+00> : vector<256x32xf32>
    %197 = tpu.matmul %194, %196, %cst_208 {dimension_numbers = #tpu.dot_dimension_numbers<[1], [0], [0], [1], [0, 0, 1, 1], [], []>} : vector<256x3xbf16>, vector<3x32xbf16>, vector<256x32xf32> -> vector<256x32xf32>
    %198 = arith.addf %180, %197 : vector<256x32xf32>
    %c1_209 = arith.constant 1 : index
    %c1_210 = arith.constant 1 : index
    %c0_211 = arith.constant 0 : index
    %c0_212 = arith.constant 0 : index
    %199 = vector.load %arg1[%c1_209, %c1_210, %c0_211, %c0_212] : memref<4x10x10x3xf32, #tpu.memory_space<vmem>>, vector<1x8x8x3xf32>
    %200 = vector.shape_cast %199 : vector<1x8x8x3xf32> to vector<8x8x3xf32>
    %201 = vector.shape_cast %200 : vector<8x8x3xf32> to vector<64x3xf32>
    %c0_213 = arith.constant 0 : index
    %c1_214 = arith.constant 1 : index
    %c1_215 = arith.constant 1 : index
    %c0_216 = arith.constant 0 : index
    %202 = vector.load %arg1[%c0_213, %c1_214, %c1_215, %c0_216] : memref<4x10x10x3xf32, #tpu.memory_space<vmem>>, vector<1x8x8x3xf32>
    %203 = vector.shape_cast %202 : vector<1x8x8x3xf32> to vector<8x8x3xf32>
    %204 = vector.shape_cast %203 : vector<8x8x3xf32> to vector<64x3xf32>
    %c3_217 = arith.constant 3 : index
    %c1_218 = arith.constant 1 : index
    %c0_219 = arith.constant 0 : index
    %c0_220 = arith.constant 0 : index
    %205 = vector.load %arg1[%c3_217, %c1_218, %c0_219, %c0_220] : memref<4x10x10x3xf32, #tpu.memory_space<vmem>>, vector<1x8x8x3xf32>
    %206 = vector.shape_cast %205 : vector<1x8x8x3xf32> to vector<8x8x3xf32>
    %207 = vector.shape_cast %206 : vector<8x8x3xf32> to vector<64x3xf32>
    %c2_221 = arith.constant 2 : index
    %c1_222 = arith.constant 1 : index
    %c1_223 = arith.constant 1 : index
    %c0_224 = arith.constant 0 : index
    %208 = vector.load %arg1[%c2_221, %c1_222, %c1_223, %c0_224] : memref<4x10x10x3xf32, #tpu.memory_space<vmem>>, vector<1x8x8x3xf32>
    %209 = vector.shape_cast %208 : vector<1x8x8x3xf32> to vector<8x8x3xf32>
    %210 = vector.shape_cast %209 : vector<8x8x3xf32> to vector<64x3xf32>
    %211 = tpu.concatenate %201, %204, %207, %210 in 0 : vector<64x3xf32>, vector<64x3xf32>, vector<64x3xf32>, vector<64x3xf32> -> vector<256x3xf32>
    %212 = arith.truncf %211 : vector<256x3xf32> to vector<256x3xbf16>
    %c11 = arith.constant 11 : index
    %c0_225 = arith.constant 0 : index
    %c0_226 = arith.constant 0 : index
    %213 = vector.load %arg2[%c11, %c0_225, %c0_226] : memref<25x3x32xbf16, #tpu.memory_space<vmem>>, vector<1x3x32xbf16>
    %214 = vector.shape_cast %213 : vector<1x3x32xbf16> to vector<3x32xbf16>
    %cst_227 = arith.constant dense<0.000000e+00> : vector<256x32xf32>
    %215 = tpu.matmul %212, %214, %cst_227 {dimension_numbers = #tpu.dot_dimension_numbers<[1], [0], [0], [1], [0, 0, 1, 1], [], []>} : vector<256x3xbf16>, vector<3x32xbf16>, vector<256x32xf32> -> vector<256x32xf32>
    %216 = arith.addf %198, %215 : vector<256x32xf32>
    %c0_228 = arith.constant 0 : index
    %c1_229 = arith.constant 1 : index
    %c1_230 = arith.constant 1 : index
    %c0_231 = arith.constant 0 : index
    %217 = vector.load %arg1[%c0_228, %c1_229, %c1_230, %c0_231] : memref<4x10x10x3xf32, #tpu.memory_space<vmem>>, vector<1x8x8x3xf32>
    %218 = vector.shape_cast %217 : vector<1x8x8x3xf32> to vector<8x8x3xf32>
    %219 = vector.shape_cast %218 : vector<8x8x3xf32> to vector<64x3xf32>
    %c1_232 = arith.constant 1 : index
    %c1_233 = arith.constant 1 : index
    %c1_234 = arith.constant 1 : index
    %c0_235 = arith.constant 0 : index
    %220 = vector.load %arg1[%c1_232, %c1_233, %c1_234, %c0_235] : memref<4x10x10x3xf32, #tpu.memory_space<vmem>>, vector<1x8x8x3xf32>
    %221 = vector.shape_cast %220 : vector<1x8x8x3xf32> to vector<8x8x3xf32>
    %222 = vector.shape_cast %221 : vector<8x8x3xf32> to vector<64x3xf32>
    %c2_236 = arith.constant 2 : index
    %c1_237 = arith.constant 1 : index
    %c1_238 = arith.constant 1 : index
    %c0_239 = arith.constant 0 : index
    %223 = vector.load %arg1[%c2_236, %c1_237, %c1_238, %c0_239] : memref<4x10x10x3xf32, #tpu.memory_space<vmem>>, vector<1x8x8x3xf32>
    %224 = vector.shape_cast %223 : vector<1x8x8x3xf32> to vector<8x8x3xf32>
    %225 = vector.shape_cast %224 : vector<8x8x3xf32> to vector<64x3xf32>
    %c3_240 = arith.constant 3 : index
    %c1_241 = arith.constant 1 : index
    %c1_242 = arith.constant 1 : index
    %c0_243 = arith.constant 0 : index
    %226 = vector.load %arg1[%c3_240, %c1_241, %c1_242, %c0_243] : memref<4x10x10x3xf32, #tpu.memory_space<vmem>>, vector<1x8x8x3xf32>
    %227 = vector.shape_cast %226 : vector<1x8x8x3xf32> to vector<8x8x3xf32>
    %228 = vector.shape_cast %227 : vector<8x8x3xf32> to vector<64x3xf32>
    %229 = tpu.concatenate %219, %222, %225, %228 in 0 : vector<64x3xf32>, vector<64x3xf32>, vector<64x3xf32>, vector<64x3xf32> -> vector<256x3xf32>
    %230 = arith.truncf %229 : vector<256x3xf32> to vector<256x3xbf16>
    %c12 = arith.constant 12 : index
    %c0_244 = arith.constant 0 : index
    %c0_245 = arith.constant 0 : index
    %231 = vector.load %arg2[%c12, %c0_244, %c0_245] : memref<25x3x32xbf16, #tpu.memory_space<vmem>>, vector<1x3x32xbf16>
    %232 = vector.shape_cast %231 : vector<1x3x32xbf16> to vector<3x32xbf16>
    %cst_246 = arith.constant dense<0.000000e+00> : vector<256x32xf32>
    %233 = tpu.matmul %230, %232, %cst_246 {dimension_numbers = #tpu.dot_dimension_numbers<[1], [0], [0], [1], [0, 0, 1, 1], [], []>} : vector<256x3xbf16>, vector<3x32xbf16>, vector<256x32xf32> -> vector<256x32xf32>
    %234 = arith.addf %216, %233 : vector<256x32xf32>
    %c1_247 = arith.constant 1 : index
    %c1_248 = arith.constant 1 : index
    %c1_249 = arith.constant 1 : index
    %c0_250 = arith.constant 0 : index
    %235 = vector.load %arg1[%c1_247, %c1_248, %c1_249, %c0_250] : memref<4x10x10x3xf32, #tpu.memory_space<vmem>>, vector<1x8x8x3xf32>
    %236 = vector.shape_cast %235 : vector<1x8x8x3xf32> to vector<8x8x3xf32>
    %237 = vector.shape_cast %236 : vector<8x8x3xf32> to vector<64x3xf32>
    %c0_251 = arith.constant 0 : index
    %c1_252 = arith.constant 1 : index
    %c2_253 = arith.constant 2 : index
    %c0_254 = arith.constant 0 : index
    %238 = vector.load %arg1[%c0_251, %c1_252, %c2_253, %c0_254] : memref<4x10x10x3xf32, #tpu.memory_space<vmem>>, vector<1x8x8x3xf32>
    %239 = vector.shape_cast %238 : vector<1x8x8x3xf32> to vector<8x8x3xf32>
    %240 = vector.shape_cast %239 : vector<8x8x3xf32> to vector<64x3xf32>
    %c3_255 = arith.constant 3 : index
    %c1_256 = arith.constant 1 : index
    %c1_257 = arith.constant 1 : index
    %c0_258 = arith.constant 0 : index
    %241 = vector.load %arg1[%c3_255, %c1_256, %c1_257, %c0_258] : memref<4x10x10x3xf32, #tpu.memory_space<vmem>>, vector<1x8x8x3xf32>
    %242 = vector.shape_cast %241 : vector<1x8x8x3xf32> to vector<8x8x3xf32>
    %243 = vector.shape_cast %242 : vector<8x8x3xf32> to vector<64x3xf32>
    %c2_259 = arith.constant 2 : index
    %c1_260 = arith.constant 1 : index
    %c2_261 = arith.constant 2 : index
    %c0_262 = arith.constant 0 : index
    %244 = vector.load %arg1[%c2_259, %c1_260, %c2_261, %c0_262] : memref<4x10x10x3xf32, #tpu.memory_space<vmem>>, vector<1x8x8x3xf32>
    %245 = vector.shape_cast %244 : vector<1x8x8x3xf32> to vector<8x8x3xf32>
    %246 = vector.shape_cast %245 : vector<8x8x3xf32> to vector<64x3xf32>
    %247 = tpu.concatenate %237, %240, %243, %246 in 0 : vector<64x3xf32>, vector<64x3xf32>, vector<64x3xf32>, vector<64x3xf32> -> vector<256x3xf32>
    %248 = arith.truncf %247 : vector<256x3xf32> to vector<256x3xbf16>
    %c13 = arith.constant 13 : index
    %c0_263 = arith.constant 0 : index
    %c0_264 = arith.constant 0 : index
    %249 = vector.load %arg2[%c13, %c0_263, %c0_264] : memref<25x3x32xbf16, #tpu.memory_space<vmem>>, vector<1x3x32xbf16>
    %250 = vector.shape_cast %249 : vector<1x3x32xbf16> to vector<3x32xbf16>
    %cst_265 = arith.constant dense<0.000000e+00> : vector<256x32xf32>
    %251 = tpu.matmul %248, %250, %cst_265 {dimension_numbers = #tpu.dot_dimension_numbers<[1], [0], [0], [1], [0, 0, 1, 1], [], []>} : vector<256x3xbf16>, vector<3x32xbf16>, vector<256x32xf32> -> vector<256x32xf32>
    %252 = arith.addf %234, %251 : vector<256x32xf32>
    %c0_266 = arith.constant 0 : index
    %c1_267 = arith.constant 1 : index
    %c2_268 = arith.constant 2 : index
    %c0_269 = arith.constant 0 : index
    %253 = vector.load %arg1[%c0_266, %c1_267, %c2_268, %c0_269] : memref<4x10x10x3xf32, #tpu.memory_space<vmem>>, vector<1x8x8x3xf32>
    %254 = vector.shape_cast %253 : vector<1x8x8x3xf32> to vector<8x8x3xf32>
    %255 = vector.shape_cast %254 : vector<8x8x3xf32> to vector<64x3xf32>
    %c1_270 = arith.constant 1 : index
    %c1_271 = arith.constant 1 : index
    %c2_272 = arith.constant 2 : index
    %c0_273 = arith.constant 0 : index
    %256 = vector.load %arg1[%c1_270, %c1_271, %c2_272, %c0_273] : memref<4x10x10x3xf32, #tpu.memory_space<vmem>>, vector<1x8x8x3xf32>
    %257 = vector.shape_cast %256 : vector<1x8x8x3xf32> to vector<8x8x3xf32>
    %258 = vector.shape_cast %257 : vector<8x8x3xf32> to vector<64x3xf32>
    %c2_274 = arith.constant 2 : index
    %c1_275 = arith.constant 1 : index
    %c2_276 = arith.constant 2 : index
    %c0_277 = arith.constant 0 : index
    %259 = vector.load %arg1[%c2_274, %c1_275, %c2_276, %c0_277] : memref<4x10x10x3xf32, #tpu.memory_space<vmem>>, vector<1x8x8x3xf32>
    %260 = vector.shape_cast %259 : vector<1x8x8x3xf32> to vector<8x8x3xf32>
    %261 = vector.shape_cast %260 : vector<8x8x3xf32> to vector<64x3xf32>
    %c3_278 = arith.constant 3 : index
    %c1_279 = arith.constant 1 : index
    %c2_280 = arith.constant 2 : index
    %c0_281 = arith.constant 0 : index
    %262 = vector.load %arg1[%c3_278, %c1_279, %c2_280, %c0_281] : memref<4x10x10x3xf32, #tpu.memory_space<vmem>>, vector<1x8x8x3xf32>
    %263 = vector.shape_cast %262 : vector<1x8x8x3xf32> to vector<8x8x3xf32>
    %264 = vector.shape_cast %263 : vector<8x8x3xf32> to vector<64x3xf32>
    %265 = tpu.concatenate %255, %258, %261, %264 in 0 : vector<64x3xf32>, vector<64x3xf32>, vector<64x3xf32>, vector<64x3xf32> -> vector<256x3xf32>
    %266 = arith.truncf %265 : vector<256x3xf32> to vector<256x3xbf16>
    %c14 = arith.constant 14 : index
    %c0_282 = arith.constant 0 : index
    %c0_283 = arith.constant 0 : index
    %267 = vector.load %arg2[%c14, %c0_282, %c0_283] : memref<25x3x32xbf16, #tpu.memory_space<vmem>>, vector<1x3x32xbf16>
    %268 = vector.shape_cast %267 : vector<1x3x32xbf16> to vector<3x32xbf16>
    %cst_284 = arith.constant dense<0.000000e+00> : vector<256x32xf32>
    %269 = tpu.matmul %266, %268, %cst_284 {dimension_numbers = #tpu.dot_dimension_numbers<[1], [0], [0], [1], [0, 0, 1, 1], [], []>} : vector<256x3xbf16>, vector<3x32xbf16>, vector<256x32xf32> -> vector<256x32xf32>
    %270 = arith.addf %252, %269 : vector<256x32xf32>
    %c2_285 = arith.constant 2 : index
    %c1_286 = arith.constant 1 : index
    %c0_287 = arith.constant 0 : index
    %c0_288 = arith.constant 0 : index
    %271 = vector.load %arg1[%c2_285, %c1_286, %c0_287, %c0_288] : memref<4x10x10x3xf32, #tpu.memory_space<vmem>>, vector<1x8x8x3xf32>
    %272 = vector.shape_cast %271 : vector<1x8x8x3xf32> to vector<8x8x3xf32>
    %273 = vector.shape_cast %272 : vector<8x8x3xf32> to vector<64x3xf32>
    %c3_289 = arith.constant 3 : index
    %c1_290 = arith.constant 1 : index
    %c0_291 = arith.constant 0 : index
    %c0_292 = arith.constant 0 : index
    %274 = vector.load %arg1[%c3_289, %c1_290, %c0_291, %c0_292] : memref<4x10x10x3xf32, #tpu.memory_space<vmem>>, vector<1x8x8x3xf32>
    %275 = vector.shape_cast %274 : vector<1x8x8x3xf32> to vector<8x8x3xf32>
    %276 = vector.shape_cast %275 : vector<8x8x3xf32> to vector<64x3xf32>
    %c0_293 = arith.constant 0 : index
    %c2_294 = arith.constant 2 : index
    %c0_295 = arith.constant 0 : index
    %c0_296 = arith.constant 0 : index
    %277 = vector.load %arg1[%c0_293, %c2_294, %c0_295, %c0_296] : memref<4x10x10x3xf32, #tpu.memory_space<vmem>>, vector<1x8x8x3xf32>
    %278 = vector.shape_cast %277 : vector<1x8x8x3xf32> to vector<8x8x3xf32>
    %279 = vector.shape_cast %278 : vector<8x8x3xf32> to vector<64x3xf32>
    %c1_297 = arith.constant 1 : index
    %c2_298 = arith.constant 2 : index
    %c0_299 = arith.constant 0 : index
    %c0_300 = arith.constant 0 : index
    %280 = vector.load %arg1[%c1_297, %c2_298, %c0_299, %c0_300] : memref<4x10x10x3xf32, #tpu.memory_space<vmem>>, vector<1x8x8x3xf32>
    %281 = vector.shape_cast %280 : vector<1x8x8x3xf32> to vector<8x8x3xf32>
    %282 = vector.shape_cast %281 : vector<8x8x3xf32> to vector<64x3xf32>
    %283 = tpu.concatenate %273, %276, %279, %282 in 0 : vector<64x3xf32>, vector<64x3xf32>, vector<64x3xf32>, vector<64x3xf32> -> vector<256x3xf32>
    %284 = arith.truncf %283 : vector<256x3xf32> to vector<256x3xbf16>
    %c15 = arith.constant 15 : index
    %c0_301 = arith.constant 0 : index
    %c0_302 = arith.constant 0 : index
    %285 = vector.load %arg2[%c15, %c0_301, %c0_302] : memref<25x3x32xbf16, #tpu.memory_space<vmem>>, vector<1x3x32xbf16>
    %286 = vector.shape_cast %285 : vector<1x3x32xbf16> to vector<3x32xbf16>
    %cst_303 = arith.constant dense<0.000000e+00> : vector<256x32xf32>
    %287 = tpu.matmul %284, %286, %cst_303 {dimension_numbers = #tpu.dot_dimension_numbers<[1], [0], [0], [1], [0, 0, 1, 1], [], []>} : vector<256x3xbf16>, vector<3x32xbf16>, vector<256x32xf32> -> vector<256x32xf32>
    %288 = arith.addf %270, %287 : vector<256x32xf32>
    %c3_304 = arith.constant 3 : index
    %c1_305 = arith.constant 1 : index
    %c0_306 = arith.constant 0 : index
    %c0_307 = arith.constant 0 : index
    %289 = vector.load %arg1[%c3_304, %c1_305, %c0_306, %c0_307] : memref<4x10x10x3xf32, #tpu.memory_space<vmem>>, vector<1x8x8x3xf32>
    %290 = vector.shape_cast %289 : vector<1x8x8x3xf32> to vector<8x8x3xf32>
    %291 = vector.shape_cast %290 : vector<8x8x3xf32> to vector<64x3xf32>
    %c2_308 = arith.constant 2 : index
    %c1_309 = arith.constant 1 : index
    %c1_310 = arith.constant 1 : index
    %c0_311 = arith.constant 0 : index
    %292 = vector.load %arg1[%c2_308, %c1_309, %c1_310, %c0_311] : memref<4x10x10x3xf32, #tpu.memory_space<vmem>>, vector<1x8x8x3xf32>
    %293 = vector.shape_cast %292 : vector<1x8x8x3xf32> to vector<8x8x3xf32>
    %294 = vector.shape_cast %293 : vector<8x8x3xf32> to vector<64x3xf32>
    %c1_312 = arith.constant 1 : index
    %c2_313 = arith.constant 2 : index
    %c0_314 = arith.constant 0 : index
    %c0_315 = arith.constant 0 : index
    %295 = vector.load %arg1[%c1_312, %c2_313, %c0_314, %c0_315] : memref<4x10x10x3xf32, #tpu.memory_space<vmem>>, vector<1x8x8x3xf32>
    %296 = vector.shape_cast %295 : vector<1x8x8x3xf32> to vector<8x8x3xf32>
    %297 = vector.shape_cast %296 : vector<8x8x3xf32> to vector<64x3xf32>
    %c0_316 = arith.constant 0 : index
    %c2_317 = arith.constant 2 : index
    %c1_318 = arith.constant 1 : index
    %c0_319 = arith.constant 0 : index
    %298 = vector.load %arg1[%c0_316, %c2_317, %c1_318, %c0_319] : memref<4x10x10x3xf32, #tpu.memory_space<vmem>>, vector<1x8x8x3xf32>
    %299 = vector.shape_cast %298 : vector<1x8x8x3xf32> to vector<8x8x3xf32>
    %300 = vector.shape_cast %299 : vector<8x8x3xf32> to vector<64x3xf32>
    %301 = tpu.concatenate %291, %294, %297, %300 in 0 : vector<64x3xf32>, vector<64x3xf32>, vector<64x3xf32>, vector<64x3xf32> -> vector<256x3xf32>
    %302 = arith.truncf %301 : vector<256x3xf32> to vector<256x3xbf16>
    %c16 = arith.constant 16 : index
    %c0_320 = arith.constant 0 : index
    %c0_321 = arith.constant 0 : index
    %303 = vector.load %arg2[%c16, %c0_320, %c0_321] : memref<25x3x32xbf16, #tpu.memory_space<vmem>>, vector<1x3x32xbf16>
    %304 = vector.shape_cast %303 : vector<1x3x32xbf16> to vector<3x32xbf16>
    %cst_322 = arith.constant dense<0.000000e+00> : vector<256x32xf32>
    %305 = tpu.matmul %302, %304, %cst_322 {dimension_numbers = #tpu.dot_dimension_numbers<[1], [0], [0], [1], [0, 0, 1, 1], [], []>} : vector<256x3xbf16>, vector<3x32xbf16>, vector<256x32xf32> -> vector<256x32xf32>
    %306 = arith.addf %288, %305 : vector<256x32xf32>
    %c2_323 = arith.constant 2 : index
    %c1_324 = arith.constant 1 : index
    %c1_325 = arith.constant 1 : index
    %c0_326 = arith.constant 0 : index
    %307 = vector.load %arg1[%c2_323, %c1_324, %c1_325, %c0_326] : memref<4x10x10x3xf32, #tpu.memory_space<vmem>>, vector<1x8x8x3xf32>
    %308 = vector.shape_cast %307 : vector<1x8x8x3xf32> to vector<8x8x3xf32>
    %309 = vector.shape_cast %308 : vector<8x8x3xf32> to vector<64x3xf32>
    %c3_327 = arith.constant 3 : index
    %c1_328 = arith.constant 1 : index
    %c1_329 = arith.constant 1 : index
    %c0_330 = arith.constant 0 : index
    %310 = vector.load %arg1[%c3_327, %c1_328, %c1_329, %c0_330] : memref<4x10x10x3xf32, #tpu.memory_space<vmem>>, vector<1x8x8x3xf32>
    %311 = vector.shape_cast %310 : vector<1x8x8x3xf32> to vector<8x8x3xf32>
    %312 = vector.shape_cast %311 : vector<8x8x3xf32> to vector<64x3xf32>
    %c0_331 = arith.constant 0 : index
    %c2_332 = arith.constant 2 : index
    %c1_333 = arith.constant 1 : index
    %c0_334 = arith.constant 0 : index
    %313 = vector.load %arg1[%c0_331, %c2_332, %c1_333, %c0_334] : memref<4x10x10x3xf32, #tpu.memory_space<vmem>>, vector<1x8x8x3xf32>
    %314 = vector.shape_cast %313 : vector<1x8x8x3xf32> to vector<8x8x3xf32>
    %315 = vector.shape_cast %314 : vector<8x8x3xf32> to vector<64x3xf32>
    %c1_335 = arith.constant 1 : index
    %c2_336 = arith.constant 2 : index
    %c1_337 = arith.constant 1 : index
    %c0_338 = arith.constant 0 : index
    %316 = vector.load %arg1[%c1_335, %c2_336, %c1_337, %c0_338] : memref<4x10x10x3xf32, #tpu.memory_space<vmem>>, vector<1x8x8x3xf32>
    %317 = vector.shape_cast %316 : vector<1x8x8x3xf32> to vector<8x8x3xf32>
    %318 = vector.shape_cast %317 : vector<8x8x3xf32> to vector<64x3xf32>
    %319 = tpu.concatenate %309, %312, %315, %318 in 0 : vector<64x3xf32>, vector<64x3xf32>, vector<64x3xf32>, vector<64x3xf32> -> vector<256x3xf32>
    %320 = arith.truncf %319 : vector<256x3xf32> to vector<256x3xbf16>
    %c17 = arith.constant 17 : index
    %c0_339 = arith.constant 0 : index
    %c0_340 = arith.constant 0 : index
    %321 = vector.load %arg2[%c17, %c0_339, %c0_340] : memref<25x3x32xbf16, #tpu.memory_space<vmem>>, vector<1x3x32xbf16>
    %322 = vector.shape_cast %321 : vector<1x3x32xbf16> to vector<3x32xbf16>
    %cst_341 = arith.constant dense<0.000000e+00> : vector<256x32xf32>
    %323 = tpu.matmul %320, %322, %cst_341 {dimension_numbers = #tpu.dot_dimension_numbers<[1], [0], [0], [1], [0, 0, 1, 1], [], []>} : vector<256x3xbf16>, vector<3x32xbf16>, vector<256x32xf32> -> vector<256x32xf32>
    %324 = arith.addf %306, %323 : vector<256x32xf32>
    %c3_342 = arith.constant 3 : index
    %c1_343 = arith.constant 1 : index
    %c1_344 = arith.constant 1 : index
    %c0_345 = arith.constant 0 : index
    %325 = vector.load %arg1[%c3_342, %c1_343, %c1_344, %c0_345] : memref<4x10x10x3xf32, #tpu.memory_space<vmem>>, vector<1x8x8x3xf32>
    %326 = vector.shape_cast %325 : vector<1x8x8x3xf32> to vector<8x8x3xf32>
    %327 = vector.shape_cast %326 : vector<8x8x3xf32> to vector<64x3xf32>
    %c2_346 = arith.constant 2 : index
    %c1_347 = arith.constant 1 : index
    %c2_348 = arith.constant 2 : index
    %c0_349 = arith.constant 0 : index
    %328 = vector.load %arg1[%c2_346, %c1_347, %c2_348, %c0_349] : memref<4x10x10x3xf32, #tpu.memory_space<vmem>>, vector<1x8x8x3xf32>
    %329 = vector.shape_cast %328 : vector<1x8x8x3xf32> to vector<8x8x3xf32>
    %330 = vector.shape_cast %329 : vector<8x8x3xf32> to vector<64x3xf32>
    %c1_350 = arith.constant 1 : index
    %c2_351 = arith.constant 2 : index
    %c1_352 = arith.constant 1 : index
    %c0_353 = arith.constant 0 : index
    %331 = vector.load %arg1[%c1_350, %c2_351, %c1_352, %c0_353] : memref<4x10x10x3xf32, #tpu.memory_space<vmem>>, vector<1x8x8x3xf32>
    %332 = vector.shape_cast %331 : vector<1x8x8x3xf32> to vector<8x8x3xf32>
    %333 = vector.shape_cast %332 : vector<8x8x3xf32> to vector<64x3xf32>
    %c0_354 = arith.constant 0 : index
    %c2_355 = arith.constant 2 : index
    %c2_356 = arith.constant 2 : index
    %c0_357 = arith.constant 0 : index
    %334 = vector.load %arg1[%c0_354, %c2_355, %c2_356, %c0_357] : memref<4x10x10x3xf32, #tpu.memory_space<vmem>>, vector<1x8x8x3xf32>
    %335 = vector.shape_cast %334 : vector<1x8x8x3xf32> to vector<8x8x3xf32>
    %336 = vector.shape_cast %335 : vector<8x8x3xf32> to vector<64x3xf32>
    %337 = tpu.concatenate %327, %330, %333, %336 in 0 : vector<64x3xf32>, vector<64x3xf32>, vector<64x3xf32>, vector<64x3xf32> -> vector<256x3xf32>
    %338 = arith.truncf %337 : vector<256x3xf32> to vector<256x3xbf16>
    %c18 = arith.constant 18 : index
    %c0_358 = arith.constant 0 : index
    %c0_359 = arith.constant 0 : index
    %339 = vector.load %arg2[%c18, %c0_358, %c0_359] : memref<25x3x32xbf16, #tpu.memory_space<vmem>>, vector<1x3x32xbf16>
    %340 = vector.shape_cast %339 : vector<1x3x32xbf16> to vector<3x32xbf16>
    %cst_360 = arith.constant dense<0.000000e+00> : vector<256x32xf32>
    %341 = tpu.matmul %338, %340, %cst_360 {dimension_numbers = #tpu.dot_dimension_numbers<[1], [0], [0], [1], [0, 0, 1, 1], [], []>} : vector<256x3xbf16>, vector<3x32xbf16>, vector<256x32xf32> -> vector<256x32xf32>
    %342 = arith.addf %324, %341 : vector<256x32xf32>
    %c2_361 = arith.constant 2 : index
    %c1_362 = arith.constant 1 : index
    %c2_363 = arith.constant 2 : index
    %c0_364 = arith.constant 0 : index
    %343 = vector.load %arg1[%c2_361, %c1_362, %c2_363, %c0_364] : memref<4x10x10x3xf32, #tpu.memory_space<vmem>>, vector<1x8x8x3xf32>
    %344 = vector.shape_cast %343 : vector<1x8x8x3xf32> to vector<8x8x3xf32>
    %345 = vector.shape_cast %344 : vector<8x8x3xf32> to vector<64x3xf32>
    %c3_365 = arith.constant 3 : index
    %c1_366 = arith.constant 1 : index
    %c2_367 = arith.constant 2 : index
    %c0_368 = arith.constant 0 : index
    %346 = vector.load %arg1[%c3_365, %c1_366, %c2_367, %c0_368] : memref<4x10x10x3xf32, #tpu.memory_space<vmem>>, vector<1x8x8x3xf32>
    %347 = vector.shape_cast %346 : vector<1x8x8x3xf32> to vector<8x8x3xf32>
    %348 = vector.shape_cast %347 : vector<8x8x3xf32> to vector<64x3xf32>
    %c0_369 = arith.constant 0 : index
    %c2_370 = arith.constant 2 : index
    %c2_371 = arith.constant 2 : index
    %c0_372 = arith.constant 0 : index
    %349 = vector.load %arg1[%c0_369, %c2_370, %c2_371, %c0_372] : memref<4x10x10x3xf32, #tpu.memory_space<vmem>>, vector<1x8x8x3xf32>
    %350 = vector.shape_cast %349 : vector<1x8x8x3xf32> to vector<8x8x3xf32>
    %351 = vector.shape_cast %350 : vector<8x8x3xf32> to vector<64x3xf32>
    %c1_373 = arith.constant 1 : index
    %c2_374 = arith.constant 2 : index
    %c2_375 = arith.constant 2 : index
    %c0_376 = arith.constant 0 : index
    %352 = vector.load %arg1[%c1_373, %c2_374, %c2_375, %c0_376] : memref<4x10x10x3xf32, #tpu.memory_space<vmem>>, vector<1x8x8x3xf32>
    %353 = vector.shape_cast %352 : vector<1x8x8x3xf32> to vector<8x8x3xf32>
    %354 = vector.shape_cast %353 : vector<8x8x3xf32> to vector<64x3xf32>
    %355 = tpu.concatenate %345, %348, %351, %354 in 0 : vector<64x3xf32>, vector<64x3xf32>, vector<64x3xf32>, vector<64x3xf32> -> vector<256x3xf32>
    %356 = arith.truncf %355 : vector<256x3xf32> to vector<256x3xbf16>
    %c19 = arith.constant 19 : index
    %c0_377 = arith.constant 0 : index
    %c0_378 = arith.constant 0 : index
    %357 = vector.load %arg2[%c19, %c0_377, %c0_378] : memref<25x3x32xbf16, #tpu.memory_space<vmem>>, vector<1x3x32xbf16>
    %358 = vector.shape_cast %357 : vector<1x3x32xbf16> to vector<3x32xbf16>
    %cst_379 = arith.constant dense<0.000000e+00> : vector<256x32xf32>
    %359 = tpu.matmul %356, %358, %cst_379 {dimension_numbers = #tpu.dot_dimension_numbers<[1], [0], [0], [1], [0, 0, 1, 1], [], []>} : vector<256x3xbf16>, vector<3x32xbf16>, vector<256x32xf32> -> vector<256x32xf32>
    %360 = arith.addf %342, %359 : vector<256x32xf32>
    %c0_380 = arith.constant 0 : index
    %c2_381 = arith.constant 2 : index
    %c0_382 = arith.constant 0 : index
    %c0_383 = arith.constant 0 : index
    %361 = vector.load %arg1[%c0_380, %c2_381, %c0_382, %c0_383] : memref<4x10x10x3xf32, #tpu.memory_space<vmem>>, vector<1x8x8x3xf32>
    %362 = vector.shape_cast %361 : vector<1x8x8x3xf32> to vector<8x8x3xf32>
    %363 = vector.shape_cast %362 : vector<8x8x3xf32> to vector<64x3xf32>
    %c1_384 = arith.constant 1 : index
    %c2_385 = arith.constant 2 : index
    %c0_386 = arith.constant 0 : index
    %c0_387 = arith.constant 0 : index
    %364 = vector.load %arg1[%c1_384, %c2_385, %c0_386, %c0_387] : memref<4x10x10x3xf32, #tpu.memory_space<vmem>>, vector<1x8x8x3xf32>
    %365 = vector.shape_cast %364 : vector<1x8x8x3xf32> to vector<8x8x3xf32>
    %366 = vector.shape_cast %365 : vector<8x8x3xf32> to vector<64x3xf32>
    %c2_388 = arith.constant 2 : index
    %c2_389 = arith.constant 2 : index
    %c0_390 = arith.constant 0 : index
    %c0_391 = arith.constant 0 : index
    %367 = vector.load %arg1[%c2_388, %c2_389, %c0_390, %c0_391] : memref<4x10x10x3xf32, #tpu.memory_space<vmem>>, vector<1x8x8x3xf32>
    %368 = vector.shape_cast %367 : vector<1x8x8x3xf32> to vector<8x8x3xf32>
    %369 = vector.shape_cast %368 : vector<8x8x3xf32> to vector<64x3xf32>
    %c3_392 = arith.constant 3 : index
    %c2_393 = arith.constant 2 : index
    %c0_394 = arith.constant 0 : index
    %c0_395 = arith.constant 0 : index
    %370 = vector.load %arg1[%c3_392, %c2_393, %c0_394, %c0_395] : memref<4x10x10x3xf32, #tpu.memory_space<vmem>>, vector<1x8x8x3xf32>
    %371 = vector.shape_cast %370 : vector<1x8x8x3xf32> to vector<8x8x3xf32>
    %372 = vector.shape_cast %371 : vector<8x8x3xf32> to vector<64x3xf32>
    %373 = tpu.concatenate %363, %366, %369, %372 in 0 : vector<64x3xf32>, vector<64x3xf32>, vector<64x3xf32>, vector<64x3xf32> -> vector<256x3xf32>
    %374 = arith.truncf %373 : vector<256x3xf32> to vector<256x3xbf16>
    %c20 = arith.constant 20 : index
    %c0_396 = arith.constant 0 : index
    %c0_397 = arith.constant 0 : index
    %375 = vector.load %arg2[%c20, %c0_396, %c0_397] : memref<25x3x32xbf16, #tpu.memory_space<vmem>>, vector<1x3x32xbf16>
    %376 = vector.shape_cast %375 : vector<1x3x32xbf16> to vector<3x32xbf16>
    %cst_398 = arith.constant dense<0.000000e+00> : vector<256x32xf32>
    %377 = tpu.matmul %374, %376, %cst_398 {dimension_numbers = #tpu.dot_dimension_numbers<[1], [0], [0], [1], [0, 0, 1, 1], [], []>} : vector<256x3xbf16>, vector<3x32xbf16>, vector<256x32xf32> -> vector<256x32xf32>
    %378 = arith.addf %360, %377 : vector<256x32xf32>
    %c1_399 = arith.constant 1 : index
    %c2_400 = arith.constant 2 : index
    %c0_401 = arith.constant 0 : index
    %c0_402 = arith.constant 0 : index
    %379 = vector.load %arg1[%c1_399, %c2_400, %c0_401, %c0_402] : memref<4x10x10x3xf32, #tpu.memory_space<vmem>>, vector<1x8x8x3xf32>
    %380 = vector.shape_cast %379 : vector<1x8x8x3xf32> to vector<8x8x3xf32>
    %381 = vector.shape_cast %380 : vector<8x8x3xf32> to vector<64x3xf32>
    %c0_403 = arith.constant 0 : index
    %c2_404 = arith.constant 2 : index
    %c1_405 = arith.constant 1 : index
    %c0_406 = arith.constant 0 : index
    %382 = vector.load %arg1[%c0_403, %c2_404, %c1_405, %c0_406] : memref<4x10x10x3xf32, #tpu.memory_space<vmem>>, vector<1x8x8x3xf32>
    %383 = vector.shape_cast %382 : vector<1x8x8x3xf32> to vector<8x8x3xf32>
    %384 = vector.shape_cast %383 : vector<8x8x3xf32> to vector<64x3xf32>
    %c3_407 = arith.constant 3 : index
    %c2_408 = arith.constant 2 : index
    %c0_409 = arith.constant 0 : index
    %c0_410 = arith.constant 0 : index
    %385 = vector.load %arg1[%c3_407, %c2_408, %c0_409, %c0_410] : memref<4x10x10x3xf32, #tpu.memory_space<vmem>>, vector<1x8x8x3xf32>
    %386 = vector.shape_cast %385 : vector<1x8x8x3xf32> to vector<8x8x3xf32>
    %387 = vector.shape_cast %386 : vector<8x8x3xf32> to vector<64x3xf32>
    %c2_411 = arith.constant 2 : index
    %c2_412 = arith.constant 2 : index
    %c1_413 = arith.constant 1 : index
    %c0_414 = arith.constant 0 : index
    %388 = vector.load %arg1[%c2_411, %c2_412, %c1_413, %c0_414] : memref<4x10x10x3xf32, #tpu.memory_space<vmem>>, vector<1x8x8x3xf32>
    %389 = vector.shape_cast %388 : vector<1x8x8x3xf32> to vector<8x8x3xf32>
    %390 = vector.shape_cast %389 : vector<8x8x3xf32> to vector<64x3xf32>
    %391 = tpu.concatenate %381, %384, %387, %390 in 0 : vector<64x3xf32>, vector<64x3xf32>, vector<64x3xf32>, vector<64x3xf32> -> vector<256x3xf32>
    %392 = arith.truncf %391 : vector<256x3xf32> to vector<256x3xbf16>
    %c21 = arith.constant 21 : index
    %c0_415 = arith.constant 0 : index
    %c0_416 = arith.constant 0 : index
    %393 = vector.load %arg2[%c21, %c0_415, %c0_416] : memref<25x3x32xbf16, #tpu.memory_space<vmem>>, vector<1x3x32xbf16>
    %394 = vector.shape_cast %393 : vector<1x3x32xbf16> to vector<3x32xbf16>
    %cst_417 = arith.constant dense<0.000000e+00> : vector<256x32xf32>
    %395 = tpu.matmul %392, %394, %cst_417 {dimension_numbers = #tpu.dot_dimension_numbers<[1], [0], [0], [1], [0, 0, 1, 1], [], []>} : vector<256x3xbf16>, vector<3x32xbf16>, vector<256x32xf32> -> vector<256x32xf32>
    %396 = arith.addf %378, %395 : vector<256x32xf32>
    %c0_418 = arith.constant 0 : index
    %c2_419 = arith.constant 2 : index
    %c1_420 = arith.constant 1 : index
    %c0_421 = arith.constant 0 : index
    %397 = vector.load %arg1[%c0_418, %c2_419, %c1_420, %c0_421] : memref<4x10x10x3xf32, #tpu.memory_space<vmem>>, vector<1x8x8x3xf32>
    %398 = vector.shape_cast %397 : vector<1x8x8x3xf32> to vector<8x8x3xf32>
    %399 = vector.shape_cast %398 : vector<8x8x3xf32> to vector<64x3xf32>
    %c1_422 = arith.constant 1 : index
    %c2_423 = arith.constant 2 : index
    %c1_424 = arith.constant 1 : index
    %c0_425 = arith.constant 0 : index
    %400 = vector.load %arg1[%c1_422, %c2_423, %c1_424, %c0_425] : memref<4x10x10x3xf32, #tpu.memory_space<vmem>>, vector<1x8x8x3xf32>
    %401 = vector.shape_cast %400 : vector<1x8x8x3xf32> to vector<8x8x3xf32>
    %402 = vector.shape_cast %401 : vector<8x8x3xf32> to vector<64x3xf32>
    %c2_426 = arith.constant 2 : index
    %c2_427 = arith.constant 2 : index
    %c1_428 = arith.constant 1 : index
    %c0_429 = arith.constant 0 : index
    %403 = vector.load %arg1[%c2_426, %c2_427, %c1_428, %c0_429] : memref<4x10x10x3xf32, #tpu.memory_space<vmem>>, vector<1x8x8x3xf32>
    %404 = vector.shape_cast %403 : vector<1x8x8x3xf32> to vector<8x8x3xf32>
    %405 = vector.shape_cast %404 : vector<8x8x3xf32> to vector<64x3xf32>
    %c3_430 = arith.constant 3 : index
    %c2_431 = arith.constant 2 : index
    %c1_432 = arith.constant 1 : index
    %c0_433 = arith.constant 0 : index
    %406 = vector.load %arg1[%c3_430, %c2_431, %c1_432, %c0_433] : memref<4x10x10x3xf32, #tpu.memory_space<vmem>>, vector<1x8x8x3xf32>
    %407 = vector.shape_cast %406 : vector<1x8x8x3xf32> to vector<8x8x3xf32>
    %408 = vector.shape_cast %407 : vector<8x8x3xf32> to vector<64x3xf32>
    %409 = tpu.concatenate %399, %402, %405, %408 in 0 : vector<64x3xf32>, vector<64x3xf32>, vector<64x3xf32>, vector<64x3xf32> -> vector<256x3xf32>
    %410 = arith.truncf %409 : vector<256x3xf32> to vector<256x3xbf16>
    %c22 = arith.constant 22 : index
    %c0_434 = arith.constant 0 : index
    %c0_435 = arith.constant 0 : index
    %411 = vector.load %arg2[%c22, %c0_434, %c0_435] : memref<25x3x32xbf16, #tpu.memory_space<vmem>>, vector<1x3x32xbf16>
    %412 = vector.shape_cast %411 : vector<1x3x32xbf16> to vector<3x32xbf16>
    %cst_436 = arith.constant dense<0.000000e+00> : vector<256x32xf32>
    %413 = tpu.matmul %410, %412, %cst_436 {dimension_numbers = #tpu.dot_dimension_numbers<[1], [0], [0], [1], [0, 0, 1, 1], [], []>} : vector<256x3xbf16>, vector<3x32xbf16>, vector<256x32xf32> -> vector<256x32xf32>
    %414 = arith.addf %396, %413 : vector<256x32xf32>
    %c1_437 = arith.constant 1 : index
    %c2_438 = arith.constant 2 : index
    %c1_439 = arith.constant 1 : index
    %c0_440 = arith.constant 0 : index
    %415 = vector.load %arg1[%c1_437, %c2_438, %c1_439, %c0_440] : memref<4x10x10x3xf32, #tpu.memory_space<vmem>>, vector<1x8x8x3xf32>
    %416 = vector.shape_cast %415 : vector<1x8x8x3xf32> to vector<8x8x3xf32>
    %417 = vector.shape_cast %416 : vector<8x8x3xf32> to vector<64x3xf32>
    %c0_441 = arith.constant 0 : index
    %c2_442 = arith.constant 2 : index
    %c2_443 = arith.constant 2 : index
    %c0_444 = arith.constant 0 : index
    %418 = vector.load %arg1[%c0_441, %c2_442, %c2_443, %c0_444] : memref<4x10x10x3xf32, #tpu.memory_space<vmem>>, vector<1x8x8x3xf32>
    %419 = vector.shape_cast %418 : vector<1x8x8x3xf32> to vector<8x8x3xf32>
    %420 = vector.shape_cast %419 : vector<8x8x3xf32> to vector<64x3xf32>
    %c3_445 = arith.constant 3 : index
    %c2_446 = arith.constant 2 : index
    %c1_447 = arith.constant 1 : index
    %c0_448 = arith.constant 0 : index
    %421 = vector.load %arg1[%c3_445, %c2_446, %c1_447, %c0_448] : memref<4x10x10x3xf32, #tpu.memory_space<vmem>>, vector<1x8x8x3xf32>
    %422 = vector.shape_cast %421 : vector<1x8x8x3xf32> to vector<8x8x3xf32>
    %423 = vector.shape_cast %422 : vector<8x8x3xf32> to vector<64x3xf32>
    %c2_449 = arith.constant 2 : index
    %c2_450 = arith.constant 2 : index
    %c2_451 = arith.constant 2 : index
    %c0_452 = arith.constant 0 : index
    %424 = vector.load %arg1[%c2_449, %c2_450, %c2_451, %c0_452] : memref<4x10x10x3xf32, #tpu.memory_space<vmem>>, vector<1x8x8x3xf32>
    %425 = vector.shape_cast %424 : vector<1x8x8x3xf32> to vector<8x8x3xf32>
    %426 = vector.shape_cast %425 : vector<8x8x3xf32> to vector<64x3xf32>
    %427 = tpu.concatenate %417, %420, %423, %426 in 0 : vector<64x3xf32>, vector<64x3xf32>, vector<64x3xf32>, vector<64x3xf32> -> vector<256x3xf32>
    %428 = arith.truncf %427 : vector<256x3xf32> to vector<256x3xbf16>
    %c23 = arith.constant 23 : index
    %c0_453 = arith.constant 0 : index
    %c0_454 = arith.constant 0 : index
    %429 = vector.load %arg2[%c23, %c0_453, %c0_454] : memref<25x3x32xbf16, #tpu.memory_space<vmem>>, vector<1x3x32xbf16>
    %430 = vector.shape_cast %429 : vector<1x3x32xbf16> to vector<3x32xbf16>
    %cst_455 = arith.constant dense<0.000000e+00> : vector<256x32xf32>
    %431 = tpu.matmul %428, %430, %cst_455 {dimension_numbers = #tpu.dot_dimension_numbers<[1], [0], [0], [1], [0, 0, 1, 1], [], []>} : vector<256x3xbf16>, vector<3x32xbf16>, vector<256x32xf32> -> vector<256x32xf32>
    %432 = arith.addf %414, %431 : vector<256x32xf32>
    %c0_456 = arith.constant 0 : index
    %c2_457 = arith.constant 2 : index
    %c2_458 = arith.constant 2 : index
    %c0_459 = arith.constant 0 : index
    %433 = vector.load %arg1[%c0_456, %c2_457, %c2_458, %c0_459] : memref<4x10x10x3xf32, #tpu.memory_space<vmem>>, vector<1x8x8x3xf32>
    %434 = vector.shape_cast %433 : vector<1x8x8x3xf32> to vector<8x8x3xf32>
    %435 = vector.shape_cast %434 : vector<8x8x3xf32> to vector<64x3xf32>
    %c1_460 = arith.constant 1 : index
    %c2_461 = arith.constant 2 : index
    %c2_462 = arith.constant 2 : index
    %c0_463 = arith.constant 0 : index
    %436 = vector.load %arg1[%c1_460, %c2_461, %c2_462, %c0_463] : memref<4x10x10x3xf32, #tpu.memory_space<vmem>>, vector<1x8x8x3xf32>
    %437 = vector.shape_cast %436 : vector<1x8x8x3xf32> to vector<8x8x3xf32>
    %438 = vector.shape_cast %437 : vector<8x8x3xf32> to vector<64x3xf32>
    %c2_464 = arith.constant 2 : index
    %c2_465 = arith.constant 2 : index
    %c2_466 = arith.constant 2 : index
    %c0_467 = arith.constant 0 : index
    %439 = vector.load %arg1[%c2_464, %c2_465, %c2_466, %c0_467] : memref<4x10x10x3xf32, #tpu.memory_space<vmem>>, vector<1x8x8x3xf32>
    %440 = vector.shape_cast %439 : vector<1x8x8x3xf32> to vector<8x8x3xf32>
    %441 = vector.shape_cast %440 : vector<8x8x3xf32> to vector<64x3xf32>
    %c3_468 = arith.constant 3 : index
    %c2_469 = arith.constant 2 : index
    %c2_470 = arith.constant 2 : index
    %c0_471 = arith.constant 0 : index
    %442 = vector.load %arg1[%c3_468, %c2_469, %c2_470, %c0_471] : memref<4x10x10x3xf32, #tpu.memory_space<vmem>>, vector<1x8x8x3xf32>
    %443 = vector.shape_cast %442 : vector<1x8x8x3xf32> to vector<8x8x3xf32>
    %444 = vector.shape_cast %443 : vector<8x8x3xf32> to vector<64x3xf32>
    %445 = tpu.concatenate %435, %438, %441, %444 in 0 : vector<64x3xf32>, vector<64x3xf32>, vector<64x3xf32>, vector<64x3xf32> -> vector<256x3xf32>
    %446 = arith.truncf %445 : vector<256x3xf32> to vector<256x3xbf16>
    %c24 = arith.constant 24 : index
    %c0_472 = arith.constant 0 : index
    %c0_473 = arith.constant 0 : index
    %447 = vector.load %arg2[%c24, %c0_472, %c0_473] : memref<25x3x32xbf16, #tpu.memory_space<vmem>>, vector<1x3x32xbf16>
    %448 = vector.shape_cast %447 : vector<1x3x32xbf16> to vector<3x32xbf16>
    %cst_474 = arith.constant dense<0.000000e+00> : vector<256x32xf32>
    %449 = tpu.matmul %446, %448, %cst_474 {dimension_numbers = #tpu.dot_dimension_numbers<[1], [0], [0], [1], [0, 0, 1, 1], [], []>} : vector<256x3xbf16>, vector<3x32xbf16>, vector<256x32xf32> -> vector<256x32xf32>
    %450 = arith.addf %432, %449 : vector<256x32xf32>
    %c0_475 = arith.constant 0 : index
    %c0_476 = arith.constant 0 : index
    %451 = vector.load %arg3[%c0_475, %c0_476] : memref<1x32xf32, #tpu.memory_space<vmem>>, vector<1x32xf32>
    %452 = vector.broadcast %451 : vector<1x32xf32> to vector<256x32xf32>
    %453 = arith.addf %450, %452 : vector<256x32xf32>
    %cst_477 = arith.constant 0.000000e+00 : f32
    %454 = vector.broadcast %cst_477 : f32 to vector<256x32xf32>
    %455 = arith.maximumf %453, %454 : vector<256x32xf32>
    %456 = vector.extract_strided_slice %455 {offsets = [0, 0], sizes = [64, 32], strides = [1, 1]} : vector<256x32xf32> to vector<64x32xf32>
    %457 = vector.extract_strided_slice %455 {offsets = [64, 0], sizes = [64, 32], strides = [1, 1]} : vector<256x32xf32> to vector<64x32xf32>
    %458 = arith.maximumf %456, %457 : vector<64x32xf32>
    %459 = vector.extract_strided_slice %455 {offsets = [128, 0], sizes = [64, 32], strides = [1, 1]} : vector<256x32xf32> to vector<64x32xf32>
    %460 = vector.extract_strided_slice %455 {offsets = [192, 0], sizes = [64, 32], strides = [1, 1]} : vector<256x32xf32> to vector<64x32xf32>
    %461 = arith.maximumf %459, %460 : vector<64x32xf32>
    %462 = arith.maximumf %458, %461 : vector<64x32xf32>
    %cst_478 = arith.constant 0.000000e+00 : f32
    %463 = vector.broadcast %cst_478 : f32 to vector<12x12x32xf32>
    %c0_479 = arith.constant 0 : index
    %c0_480 = arith.constant 0 : index
    %c0_481 = arith.constant 0 : index
    %464 = vector.load %arg11[%c0_479, %c0_480, %c0_481] : memref<12x12x32xf32, #tpu.memory_space<vmem>>, vector<12x12x32xf32>
    tpu.vector_store %arg11[%c0_479, %c0_480, %c0_481], %463 {strides = array<i32>} : memref<12x12x32xf32, #tpu.memory_space<vmem>>, vector<12x12x32xf32>,
    %465 = vector.shape_cast %462 : vector<64x32xf32> to vector<8x8x32xf32>
    %c2_482 = arith.constant 2 : index
    %c2_483 = arith.constant 2 : index
    %c0_484 = arith.constant 0 : index
    %466 = vector.load %arg11[%c2_482, %c2_483, %c0_484] : memref<12x12x32xf32, #tpu.memory_space<vmem>>, vector<8x8x32xf32>
    tpu.vector_store %arg11[%c2_482, %c2_483, %c0_484], %465 {strides = array<i32>} : memref<12x12x32xf32, #tpu.memory_space<vmem>>, vector<8x8x32xf32>,
    %cst_485 = arith.constant 0.000000e+00 : f32
    %467 = vector.broadcast %cst_485 : f32 to vector<64x64xf32>
    %c0_486 = arith.constant 0 : index
    %c0_487 = arith.constant 0 : index
    %c0_488 = arith.constant 0 : index
    %468 = vector.load %arg11[%c0_486, %c0_487, %c0_488] : memref<12x12x32xf32, #tpu.memory_space<vmem>>, vector<8x8x32xf32>
    %469 = vector.shape_cast %468 : vector<8x8x32xf32> to vector<64x32xf32>
    %470 = arith.truncf %469 : vector<64x32xf32> to vector<64x32xbf16>
    %c0_489 = arith.constant 0 : index
    %c0_490 = arith.constant 0 : index
    %c0_491 = arith.constant 0 : index
    %471 = vector.load %arg4[%c0_489, %c0_490, %c0_491] : memref<25x32x64xbf16, #tpu.memory_space<vmem>>, vector<1x32x64xbf16>
    %472 = vector.shape_cast %471 : vector<1x32x64xbf16> to vector<32x64xbf16>
    %cst_492 = arith.constant dense<0.000000e+00> : vector<64x64xf32>
    %473 = tpu.matmul %470, %472, %cst_492 {dimension_numbers = #tpu.dot_dimension_numbers<[1], [0], [0], [1], [0, 0, 1, 1], [], []>} : vector<64x32xbf16>, vector<32x64xbf16>, vector<64x64xf32> -> vector<64x64xf32>
    %474 = arith.addf %467, %473 : vector<64x64xf32>
    %c0_493 = arith.constant 0 : index
    %c1_494 = arith.constant 1 : index
    %c0_495 = arith.constant 0 : index
    %475 = vector.load %arg11[%c0_493, %c1_494, %c0_495] : memref<12x12x32xf32, #tpu.memory_space<vmem>>, vector<8x8x32xf32>
    %476 = vector.shape_cast %475 : vector<8x8x32xf32> to vector<64x32xf32>
    %477 = arith.truncf %476 : vector<64x32xf32> to vector<64x32xbf16>
    %c1_496 = arith.constant 1 : index
    %c0_497 = arith.constant 0 : index
    %c0_498 = arith.constant 0 : index
    %478 = vector.load %arg4[%c1_496, %c0_497, %c0_498] : memref<25x32x64xbf16, #tpu.memory_space<vmem>>, vector<1x32x64xbf16>
    %479 = vector.shape_cast %478 : vector<1x32x64xbf16> to vector<32x64xbf16>
    %cst_499 = arith.constant dense<0.000000e+00> : vector<64x64xf32>
    %480 = tpu.matmul %477, %479, %cst_499 {dimension_numbers = #tpu.dot_dimension_numbers<[1], [0], [0], [1], [0, 0, 1, 1], [], []>} : vector<64x32xbf16>, vector<32x64xbf16>, vector<64x64xf32> -> vector<64x64xf32>
    %481 = arith.addf %474, %480 : vector<64x64xf32>
    %c0_500 = arith.constant 0 : index
    %c2_501 = arith.constant 2 : index
    %c0_502 = arith.constant 0 : index
    %482 = vector.load %arg11[%c0_500, %c2_501, %c0_502] : memref<12x12x32xf32, #tpu.memory_space<vmem>>, vector<8x8x32xf32>
    %483 = vector.shape_cast %482 : vector<8x8x32xf32> to vector<64x32xf32>
    %484 = arith.truncf %483 : vector<64x32xf32> to vector<64x32xbf16>
    %c2_503 = arith.constant 2 : index
    %c0_504 = arith.constant 0 : index
    %c0_505 = arith.constant 0 : index
    %485 = vector.load %arg4[%c2_503, %c0_504, %c0_505] : memref<25x32x64xbf16, #tpu.memory_space<vmem>>, vector<1x32x64xbf16>
    %486 = vector.shape_cast %485 : vector<1x32x64xbf16> to vector<32x64xbf16>
    %cst_506 = arith.constant dense<0.000000e+00> : vector<64x64xf32>
    %487 = tpu.matmul %484, %486, %cst_506 {dimension_numbers = #tpu.dot_dimension_numbers<[1], [0], [0], [1], [0, 0, 1, 1], [], []>} : vector<64x32xbf16>, vector<32x64xbf16>, vector<64x64xf32> -> vector<64x64xf32>
    %488 = arith.addf %481, %487 : vector<64x64xf32>
    %c0_507 = arith.constant 0 : index
    %c3_508 = arith.constant 3 : index
    %c0_509 = arith.constant 0 : index
    %489 = vector.load %arg11[%c0_507, %c3_508, %c0_509] : memref<12x12x32xf32, #tpu.memory_space<vmem>>, vector<8x8x32xf32>
    %490 = vector.shape_cast %489 : vector<8x8x32xf32> to vector<64x32xf32>
    %491 = arith.truncf %490 : vector<64x32xf32> to vector<64x32xbf16>
    %c3_510 = arith.constant 3 : index
    %c0_511 = arith.constant 0 : index
    %c0_512 = arith.constant 0 : index
    %492 = vector.load %arg4[%c3_510, %c0_511, %c0_512] : memref<25x32x64xbf16, #tpu.memory_space<vmem>>, vector<1x32x64xbf16>
    %493 = vector.shape_cast %492 : vector<1x32x64xbf16> to vector<32x64xbf16>
    %cst_513 = arith.constant dense<0.000000e+00> : vector<64x64xf32>
    %494 = tpu.matmul %491, %493, %cst_513 {dimension_numbers = #tpu.dot_dimension_numbers<[1], [0], [0], [1], [0, 0, 1, 1], [], []>} : vector<64x32xbf16>, vector<32x64xbf16>, vector<64x64xf32> -> vector<64x64xf32>
    %495 = arith.addf %488, %494 : vector<64x64xf32>
    %c0_514 = arith.constant 0 : index
    %c4_515 = arith.constant 4 : index
    %c0_516 = arith.constant 0 : index
    %496 = vector.load %arg11[%c0_514, %c4_515, %c0_516] : memref<12x12x32xf32, #tpu.memory_space<vmem>>, vector<8x8x32xf32>
    %497 = vector.shape_cast %496 : vector<8x8x32xf32> to vector<64x32xf32>
    %498 = arith.truncf %497 : vector<64x32xf32> to vector<64x32xbf16>
    %c4_517 = arith.constant 4 : index
    %c0_518 = arith.constant 0 : index
    %c0_519 = arith.constant 0 : index
    %499 = vector.load %arg4[%c4_517, %c0_518, %c0_519] : memref<25x32x64xbf16, #tpu.memory_space<vmem>>, vector<1x32x64xbf16>
    %500 = vector.shape_cast %499 : vector<1x32x64xbf16> to vector<32x64xbf16>
    %cst_520 = arith.constant dense<0.000000e+00> : vector<64x64xf32>
    %501 = tpu.matmul %498, %500, %cst_520 {dimension_numbers = #tpu.dot_dimension_numbers<[1], [0], [0], [1], [0, 0, 1, 1], [], []>} : vector<64x32xbf16>, vector<32x64xbf16>, vector<64x64xf32> -> vector<64x64xf32>
    %502 = arith.addf %495, %501 : vector<64x64xf32>
    %c1_521 = arith.constant 1 : index
    %c0_522 = arith.constant 0 : index
    %c0_523 = arith.constant 0 : index
    %503 = vector.load %arg11[%c1_521, %c0_522, %c0_523] : memref<12x12x32xf32, #tpu.memory_space<vmem>>, vector<8x8x32xf32>
    %504 = vector.shape_cast %503 : vector<8x8x32xf32> to vector<64x32xf32>
    %505 = arith.truncf %504 : vector<64x32xf32> to vector<64x32xbf16>
    %c5_524 = arith.constant 5 : index
    %c0_525 = arith.constant 0 : index
    %c0_526 = arith.constant 0 : index
    %506 = vector.load %arg4[%c5_524, %c0_525, %c0_526] : memref<25x32x64xbf16, #tpu.memory_space<vmem>>, vector<1x32x64xbf16>
    %507 = vector.shape_cast %506 : vector<1x32x64xbf16> to vector<32x64xbf16>
    %cst_527 = arith.constant dense<0.000000e+00> : vector<64x64xf32>
    %508 = tpu.matmul %505, %507, %cst_527 {dimension_numbers = #tpu.dot_dimension_numbers<[1], [0], [0], [1], [0, 0, 1, 1], [], []>} : vector<64x32xbf16>, vector<32x64xbf16>, vector<64x64xf32> -> vector<64x64xf32>
    %509 = arith.addf %502, %508 : vector<64x64xf32>
    %c1_528 = arith.constant 1 : index
    %c1_529 = arith.constant 1 : index
    %c0_530 = arith.constant 0 : index
    %510 = vector.load %arg11[%c1_528, %c1_529, %c0_530] : memref<12x12x32xf32, #tpu.memory_space<vmem>>, vector<8x8x32xf32>
    %511 = vector.shape_cast %510 : vector<8x8x32xf32> to vector<64x32xf32>
    %512 = arith.truncf %511 : vector<64x32xf32> to vector<64x32xbf16>
    %c6_531 = arith.constant 6 : index
    %c0_532 = arith.constant 0 : index
    %c0_533 = arith.constant 0 : index
    %513 = vector.load %arg4[%c6_531, %c0_532, %c0_533] : memref<25x32x64xbf16, #tpu.memory_space<vmem>>, vector<1x32x64xbf16>
    %514 = vector.shape_cast %513 : vector<1x32x64xbf16> to vector<32x64xbf16>
    %cst_534 = arith.constant dense<0.000000e+00> : vector<64x64xf32>
    %515 = tpu.matmul %512, %514, %cst_534 {dimension_numbers = #tpu.dot_dimension_numbers<[1], [0], [0], [1], [0, 0, 1, 1], [], []>} : vector<64x32xbf16>, vector<32x64xbf16>, vector<64x64xf32> -> vector<64x64xf32>
    %516 = arith.addf %509, %515 : vector<64x64xf32>
    %c1_535 = arith.constant 1 : index
    %c2_536 = arith.constant 2 : index
    %c0_537 = arith.constant 0 : index
    %517 = vector.load %arg11[%c1_535, %c2_536, %c0_537] : memref<12x12x32xf32, #tpu.memory_space<vmem>>, vector<8x8x32xf32>
    %518 = vector.shape_cast %517 : vector<8x8x32xf32> to vector<64x32xf32>
    %519 = arith.truncf %518 : vector<64x32xf32> to vector<64x32xbf16>
    %c7_538 = arith.constant 7 : index
    %c0_539 = arith.constant 0 : index
    %c0_540 = arith.constant 0 : index
    %520 = vector.load %arg4[%c7_538, %c0_539, %c0_540] : memref<25x32x64xbf16, #tpu.memory_space<vmem>>, vector<1x32x64xbf16>
    %521 = vector.shape_cast %520 : vector<1x32x64xbf16> to vector<32x64xbf16>
    %cst_541 = arith.constant dense<0.000000e+00> : vector<64x64xf32>
    %522 = tpu.matmul %519, %521, %cst_541 {dimension_numbers = #tpu.dot_dimension_numbers<[1], [0], [0], [1], [0, 0, 1, 1], [], []>} : vector<64x32xbf16>, vector<32x64xbf16>, vector<64x64xf32> -> vector<64x64xf32>
    %523 = arith.addf %516, %522 : vector<64x64xf32>
    %c1_542 = arith.constant 1 : index
    %c3_543 = arith.constant 3 : index
    %c0_544 = arith.constant 0 : index
    %524 = vector.load %arg11[%c1_542, %c3_543, %c0_544] : memref<12x12x32xf32, #tpu.memory_space<vmem>>, vector<8x8x32xf32>
    %525 = vector.shape_cast %524 : vector<8x8x32xf32> to vector<64x32xf32>
    %526 = arith.truncf %525 : vector<64x32xf32> to vector<64x32xbf16>
    %c8_545 = arith.constant 8 : index
    %c0_546 = arith.constant 0 : index
    %c0_547 = arith.constant 0 : index
    %527 = vector.load %arg4[%c8_545, %c0_546, %c0_547] : memref<25x32x64xbf16, #tpu.memory_space<vmem>>, vector<1x32x64xbf16>
    %528 = vector.shape_cast %527 : vector<1x32x64xbf16> to vector<32x64xbf16>
    %cst_548 = arith.constant dense<0.000000e+00> : vector<64x64xf32>
    %529 = tpu.matmul %526, %528, %cst_548 {dimension_numbers = #tpu.dot_dimension_numbers<[1], [0], [0], [1], [0, 0, 1, 1], [], []>} : vector<64x32xbf16>, vector<32x64xbf16>, vector<64x64xf32> -> vector<64x64xf32>
    %530 = arith.addf %523, %529 : vector<64x64xf32>
    %c1_549 = arith.constant 1 : index
    %c4_550 = arith.constant 4 : index
    %c0_551 = arith.constant 0 : index
    %531 = vector.load %arg11[%c1_549, %c4_550, %c0_551] : memref<12x12x32xf32, #tpu.memory_space<vmem>>, vector<8x8x32xf32>
    %532 = vector.shape_cast %531 : vector<8x8x32xf32> to vector<64x32xf32>
    %533 = arith.truncf %532 : vector<64x32xf32> to vector<64x32xbf16>
    %c9_552 = arith.constant 9 : index
    %c0_553 = arith.constant 0 : index
    %c0_554 = arith.constant 0 : index
    %534 = vector.load %arg4[%c9_552, %c0_553, %c0_554] : memref<25x32x64xbf16, #tpu.memory_space<vmem>>, vector<1x32x64xbf16>
    %535 = vector.shape_cast %534 : vector<1x32x64xbf16> to vector<32x64xbf16>
    %cst_555 = arith.constant dense<0.000000e+00> : vector<64x64xf32>
    %536 = tpu.matmul %533, %535, %cst_555 {dimension_numbers = #tpu.dot_dimension_numbers<[1], [0], [0], [1], [0, 0, 1, 1], [], []>} : vector<64x32xbf16>, vector<32x64xbf16>, vector<64x64xf32> -> vector<64x64xf32>
    %537 = arith.addf %530, %536 : vector<64x64xf32>
    %c2_556 = arith.constant 2 : index
    %c0_557 = arith.constant 0 : index
    %c0_558 = arith.constant 0 : index
    %538 = vector.load %arg11[%c2_556, %c0_557, %c0_558] : memref<12x12x32xf32, #tpu.memory_space<vmem>>, vector<8x8x32xf32>
    %539 = vector.shape_cast %538 : vector<8x8x32xf32> to vector<64x32xf32>
    %540 = arith.truncf %539 : vector<64x32xf32> to vector<64x32xbf16>
    %c10_559 = arith.constant 10 : index
    %c0_560 = arith.constant 0 : index
    %c0_561 = arith.constant 0 : index
    %541 = vector.load %arg4[%c10_559, %c0_560, %c0_561] : memref<25x32x64xbf16, #tpu.memory_space<vmem>>, vector<1x32x64xbf16>
    %542 = vector.shape_cast %541 : vector<1x32x64xbf16> to vector<32x64xbf16>
    %cst_562 = arith.constant dense<0.000000e+00> : vector<64x64xf32>
    %543 = tpu.matmul %540, %542, %cst_562 {dimension_numbers = #tpu.dot_dimension_numbers<[1], [0], [0], [1], [0, 0, 1, 1], [], []>} : vector<64x32xbf16>, vector<32x64xbf16>, vector<64x64xf32> -> vector<64x64xf32>
    %544 = arith.addf %537, %543 : vector<64x64xf32>
    %c2_563 = arith.constant 2 : index
    %c1_564 = arith.constant 1 : index
    %c0_565 = arith.constant 0 : index
    %545 = vector.load %arg11[%c2_563, %c1_564, %c0_565] : memref<12x12x32xf32, #tpu.memory_space<vmem>>, vector<8x8x32xf32>
    %546 = vector.shape_cast %545 : vector<8x8x32xf32> to vector<64x32xf32>
    %547 = arith.truncf %546 : vector<64x32xf32> to vector<64x32xbf16>
    %c11_566 = arith.constant 11 : index
    %c0_567 = arith.constant 0 : index
    %c0_568 = arith.constant 0 : index
    %548 = vector.load %arg4[%c11_566, %c0_567, %c0_568] : memref<25x32x64xbf16, #tpu.memory_space<vmem>>, vector<1x32x64xbf16>
    %549 = vector.shape_cast %548 : vector<1x32x64xbf16> to vector<32x64xbf16>
    %cst_569 = arith.constant dense<0.000000e+00> : vector<64x64xf32>
    %550 = tpu.matmul %547, %549, %cst_569 {dimension_numbers = #tpu.dot_dimension_numbers<[1], [0], [0], [1], [0, 0, 1, 1], [], []>} : vector<64x32xbf16>, vector<32x64xbf16>, vector<64x64xf32> -> vector<64x64xf32>
    %551 = arith.addf %544, %550 : vector<64x64xf32>
    %c2_570 = arith.constant 2 : index
    %c2_571 = arith.constant 2 : index
    %c0_572 = arith.constant 0 : index
    %552 = vector.load %arg11[%c2_570, %c2_571, %c0_572] : memref<12x12x32xf32, #tpu.memory_space<vmem>>, vector<8x8x32xf32>
    %553 = vector.shape_cast %552 : vector<8x8x32xf32> to vector<64x32xf32>
    %554 = arith.truncf %553 : vector<64x32xf32> to vector<64x32xbf16>
    %c12_573 = arith.constant 12 : index
    %c0_574 = arith.constant 0 : index
    %c0_575 = arith.constant 0 : index
    %555 = vector.load %arg4[%c12_573, %c0_574, %c0_575] : memref<25x32x64xbf16, #tpu.memory_space<vmem>>, vector<1x32x64xbf16>
    %556 = vector.shape_cast %555 : vector<1x32x64xbf16> to vector<32x64xbf16>
    %cst_576 = arith.constant dense<0.000000e+00> : vector<64x64xf32>
    %557 = tpu.matmul %554, %556, %cst_576 {dimension_numbers = #tpu.dot_dimension_numbers<[1], [0], [0], [1], [0, 0, 1, 1], [], []>} : vector<64x32xbf16>, vector<32x64xbf16>, vector<64x64xf32> -> vector<64x64xf32>
    %558 = arith.addf %551, %557 : vector<64x64xf32>
    %c2_577 = arith.constant 2 : index
    %c3_578 = arith.constant 3 : index
    %c0_579 = arith.constant 0 : index
    %559 = vector.load %arg11[%c2_577, %c3_578, %c0_579] : memref<12x12x32xf32, #tpu.memory_space<vmem>>, vector<8x8x32xf32>
    %560 = vector.shape_cast %559 : vector<8x8x32xf32> to vector<64x32xf32>
    %561 = arith.truncf %560 : vector<64x32xf32> to vector<64x32xbf16>
    %c13_580 = arith.constant 13 : index
    %c0_581 = arith.constant 0 : index
    %c0_582 = arith.constant 0 : index
    %562 = vector.load %arg4[%c13_580, %c0_581, %c0_582] : memref<25x32x64xbf16, #tpu.memory_space<vmem>>, vector<1x32x64xbf16>
    %563 = vector.shape_cast %562 : vector<1x32x64xbf16> to vector<32x64xbf16>
    %cst_583 = arith.constant dense<0.000000e+00> : vector<64x64xf32>
    %564 = tpu.matmul %561, %563, %cst_583 {dimension_numbers = #tpu.dot_dimension_numbers<[1], [0], [0], [1], [0, 0, 1, 1], [], []>} : vector<64x32xbf16>, vector<32x64xbf16>, vector<64x64xf32> -> vector<64x64xf32>
    %565 = arith.addf %558, %564 : vector<64x64xf32>
    %c2_584 = arith.constant 2 : index
    %c4_585 = arith.constant 4 : index
    %c0_586 = arith.constant 0 : index
    %566 = vector.load %arg11[%c2_584, %c4_585, %c0_586] : memref<12x12x32xf32, #tpu.memory_space<vmem>>, vector<8x8x32xf32>
    %567 = vector.shape_cast %566 : vector<8x8x32xf32> to vector<64x32xf32>
    %568 = arith.truncf %567 : vector<64x32xf32> to vector<64x32xbf16>
    %c14_587 = arith.constant 14 : index
    %c0_588 = arith.constant 0 : index
    %c0_589 = arith.constant 0 : index
    %569 = vector.load %arg4[%c14_587, %c0_588, %c0_589] : memref<25x32x64xbf16, #tpu.memory_space<vmem>>, vector<1x32x64xbf16>
    %570 = vector.shape_cast %569 : vector<1x32x64xbf16> to vector<32x64xbf16>
    %cst_590 = arith.constant dense<0.000000e+00> : vector<64x64xf32>
    %571 = tpu.matmul %568, %570, %cst_590 {dimension_numbers = #tpu.dot_dimension_numbers<[1], [0], [0], [1], [0, 0, 1, 1], [], []>} : vector<64x32xbf16>, vector<32x64xbf16>, vector<64x64xf32> -> vector<64x64xf32>
    %572 = arith.addf %565, %571 : vector<64x64xf32>
    %c3_591 = arith.constant 3 : index
    %c0_592 = arith.constant 0 : index
    %c0_593 = arith.constant 0 : index
    %573 = vector.load %arg11[%c3_591, %c0_592, %c0_593] : memref<12x12x32xf32, #tpu.memory_space<vmem>>, vector<8x8x32xf32>
    %574 = vector.shape_cast %573 : vector<8x8x32xf32> to vector<64x32xf32>
    %575 = arith.truncf %574 : vector<64x32xf32> to vector<64x32xbf16>
    %c15_594 = arith.constant 15 : index
    %c0_595 = arith.constant 0 : index
    %c0_596 = arith.constant 0 : index
    %576 = vector.load %arg4[%c15_594, %c0_595, %c0_596] : memref<25x32x64xbf16, #tpu.memory_space<vmem>>, vector<1x32x64xbf16>
    %577 = vector.shape_cast %576 : vector<1x32x64xbf16> to vector<32x64xbf16>
    %cst_597 = arith.constant dense<0.000000e+00> : vector<64x64xf32>
    %578 = tpu.matmul %575, %577, %cst_597 {dimension_numbers = #tpu.dot_dimension_numbers<[1], [0], [0], [1], [0, 0, 1, 1], [], []>} : vector<64x32xbf16>, vector<32x64xbf16>, vector<64x64xf32> -> vector<64x64xf32>
    %579 = arith.addf %572, %578 : vector<64x64xf32>
    %c3_598 = arith.constant 3 : index
    %c1_599 = arith.constant 1 : index
    %c0_600 = arith.constant 0 : index
    %580 = vector.load %arg11[%c3_598, %c1_599, %c0_600] : memref<12x12x32xf32, #tpu.memory_space<vmem>>, vector<8x8x32xf32>
    %581 = vector.shape_cast %580 : vector<8x8x32xf32> to vector<64x32xf32>
    %582 = arith.truncf %581 : vector<64x32xf32> to vector<64x32xbf16>
    %c16_601 = arith.constant 16 : index
    %c0_602 = arith.constant 0 : index
    %c0_603 = arith.constant 0 : index
    %583 = vector.load %arg4[%c16_601, %c0_602, %c0_603] : memref<25x32x64xbf16, #tpu.memory_space<vmem>>, vector<1x32x64xbf16>
    %584 = vector.shape_cast %583 : vector<1x32x64xbf16> to vector<32x64xbf16>
    %cst_604 = arith.constant dense<0.000000e+00> : vector<64x64xf32>
    %585 = tpu.matmul %582, %584, %cst_604 {dimension_numbers = #tpu.dot_dimension_numbers<[1], [0], [0], [1], [0, 0, 1, 1], [], []>} : vector<64x32xbf16>, vector<32x64xbf16>, vector<64x64xf32> -> vector<64x64xf32>
    %586 = arith.addf %579, %585 : vector<64x64xf32>
    %c3_605 = arith.constant 3 : index
    %c2_606 = arith.constant 2 : index
    %c0_607 = arith.constant 0 : index
    %587 = vector.load %arg11[%c3_605, %c2_606, %c0_607] : memref<12x12x32xf32, #tpu.memory_space<vmem>>, vector<8x8x32xf32>
    %588 = vector.shape_cast %587 : vector<8x8x32xf32> to vector<64x32xf32>
    %589 = arith.truncf %588 : vector<64x32xf32> to vector<64x32xbf16>
    %c17_608 = arith.constant 17 : index
    %c0_609 = arith.constant 0 : index
    %c0_610 = arith.constant 0 : index
    %590 = vector.load %arg4[%c17_608, %c0_609, %c0_610] : memref<25x32x64xbf16, #tpu.memory_space<vmem>>, vector<1x32x64xbf16>
    %591 = vector.shape_cast %590 : vector<1x32x64xbf16> to vector<32x64xbf16>
    %cst_611 = arith.constant dense<0.000000e+00> : vector<64x64xf32>
    %592 = tpu.matmul %589, %591, %cst_611 {dimension_numbers = #tpu.dot_dimension_numbers<[1], [0], [0], [1], [0, 0, 1, 1], [], []>} : vector<64x32xbf16>, vector<32x64xbf16>, vector<64x64xf32> -> vector<64x64xf32>
    %593 = arith.addf %586, %592 : vector<64x64xf32>
    %c3_612 = arith.constant 3 : index
    %c3_613 = arith.constant 3 : index
    %c0_614 = arith.constant 0 : index
    %594 = vector.load %arg11[%c3_612, %c3_613, %c0_614] : memref<12x12x32xf32, #tpu.memory_space<vmem>>, vector<8x8x32xf32>
    %595 = vector.shape_cast %594 : vector<8x8x32xf32> to vector<64x32xf32>
    %596 = arith.truncf %595 : vector<64x32xf32> to vector<64x32xbf16>
    %c18_615 = arith.constant 18 : index
    %c0_616 = arith.constant 0 : index
    %c0_617 = arith.constant 0 : index
    %597 = vector.load %arg4[%c18_615, %c0_616, %c0_617] : memref<25x32x64xbf16, #tpu.memory_space<vmem>>, vector<1x32x64xbf16>
    %598 = vector.shape_cast %597 : vector<1x32x64xbf16> to vector<32x64xbf16>
    %cst_618 = arith.constant dense<0.000000e+00> : vector<64x64xf32>
    %599 = tpu.matmul %596, %598, %cst_618 {dimension_numbers = #tpu.dot_dimension_numbers<[1], [0], [0], [1], [0, 0, 1, 1], [], []>} : vector<64x32xbf16>, vector<32x64xbf16>, vector<64x64xf32> -> vector<64x64xf32>
    %600 = arith.addf %593, %599 : vector<64x64xf32>
    %c3_619 = arith.constant 3 : index
    %c4_620 = arith.constant 4 : index
    %c0_621 = arith.constant 0 : index
    %601 = vector.load %arg11[%c3_619, %c4_620, %c0_621] : memref<12x12x32xf32, #tpu.memory_space<vmem>>, vector<8x8x32xf32>
    %602 = vector.shape_cast %601 : vector<8x8x32xf32> to vector<64x32xf32>
    %603 = arith.truncf %602 : vector<64x32xf32> to vector<64x32xbf16>
    %c19_622 = arith.constant 19 : index
    %c0_623 = arith.constant 0 : index
    %c0_624 = arith.constant 0 : index
    %604 = vector.load %arg4[%c19_622, %c0_623, %c0_624] : memref<25x32x64xbf16, #tpu.memory_space<vmem>>, vector<1x32x64xbf16>
    %605 = vector.shape_cast %604 : vector<1x32x64xbf16> to vector<32x64xbf16>
    %cst_625 = arith.constant dense<0.000000e+00> : vector<64x64xf32>
    %606 = tpu.matmul %603, %605, %cst_625 {dimension_numbers = #tpu.dot_dimension_numbers<[1], [0], [0], [1], [0, 0, 1, 1], [], []>} : vector<64x32xbf16>, vector<32x64xbf16>, vector<64x64xf32> -> vector<64x64xf32>
    %607 = arith.addf %600, %606 : vector<64x64xf32>
    %c4_626 = arith.constant 4 : index
    %c0_627 = arith.constant 0 : index
    %c0_628 = arith.constant 0 : index
    %608 = vector.load %arg11[%c4_626, %c0_627, %c0_628] : memref<12x12x32xf32, #tpu.memory_space<vmem>>, vector<8x8x32xf32>
    %609 = vector.shape_cast %608 : vector<8x8x32xf32> to vector<64x32xf32>
    %610 = arith.truncf %609 : vector<64x32xf32> to vector<64x32xbf16>
    %c20_629 = arith.constant 20 : index
    %c0_630 = arith.constant 0 : index
    %c0_631 = arith.constant 0 : index
    %611 = vector.load %arg4[%c20_629, %c0_630, %c0_631] : memref<25x32x64xbf16, #tpu.memory_space<vmem>>, vector<1x32x64xbf16>
    %612 = vector.shape_cast %611 : vector<1x32x64xbf16> to vector<32x64xbf16>
    %cst_632 = arith.constant dense<0.000000e+00> : vector<64x64xf32>
    %613 = tpu.matmul %610, %612, %cst_632 {dimension_numbers = #tpu.dot_dimension_numbers<[1], [0], [0], [1], [0, 0, 1, 1], [], []>} : vector<64x32xbf16>, vector<32x64xbf16>, vector<64x64xf32> -> vector<64x64xf32>
    %614 = arith.addf %607, %613 : vector<64x64xf32>
    %c4_633 = arith.constant 4 : index
    %c1_634 = arith.constant 1 : index
    %c0_635 = arith.constant 0 : index
    %615 = vector.load %arg11[%c4_633, %c1_634, %c0_635] : memref<12x12x32xf32, #tpu.memory_space<vmem>>, vector<8x8x32xf32>
    %616 = vector.shape_cast %615 : vector<8x8x32xf32> to vector<64x32xf32>
    %617 = arith.truncf %616 : vector<64x32xf32> to vector<64x32xbf16>
    %c21_636 = arith.constant 21 : index
    %c0_637 = arith.constant 0 : index
    %c0_638 = arith.constant 0 : index
    %618 = vector.load %arg4[%c21_636, %c0_637, %c0_638] : memref<25x32x64xbf16, #tpu.memory_space<vmem>>, vector<1x32x64xbf16>
    %619 = vector.shape_cast %618 : vector<1x32x64xbf16> to vector<32x64xbf16>
    %cst_639 = arith.constant dense<0.000000e+00> : vector<64x64xf32>
    %620 = tpu.matmul %617, %619, %cst_639 {dimension_numbers = #tpu.dot_dimension_numbers<[1], [0], [0], [1], [0, 0, 1, 1], [], []>} : vector<64x32xbf16>, vector<32x64xbf16>, vector<64x64xf32> -> vector<64x64xf32>
    %621 = arith.addf %614, %620 : vector<64x64xf32>
    %c4_640 = arith.constant 4 : index
    %c2_641 = arith.constant 2 : index
    %c0_642 = arith.constant 0 : index
    %622 = vector.load %arg11[%c4_640, %c2_641, %c0_642] : memref<12x12x32xf32, #tpu.memory_space<vmem>>, vector<8x8x32xf32>
    %623 = vector.shape_cast %622 : vector<8x8x32xf32> to vector<64x32xf32>
    %624 = arith.truncf %623 : vector<64x32xf32> to vector<64x32xbf16>
    %c22_643 = arith.constant 22 : index
    %c0_644 = arith.constant 0 : index
    %c0_645 = arith.constant 0 : index
    %625 = vector.load %arg4[%c22_643, %c0_644, %c0_645] : memref<25x32x64xbf16, #tpu.memory_space<vmem>>, vector<1x32x64xbf16>
    %626 = vector.shape_cast %625 : vector<1x32x64xbf16> to vector<32x64xbf16>
    %cst_646 = arith.constant dense<0.000000e+00> : vector<64x64xf32>
    %627 = tpu.matmul %624, %626, %cst_646 {dimension_numbers = #tpu.dot_dimension_numbers<[1], [0], [0], [1], [0, 0, 1, 1], [], []>} : vector<64x32xbf16>, vector<32x64xbf16>, vector<64x64xf32> -> vector<64x64xf32>
    %628 = arith.addf %621, %627 : vector<64x64xf32>
    %c4_647 = arith.constant 4 : index
    %c3_648 = arith.constant 3 : index
    %c0_649 = arith.constant 0 : index
    %629 = vector.load %arg11[%c4_647, %c3_648, %c0_649] : memref<12x12x32xf32, #tpu.memory_space<vmem>>, vector<8x8x32xf32>
    %630 = vector.shape_cast %629 : vector<8x8x32xf32> to vector<64x32xf32>
    %631 = arith.truncf %630 : vector<64x32xf32> to vector<64x32xbf16>
    %c23_650 = arith.constant 23 : index
    %c0_651 = arith.constant 0 : index
    %c0_652 = arith.constant 0 : index
    %632 = vector.load %arg4[%c23_650, %c0_651, %c0_652] : memref<25x32x64xbf16, #tpu.memory_space<vmem>>, vector<1x32x64xbf16>
    %633 = vector.shape_cast %632 : vector<1x32x64xbf16> to vector<32x64xbf16>
    %cst_653 = arith.constant dense<0.000000e+00> : vector<64x64xf32>
    %634 = tpu.matmul %631, %633, %cst_653 {dimension_numbers = #tpu.dot_dimension_numbers<[1], [0], [0], [1], [0, 0, 1, 1], [], []>} : vector<64x32xbf16>, vector<32x64xbf16>, vector<64x64xf32> -> vector<64x64xf32>
    %635 = arith.addf %628, %634 : vector<64x64xf32>
    %c4_654 = arith.constant 4 : index
    %c4_655 = arith.constant 4 : index
    %c0_656 = arith.constant 0 : index
    %636 = vector.load %arg11[%c4_654, %c4_655, %c0_656] : memref<12x12x32xf32, #tpu.memory_space<vmem>>, vector<8x8x32xf32>
    %637 = vector.shape_cast %636 : vector<8x8x32xf32> to vector<64x32xf32>
    %638 = arith.truncf %637 : vector<64x32xf32> to vector<64x32xbf16>
    %c24_657 = arith.constant 24 : index
    %c0_658 = arith.constant 0 : index
    %c0_659 = arith.constant 0 : index
    %639 = vector.load %arg4[%c24_657, %c0_658, %c0_659] : memref<25x32x64xbf16, #tpu.memory_space<vmem>>, vector<1x32x64xbf16>
    %640 = vector.shape_cast %639 : vector<1x32x64xbf16> to vector<32x64xbf16>
    %cst_660 = arith.constant dense<0.000000e+00> : vector<64x64xf32>
    %641 = tpu.matmul %638, %640, %cst_660 {dimension_numbers = #tpu.dot_dimension_numbers<[1], [0], [0], [1], [0, 0, 1, 1], [], []>} : vector<64x32xbf16>, vector<32x64xbf16>, vector<64x64xf32> -> vector<64x64xf32>
    %642 = arith.addf %635, %641 : vector<64x64xf32>
    %c0_661 = arith.constant 0 : index
    %c0_662 = arith.constant 0 : index
    %643 = vector.load %arg5[%c0_661, %c0_662] : memref<1x64xf32, #tpu.memory_space<vmem>>, vector<1x64xf32>
    %644 = vector.broadcast %643 : vector<1x64xf32> to vector<64x64xf32>
    %645 = arith.addf %642, %644 : vector<64x64xf32>
    %cst_663 = arith.constant 0.000000e+00 : f32
    %646 = vector.broadcast %cst_663 : f32 to vector<64x64xf32>
    %647 = arith.maximumf %645, %646 : vector<64x64xf32>
    %cst_664 = arith.constant dense<0.000000e+00> : vector<64xf32>
    %648 = vector.multi_reduction <add>, %647, %cst_664 [0] : vector<64x64xf32> to vector<64xf32>
    %649 = vector.shape_cast %648 : vector<64xf32> to vector<1x64xf32>
    %cst_665 = arith.constant 6.400000e+01 : f32
    %650 = vector.broadcast %cst_665 : f32 to vector<1x64xf32>
    %651 = arith.divf %649, %650 : vector<1x64xf32>
    %c0_666 = arith.constant 0 : index
    %c0_667 = arith.constant 0 : index
    %652 = vector.load %arg6[%c0_666, %c0_667] : memref<64x100xf32, #tpu.memory_space<vmem>>, vector<64x100xf32>
    %cst_668 = arith.constant dense<0.000000e+00> : vector<1x100xf32>
    %653 = tpu.matmul %651, %652, %cst_668 {dimension_numbers = #tpu.dot_dimension_numbers<[1], [0], [0], [1], [0, 0, 1, 1], [], []>} : vector<1x64xf32>, vector<64x100xf32>, vector<1x100xf32> -> vector<1x100xf32>
    %c0_669 = arith.constant 0 : index
    %c0_670 = arith.constant 0 : index
    %654 = vector.load %arg7[%c0_669, %c0_670] : memref<1x100xf32, #tpu.memory_space<vmem>>, vector<1x100xf32>
    %655 = arith.addf %653, %654 : vector<1x100xf32>
    %c0_671 = arith.constant 0 : index
    %c0_672 = arith.constant 0 : index
    %656 = vector.load %arg8[%c0_671, %c0_672] : memref<100x64xf32, #tpu.memory_space<vmem>>, vector<100x64xf32>
    %cst_673 = arith.constant dense<0.000000e+00> : vector<1x64xf32>
    %657 = tpu.matmul %655, %656, %cst_673 {dimension_numbers = #tpu.dot_dimension_numbers<[1], [0], [0], [1], [0, 0, 1, 1], [], []>} : vector<1x100xf32>, vector<100x64xf32>, vector<1x64xf32> -> vector<1x64xf32>
    %c0_674 = arith.constant 0 : index
    %c0_675 = arith.constant 0 : index
    %658 = vector.load %arg9[%c0_674, %c0_675] : memref<1x64xf32, #tpu.memory_space<vmem>>, vector<1x64xf32>
    %659 = arith.addf %657, %658 : vector<1x64xf32>
    %660 = vector.shape_cast %659 : vector<1x64xf32> to vector<1x1x64xf32>
    %c0_676 = arith.constant 0 : index
    %c0_677 = arith.constant 0 : index
    %c0_678 = arith.constant 0 : index
    %661 = vector.load %arg10[%c0_676, %c0_677, %c0_678] : memref<1x1x64xf32, #tpu.memory_space<vmem>>, vector<1x1x64xf32>
    tpu.vector_store %arg10[%c0_676, %c0_677, %c0_678], %660 {strides = array<i32>} : memref<1x1x64xf32, #tpu.memory_space<vmem>>, vector<1x1x64xf32>,
    return
  }
  func.func @transform_0(%arg0: i32) -> (i32, i32, i32, i32) {
    %c0_i32 = arith.constant 0 : i32
    %c0_i32_0 = arith.constant 0 : i32
    %c0_i32_1 = arith.constant 0 : i32
    %c0_i32_2 = arith.constant 0 : i32
    return %arg0, %c0_i32, %c0_i32_0, %c0_i32_1 : i32, i32, i32, i32
  }
  func.func @transform_1(%arg0: i32) -> (i32, i32, i32) {
    %c0_i32 = arith.constant 0 : i32
    %c0_i32_0 = arith.constant 0 : i32
    %c0_i32_1 = arith.constant 0 : i32
    %c0_i32_2 = arith.constant 0 : i32
    return %c0_i32, %c0_i32_0, %c0_i32_1 : i32, i32, i32
  }
  func.func @transform_2(%arg0: i32) -> (i32, i32) {
    %c0_i32 = arith.constant 0 : i32
    %c0_i32_0 = arith.constant 0 : i32
    %c0_i32_1 = arith.constant 0 : i32
    return %c0_i32, %c0_i32_0 : i32, i32
  }
  func.func @transform_3(%arg0: i32) -> (i32, i32, i32) {
    %c0_i32 = arith.constant 0 : i32
    %c0_i32_0 = arith.constant 0 : i32
    %c0_i32_1 = arith.constant 0 : i32
    %c0_i32_2 = arith.constant 0 : i32
    return %c0_i32, %c0_i32_0, %c0_i32_1 : i32, i32, i32
  }
  func.func @transform_4(%arg0: i32) -> (i32, i32) {
    %c0_i32 = arith.constant 0 : i32
    %c0_i32_0 = arith.constant 0 : i32
    %c0_i32_1 = arith.constant 0 : i32
    return %c0_i32, %c0_i32_0 : i32, i32
  }
  func.func @transform_5(%arg0: i32) -> (i32, i32) {
    %c0_i32 = arith.constant 0 : i32
    %c0_i32_0 = arith.constant 0 : i32
    %c0_i32_1 = arith.constant 0 : i32
    return %c0_i32, %c0_i32_0 : i32, i32
  }
  func.func @transform_6(%arg0: i32) -> (i32, i32) {
    %c0_i32 = arith.constant 0 : i32
    %c0_i32_0 = arith.constant 0 : i32
    %c0_i32_1 = arith.constant 0 : i32
    return %c0_i32, %c0_i32_0 : i32, i32
  }
  func.func @transform_7(%arg0: i32) -> (i32, i32) {
    %c0_i32 = arith.constant 0 : i32
    %c0_i32_0 = arith.constant 0 : i32
    %c0_i32_1 = arith.constant 0 : i32
    return %c0_i32, %c0_i32_0 : i32, i32
  }
  func.func @transform_8(%arg0: i32) -> (i32, i32) {
    %c0_i32 = arith.constant 0 : i32
    %c0_i32_0 = arith.constant 0 : i32
    %c0_i32_1 = arith.constant 0 : i32
    return %c0_i32, %c0_i32_0 : i32, i32
  }
  func.func @transform_9(%arg0: i32) -> (i32, i32, i32) {
    %c0_i32 = arith.constant 0 : i32
    %c0_i32_0 = arith.constant 0 : i32
    %c0_i32_1 = arith.constant 0 : i32
    return %arg0, %c0_i32, %c0_i32_0 : i32, i32, i32
  }
}

</mosaic_0001>

<llo_original>
// kernel: my_model_forward.1
$region0: #{my_model_forward.1}
  #allocation0 [shape = 'u32[]', space=smem, size = 0x4, offset = 0x4, fixed_abs, tag = 'smem constant byte address 0x4 - core index']
  #allocation1 [shape = 'u32[144,128]{1,0:T(1,128)}', space=vmem, size = 0x12000, scoped, tag = 'internal scratch']
  #allocation2 [shape = 'f32[12,12,32]{2,1,0:T(8,128)}', space=vmem, size = 0x18000, scoped, tag = 'scratch operand']
  %s0 = inlined_call_operand.vmem [shape: f32[8,10,10,3], index: 0, kind: input, shape index: {}]
  %s1 = inlined_call_operand.vmem [shape: bf16[25,3,32], index: 1, kind: input, shape index: {}]
  %s2 = inlined_call_operand.vmem [shape: f32[1,32], index: 2, kind: input, shape index: {}]
  %s3 = inlined_call_operand.vmem [shape: bf16[25,32,64], index: 3, kind: input, shape index: {}]
  %s4 = inlined_call_operand.vmem [shape: f32[1,64], index: 4, kind: input, shape index: {}]
  %s5 = inlined_call_operand.vmem [shape: f32[64,100], index: 5, kind: input, shape index: {}]
  %s6 = inlined_call_operand.vmem [shape: f32[1,100], index: 6, kind: input, shape index: {}]
  %s7 = inlined_call_operand.vmem [shape: f32[100,64], index: 7, kind: input, shape index: {}]
  %s8 = inlined_call_operand.vmem [shape: f32[1,64], index: 8, kind: input, shape index: {}]
  %s9 = inlined_call_operand.hbm [shape: f32[2,1,64], index: 9, kind: output, shape index: {}]
  %s10 = sld [smem:[#allocation0]]
  $region69: #{my_model_forward.1} parent=0
    _
  %s12 = ssub.s32 1, %s10
  %s13 = scalar_select 0, %s12, %s10
  $region1: #{my_model_forward.1} parent=0
    #allocation3 [shape = 'u8[1024]{0}', space=vmem, size = 0x400, scoped, tag = 'output window, operand 0']
    #allocation4 [shape = 's32[2]{0}', space=sflag, size = 0x8, scoped, tag = 'scoped memory for my_model_forward.1']
    %14 = vsyncpa [#allocation4], 0
    %s15 = scalar_lea.sflag [#allocation4], 1
    %16 = vsyncpa %s15, 0
    loop: start=0, step=1, limit=4
    $region2: #{my_model_forward.1} parent=1 // loop_pre_header
      _
    $region3: #{my_model_forward.1} parent=1 // loop_header
      %s18 = sphi 0, %s22
      %p19 = scmp.ge.s32.totalorder %s18, 4
      %s28 = sphi 0, %s30
      %s31 = sphi 0, %s28
      %s32 = sphi 0, %s31
      %s48 = sphi 0, %s32
      %s52 = sphi 0, %s52
      %s54 = sphi 0, %s52
      %s55 = sphi 0, %s54
      %s69 = sphi 0, %s55
      %s73 = sphi 0, %s73
      %s75 = sphi 0, %s73
      %s76 = sphi 0, %s75
      %s90 = sphi 0, %s76
      %s94 = sphi 0, %s94
      %s96 = sphi 0, %s94
      %s97 = sphi 0, %s96
      %s111 = sphi 0, %s97
      %s115 = sphi 0, %s115
      %s117 = sphi 0, %s115
      %s118 = sphi 0, %s117
      %s132 = sphi 0, %s118
      %s136 = sphi 0, %s136
      %s138 = sphi 0, %s136
      %s139 = sphi 0, %s138
      %s153 = sphi 0, %s139
      %s157 = sphi 0, %s157
      %s159 = sphi 0, %s157
      %s160 = sphi 0, %s159
      %s174 = sphi 0, %s160
      %s178 = sphi 0, %s178
      %s180 = sphi 0, %s178
      %s181 = sphi 0, %s180
      %s195 = sphi 0, %s181
      %s199 = sphi 0, %s199
      %s201 = sphi 0, %s199
      %s202 = sphi 0, %s201
      %s216 = sphi 0, %s202
      %s222 = sphi 0, %s224
      %s225 = sphi 0, %s222
      %s226 = sphi 0, %s225
      %s242 = sphi 0, %s226
    $region4: #{my_model_forward.1} parent=1 // loop_header_branch
      %21 = sbr.rel (%p19) target = $region8
    $region5: #{my_model_forward.1} parent=1 // loop_body
      %s23 = ssub.s32 %s18, 1
      %s24 = ssub.s32 %s18, 2
      %s25 = sadd.s32 %s18, 1
      %s26 = ssub.s32 %s18, %s25
      %p27 = scmp.eq.s32.totalorder %s26, 0
      %s29 = sadd.s32 %s28, 1
      %s30 = scalar_select %p27, %s28, %s29
      %p33 = pneg %p27
      %p34 = scmp.eq.s32.totalorder %s18, 1
      %p35 = por %p33, %p34
      %p36 = scmp.ne.s32.totalorder %s28, %s31
      %p37 = scmp.eq.s32.totalorder %s18, 0
      %p38 = por %p36, %p37
      %p39 = scmp.ne.s32.totalorder %s28, %s31
      %p40 = scmp.eq.s32.totalorder %s23, 1
      %p41 = por %p39, %p40
      %p42 = scmp.ne.s32.totalorder %s31, %s32
      %p43 = scmp.eq.s32.totalorder %s23, 0
      %p44 = por %p42, %p43
      %p45 = scmp.ne.s32.totalorder %s31, %s32
      %p46 = scmp.eq.s32.totalorder %s24, 1
      %p47 = por %p45, %p46
      %p49 = scmp.ne.s32.totalorder %s32, %s48
      %p50 = scmp.eq.s32.totalorder %s24, 0
      %p51 = por %p49, %p50
      %s53 = sadd.s32 %s52, 1
      %p56 = scmp.eq.s32.totalorder %s18, 1
      %p57 = scmp.ne.s32.totalorder %s52, %s54
      %p58 = scmp.eq.s32.totalorder %s18, 0
      %p59 = por %p57, %p58
      %p60 = scmp.ne.s32.totalorder %s52, %s54
      %p61 = scmp.eq.s32.totalorder %s23, 1
      %p62 = por %p60, %p61
      %p63 = scmp.ne.s32.totalorder %s54, %s55
      %p64 = scmp.eq.s32.totalorder %s23, 0
      %p65 = por %p63, %p64
      %p66 = scmp.ne.s32.totalorder %s54, %s55
      %p67 = scmp.eq.s32.totalorder %s24, 1
      %p68 = por %p66, %p67
      %p70 = scmp.ne.s32.totalorder %s55, %s69
      %p71 = scmp.eq.s32.totalorder %s24, 0
      %p72 = por %p70, %p71
      %s74 = sadd.s32 %s73, 1
      %p77 = scmp.eq.s32.totalorder %s18, 1
      %p78 = scmp.ne.s32.totalorder %s73, %s75
      %p79 = scmp.eq.s32.totalorder %s18, 0
      %p80 = por %p78, %p79
      %p81 = scmp.ne.s32.totalorder %s73, %s75
      %p82 = scmp.eq.s32.totalorder %s23, 1
      %p83 = por %p81, %p82
      %p84 = scmp.ne.s32.totalorder %s75, %s76
      %p85 = scmp.eq.s32.totalorder %s23, 0
      %p86 = por %p84, %p85
      %p87 = scmp.ne.s32.totalorder %s75, %s76
      %p88 = scmp.eq.s32.totalorder %s24, 1
      %p89 = por %p87, %p88
      %p91 = scmp.ne.s32.totalorder %s76, %s90
      %p92 = scmp.eq.s32.totalorder %s24, 0
      %p93 = por %p91, %p92
      %s95 = sadd.s32 %s94, 1
      %p98 = scmp.eq.s32.totalorder %s18, 1
      %p99 = scmp.ne.s32.totalorder %s94, %s96
      %p100 = scmp.eq.s32.totalorder %s18, 0
      %p101 = por %p99, %p100
      %p102 = scmp.ne.s32.totalorder %s94, %s96
      %p103 = scmp.eq.s32.totalorder %s23, 1
      %p104 = por %p102, %p103
      %p105 = scmp.ne.s32.totalorder %s96, %s97
      %p106 = scmp.eq.s32.totalorder %s23, 0
      %p107 = por %p105, %p106
      %p108 = scmp.ne.s32.totalorder %s96, %s97
      %p109 = scmp.eq.s32.totalorder %s24, 1
      %p110 = por %p108, %p109
      %p112 = scmp.ne.s32.totalorder %s97, %s111
      %p113 = scmp.eq.s32.totalorder %s24, 0
      %p114 = por %p112, %p113
      %s116 = sadd.s32 %s115, 1
      %p119 = scmp.eq.s32.totalorder %s18, 1
      %p120 = scmp.ne.s32.totalorder %s115, %s117
      %p121 = scmp.eq.s32.totalorder %s18, 0
      %p122 = por %p120, %p121
      %p123 = scmp.ne.s32.totalorder %s115, %s117
      %p124 = scmp.eq.s32.totalorder %s23, 1
      %p125 = por %p123, %p124
      %p126 = scmp.ne.s32.totalorder %s117, %s118
      %p127 = scmp.eq.s32.totalorder %s23, 0
      %p128 = por %p126, %p127
      %p129 = scmp.ne.s32.totalorder %s117, %s118
      %p130 = scmp.eq.s32.totalorder %s24, 1
      %p131 = por %p129, %p130
      %p133 = scmp.ne.s32.totalorder %s118, %s132
      %p134 = scmp.eq.s32.totalorder %s24, 0
      %p135 = por %p133, %p134
      %s137 = sadd.s32 %s136, 1
      %p140 = scmp.eq.s32.totalorder %s18, 1
      %p141 = scmp.ne.s32.totalorder %s136, %s138
      %p142 = scmp.eq.s32.totalorder %s18, 0
      %p143 = por %p141, %p142
      %p144 = scmp.ne.s32.totalorder %s136, %s138
      %p145 = scmp.eq.s32.totalorder %s23, 1
      %p146 = por %p144, %p145
      %p147 = scmp.ne.s32.totalorder %s138, %s139
      %p148 = scmp.eq.s32.totalorder %s23, 0
      %p149 = por %p147, %p148
      %p150 = scmp.ne.s32.totalorder %s138, %s139
      %p151 = scmp.eq.s32.totalorder %s24, 1
      %p152 = por %p150, %p151
      %p154 = scmp.ne.s32.totalorder %s139, %s153
      %p155 = scmp.eq.s32.totalorder %s24, 0
      %p156 = por %p154, %p155
      %s158 = sadd.s32 %s157, 1
      %p161 = scmp.eq.s32.totalorder %s18, 1
      %p162 = scmp.ne.s32.totalorder %s157, %s159
      %p163 = scmp.eq.s32.totalorder %s18, 0
      %p164 = por %p162, %p163
      %p165 = scmp.ne.s32.totalorder %s157, %s159
      %p166 = scmp.eq.s32.totalorder %s23, 1
      %p167 = por %p165, %p166
      %p168 = scmp.ne.s32.totalorder %s159, %s160
      %p169 = scmp.eq.s32.totalorder %s23, 0
      %p170 = por %p168, %p169
      %p171 = scmp.ne.s32.totalorder %s159, %s160
      %p172 = scmp.eq.s32.totalorder %s24, 1
      %p173 = por %p171, %p172
      %p175 = scmp.ne.s32.totalorder %s160, %s174
      %p176 = scmp.eq.s32.totalorder %s24, 0
      %p177 = por %p175, %p176
      %s179 = sadd.s32 %s178, 1
      %p182 = scmp.eq.s32.totalorder %s18, 1
      %p183 = scmp.ne.s32.totalorder %s178, %s180
      %p184 = scmp.eq.s32.totalorder %s18, 0
      %p185 = por %p183, %p184
      %p186 = scmp.ne.s32.totalorder %s178, %s180
      %p187 = scmp.eq.s32.totalorder %s23, 1
      %p188 = por %p186, %p187
      %p189 = scmp.ne.s32.totalorder %s180, %s181
      %p190 = scmp.eq.s32.totalorder %s23, 0
      %p191 = por %p189, %p190
      %p192 = scmp.ne.s32.totalorder %s180, %s181
      %p193 = scmp.eq.s32.totalorder %s24, 1
      %p194 = por %p192, %p193
      %p196 = scmp.ne.s32.totalorder %s181, %s195
      %p197 = scmp.eq.s32.totalorder %s24, 0
      %p198 = por %p196, %p197
      %s200 = sadd.s32 %s199, 1
      %p203 = scmp.eq.s32.totalorder %s18, 1
      %p204 = scmp.ne.s32.totalorder %s199, %s201
      %p205 = scmp.eq.s32.totalorder %s18, 0
      %p206 = por %p204, %p205
      %p207 = scmp.ne.s32.totalorder %s199, %s201
      %p208 = scmp.eq.s32.totalorder %s23, 1
      %p209 = por %p207, %p208
      %p210 = scmp.ne.s32.totalorder %s201, %s202
      %p211 = scmp.eq.s32.totalorder %s23, 0
      %p212 = por %p210, %p211
      %p213 = scmp.ne.s32.totalorder %s201, %s202
      %p214 = scmp.eq.s32.totalorder %s24, 1
      %p215 = por %p213, %p214
      %p217 = scmp.ne.s32.totalorder %s202, %s216
      %p218 = scmp.eq.s32.totalorder %s24, 0
      %p219 = por %p217, %p218
      %s220 = ssub.s32 %s18, %s25
      %p221 = scmp.eq.s32.totalorder %s220, 0
      %s223 = sadd.s32 %s222, 1
      %s224 = scalar_select %p221, %s222, %s223
      %p227 = pneg %p221
      %p228 = scmp.eq.s32.totalorder %s18, 1
      %p229 = por %p227, %p228
      %p230 = scmp.ne.s32.totalorder %s222, %s225
      %p231 = scmp.eq.s32.totalorder %s18, 0
      %p232 = por %p230, %p231
      %p233 = scmp.ne.s32.totalorder %s222, %s225
      %p234 = scmp.eq.s32.totalorder %s23, 1
      %p235 = por %p233, %p234
      %p236 = scmp.ne.s32.totalorder %s225, %s226
      %p237 = scmp.eq.s32.totalorder %s23, 0
      %p238 = por %p236, %p237
      %p239 = scmp.ne.s32.totalorder %s225, %s226
      %p240 = scmp.eq.s32.totalorder %s24, 1
      %p241 = por %p239, %p240
      %p243 = scmp.ne.s32.totalorder %s226, %s242
      %p244 = scmp.eq.s32.totalorder %s24, 0
      %p245 = por %p243, %p244
      %p246 = scmp.le.s32.totalorder 1, %s18
      %p247 = scmp.lt.s32.totalorder %s18, 3
      %p248 = pnand %p246, %p247
      %p249 = pneg %p248
      // Predicated region
      $region9: #{my_model_forward.1} parent=5 // pred_check
        _
      $region10: #{my_model_forward.1} parent=5 // pred_check_branch
        %251 = sbr.rel (%p248) target = $region12
      $region11: #{my_model_forward.1} parent=5 // pred_region
        %s252 = ssub.s32 %s18, 1
        // Predicated region
        $region13: #{my_model_forward.1} parent=11 // pred_check
          %p253 = pneg %p65
        $region14: #{my_model_forward.1} parent=11 // pred_check_branch
          %255 = sbr.rel (%p253) target = $region16
        $region15: #{my_model_forward.1} parent=11 // pred_region
          _
        $region16: #{my_model_forward.1} parent=11 // pred_fallthru
          _
        // Predicated region
        $region17: #{my_model_forward.1} parent=11 // pred_check
          %p256 = pneg %p86
        $region18: #{my_model_forward.1} parent=11 // pred_check_branch
          %258 = sbr.rel (%p256) target = $region20
        $region19: #{my_model_forward.1} parent=11 // pred_region
          _
        $region20: #{my_model_forward.1} parent=11 // pred_fallthru
          _
        // Predicated region
        $region21: #{my_model_forward.1} parent=11 // pred_check
          %p259 = pneg %p107
        $region22: #{my_model_forward.1} parent=11 // pred_check_branch
          %261 = sbr.rel (%p259) target = $region24
        $region23: #{my_model_forward.1} parent=11 // pred_region
          _
        $region24: #{my_model_forward.1} parent=11 // pred_fallthru
          _
        // Predicated region
        $region25: #{my_model_forward.1} parent=11 // pred_check
          %p262 = pneg %p128
        $region26: #{my_model_forward.1} parent=11 // pred_check_branch
          %264 = sbr.rel (%p262) target = $region28
        $region27: #{my_model_forward.1} parent=11 // pred_region
          _
        $region28: #{my_model_forward.1} parent=11 // pred_fallthru
          _
        // Predicated region
        $region29: #{my_model_forward.1} parent=11 // pred_check
          %p265 = pneg %p149
        $region30: #{my_model_forward.1} parent=11 // pred_check_branch
          %267 = sbr.rel (%p265) target = $region32
        $region31: #{my_model_forward.1} parent=11 // pred_region
          _
        $region32: #{my_model_forward.1} parent=11 // pred_fallthru
          _
        // Predicated region
        $region33: #{my_model_forward.1} parent=11 // pred_check
          %p268 = pneg %p170
        $region34: #{my_model_forward.1} parent=11 // pred_check_branch
          %270 = sbr.rel (%p268) target = $region36
        $region35: #{my_model_forward.1} parent=11 // pred_region
          _
        $region36: #{my_model_forward.1} parent=11 // pred_fallthru
          _
        // Predicated region
        $region37: #{my_model_forward.1} parent=11 // pred_check
          %p271 = pneg %p191
        $region38: #{my_model_forward.1} parent=11 // pred_check_branch
          %273 = sbr.rel (%p271) target = $region40
        $region39: #{my_model_forward.1} parent=11 // pred_region
          _
        $region40: #{my_model_forward.1} parent=11 // pred_fallthru
          _
        // Predicated region
        $region41: #{my_model_forward.1} parent=11 // pred_check
          %p274 = pneg %p212
        $region42: #{my_model_forward.1} parent=11 // pred_check_branch
          %276 = sbr.rel (%p274) target = $region44
        $region43: #{my_model_forward.1} parent=11 // pred_region
          _
        $region44: #{my_model_forward.1} parent=11 // pred_fallthru
          _
      $region12: #{my_model_forward.1} parent=5 // pred_fallthru
        _
      %p277 = scmp.lt.s32.totalorder %s18, 2
      // Predicated region
      $region45: #{my_model_forward.1} parent=5 // pred_check
        %p278 = pneg %p277
      $region46: #{my_model_forward.1} parent=5 // pred_check_branch
        %280 = sbr.rel (%p278) target = $region48
      $region47: #{my_model_forward.1} parent=5 // pred_region
        // Predicated region
        $region49: #{my_model_forward.1} parent=47 // pred_check
          %p281 = pneg %p38
        $region50: #{my_model_forward.1} parent=47 // pred_check_branch
          %283 = sbr.rel (%p281) target = $region52
        $region51: #{my_model_forward.1} parent=47 // pred_region
          %s284 = smul.u32 4, %s18
          %p285 = scmp.lt.s32.totalorder %s284, 7
          %s286 = scalar_select %p285, %s284, 7
          %s287 = smul.addr %s286, 20
          %s288 = smul.addr %s287, 8
          %s289 = scalar_lea.vmem %s0, %s288
          %s290 = smul.u32 4, %s18
        $region52: #{my_model_forward.1} parent=47 // pred_fallthru
          _
      $region48: #{my_model_forward.1} parent=5 // pred_fallthru
        _
      %p291 = scmp.le.s32.totalorder 1, %s18
      %p292 = scmp.lt.s32.totalorder %s18, 3
      %p293 = pnand %p291, %p292
      %p294 = pneg %p293
      // Predicated region
      $region53: #{my_model_forward.1} parent=5 // pred_check
        _
      $region54: #{my_model_forward.1} parent=5 // pred_check_branch
        %296 = sbr.rel (%p293) target = $region56
      $region55: #{my_model_forward.1} parent=5 // pred_region
        %s297 = ssub.s32 %s18, 1
        %s298 = smul.u32 4, %s23
        %p299 = scmp.lt.s32.totalorder %s298, 7
        %s300 = scalar_select %p299, %s298, 7
        %s301 = smul.addr %s300, 20
        %s302 = smul.addr %s301, 8
        %s303 = scalar_lea.vmem %s0, %s302
        %p304 = pneg %p44
        %p305 = pneg %p41
        %p306 = pneg %p65
        %p307 = pneg %p62
        %p308 = pneg %p86
        %p309 = pneg %p83
        %p310 = pneg %p107
        %p311 = pneg %p104
        %p312 = pneg %p128
        %p313 = pneg %p125
        %p314 = pneg %p149
        %p315 = pneg %p146
        %p316 = pneg %p170
        %p317 = pneg %p167
        %p318 = pneg %p191
        %p319 = pneg %p188
        %p320 = pneg %p212
        %p321 = pneg %p209
        %p322 = pneg %p238
        %p323 = pneg %p235
        %s324 = sand.u32 %s225, 1
        %s325 = scalar_lea.sflag [#allocation4], %s324
        %s326 = sand.u32 %s225, 1
        %s327 = scalar_lea.vmem [#allocation3], %s326
        %s328 = smul.u32 4, %s23
        %p329 = scmp.lt.s32.totalorder %s328, 7
        %s330 = scalar_select %p329, %s328, 7
        %s331 = smul.addr %s330, 20
        %s332 = smul.addr %s331, 8
        %s333 = scalar_lea.vmem %s0, %s332
        %s334 = smul.u32 4, %s23
        %v336 = vld [vmem:[%s333] sm:$0xff]
        %v337 = vld [vmem:[%s333 + $0x10] sm:$0xff]
        %v338 = vld [vmem:[%s333 + $0x20] sm:$0xff]
        %v339 = vld [vmem:[%s333 + $0x30] sm:$0xff]
        %v340 = vld [vmem:[%s333 + $0x40] sm:$0xff]
        %v341 = vld [vmem:[%s333 + $0x50] sm:$0xff]
        %v342 = vld [vmem:[%s333 + $0x60] sm:$0xff]
        %v343 = vld [vmem:[%s333 + $0x70] sm:$0xff]
        %s344 = scalar_lea.vmem %s333, 160
        %v345 = vld [vmem:[%s344] sm:$0xff]
        %v346 = vld [vmem:[%s344 + $0x10] sm:$0xff]
        %v347 = vld [vmem:[%s344 + $0x20] sm:$0xff]
        %v348 = vld [vmem:[%s344 + $0x30] sm:$0xff]
        %v349 = vld [vmem:[%s344 + $0x40] sm:$0xff]
        %v350 = vld [vmem:[%s344 + $0x50] sm:$0xff]
        %v351 = vld [vmem:[%s344 + $0x60] sm:$0xff]
        %v352 = vld [vmem:[%s344 + $0x70] sm:$0xff]
        %s353 = scalar_lea.vmem %s333, 320
        %v354 = vld [vmem:[%s353] sm:$0xff]
        %v355 = vld [vmem:[%s353 + $0x10] sm:$0xff]
        %v356 = vld [vmem:[%s353 + $0x20] sm:$0xff]
        %v357 = vld [vmem:[%s353 + $0x30] sm:$0xff]
        %v358 = vld [vmem:[%s353 + $0x40] sm:$0xff]
        %v359 = vld [vmem:[%s353 + $0x50] sm:$0xff]
        %v360 = vld [vmem:[%s353 + $0x60] sm:$0xff]
        %v361 = vld [vmem:[%s353 + $0x70] sm:$0xff]
        %s362 = scalar_lea.vmem %s333, 480
        %v363 = vld [vmem:[%s362] sm:$0xff]
        %v364 = vld [vmem:[%s362 + $0x10] sm:$0xff]
        %v365 = vld [vmem:[%s362 + $0x20] sm:$0xff]
        %v366 = vld [vmem:[%s362 + $0x30] sm:$0xff]
        %v367 = vld [vmem:[%s362 + $0x40] sm:$0xff]
        %v368 = vld [vmem:[%s362 + $0x50] sm:$0xff]
        %v369 = vld [vmem:[%s362 + $0x60] sm:$0xff]
        %v370 = vld [vmem:[%s362 + $0x70] sm:$0xff]
        %v371 = vpack.c.bf16 %v337, %v336
        %v372 = vpack.c.bf16 %v339, %v338
        %v373 = vpack.c.bf16 %v341, %v340
        %v374 = vpack.c.bf16 %v343, %v342
        %v375 = vpack.c.bf16 %v346, %v345
        %v376 = vpack.c.bf16 %v348, %v347
        %v377 = vpack.c.bf16 %v350, %v349
        %v378 = vpack.c.bf16 %v352, %v351
        %v379 = vpack.c.bf16 %v355, %v354
        %v380 = vpack.c.bf16 %v357, %v356
        %v381 = vpack.c.bf16 %v359, %v358
        %v382 = vpack.c.bf16 %v361, %v360
        %v383 = vpack.c.bf16 %v364, %v363
        %v384 = vpack.c.bf16 %v366, %v365
        %v385 = vpack.c.bf16 %v368, %v367
        %v386 = vpack.c.bf16 %v370, %v369
        %v387 = vld [vmem:[%s1] sm:$0x3]
        %v388 = vld [vmem:[%s333 + $0x1] sm:$0xff]
        %v389 = vld [vmem:[%s333 + $0x11] sm:$0xff]
        %v390 = vld [vmem:[%s333 + $0x21] sm:$0xff]
        %v391 = vld [vmem:[%s333 + $0x31] sm:$0xff]
        %v392 = vld [vmem:[%s333 + $0x41] sm:$0xff]
        %v393 = vld [vmem:[%s333 + $0x51] sm:$0xff]
        %v394 = vld [vmem:[%s333 + $0x61] sm:$0xff]
        %v395 = vld [vmem:[%s333 + $0x71] sm:$0xff]
        %v396 = vld [vmem:[%s353 + $0x1] sm:$0xff]
        %v397 = vld [vmem:[%s353 + $0x11] sm:$0xff]
        %v398 = vld [vmem:[%s353 + $0x21] sm:$0xff]
        %v399 = vld [vmem:[%s353 + $0x31] sm:$0xff]
        %v400 = vld [vmem:[%s353 + $0x41] sm:$0xff]
        %v401 = vld [vmem:[%s353 + $0x51] sm:$0xff]
        %v402 = vld [vmem:[%s353 + $0x61] sm:$0xff]
        %v403 = vld [vmem:[%s353 + $0x71] sm:$0xff]
        %v404 = vpack.c.bf16 %v389, %v388
        %v405 = vpack.c.bf16 %v391, %v390
        %v406 = vpack.c.bf16 %v393, %v392
        %v407 = vpack.c.bf16 %v395, %v394
        %v408 = vpack.c.bf16 %v397, %v396
        %v409 = vpack.c.bf16 %v399, %v398
        %v410 = vpack.c.bf16 %v401, %v400
        %v411 = vpack.c.bf16 %v403, %v402
        %s412 = scalar_lea.vmem %s1, 2
        %v413 = vld [vmem:[%s412] sm:$0x3]
        %vm414 = vcmask 23552
        %v416 = vsel %vm414, %v375, 0
        %v419 = vsel %vm414, %v376, 0
        %v422 = vsel %vm414, %v377, 0
        %v425 = vsel %vm414, %v378, 0
        %v428 = vsel %vm414, %v404, 0
        %v431 = vsel %vm414, %v405, 0
        %v434 = vsel %vm414, %v406, 0
        %v437 = vsel %vm414, %v407, 0
        %v440 = vsel %vm414, %v383, 0
        %v443 = vsel %vm414, %v384, 0
        %v446 = vsel %vm414, %v385, 0
        %v449 = vsel %vm414, %v386, 0
        %v452 = vsel %vm414, %v408, 0
        %v455 = vsel %vm414, %v409, 0
        %v458 = vsel %vm414, %v410, 0
        %v461 = vsel %vm414, %v411, 0
        %vm463 = vcmask 1040384
        %vm464 = vcmask 1041408
        %v465 = vsel %vm463, 4294967295, 65535
        %v466 = vsel %vm464, %v465, 0
        %v468 = vand.u32 %v413, %v466
        %470 = vmatprep.subr.bf16.mxu0 0
        %471 = vmatpush1.bf16.msra.mxu0 %v468
        %472 = vmatprep.subr.bf16.mxu0 0
        %473 = vmatpush1.bf16.msra.mxu0 0
        %474 = vmatprep.subr.bf16.mxu0 0
        %475 = vmatpush1.bf16.msra.mxu0 0
        %476 = vmatprep.subr.bf16.mxu0 0
        %477 = vmatpush1.bf16.msra.mxu0 0
        %478 = vmatprep.subr.bf16.mxu0 0
        %479 = vmatpush1.bf16.msra.mxu0 0
        %480 = vmatprep.subr.bf16.mxu0 0
        %481 = vmatpush1.bf16.msra.mxu0 0
        %482 = vmatprep.subr.bf16.mxu0 0
        %483 = vmatpush1.bf16.msra.mxu0 0
        %484 = vmatprep.subr.bf16.mxu0 0
        %485 = vmatpush1.bf16.msra.mxu0 0
        %486 = vmatprep.subr.bf16.mxu0 0
        %487 = vmatpush1.bf16.msra.mxu0 0
        %488 = vmatprep.subr.bf16.mxu0 0
        %489 = vmatpush1.bf16.msra.mxu0 0
        %490 = vmatprep.subr.bf16.mxu0 0
        %491 = vmatpush1.bf16.msra.mxu0 0
        %492 = vmatprep.subr.bf16.mxu0 0
        %493 = vmatpush1.bf16.msra.mxu0 0
        %494 = vmatprep.subr.bf16.mxu0 0
        %495 = vmatpush1.bf16.msra.mxu0 0
        %496 = vmatprep.subr.bf16.mxu0 0
        %497 = vmatpush1.bf16.msra.mxu0 0
        %498 = vmatprep.subr.bf16.mxu0 0
        %499 = vmatpush1.bf16.msra.mxu0 0
        %500 = vmatprep.subr.bf16.mxu0 0
        %501 = vmatpush1.bf16.msra.mxu0 0
        %502 = vmatprep.mubr.bf16.mxu0 0
        %503 = vmatmul.mubr.bf16.gmra.mrb[0].mxu0 %v416
        %v504 = vpop.f32.mrb[0].mxu0
        %v505 = vadd.f32 0.0, %v504
        %v506 = vpop.f32.mrb[0].mxu0
        %v507 = vpop.f32.mrb[0].mxu0
        %v508 = vadd.f32 0.0, %v507
        %v509 = vpop.f32.mrb[0].mxu0
        %510 = vmatprep.mubr.bf16.mxu0 0
        %511 = vmatmul.mubr.bf16.gmra.mrb[0].mxu0 %v419
        %v512 = vpop.f32.mrb[0].mxu0
        %v513 = vadd.f32 0.0, %v512
        %v514 = vpop.f32.mrb[0].mxu0
        %v515 = vpop.f32.mrb[0].mxu0
        %v516 = vadd.f32 0.0, %v515
        %v517 = vpop.f32.mrb[0].mxu0
        %518 = vmatprep.mubr.bf16.mxu0 0
        %519 = vmatmul.mubr.bf16.gmra.mrb[0].mxu0 %v422
        %v520 = vpop.f32.mrb[0].mxu0
        %v521 = vadd.f32 0.0, %v520
        %v522 = vpop.f32.mrb[0].mxu0
        %v523 = vpop.f32.mrb[0].mxu0
        %v524 = vadd.f32 0.0, %v523
        %v525 = vpop.f32.mrb[0].mxu0
        %526 = vmatprep.mubr.bf16.mxu0 0
        %527 = vmatmul.mubr.bf16.gmra.mrb[0].mxu0 %v425
        %v528 = vpop.f32.mrb[0].mxu0
        %v529 = vadd.f32 0.0, %v528
        %v530 = vpop.f32.mrb[0].mxu0
        %v531 = vpop.f32.mrb[0].mxu0
        %v532 = vadd.f32 0.0, %v531
        %v533 = vpop.f32.mrb[0].mxu0
        %534 = vmatprep.mubr.bf16.mxu0 0
        %535 = vmatmul.mubr.bf16.gmra.mrb[0].mxu0 %v428
        %v536 = vpop.f32.mrb[0].mxu0
        %v537 = vadd.f32 0.0, %v536
        %v538 = vpop.f32.mrb[0].mxu0
        %v539 = vpop.f32.mrb[0].mxu0
        %v540 = vadd.f32 0.0, %v539
        %v541 = vpop.f32.mrb[0].mxu0
        %542 = vmatprep.mubr.bf16.mxu0 0
        %543 = vmatmul.mubr.bf16.gmra.mrb[0].mxu0 %v431
        %v544 = vpop.f32.mrb[0].mxu0
        %v545 = vadd.f32 0.0, %v544
        %v546 = vpop.f32.mrb[0].mxu0
        %v547 = vpop.f32.mrb[0].mxu0
        %v548 = vadd.f32 0.0, %v547
        %v549 = vpop.f32.mrb[0].mxu0
        %550 = vmatprep.mubr.bf16.mxu0 0
        %551 = vmatmul.mubr.bf16.gmra.mrb[0].mxu0 %v434
        %v552 = vpop.f32.mrb[0].mxu0
        %v553 = vadd.f32 0.0, %v552
        %v554 = vpop.f32.mrb[0].mxu0
        %v555 = vpop.f32.mrb[0].mxu0
        %v556 = vadd.f32 0.0, %v555
        %v557 = vpop.f32.mrb[0].mxu0
        %558 = vmatprep.mubr.bf16.mxu0 0
        %559 = vmatmul.mubr.bf16.gmra.mrb[0].mxu0 %v437
        %v560 = vpop.f32.mrb[0].mxu0
        %v561 = vadd.f32 0.0, %v560
        %v562 = vpop.f32.mrb[0].mxu0
        %v563 = vpop.f32.mrb[0].mxu0
        %v564 = vadd.f32 0.0, %v563
        %v565 = vpop.f32.mrb[0].mxu0
        %566 = vmatprep.mubr.bf16.mxu0 0
        %567 = vmatmul.mubr.bf16.gmra.mrb[0].mxu0 %v440
        %v568 = vpop.f32.mrb[0].mxu0
        %v569 = vadd.f32 0.0, %v568
        %v570 = vpop.f32.mrb[0].mxu0
        %v571 = vpop.f32.mrb[0].mxu0
        %v572 = vadd.f32 0.0, %v571
        %v573 = vpop.f32.mrb[0].mxu0
        %574 = vmatprep.mubr.bf16.mxu0 0
        %575 = vmatmul.mubr.bf16.gmra.mrb[0].mxu0 %v443
        %v576 = vpop.f32.mrb[0].mxu0
        %v577 = vadd.f32 0.0, %v576
        %v578 = vpop.f32.mrb[0].mxu0
        %v579 = vpop.f32.mrb[0].mxu0
        %v580 = vadd.f32 0.0, %v579
        %v581 = vpop.f32.mrb[0].mxu0
        %582 = vmatprep.mubr.bf16.mxu0 0
        %583 = vmatmul.mubr.bf16.gmra.mrb[0].mxu0 %v446
        %v584 = vpop.f32.mrb[0].mxu0
        %v585 = vadd.f32 0.0, %v584
        %v586 = vpop.f32.mrb[0].mxu0
        %v587 = vpop.f32.mrb[0].mxu0
        %v588 = vadd.f32 0.0, %v587
        %v589 = vpop.f32.mrb[0].mxu0
        %590 = vmatprep.mubr.bf16.mxu0 0
        %591 = vmatmul.mubr.bf16.gmra.mrb[0].mxu0 %v449
        %v592 = vpop.f32.mrb[0].mxu0
        %v593 = vadd.f32 0.0, %v592
        %v594 = vpop.f32.mrb[0].mxu0
        %v595 = vpop.f32.mrb[0].mxu0
        %v596 = vadd.f32 0.0, %v595
        %v597 = vpop.f32.mrb[0].mxu0
        %598 = vmatprep.mubr.bf16.mxu0 0
        %599 = vmatmul.mubr.bf16.gmra.mrb[0].mxu0 %v452
        %v600 = vpop.f32.mrb[0].mxu0
        %v601 = vadd.f32 0.0, %v600
        %v602 = vpop.f32.mrb[0].mxu0
        %v603 = vpop.f32.mrb[0].mxu0
        %v604 = vadd.f32 0.0, %v603
        %v605 = vpop.f32.mrb[0].mxu0
        %606 = vmatprep.mubr.bf16.mxu0 0
        %607 = vmatmul.mubr.bf16.gmra.mrb[0].mxu0 %v455
        %v608 = vpop.f32.mrb[0].mxu0
        %v609 = vadd.f32 0.0, %v608
        %v610 = vpop.f32.mrb[0].mxu0
        %v611 = vpop.f32.mrb[0].mxu0
        %v612 = vadd.f32 0.0, %v611
        %v613 = vpop.f32.mrb[0].mxu0
        %614 = vmatprep.mubr.bf16.mxu0 0
        %615 = vmatmul.mubr.bf16.gmra.mrb[0].mxu0 %v458
        %v616 = vpop.f32.mrb[0].mxu0
        %v617 = vadd.f32 0.0, %v616
        %v618 = vpop.f32.mrb[0].mxu0
        %v619 = vpop.f32.mrb[0].mxu0
        %v620 = vadd.f32 0.0, %v619
        %v621 = vpop.f32.mrb[0].mxu0
        %622 = vmatprep.mubr.bf16.mxu0 0
        %623 = vmatmul.mubr.bf16.gmra.mrb[0].mxu0 %v461
        %v624 = vpop.f32.mrb[0].mxu0
        %v625 = vadd.f32 0.0, %v624
        %v626 = vpop.f32.mrb[0].mxu0
        %v627 = vpop.f32.mrb[0].mxu0
        %v628 = vadd.f32 0.0, %v627
        %v629 = vpop.f32.mrb[0].mxu0
        %630 = vdwg.mxu0
        %v632 = vsel %vm414, %v371, 0
        %v635 = vsel %vm414, %v372, 0
        %v638 = vsel %vm414, %v373, 0
        %v641 = vsel %vm414, %v374, 0
        %v644 = vsel %vm414, %v379, 0
        %v647 = vsel %vm414, %v380, 0
        %v650 = vsel %vm414, %v381, 0
        %v653 = vsel %vm414, %v382, 0
        %v656 = vand.u32 %v387, %v466
        %658 = vmatprep.subr.bf16.mxu0 0
        %659 = vmatpush1.bf16.msra.mxu0 %v656
        %660 = vmatprep.subr.bf16.mxu0 0
        %661 = vmatpush1.bf16.msra.mxu0 0
        %662 = vmatprep.subr.bf16.mxu0 0
        %663 = vmatpush1.bf16.msra.mxu0 0
        %664 = vmatprep.subr.bf16.mxu0 0
        %665 = vmatpush1.bf16.msra.mxu0 0
        %666 = vmatprep.subr.bf16.mxu0 0
        %667 = vmatpush1.bf16.msra.mxu0 0
        %668 = vmatprep.subr.bf16.mxu0 0
        %669 = vmatpush1.bf16.msra.mxu0 0
        %670 = vmatprep.subr.bf16.mxu0 0
        %671 = vmatpush1.bf16.msra.mxu0 0
        %672 = vmatprep.subr.bf16.mxu0 0
        %673 = vmatpush1.bf16.msra.mxu0 0
        %674 = vmatprep.subr.bf16.mxu0 0
        %675 = vmatpush1.bf16.msra.mxu0 0
        %676 = vmatprep.subr.bf16.mxu0 0
        %677 = vmatpush1.bf16.msra.mxu0 0
        %678 = vmatprep.subr.bf16.mxu0 0
        %679 = vmatpush1.bf16.msra.mxu0 0
        %680 = vmatprep.subr.bf16.mxu0 0
        %681 = vmatpush1.bf16.msra.mxu0 0
        %682 = vmatprep.subr.bf16.mxu0 0
        %683 = vmatpush1.bf16.msra.mxu0 0
        %684 = vmatprep.subr.bf16.mxu0 0
        %685 = vmatpush1.bf16.msra.mxu0 0
        %686 = vmatprep.subr.bf16.mxu0 0
        %687 = vmatpush1.bf16.msra.mxu0 0
        %688 = vmatprep.subr.bf16.mxu0 0
        %689 = vmatpush1.bf16.msra.mxu0 0
        %690 = vmatprep.mubr.bf16.mxu0 0
        %691 = vmatmul.mubr.bf16.gmra.mrb[0].mxu0 %v632
        %v692 = vpop.f32.mrb[0].mxu0
        %v693 = vadd.f32 %v505, %v692
        %v694 = vpop.f32.mrb[0].mxu0
        %v695 = vpop.f32.mrb[0].mxu0
        %v696 = vadd.f32 %v508, %v695
        %v697 = vpop.f32.mrb[0].mxu0
        %698 = vmatprep.mubr.bf16.mxu0 0
        %699 = vmatmul.mubr.bf16.gmra.mrb[0].mxu0 %v635
        %v700 = vpop.f32.mrb[0].mxu0
        %v701 = vadd.f32 %v513, %v700
        %v702 = vpop.f32.mrb[0].mxu0
        %v703 = vpop.f32.mrb[0].mxu0
        %v704 = vadd.f32 %v516, %v703
        %v705 = vpop.f32.mrb[0].mxu0
        %706 = vmatprep.mubr.bf16.mxu0 0
        %707 = vmatmul.mubr.bf16.gmra.mrb[0].mxu0 %v638
        %v708 = vpop.f32.mrb[0].mxu0
        %v709 = vadd.f32 %v521, %v708
        %v710 = vpop.f32.mrb[0].mxu0
        %v711 = vpop.f32.mrb[0].mxu0
        %v712 = vadd.f32 %v524, %v711
        %v713 = vpop.f32.mrb[0].mxu0
        %714 = vmatprep.mubr.bf16.mxu0 0
        %715 = vmatmul.mubr.bf16.gmra.mrb[0].mxu0 %v641
        %v716 = vpop.f32.mrb[0].mxu0
        %v717 = vadd.f32 %v529, %v716
        %v718 = vpop.f32.mrb[0].mxu0
        %v719 = vpop.f32.mrb[0].mxu0
        %v720 = vadd.f32 %v532, %v719
        %v721 = vpop.f32.mrb[0].mxu0
        %722 = vmatprep.mubr.bf16.mxu0 0
        %723 = vmatmul.mubr.bf16.gmra.mrb[0].mxu0 %v416
        %v724 = vpop.f32.mrb[0].mxu0
        %v725 = vadd.f32 %v537, %v724
        %v726 = vpop.f32.mrb[0].mxu0
        %v727 = vpop.f32.mrb[0].mxu0
        %v728 = vadd.f32 %v540, %v727
        %v729 = vpop.f32.mrb[0].mxu0
        %730 = vmatprep.mubr.bf16.mxu0 0
        %731 = vmatmul.mubr.bf16.gmra.mrb[0].mxu0 %v419
        %v732 = vpop.f32.mrb[0].mxu0
        %v733 = vadd.f32 %v545, %v732
        %v734 = vpop.f32.mrb[0].mxu0
        %v735 = vpop.f32.mrb[0].mxu0
        %v736 = vadd.f32 %v548, %v735
        %v737 = vpop.f32.mrb[0].mxu0
        %738 = vmatprep.mubr.bf16.mxu0 0
        %739 = vmatmul.mubr.bf16.gmra.mrb[0].mxu0 %v422
        %v740 = vpop.f32.mrb[0].mxu0
        %v741 = vadd.f32 %v553, %v740
        %v742 = vpop.f32.mrb[0].mxu0
        %v743 = vpop.f32.mrb[0].mxu0
        %v744 = vadd.f32 %v556, %v743
        %v745 = vpop.f32.mrb[0].mxu0
        %746 = vmatprep.mubr.bf16.mxu0 0
        %747 = vmatmul.mubr.bf16.gmra.mrb[0].mxu0 %v425
        %v748 = vpop.f32.mrb[0].mxu0
        %v749 = vadd.f32 %v561, %v748
        %v750 = vpop.f32.mrb[0].mxu0
        %v751 = vpop.f32.mrb[0].mxu0
        %v752 = vadd.f32 %v564, %v751
        %v753 = vpop.f32.mrb[0].mxu0
        %754 = vmatprep.mubr.bf16.mxu0 0
        %755 = vmatmul.mubr.bf16.gmra.mrb[0].mxu0 %v644
        %v756 = vpop.f32.mrb[0].mxu0
        %v757 = vadd.f32 %v569, %v756
        %v758 = vpop.f32.mrb[0].mxu0
        %v759 = vpop.f32.mrb[0].mxu0
        %v760 = vadd.f32 %v572, %v759
        %v761 = vpop.f32.mrb[0].mxu0
        %762 = vmatprep.mubr.bf16.mxu0 0
        %763 = vmatmul.mubr.bf16.gmra.mrb[0].mxu0 %v647
        %v764 = vpop.f32.mrb[0].mxu0
        %v765 = vadd.f32 %v577, %v764
        %v766 = vpop.f32.mrb[0].mxu0
        %v767 = vpop.f32.mrb[0].mxu0
        %v768 = vadd.f32 %v580, %v767
        %v769 = vpop.f32.mrb[0].mxu0
        %770 = vmatprep.mubr.bf16.mxu0 0
        %771 = vmatmul.mubr.bf16.gmra.mrb[0].mxu0 %v650
        %v772 = vpop.f32.mrb[0].mxu0
        %v773 = vadd.f32 %v585, %v772
        %v774 = vpop.f32.mrb[0].mxu0
        %v775 = vpop.f32.mrb[0].mxu0
        %v776 = vadd.f32 %v588, %v775
        %v777 = vpop.f32.mrb[0].mxu0
        %778 = vmatprep.mubr.bf16.mxu0 0
        %779 = vmatmul.mubr.bf16.gmra.mrb[0].mxu0 %v653
        %v780 = vpop.f32.mrb[0].mxu0
        %v781 = vadd.f32 %v593, %v780
        %v782 = vpop.f32.mrb[0].mxu0
        %v783 = vpop.f32.mrb[0].mxu0
        %v784 = vadd.f32 %v596, %v783
        %v785 = vpop.f32.mrb[0].mxu0
        %786 = vmatprep.mubr.bf16.mxu0 0
        %787 = vmatmul.mubr.bf16.gmra.mrb[0].mxu0 %v440
        %v788 = vpop.f32.mrb[0].mxu0
        %v789 = vadd.f32 %v601, %v788
        %v790 = vpop.f32.mrb[0].mxu0
        %v791 = vpop.f32.mrb[0].mxu0
        %v792 = vadd.f32 %v604, %v791
        %v793 = vpop.f32.mrb[0].mxu0
        %794 = vmatprep.mubr.bf16.mxu0 0
        %795 = vmatmul.mubr.bf16.gmra.mrb[0].mxu0 %v443
        %v796 = vpop.f32.mrb[0].mxu0
        %v797 = vadd.f32 %v609, %v796
        %v798 = vpop.f32.mrb[0].mxu0
        %v799 = vpop.f32.mrb[0].mxu0
        %v800 = vadd.f32 %v612, %v799
        %v801 = vpop.f32.mrb[0].mxu0
        %802 = vmatprep.mubr.bf16.mxu0 0
        %803 = vmatmul.mubr.bf16.gmra.mrb[0].mxu0 %v446
        %v804 = vpop.f32.mrb[0].mxu0
        %v805 = vadd.f32 %v617, %v804
        %v806 = vpop.f32.mrb[0].mxu0
        %v807 = vpop.f32.mrb[0].mxu0
        %v808 = vadd.f32 %v620, %v807
        %v809 = vpop.f32.mrb[0].mxu0
        %810 = vmatprep.mubr.bf16.mxu0 0
        %811 = vmatmul.mubr.bf16.gmra.mrb[0].mxu0 %v449
        %v812 = vpop.f32.mrb[0].mxu0
        %v813 = vadd.f32 %v625, %v812
        %v814 = vpop.f32.mrb[0].mxu0
        %v815 = vpop.f32.mrb[0].mxu0
        %v816 = vadd.f32 %v628, %v815
        %v817 = vpop.f32.mrb[0].mxu0
        %818 = vdwg.mxu0
        %v819 = vld [vmem:[%s344 + $0x1] sm:$0xff]
        %v820 = vld [vmem:[%s344 + $0x11] sm:$0xff]
        %v821 = vld [vmem:[%s344 + $0x21] sm:$0xff]
        %v822 = vld [vmem:[%s344 + $0x31] sm:$0xff]
        %v823 = vld [vmem:[%s344 + $0x41] sm:$0xff]
        %v824 = vld [vmem:[%s344 + $0x51] sm:$0xff]
        %v825 = vld [vmem:[%s344 + $0x61] sm:$0xff]
        %v826 = vld [vmem:[%s344 + $0x71] sm:$0xff]
        %v827 = vld [vmem:[%s362 + $0x1] sm:$0xff]
        %v828 = vld [vmem:[%s362 + $0x11] sm:$0xff]
        %v829 = vld [vmem:[%s362 + $0x21] sm:$0xff]
        %v830 = vld [vmem:[%s362 + $0x31] sm:$0xff]
        %v831 = vld [vmem:[%s362 + $0x41] sm:$0xff]
        %v832 = vld [vmem:[%s362 + $0x51] sm:$0xff]
        %v833 = vld [vmem:[%s362 + $0x61] sm:$0xff]
        %v834 = vld [vmem:[%s362 + $0x71] sm:$0xff]
        %v835 = vpack.c.bf16 %v820, %v819
        %v836 = vpack.c.bf16 %v822, %v821
        %v837 = vpack.c.bf16 %v824, %v823
        %v838 = vpack.c.bf16 %v826, %v825
        %v839 = vpack.c.bf16 %v828, %v827
        %v840 = vpack.c.bf16 %v830, %v829
        %v841 = vpack.c.bf16 %v832, %v831
        %v842 = vpack.c.bf16 %v834, %v833
        %s843 = scalar_lea.vmem %s1, 4
        %v844 = vld [vmem:[%s843] sm:$0x3]
        %v846 = vsel %vm414, %v835, 0
        %v849 = vsel %vm414, %v836, 0
        %v852 = vsel %vm414, %v837, 0
        %v855 = vsel %vm414, %v838, 0
        %v858 = vsel %vm414, %v839, 0
        %v861 = vsel %vm414, %v840, 0
        %v864 = vsel %vm414, %v841, 0
        %v867 = vsel %vm414, %v842, 0
        %v870 = vand.u32 %v844, %v466
        %872 = vmatprep.subr.bf16.mxu0 0
        %873 = vmatpush1.bf16.msra.mxu0 %v870
        %874 = vmatprep.subr.bf16.mxu0 0
        %875 = vmatpush1.bf16.msra.mxu0 0
        %876 = vmatprep.subr.bf16.mxu0 0
        %877 = vmatpush1.bf16.msra.mxu0 0
        %878 = vmatprep.subr.bf16.mxu0 0
        %879 = vmatpush1.bf16.msra.mxu0 0
        %880 = vmatprep.subr.bf16.mxu0 0
        %881 = vmatpush1.bf16.msra.mxu0 0
        %882 = vmatprep.subr.bf16.mxu0 0
        %883 = vmatpush1.bf16.msra.mxu0 0
        %884 = vmatprep.subr.bf16.mxu0 0
        %885 = vmatpush1.bf16.msra.mxu0 0
        %886 = vmatprep.subr.bf16.mxu0 0
        %887 = vmatpush1.bf16.msra.mxu0 0
        %888 = vmatprep.subr.bf16.mxu0 0
        %889 = vmatpush1.bf16.msra.mxu0 0
        %890 = vmatprep.subr.bf16.mxu0 0
        %891 = vmatpush1.bf16.msra.mxu0 0
        %892 = vmatprep.subr.bf16.mxu0 0
        %893 = vmatpush1.bf16.msra.mxu0 0
        %894 = vmatprep.subr.bf16.mxu0 0
        %895 = vmatpush1.bf16.msra.mxu0 0
        %896 = vmatprep.subr.bf16.mxu0 0
        %897 = vmatpush1.bf16.msra.mxu0 0
        %898 = vmatprep.subr.bf16.mxu0 0
        %899 = vmatpush1.bf16.msra.mxu0 0
        %900 = vmatprep.subr.bf16.mxu0 0
        %901 = vmatpush1.bf16.msra.mxu0 0
        %902 = vmatprep.subr.bf16.mxu0 0
        %903 = vmatpush1.bf16.msra.mxu0 0
        %904 = vmatprep.mubr.bf16.mxu0 0
        %905 = vmatmul.mubr.bf16.gmra.mrb[0].mxu0 %v428
        %v906 = vpop.f32.mrb[0].mxu0
        %v907 = vadd.f32 0.0, %v906
        %v908 = vpop.f32.mrb[0].mxu0
        %v909 = vpop.f32.mrb[0].mxu0
        %v910 = vadd.f32 0.0, %v909
        %v911 = vpop.f32.mrb[0].mxu0
        %912 = vmatprep.mubr.bf16.mxu0 0
        %913 = vmatmul.mubr.bf16.gmra.mrb[0].mxu0 %v431
        %v914 = vpop.f32.mrb[0].mxu0
        %v915 = vadd.f32 0.0, %v914
        %v916 = vpop.f32.mrb[0].mxu0
        %v917 = vpop.f32.mrb[0].mxu0
        %v918 = vadd.f32 0.0, %v917
        %v919 = vpop.f32.mrb[0].mxu0
        %920 = vmatprep.mubr.bf16.mxu0 0
        %921 = vmatmul.mubr.bf16.gmra.mrb[0].mxu0 %v434
        %v922 = vpop.f32.mrb[0].mxu0
        %v923 = vadd.f32 0.0, %v922
        %v924 = vpop.f32.mrb[0].mxu0
        %v925 = vpop.f32.mrb[0].mxu0
        %v926 = vadd.f32 0.0, %v925
        %v927 = vpop.f32.mrb[0].mxu0
        %928 = vmatprep.mubr.bf16.mxu0 0
        %929 = vmatmul.mubr.bf16.gmra.mrb[0].mxu0 %v437
        %v930 = vpop.f32.mrb[0].mxu0
        %v931 = vadd.f32 0.0, %v930
        %v932 = vpop.f32.mrb[0].mxu0
        %v933 = vpop.f32.mrb[0].mxu0
        %v934 = vadd.f32 0.0, %v933
        %v935 = vpop.f32.mrb[0].mxu0
        %936 = vmatprep.mubr.bf16.mxu0 0
        %937 = vmatmul.mubr.bf16.gmra.mrb[0].mxu0 %v846
        %v938 = vpop.f32.mrb[0].mxu0
        %v939 = vadd.f32 0.0, %v938
        %v940 = vpop.f32.mrb[0].mxu0
        %v941 = vpop.f32.mrb[0].mxu0
        %v942 = vadd.f32 0.0, %v941
        %v943 = vpop.f32.mrb[0].mxu0
        %944 = vmatprep.mubr.bf16.mxu0 0
        %945 = vmatmul.mubr.bf16.gmra.mrb[0].mxu0 %v849
        %v946 = vpop.f32.mrb[0].mxu0
        %v947 = vadd.f32 0.0, %v946
        %v948 = vpop.f32.mrb[0].mxu0
        %v949 = vpop.f32.mrb[0].mxu0
        %v950 = vadd.f32 0.0, %v949
        %v951 = vpop.f32.mrb[0].mxu0
        %952 = vmatprep.mubr.bf16.mxu0 0
        %953 = vmatmul.mubr.bf16.gmra.mrb[0].mxu0 %v852
        %v954 = vpop.f32.mrb[0].mxu0
        %v955 = vadd.f32 0.0, %v954
        %v956 = vpop.f32.mrb[0].mxu0
        %v957 = vpop.f32.mrb[0].mxu0
        %v958 = vadd.f32 0.0, %v957
        %v959 = vpop.f32.mrb[0].mxu0
        %960 = vmatprep.mubr.bf16.mxu0 0
        %961 = vmatmul.mubr.bf16.gmra.mrb[0].mxu0 %v855
        %v962 = vpop.f32.mrb[0].mxu0
        %v963 = vadd.f32 0.0, %v962
        %v964 = vpop.f32.mrb[0].mxu0
        %v965 = vpop.f32.mrb[0].mxu0
        %v966 = vadd.f32 0.0, %v965
        %v967 = vpop.f32.mrb[0].mxu0
        %968 = vmatprep.mubr.bf16.mxu0 0
        %969 = vmatmul.mubr.bf16.gmra.mrb[0].mxu0 %v452
        %v970 = vpop.f32.mrb[0].mxu0
        %v971 = vadd.f32 0.0, %v970
        %v972 = vpop.f32.mrb[0].mxu0
        %v973 = vpop.f32.mrb[0].mxu0
        %v974 = vadd.f32 0.0, %v973
        %v975 = vpop.f32.mrb[0].mxu0
        %976 = vmatprep.mubr.bf16.mxu0 0
        %977 = vmatmul.mubr.bf16.gmra.mrb[0].mxu0 %v455
        %v978 = vpop.f32.mrb[0].mxu0
        %v979 = vadd.f32 0.0, %v978
        %v980 = vpop.f32.mrb[0].mxu0
        %v981 = vpop.f32.mrb[0].mxu0
        %v982 = vadd.f32 0.0, %v981
        %v983 = vpop.f32.mrb[0].mxu0
        %984 = vmatprep.mubr.bf16.mxu0 0
        %985 = vmatmul.mubr.bf16.gmra.mrb[0].mxu0 %v458
        %v986 = vpop.f32.mrb[0].mxu0
        %v987 = vadd.f32 0.0, %v986
        %v988 = vpop.f32.mrb[0].mxu0
        %v989 = vpop.f32.mrb[0].mxu0
        %v990 = vadd.f32 0.0, %v989
        %v991 = vpop.f32.mrb[0].mxu0
        %992 = vmatprep.mubr.bf16.mxu0 0
        %993 = vmatmul.mubr.bf16.gmra.mrb[0].mxu0 %v461
        %v994 = vpop.f32.mrb[0].mxu0
        %v995 = vadd.f32 0.0, %v994
        %v996 = vpop.f32.mrb[0].mxu0
        %v997 = vpop.f32.mrb[0].mxu0
        %v998 = vadd.f32 0.0, %v997
        %v999 = vpop.f32.mrb[0].mxu0
        %1000 = vmatprep.mubr.bf16.mxu0 0
        %1001 = vmatmul.mubr.bf16.gmra.mrb[0].mxu0 %v858
        %v1002 = vpop.f32.mrb[0].mxu0
        %v1003 = vadd.f32 0.0, %v1002
        %v1004 = vpop.f32.mrb[0].mxu0
        %v1005 = vpop.f32.mrb[0].mxu0
        %v1006 = vadd.f32 0.0, %v1005
        %v1007 = vpop.f32.mrb[0].mxu0
        %1008 = vmatprep.mubr.bf16.mxu0 0
        %1009 = vmatmul.mubr.bf16.gmra.mrb[0].mxu0 %v861
        %v1010 = vpop.f32.mrb[0].mxu0
        %v1011 = vadd.f32 0.0, %v1010
        %v1012 = vpop.f32.mrb[0].mxu0
        %v1013 = vpop.f32.mrb[0].mxu0
        %v1014 = vadd.f32 0.0, %v1013
        %v1015 = vpop.f32.mrb[0].mxu0
        %1016 = vmatprep.mubr.bf16.mxu0 0
        %1017 = vmatmul.mubr.bf16.gmra.mrb[0].mxu0 %v864
        %v1018 = vpop.f32.mrb[0].mxu0
        %v1019 = vadd.f32 0.0, %v1018
        %v1020 = vpop.f32.mrb[0].mxu0
        %v1021 = vpop.f32.mrb[0].mxu0
        %v1022 = vadd.f32 0.0, %v1021
        %v1023 = vpop.f32.mrb[0].mxu0
        %1024 = vmatprep.mubr.bf16.mxu0 0
        %1025 = vmatmul.mubr.bf16.gmra.mrb[0].mxu0 %v867
        %v1026 = vpop.f32.mrb[0].mxu0
        %v1027 = vadd.f32 0.0, %v1026
        %v1028 = vpop.f32.mrb[0].mxu0
        %v1029 = vpop.f32.mrb[0].mxu0
        %v1030 = vadd.f32 0.0, %v1029
        %v1031 = vpop.f32.mrb[0].mxu0
        %1032 = vdwg.mxu0
        %v1033 = vadd.f32 %v693, %v907
        %v1034 = vadd.f32 %v696, %v910
        %v1035 = vadd.f32 %v701, %v915
        %v1036 = vadd.f32 %v704, %v918
        %v1037 = vadd.f32 %v709, %v923
        %v1038 = vadd.f32 %v712, %v926
        %v1039 = vadd.f32 %v717, %v931
        %v1040 = vadd.f32 %v720, %v934
        %v1041 = vadd.f32 %v725, %v939
        %v1042 = vadd.f32 %v728, %v942
        %v1043 = vadd.f32 %v733, %v947
        %v1044 = vadd.f32 %v736, %v950
        %v1045 = vadd.f32 %v741, %v955
        %v1046 = vadd.f32 %v744, %v958
        %v1047 = vadd.f32 %v749, %v963
        %v1048 = vadd.f32 %v752, %v966
        %v1049 = vadd.f32 %v757, %v971
        %v1050 = vadd.f32 %v760, %v974
        %v1051 = vadd.f32 %v765, %v979
        %v1052 = vadd.f32 %v768, %v982
        %v1053 = vadd.f32 %v773, %v987
        %v1054 = vadd.f32 %v776, %v990
        %v1055 = vadd.f32 %v781, %v995
        %v1056 = vadd.f32 %v784, %v998
        %v1057 = vadd.f32 %v789, %v1003
        %v1058 = vadd.f32 %v792, %v1006
        %v1059 = vadd.f32 %v797, %v1011
        %v1060 = vadd.f32 %v800, %v1014
        %v1061 = vadd.f32 %v805, %v1019
        %v1062 = vadd.f32 %v808, %v1022
        %v1063 = vadd.f32 %v813, %v1027
        %v1064 = vadd.f32 %v816, %v1030
        %v1065 = vld [vmem:[%s333 + $0x2] sm:$0xff]
        %v1066 = vld [vmem:[%s333 + $0x12] sm:$0xff]
        %v1067 = vld [vmem:[%s333 + $0x22] sm:$0xff]
        %v1068 = vld [vmem:[%s333 + $0x32] sm:$0xff]
        %v1069 = vld [vmem:[%s333 + $0x42] sm:$0xff]
        %v1070 = vld [vmem:[%s333 + $0x52] sm:$0xff]
        %v1071 = vld [vmem:[%s333 + $0x62] sm:$0xff]
        %v1072 = vld [vmem:[%s333 + $0x72] sm:$0xff]
        %v1073 = vld [vmem:[%s353 + $0x2] sm:$0xff]
        %v1074 = vld [vmem:[%s353 + $0x12] sm:$0xff]
        %v1075 = vld [vmem:[%s353 + $0x22] sm:$0xff]
        %v1076 = vld [vmem:[%s353 + $0x32] sm:$0xff]
        %v1077 = vld [vmem:[%s353 + $0x42] sm:$0xff]
        %v1078 = vld [vmem:[%s353 + $0x52] sm:$0xff]
        %v1079 = vld [vmem:[%s353 + $0x62] sm:$0xff]
        %v1080 = vld [vmem:[%s353 + $0x72] sm:$0xff]
        %v1081 = vpack.c.bf16 %v1066, %v1065
        %v1082 = vpack.c.bf16 %v1068, %v1067
        %v1083 = vpack.c.bf16 %v1070, %v1069
        %v1084 = vpack.c.bf16 %v1072, %v1071
        %v1085 = vpack.c.bf16 %v1074, %v1073
        %v1086 = vpack.c.bf16 %v1076, %v1075
        %v1087 = vpack.c.bf16 %v1078, %v1077
        %v1088 = vpack.c.bf16 %v1080, %v1079
        %s1089 = scalar_lea.vmem %s1, 6
        %v1090 = vld [vmem:[%s1089] sm:$0x3]
        %v1092 = vsel %vm414, %v1081, 0
        %v1095 = vsel %vm414, %v1082, 0
        %v1098 = vsel %vm414, %v1083, 0
        %v1101 = vsel %vm414, %v1084, 0
        %v1104 = vsel %vm414, %v1085, 0
        %v1107 = vsel %vm414, %v1086, 0
        %v1110 = vsel %vm414, %v1087, 0
        %v1113 = vsel %vm414, %v1088, 0
        %v1116 = vand.u32 %v1090, %v466
        %1118 = vmatprep.subr.bf16.mxu0 0
        %1119 = vmatpush1.bf16.msra.mxu0 %v1116
        %1120 = vmatprep.subr.bf16.mxu0 0
        %1121 = vmatpush1.bf16.msra.mxu0 0
        %1122 = vmatprep.subr.bf16.mxu0 0
        %1123 = vmatpush1.bf16.msra.mxu0 0
        %1124 = vmatprep.subr.bf16.mxu0 0
        %1125 = vmatpush1.bf16.msra.mxu0 0
        %1126 = vmatprep.subr.bf16.mxu0 0
        %1127 = vmatpush1.bf16.msra.mxu0 0
        %1128 = vmatprep.subr.bf16.mxu0 0
        %1129 = vmatpush1.bf16.msra.mxu0 0
        %1130 = vmatprep.subr.bf16.mxu0 0
        %1131 = vmatpush1.bf16.msra.mxu0 0
        %1132 = vmatprep.subr.bf16.mxu0 0
        %1133 = vmatpush1.bf16.msra.mxu0 0
        %1134 = vmatprep.subr.bf16.mxu0 0
        %1135 = vmatpush1.bf16.msra.mxu0 0
        %1136 = vmatprep.subr.bf16.mxu0 0
        %1137 = vmatpush1.bf16.msra.mxu0 0
        %1138 = vmatprep.subr.bf16.mxu0 0
        %1139 = vmatpush1.bf16.msra.mxu0 0
        %1140 = vmatprep.subr.bf16.mxu0 0
        %1141 = vmatpush1.bf16.msra.mxu0 0
        %1142 = vmatprep.subr.bf16.mxu0 0
        %1143 = vmatpush1.bf16.msra.mxu0 0
        %1144 = vmatprep.subr.bf16.mxu0 0
        %1145 = vmatpush1.bf16.msra.mxu0 0
        %1146 = vmatprep.subr.bf16.mxu0 0
        %1147 = vmatpush1.bf16.msra.mxu0 0
        %1148 = vmatprep.subr.bf16.mxu0 0
        %1149 = vmatpush1.bf16.msra.mxu0 0
        %1150 = vmatprep.mubr.bf16.mxu0 0
        %1151 = vmatmul.mubr.bf16.gmra.mrb[0].mxu0 %v846
        %v1152 = vpop.f32.mrb[0].mxu0
        %v1153 = vadd.f32 0.0, %v1152
        %v1154 = vpop.f32.mrb[0].mxu0
        %v1155 = vpop.f32.mrb[0].mxu0
        %v1156 = vadd.f32 0.0, %v1155
        %v1157 = vpop.f32.mrb[0].mxu0
        %1158 = vmatprep.mubr.bf16.mxu0 0
        %1159 = vmatmul.mubr.bf16.gmra.mrb[0].mxu0 %v849
        %v1160 = vpop.f32.mrb[0].mxu0
        %v1161 = vadd.f32 0.0, %v1160
        %v1162 = vpop.f32.mrb[0].mxu0
        %v1163 = vpop.f32.mrb[0].mxu0
        %v1164 = vadd.f32 0.0, %v1163
        %v1165 = vpop.f32.mrb[0].mxu0
        %1166 = vmatprep.mubr.bf16.mxu0 0
        %1167 = vmatmul.mubr.bf16.gmra.mrb[0].mxu0 %v852
        %v1168 = vpop.f32.mrb[0].mxu0
        %v1169 = vadd.f32 0.0, %v1168
        %v1170 = vpop.f32.mrb[0].mxu0
        %v1171 = vpop.f32.mrb[0].mxu0
        %v1172 = vadd.f32 0.0, %v1171
        %v1173 = vpop.f32.mrb[0].mxu0
        %1174 = vmatprep.mubr.bf16.mxu0 0
        %1175 = vmatmul.mubr.bf16.gmra.mrb[0].mxu0 %v855
        %v1176 = vpop.f32.mrb[0].mxu0
        %v1177 = vadd.f32 0.0, %v1176
        %v1178 = vpop.f32.mrb[0].mxu0
        %v1179 = vpop.f32.mrb[0].mxu0
        %v1180 = vadd.f32 0.0, %v1179
        %v1181 = vpop.f32.mrb[0].mxu0
        %1182 = vmatprep.mubr.bf16.mxu0 0
        %1183 = vmatmul.mubr.bf16.gmra.mrb[0].mxu0 %v1092
        %v1184 = vpop.f32.mrb[0].mxu0
        %v1185 = vadd.f32 0.0, %v1184
        %v1186 = vpop.f32.mrb[0].mxu0
        %v1187 = vpop.f32.mrb[0].mxu0
        %v1188 = vadd.f32 0.0, %v1187
        %v1189 = vpop.f32.mrb[0].mxu0
        %1190 = vmatprep.mubr.bf16.mxu0 0
        %1191 = vmatmul.mubr.bf16.gmra.mrb[0].mxu0 %v1095
        %v1192 = vpop.f32.mrb[0].mxu0
        %v1193 = vadd.f32 0.0, %v1192
        %v1194 = vpop.f32.mrb[0].mxu0
        %v1195 = vpop.f32.mrb[0].mxu0
        %v1196 = vadd.f32 0.0, %v1195
        %v1197 = vpop.f32.mrb[0].mxu0
        %1198 = vmatprep.mubr.bf16.mxu0 0
        %1199 = vmatmul.mubr.bf16.gmra.mrb[0].mxu0 %v1098
        %v1200 = vpop.f32.mrb[0].mxu0
        %v1201 = vadd.f32 0.0, %v1200
        %v1202 = vpop.f32.mrb[0].mxu0
        %v1203 = vpop.f32.mrb[0].mxu0
        %v1204 = vadd.f32 0.0, %v1203
        %v1205 = vpop.f32.mrb[0].mxu0
        %1206 = vmatprep.mubr.bf16.mxu0 0
        %1207 = vmatmul.mubr.bf16.gmra.mrb[0].mxu0 %v1101
        %v1208 = vpop.f32.mrb[0].mxu0
        %v1209 = vadd.f32 0.0, %v1208
        %v1210 = vpop.f32.mrb[0].mxu0
        %v1211 = vpop.f32.mrb[0].mxu0
        %v1212 = vadd.f32 0.0, %v1211
        %v1213 = vpop.f32.mrb[0].mxu0
        %1214 = vmatprep.mubr.bf16.mxu0 0
        %1215 = vmatmul.mubr.bf16.gmra.mrb[0].mxu0 %v858
        %v1216 = vpop.f32.mrb[0].mxu0
        %v1217 = vadd.f32 0.0, %v1216
        %v1218 = vpop.f32.mrb[0].mxu0
        %v1219 = vpop.f32.mrb[0].mxu0
        %v1220 = vadd.f32 0.0, %v1219
        %v1221 = vpop.f32.mrb[0].mxu0
        %1222 = vmatprep.mubr.bf16.mxu0 0
        %1223 = vmatmul.mubr.bf16.gmra.mrb[0].mxu0 %v861
        %v1224 = vpop.f32.mrb[0].mxu0
        %v1225 = vadd.f32 0.0, %v1224
        %v1226 = vpop.f32.mrb[0].mxu0
        %v1227 = vpop.f32.mrb[0].mxu0
        %v1228 = vadd.f32 0.0, %v1227
        %v1229 = vpop.f32.mrb[0].mxu0
        %1230 = vmatprep.mubr.bf16.mxu0 0
        %1231 = vmatmul.mubr.bf16.gmra.mrb[0].mxu0 %v864
        %v1232 = vpop.f32.mrb[0].mxu0
        %v1233 = vadd.f32 0.0, %v1232
        %v1234 = vpop.f32.mrb[0].mxu0
        %v1235 = vpop.f32.mrb[0].mxu0
        %v1236 = vadd.f32 0.0, %v1235
        %v1237 = vpop.f32.mrb[0].mxu0
        %1238 = vmatprep.mubr.bf16.mxu0 0
        %1239 = vmatmul.mubr.bf16.gmra.mrb[0].mxu0 %v867
        %v1240 = vpop.f32.mrb[0].mxu0
        %v1241 = vadd.f32 0.0, %v1240
        %v1242 = vpop.f32.mrb[0].mxu0
        %v1243 = vpop.f32.mrb[0].mxu0
        %v1244 = vadd.f32 0.0, %v1243
        %v1245 = vpop.f32.mrb[0].mxu0
        %1246 = vmatprep.mubr.bf16.mxu0 0
        %1247 = vmatmul.mubr.bf16.gmra.mrb[0].mxu0 %v1104
        %v1248 = vpop.f32.mrb[0].mxu0
        %v1249 = vadd.f32 0.0, %v1248
        %v1250 = vpop.f32.mrb[0].mxu0
        %v1251 = vpop.f32.mrb[0].mxu0
        %v1252 = vadd.f32 0.0, %v1251
        %v1253 = vpop.f32.mrb[0].mxu0
        %1254 = vmatprep.mubr.bf16.mxu0 0
        %1255 = vmatmul.mubr.bf16.gmra.mrb[0].mxu0 %v1107
        %v1256 = vpop.f32.mrb[0].mxu0
        %v1257 = vadd.f32 0.0, %v1256
        %v1258 = vpop.f32.mrb[0].mxu0
        %v1259 = vpop.f32.mrb[0].mxu0
        %v1260 = vadd.f32 0.0, %v1259
        %v1261 = vpop.f32.mrb[0].mxu0
        %1262 = vmatprep.mubr.bf16.mxu0 0
        %1263 = vmatmul.mubr.bf16.gmra.mrb[0].mxu0 %v1110
        %v1264 = vpop.f32.mrb[0].mxu0
        %v1265 = vadd.f32 0.0, %v1264
        %v1266 = vpop.f32.mrb[0].mxu0
        %v1267 = vpop.f32.mrb[0].mxu0
        %v1268 = vadd.f32 0.0, %v1267
        %v1269 = vpop.f32.mrb[0].mxu0
        %1270 = vmatprep.mubr.bf16.mxu0 0
        %1271 = vmatmul.mubr.bf16.gmra.mrb[0].mxu0 %v1113
        %v1272 = vpop.f32.mrb[0].mxu0
        %v1273 = vadd.f32 0.0, %v1272
        %v1274 = vpop.f32.mrb[0].mxu0
        %v1275 = vpop.f32.mrb[0].mxu0
        %v1276 = vadd.f32 0.0, %v1275
        %v1277 = vpop.f32.mrb[0].mxu0
        %1278 = vdwg.mxu0
        %v1279 = vadd.f32 %v1033, %v1153
        %v1280 = vadd.f32 %v1034, %v1156
        %v1281 = vadd.f32 %v1035, %v1161
        %v1282 = vadd.f32 %v1036, %v1164
        %v1283 = vadd.f32 %v1037, %v1169
        %v1284 = vadd.f32 %v1038, %v1172
        %v1285 = vadd.f32 %v1039, %v1177
        %v1286 = vadd.f32 %v1040, %v1180
        %v1287 = vadd.f32 %v1041, %v1185
        %v1288 = vadd.f32 %v1042, %v1188
        %v1289 = vadd.f32 %v1043, %v1193
        %v1290 = vadd.f32 %v1044, %v1196
        %v1291 = vadd.f32 %v1045, %v1201
        %v1292 = vadd.f32 %v1046, %v1204
        %v1293 = vadd.f32 %v1047, %v1209
        %v1294 = vadd.f32 %v1048, %v1212
        %v1295 = vadd.f32 %v1049, %v1217
        %v1296 = vadd.f32 %v1050, %v1220
        %v1297 = vadd.f32 %v1051, %v1225
        %v1298 = vadd.f32 %v1052, %v1228
        %v1299 = vadd.f32 %v1053, %v1233
        %v1300 = vadd.f32 %v1054, %v1236
        %v1301 = vadd.f32 %v1055, %v1241
        %v1302 = vadd.f32 %v1056, %v1244
        %v1303 = vadd.f32 %v1057, %v1249
        %v1304 = vadd.f32 %v1058, %v1252
        %v1305 = vadd.f32 %v1059, %v1257
        %v1306 = vadd.f32 %v1060, %v1260
        %v1307 = vadd.f32 %v1061, %v1265
        %v1308 = vadd.f32 %v1062, %v1268
        %v1309 = vadd.f32 %v1063, %v1273
        %v1310 = vadd.f32 %v1064, %v1276
        %v1311 = vld [vmem:[%s344 + $0x2] sm:$0xff]
        %v1312 = vld [vmem:[%s344 + $0x12] sm:$0xff]
        %v1313 = vld [vmem:[%s344 + $0x22] sm:$0xff]
        %v1314 = vld [vmem:[%s344 + $0x32] sm:$0xff]
        %v1315 = vld [vmem:[%s344 + $0x42] sm:$0xff]
        %v1316 = vld [vmem:[%s344 + $0x52] sm:$0xff]
        %v1317 = vld [vmem:[%s344 + $0x62] sm:$0xff]
        %v1318 = vld [vmem:[%s344 + $0x72] sm:$0xff]
        %v1319 = vld [vmem:[%s362 + $0x2] sm:$0xff]
        %v1320 = vld [vmem:[%s362 + $0x12] sm:$0xff]
        %v1321 = vld [vmem:[%s362 + $0x22] sm:$0xff]
        %v1322 = vld [vmem:[%s362 + $0x32] sm:$0xff]
        %v1323 = vld [vmem:[%s362 + $0x42] sm:$0xff]
        %v1324 = vld [vmem:[%s362 + $0x52] sm:$0xff]
        %v1325 = vld [vmem:[%s362 + $0x62] sm:$0xff]
        %v1326 = vld [vmem:[%s362 + $0x72] sm:$0xff]
        %v1327 = vpack.c.bf16 %v1312, %v1311
        %v1328 = vpack.c.bf16 %v1314, %v1313
        %v1329 = vpack.c.bf16 %v1316, %v1315
        %v1330 = vpack.c.bf16 %v1318, %v1317
        %v1331 = vpack.c.bf16 %v1320, %v1319
        %v1332 = vpack.c.bf16 %v1322, %v1321
        %v1333 = vpack.c.bf16 %v1324, %v1323
        %v1334 = vpack.c.bf16 %v1326, %v1325
        %s1335 = scalar_lea.vmem %s1, 8
        %v1336 = vld [vmem:[%s1335] sm:$0x3]
        %v1338 = vsel %vm414, %v1327, 0
        %v1341 = vsel %vm414, %v1328, 0
        %v1344 = vsel %vm414, %v1329, 0
        %v1347 = vsel %vm414, %v1330, 0
        %v1350 = vsel %vm414, %v1331, 0
        %v1353 = vsel %vm414, %v1332, 0
        %v1356 = vsel %vm414, %v1333, 0
        %v1359 = vsel %vm414, %v1334, 0
        %v1362 = vand.u32 %v1336, %v466
        %1364 = vmatprep.subr.bf16.mxu0 0
        %1365 = vmatpush1.bf16.msra.mxu0 %v1362
        %1366 = vmatprep.subr.bf16.mxu0 0
        %1367 = vmatpush1.bf16.msra.mxu0 0
        %1368 = vmatprep.subr.bf16.mxu0 0
        %1369 = vmatpush1.bf16.msra.mxu0 0
        %1370 = vmatprep.subr.bf16.mxu0 0
        %1371 = vmatpush1.bf16.msra.mxu0 0
        %1372 = vmatprep.subr.bf16.mxu0 0
        %1373 = vmatpush1.bf16.msra.mxu0 0
        %1374 = vmatprep.subr.bf16.mxu0 0
        %1375 = vmatpush1.bf16.msra.mxu0 0
        %1376 = vmatprep.subr.bf16.mxu0 0
        %1377 = vmatpush1.bf16.msra.mxu0 0
        %1378 = vmatprep.subr.bf16.mxu0 0
        %1379 = vmatpush1.bf16.msra.mxu0 0
        %1380 = vmatprep.subr.bf16.mxu0 0
        %1381 = vmatpush1.bf16.msra.mxu0 0
        %1382 = vmatprep.subr.bf16.mxu0 0
        %1383 = vmatpush1.bf16.msra.mxu0 0
        %1384 = vmatprep.subr.bf16.mxu0 0
        %1385 = vmatpush1.bf16.msra.mxu0 0
        %1386 = vmatprep.subr.bf16.mxu0 0
        %1387 = vmatpush1.bf16.msra.mxu0 0
        %1388 = vmatprep.subr.bf16.mxu0 0
        %1389 = vmatpush1.bf16.msra.mxu0 0
        %1390 = vmatprep.subr.bf16.mxu0 0
        %1391 = vmatpush1.bf16.msra.mxu0 0
        %1392 = vmatprep.subr.bf16.mxu0 0
        %1393 = vmatpush1.bf16.msra.mxu0 0
        %1394 = vmatprep.subr.bf16.mxu0 0
        %1395 = vmatpush1.bf16.msra.mxu0 0
        %1396 = vmatprep.mubr.bf16.mxu0 0
        %1397 = vmatmul.mubr.bf16.gmra.mrb[0].mxu0 %v1092
        %v1398 = vpop.f32.mrb[0].mxu0
        %v1399 = vadd.f32 0.0, %v1398
        %v1400 = vpop.f32.mrb[0].mxu0
        %v1401 = vpop.f32.mrb[0].mxu0
        %v1402 = vadd.f32 0.0, %v1401
        %v1403 = vpop.f32.mrb[0].mxu0
        %1404 = vmatprep.mubr.bf16.mxu0 0
        %1405 = vmatmul.mubr.bf16.gmra.mrb[0].mxu0 %v1095
        %v1406 = vpop.f32.mrb[0].mxu0
        %v1407 = vadd.f32 0.0, %v1406
        %v1408 = vpop.f32.mrb[0].mxu0
        %v1409 = vpop.f32.mrb[0].mxu0
        %v1410 = vadd.f32 0.0, %v1409
        %v1411 = vpop.f32.mrb[0].mxu0
        %1412 = vmatprep.mubr.bf16.mxu0 0
        %1413 = vmatmul.mubr.bf16.gmra.mrb[0].mxu0 %v1098
        %v1414 = vpop.f32.mrb[0].mxu0
        %v1415 = vadd.f32 0.0, %v1414
        %v1416 = vpop.f32.mrb[0].mxu0
        %v1417 = vpop.f32.mrb[0].mxu0
        %v1418 = vadd.f32 0.0, %v1417
        %v1419 = vpop.f32.mrb[0].mxu0
        %1420 = vmatprep.mubr.bf16.mxu0 0
        %1421 = vmatmul.mubr.bf16.gmra.mrb[0].mxu0 %v1101
        %v1422 = vpop.f32.mrb[0].mxu0
        %v1423 = vadd.f32 0.0, %v1422
        %v1424 = vpop.f32.mrb[0].mxu0
        %v1425 = vpop.f32.mrb[0].mxu0
        %v1426 = vadd.f32 0.0, %v1425
        %v1427 = vpop.f32.mrb[0].mxu0
        %1428 = vmatprep.mubr.bf16.mxu0 0
        %1429 = vmatmul.mubr.bf16.gmra.mrb[0].mxu0 %v1338
        %v1430 = vpop.f32.mrb[0].mxu0
        %v1431 = vadd.f32 0.0, %v1430
        %v1432 = vpop.f32.mrb[0].mxu0
        %v1433 = vpop.f32.mrb[0].mxu0
        %v1434 = vadd.f32 0.0, %v1433
        %v1435 = vpop.f32.mrb[0].mxu0
        %1436 = vmatprep.mubr.bf16.mxu0 0
        %1437 = vmatmul.mubr.bf16.gmra.mrb[0].mxu0 %v1341
        %v1438 = vpop.f32.mrb[0].mxu0
        %v1439 = vadd.f32 0.0, %v1438
        %v1440 = vpop.f32.mrb[0].mxu0
        %v1441 = vpop.f32.mrb[0].mxu0
        %v1442 = vadd.f32 0.0, %v1441
        %v1443 = vpop.f32.mrb[0].mxu0
        %1444 = vmatprep.mubr.bf16.mxu0 0
        %1445 = vmatmul.mubr.bf16.gmra.mrb[0].mxu0 %v1344
        %v1446 = vpop.f32.mrb[0].mxu0
        %v1447 = vadd.f32 0.0, %v1446
        %v1448 = vpop.f32.mrb[0].mxu0
        %v1449 = vpop.f32.mrb[0].mxu0
        %v1450 = vadd.f32 0.0, %v1449
        %v1451 = vpop.f32.mrb[0].mxu0
        %1452 = vmatprep.mubr.bf16.mxu0 0
        %1453 = vmatmul.mubr.bf16.gmra.mrb[0].mxu0 %v1347
        %v1454 = vpop.f32.mrb[0].mxu0
        %v1455 = vadd.f32 0.0, %v1454
        %v1456 = vpop.f32.mrb[0].mxu0
        %v1457 = vpop.f32.mrb[0].mxu0
        %v1458 = vadd.f32 0.0, %v1457
        %v1459 = vpop.f32.mrb[0].mxu0
        %1460 = vmatprep.mubr.bf16.mxu0 0
        %1461 = vmatmul.mubr.bf16.gmra.mrb[0].mxu0 %v1104
        %v1462 = vpop.f32.mrb[0].mxu0
        %v1463 = vadd.f32 0.0, %v1462
        %v1464 = vpop.f32.mrb[0].mxu0
        %v1465 = vpop.f32.mrb[0].mxu0
        %v1466 = vadd.f32 0.0, %v1465
        %v1467 = vpop.f32.mrb[0].mxu0
        %1468 = vmatprep.mubr.bf16.mxu0 0
        %1469 = vmatmul.mubr.bf16.gmra.mrb[0].mxu0 %v1107
        %v1470 = vpop.f32.mrb[0].mxu0
        %v1471 = vadd.f32 0.0, %v1470
        %v1472 = vpop.f32.mrb[0].mxu0
        %v1473 = vpop.f32.mrb[0].mxu0
        %v1474 = vadd.f32 0.0, %v1473
        %v1475 = vpop.f32.mrb[0].mxu0
        %1476 = vmatprep.mubr.bf16.mxu0 0
        %1477 = vmatmul.mubr.bf16.gmra.mrb[0].mxu0 %v1110
        %v1478 = vpop.f32.mrb[0].mxu0
        %v1479 = vadd.f32 0.0, %v1478
        %v1480 = vpop.f32.mrb[0].mxu0
        %v1481 = vpop.f32.mrb[0].mxu0
        %v1482 = vadd.f32 0.0, %v1481
        %v1483 = vpop.f32.mrb[0].mxu0
        %1484 = vmatprep.mubr.bf16.mxu0 0
        %1485 = vmatmul.mubr.bf16.gmra.mrb[0].mxu0 %v1113
        %v1486 = vpop.f32.mrb[0].mxu0
        %v1487 = vadd.f32 0.0, %v1486
        %v1488 = vpop.f32.mrb[0].mxu0
        %v1489 = vpop.f32.mrb[0].mxu0
        %v1490 = vadd.f32 0.0, %v1489
        %v1491 = vpop.f32.mrb[0].mxu0
        %1492 = vmatprep.mubr.bf16.mxu0 0
        %1493 = vmatmul.mubr.bf16.gmra.mrb[0].mxu0 %v1350
        %v1494 = vpop.f32.mrb[0].mxu0
        %v1495 = vadd.f32 0.0, %v1494
        %v1496 = vpop.f32.mrb[0].mxu0
        %v1497 = vpop.f32.mrb[0].mxu0
        %v1498 = vadd.f32 0.0, %v1497
        %v1499 = vpop.f32.mrb[0].mxu0
        %1500 = vmatprep.mubr.bf16.mxu0 0
        %1501 = vmatmul.mubr.bf16.gmra.mrb[0].mxu0 %v1353
        %v1502 = vpop.f32.mrb[0].mxu0
        %v1503 = vadd.f32 0.0, %v1502
        %v1504 = vpop.f32.mrb[0].mxu0
        %v1505 = vpop.f32.mrb[0].mxu0
        %v1506 = vadd.f32 0.0, %v1505
        %v1507 = vpop.f32.mrb[0].mxu0
        %1508 = vmatprep.mubr.bf16.mxu0 0
        %1509 = vmatmul.mubr.bf16.gmra.mrb[0].mxu0 %v1356
        %v1510 = vpop.f32.mrb[0].mxu0
        %v1511 = vadd.f32 0.0, %v1510
        %v1512 = vpop.f32.mrb[0].mxu0
        %v1513 = vpop.f32.mrb[0].mxu0
        %v1514 = vadd.f32 0.0, %v1513
        %v1515 = vpop.f32.mrb[0].mxu0
        %1516 = vmatprep.mubr.bf16.mxu0 0
        %1517 = vmatmul.mubr.bf16.gmra.mrb[0].mxu0 %v1359
        %v1518 = vpop.f32.mrb[0].mxu0
        %v1519 = vadd.f32 0.0, %v1518
        %v1520 = vpop.f32.mrb[0].mxu0
        %v1521 = vpop.f32.mrb[0].mxu0
        %v1522 = vadd.f32 0.0, %v1521
        %v1523 = vpop.f32.mrb[0].mxu0
        %1524 = vdwg.mxu0
        %v1525 = vadd.f32 %v1279, %v1399
        %v1526 = vadd.f32 %v1280, %v1402
        %v1527 = vadd.f32 %v1281, %v1407
        %v1528 = vadd.f32 %v1282, %v1410
        %v1529 = vadd.f32 %v1283, %v1415
        %v1530 = vadd.f32 %v1284, %v1418
        %v1531 = vadd.f32 %v1285, %v1423
        %v1532 = vadd.f32 %v1286, %v1426
        %v1533 = vadd.f32 %v1287, %v1431
        %v1534 = vadd.f32 %v1288, %v1434
        %v1535 = vadd.f32 %v1289, %v1439
        %v1536 = vadd.f32 %v1290, %v1442
        %v1537 = vadd.f32 %v1291, %v1447
        %v1538 = vadd.f32 %v1292, %v1450
        %v1539 = vadd.f32 %v1293, %v1455
        %v1540 = vadd.f32 %v1294, %v1458
        %v1541 = vadd.f32 %v1295, %v1463
        %v1542 = vadd.f32 %v1296, %v1466
        %v1543 = vadd.f32 %v1297, %v1471
        %v1544 = vadd.f32 %v1298, %v1474
        %v1545 = vadd.f32 %v1299, %v1479
        %v1546 = vadd.f32 %v1300, %v1482
        %v1547 = vadd.f32 %v1301, %v1487
        %v1548 = vadd.f32 %v1302, %v1490
        %v1549 = vadd.f32 %v1303, %v1495
        %v1550 = vadd.f32 %v1304, %v1498
        %v1551 = vadd.f32 %v1305, %v1503
        %v1552 = vadd.f32 %v1306, %v1506
        %v1553 = vadd.f32 %v1307, %v1511
        %v1554 = vadd.f32 %v1308, %v1514
        %v1555 = vadd.f32 %v1309, %v1519
        %v1556 = vadd.f32 %v1310, %v1522
        %s1557 = scalar_lea.vmem %s333, 16
        %v1558 = vld [vmem:[%s1557] sm:$0xff]
        %v1559 = vld [vmem:[%s1557 + $0x10] sm:$0xff]
        %v1560 = vld [vmem:[%s1557 + $0x20] sm:$0xff]
        %v1561 = vld [vmem:[%s1557 + $0x30] sm:$0xff]
        %v1562 = vld [vmem:[%s1557 + $0x40] sm:$0xff]
        %v1563 = vld [vmem:[%s1557 + $0x50] sm:$0xff]
        %v1564 = vld [vmem:[%s1557 + $0x60] sm:$0xff]
        %v1565 = vld [vmem:[%s1557 + $0x70] sm:$0xff]
        %s1566 = scalar_lea.vmem %s333, 176
        %v1567 = vld [vmem:[%s1566] sm:$0xff]
        %v1568 = vld [vmem:[%s1566 + $0x10] sm:$0xff]
        %v1569 = vld [vmem:[%s1566 + $0x20] sm:$0xff]
        %v1570 = vld [vmem:[%s1566 + $0x30] sm:$0xff]
        %v1571 = vld [vmem:[%s1566 + $0x40] sm:$0xff]
        %v1572 = vld [vmem:[%s1566 + $0x50] sm:$0xff]
        %v1573 = vld [vmem:[%s1566 + $0x60] sm:$0xff]
        %v1574 = vld [vmem:[%s1566 + $0x70] sm:$0xff]
        %v1575 = vpack.c.bf16 %v1559, %v1558
        %v1576 = vpack.c.bf16 %v1561, %v1560
        %v1577 = vpack.c.bf16 %v1563, %v1562
        %v1578 = vpack.c.bf16 %v1565, %v1564
        %v1579 = vpack.c.bf16 %v1568, %v1567
        %v1580 = vpack.c.bf16 %v1570, %v1569
        %v1581 = vpack.c.bf16 %v1572, %v1571
        %v1582 = vpack.c.bf16 %v1574, %v1573
        %s1583 = scalar_lea.vmem %s1, 10
        %v1584 = vld [vmem:[%s1583] sm:$0x3]
        %v1586 = vsel %vm414, %v1575, 0
        %v1589 = vsel %vm414, %v1576, 0
        %v1592 = vsel %vm414, %v1577, 0
        %v1595 = vsel %vm414, %v1578, 0
        %v1598 = vsel %vm414, %v1579, 0
        %v1601 = vsel %vm414, %v1580, 0
        %v1604 = vsel %vm414, %v1581, 0
        %v1607 = vsel %vm414, %v1582, 0
        %v1610 = vand.u32 %v1584, %v466
        %1612 = vmatprep.subr.bf16.mxu0 0
        %1613 = vmatpush1.bf16.msra.mxu0 %v1610
        %1614 = vmatprep.subr.bf16.mxu0 0
        %1615 = vmatpush1.bf16.msra.mxu0 0
        %1616 = vmatprep.subr.bf16.mxu0 0
        %1617 = vmatpush1.bf16.msra.mxu0 0
        %1618 = vmatprep.subr.bf16.mxu0 0
        %1619 = vmatpush1.bf16.msra.mxu0 0
        %1620 = vmatprep.subr.bf16.mxu0 0
        %1621 = vmatpush1.bf16.msra.mxu0 0
        %1622 = vmatprep.subr.bf16.mxu0 0
        %1623 = vmatpush1.bf16.msra.mxu0 0
        %1624 = vmatprep.subr.bf16.mxu0 0
        %1625 = vmatpush1.bf16.msra.mxu0 0
        %1626 = vmatprep.subr.bf16.mxu0 0
        %1627 = vmatpush1.bf16.msra.mxu0 0
        %1628 = vmatprep.subr.bf16.mxu0 0
        %1629 = vmatpush1.bf16.msra.mxu0 0
        %1630 = vmatprep.subr.bf16.mxu0 0
        %1631 = vmatpush1.bf16.msra.mxu0 0
        %1632 = vmatprep.subr.bf16.mxu0 0
        %1633 = vmatpush1.bf16.msra.mxu0 0
        %1634 = vmatprep.subr.bf16.mxu0 0
        %1635 = vmatpush1.bf16.msra.mxu0 0
        %1636 = vmatprep.subr.bf16.mxu0 0
        %1637 = vmatpush1.bf16.msra.mxu0 0
        %1638 = vmatprep.subr.bf16.mxu0 0
        %1639 = vmatpush1.bf16.msra.mxu0 0
        %1640 = vmatprep.subr.bf16.mxu0 0
        %1641 = vmatpush1.bf16.msra.mxu0 0
        %1642 = vmatprep.subr.bf16.mxu0 0
        %1643 = vmatpush1.bf16.msra.mxu0 0
        %1644 = vmatprep.mubr.bf16.mxu0 0
        %1645 = vmatmul.mubr.bf16.gmra.mrb[0].mxu0 %v644
        %v1646 = vpop.f32.mrb[0].mxu0
        %v1647 = vadd.f32 0.0, %v1646
        %v1648 = vpop.f32.mrb[0].mxu0
        %v1649 = vpop.f32.mrb[0].mxu0
        %v1650 = vadd.f32 0.0, %v1649
        %v1651 = vpop.f32.mrb[0].mxu0
        %1652 = vmatprep.mubr.bf16.mxu0 0
        %1653 = vmatmul.mubr.bf16.gmra.mrb[0].mxu0 %v647
        %v1654 = vpop.f32.mrb[0].mxu0
        %v1655 = vadd.f32 0.0, %v1654
        %v1656 = vpop.f32.mrb[0].mxu0
        %v1657 = vpop.f32.mrb[0].mxu0
        %v1658 = vadd.f32 0.0, %v1657
        %v1659 = vpop.f32.mrb[0].mxu0
        %1660 = vmatprep.mubr.bf16.mxu0 0
        %1661 = vmatmul.mubr.bf16.gmra.mrb[0].mxu0 %v650
        %v1662 = vpop.f32.mrb[0].mxu0
        %v1663 = vadd.f32 0.0, %v1662
        %v1664 = vpop.f32.mrb[0].mxu0
        %v1665 = vpop.f32.mrb[0].mxu0
        %v1666 = vadd.f32 0.0, %v1665
        %v1667 = vpop.f32.mrb[0].mxu0
        %1668 = vmatprep.mubr.bf16.mxu0 0
        %1669 = vmatmul.mubr.bf16.gmra.mrb[0].mxu0 %v653
        %v1670 = vpop.f32.mrb[0].mxu0
        %v1671 = vadd.f32 0.0, %v1670
        %v1672 = vpop.f32.mrb[0].mxu0
        %v1673 = vpop.f32.mrb[0].mxu0
        %v1674 = vadd.f32 0.0, %v1673
        %v1675 = vpop.f32.mrb[0].mxu0
        %1676 = vmatprep.mubr.bf16.mxu0 0
        %1677 = vmatmul.mubr.bf16.gmra.mrb[0].mxu0 %v440
        %v1678 = vpop.f32.mrb[0].mxu0
        %v1679 = vadd.f32 0.0, %v1678
        %v1680 = vpop.f32.mrb[0].mxu0
        %v1681 = vpop.f32.mrb[0].mxu0
        %v1682 = vadd.f32 0.0, %v1681
        %v1683 = vpop.f32.mrb[0].mxu0
        %1684 = vmatprep.mubr.bf16.mxu0 0
        %1685 = vmatmul.mubr.bf16.gmra.mrb[0].mxu0 %v443
        %v1686 = vpop.f32.mrb[0].mxu0
        %v1687 = vadd.f32 0.0, %v1686
        %v1688 = vpop.f32.mrb[0].mxu0
        %v1689 = vpop.f32.mrb[0].mxu0
        %v1690 = vadd.f32 0.0, %v1689
        %v1691 = vpop.f32.mrb[0].mxu0
        %1692 = vmatprep.mubr.bf16.mxu0 0
        %1693 = vmatmul.mubr.bf16.gmra.mrb[0].mxu0 %v446
        %v1694 = vpop.f32.mrb[0].mxu0
        %v1695 = vadd.f32 0.0, %v1694
        %v1696 = vpop.f32.mrb[0].mxu0
        %v1697 = vpop.f32.mrb[0].mxu0
        %v1698 = vadd.f32 0.0, %v1697
        %v1699 = vpop.f32.mrb[0].mxu0
        %1700 = vmatprep.mubr.bf16.mxu0 0
        %1701 = vmatmul.mubr.bf16.gmra.mrb[0].mxu0 %v449
        %v1702 = vpop.f32.mrb[0].mxu0
        %v1703 = vadd.f32 0.0, %v1702
        %v1704 = vpop.f32.mrb[0].mxu0
        %v1705 = vpop.f32.mrb[0].mxu0
        %v1706 = vadd.f32 0.0, %v1705
        %v1707 = vpop.f32.mrb[0].mxu0
        %1708 = vmatprep.mubr.bf16.mxu0 0
        %1709 = vmatmul.mubr.bf16.gmra.mrb[0].mxu0 %v1586
        %v1710 = vpop.f32.mrb[0].mxu0
        %v1711 = vadd.f32 0.0, %v1710
        %v1712 = vpop.f32.mrb[0].mxu0
        %v1713 = vpop.f32.mrb[0].mxu0
        %v1714 = vadd.f32 0.0, %v1713
        %v1715 = vpop.f32.mrb[0].mxu0
        %1716 = vmatprep.mubr.bf16.mxu0 0
        %1717 = vmatmul.mubr.bf16.gmra.mrb[0].mxu0 %v1589
        %v1718 = vpop.f32.mrb[0].mxu0
        %v1719 = vadd.f32 0.0, %v1718
        %v1720 = vpop.f32.mrb[0].mxu0
        %v1721 = vpop.f32.mrb[0].mxu0
        %v1722 = vadd.f32 0.0, %v1721
        %v1723 = vpop.f32.mrb[0].mxu0
        %1724 = vmatprep.mubr.bf16.mxu0 0
        %1725 = vmatmul.mubr.bf16.gmra.mrb[0].mxu0 %v1592
        %v1726 = vpop.f32.mrb[0].mxu0
        %v1727 = vadd.f32 0.0, %v1726
        %v1728 = vpop.f32.mrb[0].mxu0
        %v1729 = vpop.f32.mrb[0].mxu0
        %v1730 = vadd.f32 0.0, %v1729
        %v1731 = vpop.f32.mrb[0].mxu0
        %1732 = vmatprep.mubr.bf16.mxu0 0
        %1733 = vmatmul.mubr.bf16.gmra.mrb[0].mxu0 %v1595
        %v1734 = vpop.f32.mrb[0].mxu0
        %v1735 = vadd.f32 0.0, %v1734
        %v1736 = vpop.f32.mrb[0].mxu0
        %v1737 = vpop.f32.mrb[0].mxu0
        %v1738 = vadd.f32 0.0, %v1737
        %v1739 = vpop.f32.mrb[0].mxu0
        %1740 = vmatprep.mubr.bf16.mxu0 0
        %1741 = vmatmul.mubr.bf16.gmra.mrb[0].mxu0 %v1598
        %v1742 = vpop.f32.mrb[0].mxu0
        %v1743 = vadd.f32 0.0, %v1742
        %v1744 = vpop.f32.mrb[0].mxu0
        %v1745 = vpop.f32.mrb[0].mxu0
        %v1746 = vadd.f32 0.0, %v1745
        %v1747 = vpop.f32.mrb[0].mxu0
        %1748 = vmatprep.mubr.bf16.mxu0 0
        %1749 = vmatmul.mubr.bf16.gmra.mrb[0].mxu0 %v1601
        %v1750 = vpop.f32.mrb[0].mxu0
        %v1751 = vadd.f32 0.0, %v1750
        %v1752 = vpop.f32.mrb[0].mxu0
        %v1753 = vpop.f32.mrb[0].mxu0
        %v1754 = vadd.f32 0.0, %v1753
        %v1755 = vpop.f32.mrb[0].mxu0
        %1756 = vmatprep.mubr.bf16.mxu0 0
        %1757 = vmatmul.mubr.bf16.gmra.mrb[0].mxu0 %v1604
        %v1758 = vpop.f32.mrb[0].mxu0
        %v1759 = vadd.f32 0.0, %v1758
        %v1760 = vpop.f32.mrb[0].mxu0
        %v1761 = vpop.f32.mrb[0].mxu0
        %v1762 = vadd.f32 0.0, %v1761
        %v1763 = vpop.f32.mrb[0].mxu0
        %1764 = vmatprep.mubr.bf16.mxu0 0
        %1765 = vmatmul.mubr.bf16.gmra.mrb[0].mxu0 %v1607
        %v1766 = vpop.f32.mrb[0].mxu0
        %v1767 = vadd.f32 0.0, %v1766
        %v1768 = vpop.f32.mrb[0].mxu0
        %v1769 = vpop.f32.mrb[0].mxu0
        %v1770 = vadd.f32 0.0, %v1769
        %v1771 = vpop.f32.mrb[0].mxu0
        %1772 = vdwg.mxu0
        %v1773 = vadd.f32 %v1525, %v1647
        %v1774 = vadd.f32 %v1526, %v1650
        %v1775 = vadd.f32 %v1527, %v1655
        %v1776 = vadd.f32 %v1528, %v1658
        %v1777 = vadd.f32 %v1529, %v1663
        %v1778 = vadd.f32 %v1530, %v1666
        %v1779 = vadd.f32 %v1531, %v1671
        %v1780 = vadd.f32 %v1532, %v1674
        %v1781 = vadd.f32 %v1533, %v1679
        %v1782 = vadd.f32 %v1534, %v1682
        %v1783 = vadd.f32 %v1535, %v1687
        %v1784 = vadd.f32 %v1536, %v1690
        %v1785 = vadd.f32 %v1537, %v1695
        %v1786 = vadd.f32 %v1538, %v1698
        %v1787 = vadd.f32 %v1539, %v1703
        %v1788 = vadd.f32 %v1540, %v1706
        %v1789 = vadd.f32 %v1541, %v1711
        %v1790 = vadd.f32 %v1542, %v1714
        %v1791 = vadd.f32 %v1543, %v1719
        %v1792 = vadd.f32 %v1544, %v1722
        %v1793 = vadd.f32 %v1545, %v1727
        %v1794 = vadd.f32 %v1546, %v1730
        %v1795 = vadd.f32 %v1547, %v1735
        %v1796 = vadd.f32 %v1548, %v1738
        %v1797 = vadd.f32 %v1549, %v1743
        %v1798 = vadd.f32 %v1550, %v1746
        %v1799 = vadd.f32 %v1551, %v1751
        %v1800 = vadd.f32 %v1552, %v1754
        %v1801 = vadd.f32 %v1553, %v1759
        %v1802 = vadd.f32 %v1554, %v1762
        %v1803 = vadd.f32 %v1555, %v1767
        %v1804 = vadd.f32 %v1556, %v1770
        %v1805 = vld [vmem:[%s1557 + $0x1] sm:$0xff]
        %v1806 = vld [vmem:[%s1557 + $0x11] sm:$0xff]
        %v1807 = vld [vmem:[%s1557 + $0x21] sm:$0xff]
        %v1808 = vld [vmem:[%s1557 + $0x31] sm:$0xff]
        %v1809 = vld [vmem:[%s1557 + $0x41] sm:$0xff]
        %v1810 = vld [vmem:[%s1557 + $0x51] sm:$0xff]
        %v1811 = vld [vmem:[%s1557 + $0x61] sm:$0xff]
        %v1812 = vld [vmem:[%s1557 + $0x71] sm:$0xff]
        %v1813 = vpack.c.bf16 %v1806, %v1805
        %v1814 = vpack.c.bf16 %v1808, %v1807
        %v1815 = vpack.c.bf16 %v1810, %v1809
        %v1816 = vpack.c.bf16 %v1812, %v1811
        %s1817 = scalar_lea.vmem %s1, 12
        %v1818 = vld [vmem:[%s1817] sm:$0x3]
        %v1820 = vsel %vm414, %v1813, 0
        %v1823 = vsel %vm414, %v1814, 0
        %v1826 = vsel %vm414, %v1815, 0
        %v1829 = vsel %vm414, %v1816, 0
        %v1832 = vand.u32 %v1818, %v466
        %1834 = vmatprep.subr.bf16.mxu0 0
        %1835 = vmatpush1.bf16.msra.mxu0 %v1832
        %1836 = vmatprep.subr.bf16.mxu0 0
        %1837 = vmatpush1.bf16.msra.mxu0 0
        %1838 = vmatprep.subr.bf16.mxu0 0
        %1839 = vmatpush1.bf16.msra.mxu0 0
        %1840 = vmatprep.subr.bf16.mxu0 0
        %1841 = vmatpush1.bf16.msra.mxu0 0
        %1842 = vmatprep.subr.bf16.mxu0 0
        %1843 = vmatpush1.bf16.msra.mxu0 0
        %1844 = vmatprep.subr.bf16.mxu0 0
        %1845 = vmatpush1.bf16.msra.mxu0 0
        %1846 = vmatprep.subr.bf16.mxu0 0
        %1847 = vmatpush1.bf16.msra.mxu0 0
        %1848 = vmatprep.subr.bf16.mxu0 0
        %1849 = vmatpush1.bf16.msra.mxu0 0
        %1850 = vmatprep.subr.bf16.mxu0 0
        %1851 = vmatpush1.bf16.msra.mxu0 0
        %1852 = vmatprep.subr.bf16.mxu0 0
        %1853 = vmatpush1.bf16.msra.mxu0 0
        %1854 = vmatprep.subr.bf16.mxu0 0
        %1855 = vmatpush1.bf16.msra.mxu0 0
        %1856 = vmatprep.subr.bf16.mxu0 0
        %1857 = vmatpush1.bf16.msra.mxu0 0
        %1858 = vmatprep.subr.bf16.mxu0 0
        %1859 = vmatpush1.bf16.msra.mxu0 0
        %1860 = vmatprep.subr.bf16.mxu0 0
        %1861 = vmatpush1.bf16.msra.mxu0 0
        %1862 = vmatprep.subr.bf16.mxu0 0
        %1863 = vmatpush1.bf16.msra.mxu0 0
        %1864 = vmatprep.subr.bf16.mxu0 0
        %1865 = vmatpush1.bf16.msra.mxu0 0
        %1866 = vmatprep.mubr.bf16.mxu0 0
        %1867 = vmatmul.mubr.bf16.gmra.mrb[0].mxu0 %v440
        %v1868 = vpop.f32.mrb[0].mxu0
        %v1869 = vadd.f32 0.0, %v1868
        %v1870 = vpop.f32.mrb[0].mxu0
        %v1871 = vpop.f32.mrb[0].mxu0
        %v1872 = vadd.f32 0.0, %v1871
        %v1873 = vpop.f32.mrb[0].mxu0
        %1874 = vmatprep.mubr.bf16.mxu0 0
        %1875 = vmatmul.mubr.bf16.gmra.mrb[0].mxu0 %v443
        %v1876 = vpop.f32.mrb[0].mxu0
        %v1877 = vadd.f32 0.0, %v1876
        %v1878 = vpop.f32.mrb[0].mxu0
        %v1879 = vpop.f32.mrb[0].mxu0
        %v1880 = vadd.f32 0.0, %v1879
        %v1881 = vpop.f32.mrb[0].mxu0
        %1882 = vmatprep.mubr.bf16.mxu0 0
        %1883 = vmatmul.mubr.bf16.gmra.mrb[0].mxu0 %v446
        %v1884 = vpop.f32.mrb[0].mxu0
        %v1885 = vadd.f32 0.0, %v1884
        %v1886 = vpop.f32.mrb[0].mxu0
        %v1887 = vpop.f32.mrb[0].mxu0
        %v1888 = vadd.f32 0.0, %v1887
        %v1889 = vpop.f32.mrb[0].mxu0
        %1890 = vmatprep.mubr.bf16.mxu0 0
        %1891 = vmatmul.mubr.bf16.gmra.mrb[0].mxu0 %v449
        %v1892 = vpop.f32.mrb[0].mxu0
        %v1893 = vadd.f32 0.0, %v1892
        %v1894 = vpop.f32.mrb[0].mxu0
        %v1895 = vpop.f32.mrb[0].mxu0
        %v1896 = vadd.f32 0.0, %v1895
        %v1897 = vpop.f32.mrb[0].mxu0
        %1898 = vmatprep.mubr.bf16.mxu0 0
        %1899 = vmatmul.mubr.bf16.gmra.mrb[0].mxu0 %v452
        %v1900 = vpop.f32.mrb[0].mxu0
        %v1901 = vadd.f32 0.0, %v1900
        %v1902 = vpop.f32.mrb[0].mxu0
        %v1903 = vpop.f32.mrb[0].mxu0
        %v1904 = vadd.f32 0.0, %v1903
        %v1905 = vpop.f32.mrb[0].mxu0
        %1906 = vmatprep.mubr.bf16.mxu0 0
        %1907 = vmatmul.mubr.bf16.gmra.mrb[0].mxu0 %v455
        %v1908 = vpop.f32.mrb[0].mxu0
        %v1909 = vadd.f32 0.0, %v1908
        %v1910 = vpop.f32.mrb[0].mxu0
        %v1911 = vpop.f32.mrb[0].mxu0
        %v1912 = vadd.f32 0.0, %v1911
        %v1913 = vpop.f32.mrb[0].mxu0
        %1914 = vmatprep.mubr.bf16.mxu0 0
        %1915 = vmatmul.mubr.bf16.gmra.mrb[0].mxu0 %v458
        %v1916 = vpop.f32.mrb[0].mxu0
        %v1917 = vadd.f32 0.0, %v1916
        %v1918 = vpop.f32.mrb[0].mxu0
        %v1919 = vpop.f32.mrb[0].mxu0
        %v1920 = vadd.f32 0.0, %v1919
        %v1921 = vpop.f32.mrb[0].mxu0
        %1922 = vmatprep.mubr.bf16.mxu0 0
        %1923 = vmatmul.mubr.bf16.gmra.mrb[0].mxu0 %v461
        %v1924 = vpop.f32.mrb[0].mxu0
        %v1925 = vadd.f32 0.0, %v1924
        %v1926 = vpop.f32.mrb[0].mxu0
        %v1927 = vpop.f32.mrb[0].mxu0
        %v1928 = vadd.f32 0.0, %v1927
        %v1929 = vpop.f32.mrb[0].mxu0
        %1930 = vmatprep.mubr.bf16.mxu0 0
        %1931 = vmatmul.mubr.bf16.gmra.mrb[0].mxu0 %v1598
        %v1932 = vpop.f32.mrb[0].mxu0
        %v1933 = vadd.f32 0.0, %v1932
        %v1934 = vpop.f32.mrb[0].mxu0
        %v1935 = vpop.f32.mrb[0].mxu0
        %v1936 = vadd.f32 0.0, %v1935
        %v1937 = vpop.f32.mrb[0].mxu0
        %1938 = vmatprep.mubr.bf16.mxu0 0
        %1939 = vmatmul.mubr.bf16.gmra.mrb[0].mxu0 %v1601
        %v1940 = vpop.f32.mrb[0].mxu0
        %v1941 = vadd.f32 0.0, %v1940
        %v1942 = vpop.f32.mrb[0].mxu0
        %v1943 = vpop.f32.mrb[0].mxu0
        %v1944 = vadd.f32 0.0, %v1943
        %v1945 = vpop.f32.mrb[0].mxu0
        %1946 = vmatprep.mubr.bf16.mxu0 0
        %1947 = vmatmul.mubr.bf16.gmra.mrb[0].mxu0 %v1604
        %v1948 = vpop.f32.mrb[0].mxu0
        %v1949 = vadd.f32 0.0, %v1948
        %v1950 = vpop.f32.mrb[0].mxu0
        %v1951 = vpop.f32.mrb[0].mxu0
        %v1952 = vadd.f32 0.0, %v1951
        %v1953 = vpop.f32.mrb[0].mxu0
        %1954 = vmatprep.mubr.bf16.mxu0 0
        %1955 = vmatmul.mubr.bf16.gmra.mrb[0].mxu0 %v1607
        %v1956 = vpop.f32.mrb[0].mxu0
        %v1957 = vadd.f32 0.0, %v1956
        %v1958 = vpop.f32.mrb[0].mxu0
        %v1959 = vpop.f32.mrb[0].mxu0
        %v1960 = vadd.f32 0.0, %v1959
        %v1961 = vpop.f32.mrb[0].mxu0
        %1962 = vmatprep.mubr.bf16.mxu0 0
        %1963 = vmatmul.mubr.bf16.gmra.mrb[0].mxu0 %v1820
        %v1964 = vpop.f32.mrb[0].mxu0
        %v1965 = vadd.f32 0.0, %v1964
        %v1966 = vpop.f32.mrb[0].mxu0
        %v1967 = vpop.f32.mrb[0].mxu0
        %v1968 = vadd.f32 0.0, %v1967
        %v1969 = vpop.f32.mrb[0].mxu0
        %1970 = vmatprep.mubr.bf16.mxu0 0
        %1971 = vmatmul.mubr.bf16.gmra.mrb[0].mxu0 %v1823
        %v1972 = vpop.f32.mrb[0].mxu0
        %v1973 = vadd.f32 0.0, %v1972
        %v1974 = vpop.f32.mrb[0].mxu0
        %v1975 = vpop.f32.mrb[0].mxu0
        %v1976 = vadd.f32 0.0, %v1975
        %v1977 = vpop.f32.mrb[0].mxu0
        %1978 = vmatprep.mubr.bf16.mxu0 0
        %1979 = vmatmul.mubr.bf16.gmra.mrb[0].mxu0 %v1826
        %v1980 = vpop.f32.mrb[0].mxu0
        %v1981 = vadd.f32 0.0, %v1980
        %v1982 = vpop.f32.mrb[0].mxu0
        %v1983 = vpop.f32.mrb[0].mxu0
        %v1984 = vadd.f32 0.0, %v1983
        %v1985 = vpop.f32.mrb[0].mxu0
        %1986 = vmatprep.mubr.bf16.mxu0 0
        %1987 = vmatmul.mubr.bf16.gmra.mrb[0].mxu0 %v1829
        %v1988 = vpop.f32.mrb[0].mxu0
        %v1989 = vadd.f32 0.0, %v1988
        %v1990 = vpop.f32.mrb[0].mxu0
        %v1991 = vpop.f32.mrb[0].mxu0
        %v1992 = vadd.f32 0.0, %v1991
        %v1993 = vpop.f32.mrb[0].mxu0
        %1994 = vdwg.mxu0
        %v1995 = vadd.f32 %v1773, %v1869
        %v1996 = vadd.f32 %v1774, %v1872
        %v1997 = vadd.f32 %v1775, %v1877
        %v1998 = vadd.f32 %v1776, %v1880
        %v1999 = vadd.f32 %v1777, %v1885
        %v2000 = vadd.f32 %v1778, %v1888
        %v2001 = vadd.f32 %v1779, %v1893
        %v2002 = vadd.f32 %v1780, %v1896
        %v2003 = vadd.f32 %v1781, %v1901
        %v2004 = vadd.f32 %v1782, %v1904
        %v2005 = vadd.f32 %v1783, %v1909
        %v2006 = vadd.f32 %v1784, %v1912
        %v2007 = vadd.f32 %v1785, %v1917
        %v2008 = vadd.f32 %v1786, %v1920
        %v2009 = vadd.f32 %v1787, %v1925
        %v2010 = vadd.f32 %v1788, %v1928
        %v2011 = vadd.f32 %v1789, %v1933
        %v2012 = vadd.f32 %v1790, %v1936
        %v2013 = vadd.f32 %v1791, %v1941
        %v2014 = vadd.f32 %v1792, %v1944
        %v2015 = vadd.f32 %v1793, %v1949
        %v2016 = vadd.f32 %v1794, %v1952
        %v2017 = vadd.f32 %v1795, %v1957
        %v2018 = vadd.f32 %v1796, %v1960
        %v2019 = vadd.f32 %v1797, %v1965
        %v2020 = vadd.f32 %v1798, %v1968
        %v2021 = vadd.f32 %v1799, %v1973
        %v2022 = vadd.f32 %v1800, %v1976
        %v2023 = vadd.f32 %v1801, %v1981
        %v2024 = vadd.f32 %v1802, %v1984
        %v2025 = vadd.f32 %v1803, %v1989
        %v2026 = vadd.f32 %v1804, %v1992
        %v2027 = vld [vmem:[%s1566 + $0x1] sm:$0xff]
        %v2028 = vld [vmem:[%s1566 + $0x11] sm:$0xff]
        %v2029 = vld [vmem:[%s1566 + $0x21] sm:$0xff]
        %v2030 = vld [vmem:[%s1566 + $0x31] sm:$0xff]
        %v2031 = vld [vmem:[%s1566 + $0x41] sm:$0xff]
        %v2032 = vld [vmem:[%s1566 + $0x51] sm:$0xff]
        %v2033 = vld [vmem:[%s1566 + $0x61] sm:$0xff]
        %v2034 = vld [vmem:[%s1566 + $0x71] sm:$0xff]
        %v2035 = vpack.c.bf16 %v2028, %v2027
        %v2036 = vpack.c.bf16 %v2030, %v2029
        %v2037 = vpack.c.bf16 %v2032, %v2031
        %v2038 = vpack.c.bf16 %v2034, %v2033
        %s2039 = scalar_lea.vmem %s1, 14
        %v2040 = vld [vmem:[%s2039] sm:$0x3]
        %v2042 = vsel %vm414, %v2035, 0
        %v2045 = vsel %vm414, %v2036, 0
        %v2048 = vsel %vm414, %v2037, 0
        %v2051 = vsel %vm414, %v2038, 0
        %v2054 = vand.u32 %v2040, %v466
        %2056 = vmatprep.subr.bf16.mxu0 0
        %2057 = vmatpush1.bf16.msra.mxu0 %v2054
        %2058 = vmatprep.subr.bf16.mxu0 0
        %2059 = vmatpush1.bf16.msra.mxu0 0
        %2060 = vmatprep.subr.bf16.mxu0 0
        %2061 = vmatpush1.bf16.msra.mxu0 0
        %2062 = vmatprep.subr.bf16.mxu0 0
        %2063 = vmatpush1.bf16.msra.mxu0 0
        %2064 = vmatprep.subr.bf16.mxu0 0
        %2065 = vmatpush1.bf16.msra.mxu0 0
        %2066 = vmatprep.subr.bf16.mxu0 0
        %2067 = vmatpush1.bf16.msra.mxu0 0
        %2068 = vmatprep.subr.bf16.mxu0 0
        %2069 = vmatpush1.bf16.msra.mxu0 0
        %2070 = vmatprep.subr.bf16.mxu0 0
        %2071 = vmatpush1.bf16.msra.mxu0 0
        %2072 = vmatprep.subr.bf16.mxu0 0
        %2073 = vmatpush1.bf16.msra.mxu0 0
        %2074 = vmatprep.subr.bf16.mxu0 0
        %2075 = vmatpush1.bf16.msra.mxu0 0
        %2076 = vmatprep.subr.bf16.mxu0 0
        %2077 = vmatpush1.bf16.msra.mxu0 0
        %2078 = vmatprep.subr.bf16.mxu0 0
        %2079 = vmatpush1.bf16.msra.mxu0 0
        %2080 = vmatprep.subr.bf16.mxu0 0
        %2081 = vmatpush1.bf16.msra.mxu0 0
        %2082 = vmatprep.subr.bf16.mxu0 0
        %2083 = vmatpush1.bf16.msra.mxu0 0
        %2084 = vmatprep.subr.bf16.mxu0 0
        %2085 = vmatpush1.bf16.msra.mxu0 0
        %2086 = vmatprep.subr.bf16.mxu0 0
        %2087 = vmatpush1.bf16.msra.mxu0 0
        %2088 = vmatprep.mubr.bf16.mxu0 0
        %2089 = vmatmul.mubr.bf16.gmra.mrb[0].mxu0 %v452
        %v2090 = vpop.f32.mrb[0].mxu0
        %v2091 = vadd.f32 0.0, %v2090
        %v2092 = vpop.f32.mrb[0].mxu0
        %v2093 = vpop.f32.mrb[0].mxu0
        %v2094 = vadd.f32 0.0, %v2093
        %v2095 = vpop.f32.mrb[0].mxu0
        %2096 = vmatprep.mubr.bf16.mxu0 0
        %2097 = vmatmul.mubr.bf16.gmra.mrb[0].mxu0 %v455
        %v2098 = vpop.f32.mrb[0].mxu0
        %v2099 = vadd.f32 0.0, %v2098
        %v2100 = vpop.f32.mrb[0].mxu0
        %v2101 = vpop.f32.mrb[0].mxu0
        %v2102 = vadd.f32 0.0, %v2101
        %v2103 = vpop.f32.mrb[0].mxu0
        %2104 = vmatprep.mubr.bf16.mxu0 0
        %2105 = vmatmul.mubr.bf16.gmra.mrb[0].mxu0 %v458
        %v2106 = vpop.f32.mrb[0].mxu0
        %v2107 = vadd.f32 0.0, %v2106
        %v2108 = vpop.f32.mrb[0].mxu0
        %v2109 = vpop.f32.mrb[0].mxu0
        %v2110 = vadd.f32 0.0, %v2109
        %v2111 = vpop.f32.mrb[0].mxu0
        %2112 = vmatprep.mubr.bf16.mxu0 0
        %2113 = vmatmul.mubr.bf16.gmra.mrb[0].mxu0 %v461
        %v2114 = vpop.f32.mrb[0].mxu0
        %v2115 = vadd.f32 0.0, %v2114
        %v2116 = vpop.f32.mrb[0].mxu0
        %v2117 = vpop.f32.mrb[0].mxu0
        %v2118 = vadd.f32 0.0, %v2117
        %v2119 = vpop.f32.mrb[0].mxu0
        %2120 = vmatprep.mubr.bf16.mxu0 0
        %2121 = vmatmul.mubr.bf16.gmra.mrb[0].mxu0 %v858
        %v2122 = vpop.f32.mrb[0].mxu0
        %v2123 = vadd.f32 0.0, %v2122
        %v2124 = vpop.f32.mrb[0].mxu0
        %v2125 = vpop.f32.mrb[0].mxu0
        %v2126 = vadd.f32 0.0, %v2125
        %v2127 = vpop.f32.mrb[0].mxu0
        %2128 = vmatprep.mubr.bf16.mxu0 0
        %2129 = vmatmul.mubr.bf16.gmra.mrb[0].mxu0 %v861
        %v2130 = vpop.f32.mrb[0].mxu0
        %v2131 = vadd.f32 0.0, %v2130
        %v2132 = vpop.f32.mrb[0].mxu0
        %v2133 = vpop.f32.mrb[0].mxu0
        %v2134 = vadd.f32 0.0, %v2133
        %v2135 = vpop.f32.mrb[0].mxu0
        %2136 = vmatprep.mubr.bf16.mxu0 0
        %2137 = vmatmul.mubr.bf16.gmra.mrb[0].mxu0 %v864
        %v2138 = vpop.f32.mrb[0].mxu0
        %v2139 = vadd.f32 0.0, %v2138
        %v2140 = vpop.f32.mrb[0].mxu0
        %v2141 = vpop.f32.mrb[0].mxu0
        %v2142 = vadd.f32 0.0, %v2141
        %v2143 = vpop.f32.mrb[0].mxu0
        %2144 = vmatprep.mubr.bf16.mxu0 0
        %2145 = vmatmul.mubr.bf16.gmra.mrb[0].mxu0 %v867
        %v2146 = vpop.f32.mrb[0].mxu0
        %v2147 = vadd.f32 0.0, %v2146
        %v2148 = vpop.f32.mrb[0].mxu0
        %v2149 = vpop.f32.mrb[0].mxu0
        %v2150 = vadd.f32 0.0, %v2149
        %v2151 = vpop.f32.mrb[0].mxu0
        %2152 = vmatprep.mubr.bf16.mxu0 0
        %2153 = vmatmul.mubr.bf16.gmra.mrb[0].mxu0 %v1820
        %v2154 = vpop.f32.mrb[0].mxu0
        %v2155 = vadd.f32 0.0, %v2154
        %v2156 = vpop.f32.mrb[0].mxu0
        %v2157 = vpop.f32.mrb[0].mxu0
        %v2158 = vadd.f32 0.0, %v2157
        %v2159 = vpop.f32.mrb[0].mxu0
        %2160 = vmatprep.mubr.bf16.mxu0 0
        %2161 = vmatmul.mubr.bf16.gmra.mrb[0].mxu0 %v1823
        %v2162 = vpop.f32.mrb[0].mxu0
        %v2163 = vadd.f32 0.0, %v2162
        %v2164 = vpop.f32.mrb[0].mxu0
        %v2165 = vpop.f32.mrb[0].mxu0
        %v2166 = vadd.f32 0.0, %v2165
        %v2167 = vpop.f32.mrb[0].mxu0
        %2168 = vmatprep.mubr.bf16.mxu0 0
        %2169 = vmatmul.mubr.bf16.gmra.mrb[0].mxu0 %v1826
        %v2170 = vpop.f32.mrb[0].mxu0
        %v2171 = vadd.f32 0.0, %v2170
        %v2172 = vpop.f32.mrb[0].mxu0
        %v2173 = vpop.f32.mrb[0].mxu0
        %v2174 = vadd.f32 0.0, %v2173
        %v2175 = vpop.f32.mrb[0].mxu0
        %2176 = vmatprep.mubr.bf16.mxu0 0
        %2177 = vmatmul.mubr.bf16.gmra.mrb[0].mxu0 %v1829
        %v2178 = vpop.f32.mrb[0].mxu0
        %v2179 = vadd.f32 0.0, %v2178
        %v2180 = vpop.f32.mrb[0].mxu0
        %v2181 = vpop.f32.mrb[0].mxu0
        %v2182 = vadd.f32 0.0, %v2181
        %v2183 = vpop.f32.mrb[0].mxu0
        %2184 = vmatprep.mubr.bf16.mxu0 0
        %2185 = vmatmul.mubr.bf16.gmra.mrb[0].mxu0 %v2042
        %v2186 = vpop.f32.mrb[0].mxu0
        %v2187 = vadd.f32 0.0, %v2186
        %v2188 = vpop.f32.mrb[0].mxu0
        %v2189 = vpop.f32.mrb[0].mxu0
        %v2190 = vadd.f32 0.0, %v2189
        %v2191 = vpop.f32.mrb[0].mxu0
        %2192 = vmatprep.mubr.bf16.mxu0 0
        %2193 = vmatmul.mubr.bf16.gmra.mrb[0].mxu0 %v2045
        %v2194 = vpop.f32.mrb[0].mxu0
        %v2195 = vadd.f32 0.0, %v2194
        %v2196 = vpop.f32.mrb[0].mxu0
        %v2197 = vpop.f32.mrb[0].mxu0
        %v2198 = vadd.f32 0.0, %v2197
        %v2199 = vpop.f32.mrb[0].mxu0
        %2200 = vmatprep.mubr.bf16.mxu0 0
        %2201 = vmatmul.mubr.bf16.gmra.mrb[0].mxu0 %v2048
        %v2202 = vpop.f32.mrb[0].mxu0
        %v2203 = vadd.f32 0.0, %v2202
        %v2204 = vpop.f32.mrb[0].mxu0
        %v2205 = vpop.f32.mrb[0].mxu0
        %v2206 = vadd.f32 0.0, %v2205
        %v2207 = vpop.f32.mrb[0].mxu0
        %2208 = vmatprep.mubr.bf16.mxu0 0
        %2209 = vmatmul.mubr.bf16.gmra.mrb[0].mxu0 %v2051
        %v2210 = vpop.f32.mrb[0].mxu0
        %v2211 = vadd.f32 0.0, %v2210
        %v2212 = vpop.f32.mrb[0].mxu0
        %v2213 = vpop.f32.mrb[0].mxu0
        %v2214 = vadd.f32 0.0, %v2213
        %v2215 = vpop.f32.mrb[0].mxu0
        %2216 = vdwg.mxu0
        %v2217 = vadd.f32 %v1995, %v2091
        %v2218 = vadd.f32 %v1996, %v2094
        %v2219 = vadd.f32 %v1997, %v2099
        %v2220 = vadd.f32 %v1998, %v2102
        %v2221 = vadd.f32 %v1999, %v2107
        %v2222 = vadd.f32 %v2000, %v2110
        %v2223 = vadd.f32 %v2001, %v2115
        %v2224 = vadd.f32 %v2002, %v2118
        %v2225 = vadd.f32 %v2003, %v2123
        %v2226 = vadd.f32 %v2004, %v2126
        %v2227 = vadd.f32 %v2005, %v2131
        %v2228 = vadd.f32 %v2006, %v2134
        %v2229 = vadd.f32 %v2007, %v2139
        %v2230 = vadd.f32 %v2008, %v2142
        %v2231 = vadd.f32 %v2009, %v2147
        %v2232 = vadd.f32 %v2010, %v2150
        %v2233 = vadd.f32 %v2011, %v2155
        %v2234 = vadd.f32 %v2012, %v2158
        %v2235 = vadd.f32 %v2013, %v2163
        %v2236 = vadd.f32 %v2014, %v2166
        %v2237 = vadd.f32 %v2015, %v2171
        %v2238 = vadd.f32 %v2016, %v2174
        %v2239 = vadd.f32 %v2017, %v2179
        %v2240 = vadd.f32 %v2018, %v2182
        %v2241 = vadd.f32 %v2019, %v2187
        %v2242 = vadd.f32 %v2020, %v2190
        %v2243 = vadd.f32 %v2021, %v2195
        %v2244 = vadd.f32 %v2022, %v2198
        %v2245 = vadd.f32 %v2023, %v2203
        %v2246 = vadd.f32 %v2024, %v2206
        %v2247 = vadd.f32 %v2025, %v2211
        %v2248 = vadd.f32 %v2026, %v2214
        %v2249 = vld [vmem:[%s1557 + $0x2] sm:$0xff]
        %v2250 = vld [vmem:[%s1557 + $0x12] sm:$0xff]
        %v2251 = vld [vmem:[%s1557 + $0x22] sm:$0xff]
        %v2252 = vld [vmem:[%s1557 + $0x32] sm:$0xff]
        %v2253 = vld [vmem:[%s1557 + $0x42] sm:$0xff]
        %v2254 = vld [vmem:[%s1557 + $0x52] sm:$0xff]
        %v2255 = vld [vmem:[%s1557 + $0x62] sm:$0xff]
        %v2256 = vld [vmem:[%s1557 + $0x72] sm:$0xff]
        %v2257 = vpack.c.bf16 %v2250, %v2249
        %v2258 = vpack.c.bf16 %v2252, %v2251
        %v2259 = vpack.c.bf16 %v2254, %v2253
        %v2260 = vpack.c.bf16 %v2256, %v2255
        %s2261 = scalar_lea.vmem %s1, 16
        %v2262 = vld [vmem:[%s2261] sm:$0x3]
        %v2264 = vsel %vm414, %v2257, 0
        %v2267 = vsel %vm414, %v2258, 0
        %v2270 = vsel %vm414, %v2259, 0
        %v2273 = vsel %vm414, %v2260, 0
        %v2276 = vand.u32 %v2262, %v466
        %2278 = vmatprep.subr.bf16.mxu0 0
        %2279 = vmatpush1.bf16.msra.mxu0 %v2276
        %2280 = vmatprep.subr.bf16.mxu0 0
        %2281 = vmatpush1.bf16.msra.mxu0 0
        %2282 = vmatprep.subr.bf16.mxu0 0
        %2283 = vmatpush1.bf16.msra.mxu0 0
        %2284 = vmatprep.subr.bf16.mxu0 0
        %2285 = vmatpush1.bf16.msra.mxu0 0
        %2286 = vmatprep.subr.bf16.mxu0 0
        %2287 = vmatpush1.bf16.msra.mxu0 0
        %2288 = vmatprep.subr.bf16.mxu0 0
        %2289 = vmatpush1.bf16.msra.mxu0 0
        %2290 = vmatprep.subr.bf16.mxu0 0
        %2291 = vmatpush1.bf16.msra.mxu0 0
        %2292 = vmatprep.subr.bf16.mxu0 0
        %2293 = vmatpush1.bf16.msra.mxu0 0
        %2294 = vmatprep.subr.bf16.mxu0 0
        %2295 = vmatpush1.bf16.msra.mxu0 0
        %2296 = vmatprep.subr.bf16.mxu0 0
        %2297 = vmatpush1.bf16.msra.mxu0 0
        %2298 = vmatprep.subr.bf16.mxu0 0
        %2299 = vmatpush1.bf16.msra.mxu0 0
        %2300 = vmatprep.subr.bf16.mxu0 0
        %2301 = vmatpush1.bf16.msra.mxu0 0
        %2302 = vmatprep.subr.bf16.mxu0 0
        %2303 = vmatpush1.bf16.msra.mxu0 0
        %2304 = vmatprep.subr.bf16.mxu0 0
        %2305 = vmatpush1.bf16.msra.mxu0 0
        %2306 = vmatprep.subr.bf16.mxu0 0
        %2307 = vmatpush1.bf16.msra.mxu0 0
        %2308 = vmatprep.subr.bf16.mxu0 0
        %2309 = vmatpush1.bf16.msra.mxu0 0
        %2310 = vmatprep.mubr.bf16.mxu0 0
        %2311 = vmatmul.mubr.bf16.gmra.mrb[0].mxu0 %v858
        %v2312 = vpop.f32.mrb[0].mxu0
        %v2313 = vadd.f32 0.0, %v2312
        %v2314 = vpop.f32.mrb[0].mxu0
        %v2315 = vpop.f32.mrb[0].mxu0
        %v2316 = vadd.f32 0.0, %v2315
        %v2317 = vpop.f32.mrb[0].mxu0
        %2318 = vmatprep.mubr.bf16.mxu0 0
        %2319 = vmatmul.mubr.bf16.gmra.mrb[0].mxu0 %v861
        %v2320 = vpop.f32.mrb[0].mxu0
        %v2321 = vadd.f32 0.0, %v2320
        %v2322 = vpop.f32.mrb[0].mxu0
        %v2323 = vpop.f32.mrb[0].mxu0
        %v2324 = vadd.f32 0.0, %v2323
        %v2325 = vpop.f32.mrb[0].mxu0
        %2326 = vmatprep.mubr.bf16.mxu0 0
        %2327 = vmatmul.mubr.bf16.gmra.mrb[0].mxu0 %v864
        %v2328 = vpop.f32.mrb[0].mxu0
        %v2329 = vadd.f32 0.0, %v2328
        %v2330 = vpop.f32.mrb[0].mxu0
        %v2331 = vpop.f32.mrb[0].mxu0
        %v2332 = vadd.f32 0.0, %v2331
        %v2333 = vpop.f32.mrb[0].mxu0
        %2334 = vmatprep.mubr.bf16.mxu0 0
        %2335 = vmatmul.mubr.bf16.gmra.mrb[0].mxu0 %v867
        %v2336 = vpop.f32.mrb[0].mxu0
        %v2337 = vadd.f32 0.0, %v2336
        %v2338 = vpop.f32.mrb[0].mxu0
        %v2339 = vpop.f32.mrb[0].mxu0
        %v2340 = vadd.f32 0.0, %v2339
        %v2341 = vpop.f32.mrb[0].mxu0
        %2342 = vmatprep.mubr.bf16.mxu0 0
        %2343 = vmatmul.mubr.bf16.gmra.mrb[0].mxu0 %v1104
        %v2344 = vpop.f32.mrb[0].mxu0
        %v2345 = vadd.f32 0.0, %v2344
        %v2346 = vpop.f32.mrb[0].mxu0
        %v2347 = vpop.f32.mrb[0].mxu0
        %v2348 = vadd.f32 0.0, %v2347
        %v2349 = vpop.f32.mrb[0].mxu0
        %2350 = vmatprep.mubr.bf16.mxu0 0
        %2351 = vmatmul.mubr.bf16.gmra.mrb[0].mxu0 %v1107
        %v2352 = vpop.f32.mrb[0].mxu0
        %v2353 = vadd.f32 0.0, %v2352
        %v2354 = vpop.f32.mrb[0].mxu0
        %v2355 = vpop.f32.mrb[0].mxu0
        %v2356 = vadd.f32 0.0, %v2355
        %v2357 = vpop.f32.mrb[0].mxu0
        %2358 = vmatprep.mubr.bf16.mxu0 0
        %2359 = vmatmul.mubr.bf16.gmra.mrb[0].mxu0 %v1110
        %v2360 = vpop.f32.mrb[0].mxu0
        %v2361 = vadd.f32 0.0, %v2360
        %v2362 = vpop.f32.mrb[0].mxu0
        %v2363 = vpop.f32.mrb[0].mxu0
        %v2364 = vadd.f32 0.0, %v2363
        %v2365 = vpop.f32.mrb[0].mxu0
        %2366 = vmatprep.mubr.bf16.mxu0 0
        %2367 = vmatmul.mubr.bf16.gmra.mrb[0].mxu0 %v1113
        %v2368 = vpop.f32.mrb[0].mxu0
        %v2369 = vadd.f32 0.0, %v2368
        %v2370 = vpop.f32.mrb[0].mxu0
        %v2371 = vpop.f32.mrb[0].mxu0
        %v2372 = vadd.f32 0.0, %v2371
        %v2373 = vpop.f32.mrb[0].mxu0
        %2374 = vmatprep.mubr.bf16.mxu0 0
        %2375 = vmatmul.mubr.bf16.gmra.mrb[0].mxu0 %v2042
        %v2376 = vpop.f32.mrb[0].mxu0
        %v2377 = vadd.f32 0.0, %v2376
        %v2378 = vpop.f32.mrb[0].mxu0
        %v2379 = vpop.f32.mrb[0].mxu0
        %v2380 = vadd.f32 0.0, %v2379
        %v2381 = vpop.f32.mrb[0].mxu0
        %2382 = vmatprep.mubr.bf16.mxu0 0
        %2383 = vmatmul.mubr.bf16.gmra.mrb[0].mxu0 %v2045
        %v2384 = vpop.f32.mrb[0].mxu0
        %v2385 = vadd.f32 0.0, %v2384
        %v2386 = vpop.f32.mrb[0].mxu0
        %v2387 = vpop.f32.mrb[0].mxu0
        %v2388 = vadd.f32 0.0, %v2387
        %v2389 = vpop.f32.mrb[0].mxu0
        %2390 = vmatprep.mubr.bf16.mxu0 0
        %2391 = vmatmul.mubr.bf16.gmra.mrb[0].mxu0 %v2048
        %v2392 = vpop.f32.mrb[0].mxu0
        %v2393 = vadd.f32 0.0, %v2392
        %v2394 = vpop.f32.mrb[0].mxu0
        %v2395 = vpop.f32.mrb[0].mxu0
        %v2396 = vadd.f32 0.0, %v2395
        %v2397 = vpop.f32.mrb[0].mxu0
        %2398 = vmatprep.mubr.bf16.mxu0 0
        %2399 = vmatmul.mubr.bf16.gmra.mrb[0].mxu0 %v2051
        %v2400 = vpop.f32.mrb[0].mxu0
        %v2401 = vadd.f32 0.0, %v2400
        %v2402 = vpop.f32.mrb[0].mxu0
        %v2403 = vpop.f32.mrb[0].mxu0
        %v2404 = vadd.f32 0.0, %v2403
        %v2405 = vpop.f32.mrb[0].mxu0
        %2406 = vmatprep.mubr.bf16.mxu0 0
        %2407 = vmatmul.mubr.bf16.gmra.mrb[0].mxu0 %v2264
        %v2408 = vpop.f32.mrb[0].mxu0
        %v2409 = vadd.f32 0.0, %v2408
        %v2410 = vpop.f32.mrb[0].mxu0
        %v2411 = vpop.f32.mrb[0].mxu0
        %v2412 = vadd.f32 0.0, %v2411
        %v2413 = vpop.f32.mrb[0].mxu0
        %2414 = vmatprep.mubr.bf16.mxu0 0
        %2415 = vmatmul.mubr.bf16.gmra.mrb[0].mxu0 %v2267
        %v2416 = vpop.f32.mrb[0].mxu0
        %v2417 = vadd.f32 0.0, %v2416
        %v2418 = vpop.f32.mrb[0].mxu0
        %v2419 = vpop.f32.mrb[0].mxu0
        %v2420 = vadd.f32 0.0, %v2419
        %v2421 = vpop.f32.mrb[0].mxu0
        %2422 = vmatprep.mubr.bf16.mxu0 0
        %2423 = vmatmul.mubr.bf16.gmra.mrb[0].mxu0 %v2270
        %v2424 = vpop.f32.mrb[0].mxu0
        %v2425 = vadd.f32 0.0, %v2424
        %v2426 = vpop.f32.mrb[0].mxu0
        %v2427 = vpop.f32.mrb[0].mxu0
        %v2428 = vadd.f32 0.0, %v2427
        %v2429 = vpop.f32.mrb[0].mxu0
        %2430 = vmatprep.mubr.bf16.mxu0 0
        %2431 = vmatmul.mubr.bf16.gmra.mrb[0].mxu0 %v2273
        %v2432 = vpop.f32.mrb[0].mxu0
        %v2433 = vadd.f32 0.0, %v2432
        %v2434 = vpop.f32.mrb[0].mxu0
        %v2435 = vpop.f32.mrb[0].mxu0
        %v2436 = vadd.f32 0.0, %v2435
        %v2437 = vpop.f32.mrb[0].mxu0
        %2438 = vdwg.mxu0
        %v2439 = vadd.f32 %v2217, %v2313
        %v2440 = vadd.f32 %v2218, %v2316
        %v2441 = vadd.f32 %v2219, %v2321
        %v2442 = vadd.f32 %v2220, %v2324
        %v2443 = vadd.f32 %v2221, %v2329
        %v2444 = vadd.f32 %v2222, %v2332
        %v2445 = vadd.f32 %v2223, %v2337
        %v2446 = vadd.f32 %v2224, %v2340
        %v2447 = vadd.f32 %v2225, %v2345
        %v2448 = vadd.f32 %v2226, %v2348
        %v2449 = vadd.f32 %v2227, %v2353
        %v2450 = vadd.f32 %v2228, %v2356
        %v2451 = vadd.f32 %v2229, %v2361
        %v2452 = vadd.f32 %v2230, %v2364
        %v2453 = vadd.f32 %v2231, %v2369
        %v2454 = vadd.f32 %v2232, %v2372
        %v2455 = vadd.f32 %v2233, %v2377
        %v2456 = vadd.f32 %v2234, %v2380
        %v2457 = vadd.f32 %v2235, %v2385
        %v2458 = vadd.f32 %v2236, %v2388
        %v2459 = vadd.f32 %v2237, %v2393
        %v2460 = vadd.f32 %v2238, %v2396
        %v2461 = vadd.f32 %v2239, %v2401
        %v2462 = vadd.f32 %v2240, %v2404
        %v2463 = vadd.f32 %v2241, %v2409
        %v2464 = vadd.f32 %v2242, %v2412
        %v2465 = vadd.f32 %v2243, %v2417
        %v2466 = vadd.f32 %v2244, %v2420
        %v2467 = vadd.f32 %v2245, %v2425
        %v2468 = vadd.f32 %v2246, %v2428
        %v2469 = vadd.f32 %v2247, %v2433
        %v2470 = vadd.f32 %v2248, %v2436
        %v2471 = vld [vmem:[%s1566 + $0x2] sm:$0xff]
        %v2472 = vld [vmem:[%s1566 + $0x12] sm:$0xff]
        %v2473 = vld [vmem:[%s1566 + $0x22] sm:$0xff]
        %v2474 = vld [vmem:[%s1566 + $0x32] sm:$0xff]
        %v2475 = vld [vmem:[%s1566 + $0x42] sm:$0xff]
        %v2476 = vld [vmem:[%s1566 + $0x52] sm:$0xff]
        %v2477 = vld [vmem:[%s1566 + $0x62] sm:$0xff]
        %v2478 = vld [vmem:[%s1566 + $0x72] sm:$0xff]
        %v2479 = vpack.c.bf16 %v2472, %v2471
        %v2480 = vpack.c.bf16 %v2474, %v2473
        %v2481 = vpack.c.bf16 %v2476, %v2475
        %v2482 = vpack.c.bf16 %v2478, %v2477
        %s2483 = scalar_lea.vmem %s1, 18
        %v2484 = vld [vmem:[%s2483] sm:$0x3]
        %v2486 = vsel %vm414, %v2479, 0
        %v2489 = vsel %vm414, %v2480, 0
        %v2492 = vsel %vm414, %v2481, 0
        %v2495 = vsel %vm414, %v2482, 0
        %v2498 = vand.u32 %v2484, %v466
        %2500 = vmatprep.subr.bf16.mxu0 0
        %2501 = vmatpush1.bf16.msra.mxu0 %v2498
        %2502 = vmatprep.subr.bf16.mxu0 0
        %2503 = vmatpush1.bf16.msra.mxu0 0
        %2504 = vmatprep.subr.bf16.mxu0 0
        %2505 = vmatpush1.bf16.msra.mxu0 0
        %2506 = vmatprep.subr.bf16.mxu0 0
        %2507 = vmatpush1.bf16.msra.mxu0 0
        %2508 = vmatprep.subr.bf16.mxu0 0
        %2509 = vmatpush1.bf16.msra.mxu0 0
        %2510 = vmatprep.subr.bf16.mxu0 0
        %2511 = vmatpush1.bf16.msra.mxu0 0
        %2512 = vmatprep.subr.bf16.mxu0 0
        %2513 = vmatpush1.bf16.msra.mxu0 0
        %2514 = vmatprep.subr.bf16.mxu0 0
        %2515 = vmatpush1.bf16.msra.mxu0 0
        %2516 = vmatprep.subr.bf16.mxu0 0
        %2517 = vmatpush1.bf16.msra.mxu0 0
        %2518 = vmatprep.subr.bf16.mxu0 0
        %2519 = vmatpush1.bf16.msra.mxu0 0
        %2520 = vmatprep.subr.bf16.mxu0 0
        %2521 = vmatpush1.bf16.msra.mxu0 0
        %2522 = vmatprep.subr.bf16.mxu0 0
        %2523 = vmatpush1.bf16.msra.mxu0 0
        %2524 = vmatprep.subr.bf16.mxu0 0
        %2525 = vmatpush1.bf16.msra.mxu0 0
        %2526 = vmatprep.subr.bf16.mxu0 0
        %2527 = vmatpush1.bf16.msra.mxu0 0
        %2528 = vmatprep.subr.bf16.mxu0 0
        %2529 = vmatpush1.bf16.msra.mxu0 0
        %2530 = vmatprep.subr.bf16.mxu0 0
        %2531 = vmatpush1.bf16.msra.mxu0 0
        %2532 = vmatprep.mubr.bf16.mxu0 0
        %2533 = vmatmul.mubr.bf16.gmra.mrb[0].mxu0 %v1104
        %v2534 = vpop.f32.mrb[0].mxu0
        %v2535 = vadd.f32 0.0, %v2534
        %v2536 = vpop.f32.mrb[0].mxu0
        %v2537 = vpop.f32.mrb[0].mxu0
        %v2538 = vadd.f32 0.0, %v2537
        %v2539 = vpop.f32.mrb[0].mxu0
        %2540 = vmatprep.mubr.bf16.mxu0 0
        %2541 = vmatmul.mubr.bf16.gmra.mrb[0].mxu0 %v1107
        %v2542 = vpop.f32.mrb[0].mxu0
        %v2543 = vadd.f32 0.0, %v2542
        %v2544 = vpop.f32.mrb[0].mxu0
        %v2545 = vpop.f32.mrb[0].mxu0
        %v2546 = vadd.f32 0.0, %v2545
        %v2547 = vpop.f32.mrb[0].mxu0
        %2548 = vmatprep.mubr.bf16.mxu0 0
        %2549 = vmatmul.mubr.bf16.gmra.mrb[0].mxu0 %v1110
        %v2550 = vpop.f32.mrb[0].mxu0
        %v2551 = vadd.f32 0.0, %v2550
        %v2552 = vpop.f32.mrb[0].mxu0
        %v2553 = vpop.f32.mrb[0].mxu0
        %v2554 = vadd.f32 0.0, %v2553
        %v2555 = vpop.f32.mrb[0].mxu0
        %2556 = vmatprep.mubr.bf16.mxu0 0
        %2557 = vmatmul.mubr.bf16.gmra.mrb[0].mxu0 %v1113
        %v2558 = vpop.f32.mrb[0].mxu0
        %v2559 = vadd.f32 0.0, %v2558
        %v2560 = vpop.f32.mrb[0].mxu0
        %v2561 = vpop.f32.mrb[0].mxu0
        %v2562 = vadd.f32 0.0, %v2561
        %v2563 = vpop.f32.mrb[0].mxu0
        %2564 = vmatprep.mubr.bf16.mxu0 0
        %2565 = vmatmul.mubr.bf16.gmra.mrb[0].mxu0 %v1350
        %v2566 = vpop.f32.mrb[0].mxu0
        %v2567 = vadd.f32 0.0, %v2566
        %v2568 = vpop.f32.mrb[0].mxu0
        %v2569 = vpop.f32.mrb[0].mxu0
        %v2570 = vadd.f32 0.0, %v2569
        %v2571 = vpop.f32.mrb[0].mxu0
        %2572 = vmatprep.mubr.bf16.mxu0 0
        %2573 = vmatmul.mubr.bf16.gmra.mrb[0].mxu0 %v1353
        %v2574 = vpop.f32.mrb[0].mxu0
        %v2575 = vadd.f32 0.0, %v2574
        %v2576 = vpop.f32.mrb[0].mxu0
        %v2577 = vpop.f32.mrb[0].mxu0
        %v2578 = vadd.f32 0.0, %v2577
        %v2579 = vpop.f32.mrb[0].mxu0
        %2580 = vmatprep.mubr.bf16.mxu0 0
        %2581 = vmatmul.mubr.bf16.gmra.mrb[0].mxu0 %v1356
        %v2582 = vpop.f32.mrb[0].mxu0
        %v2583 = vadd.f32 0.0, %v2582
        %v2584 = vpop.f32.mrb[0].mxu0
        %v2585 = vpop.f32.mrb[0].mxu0
        %v2586 = vadd.f32 0.0, %v2585
        %v2587 = vpop.f32.mrb[0].mxu0
        %2588 = vmatprep.mubr.bf16.mxu0 0
        %2589 = vmatmul.mubr.bf16.gmra.mrb[0].mxu0 %v1359
        %v2590 = vpop.f32.mrb[0].mxu0
        %v2591 = vadd.f32 0.0, %v2590
        %v2592 = vpop.f32.mrb[0].mxu0
        %v2593 = vpop.f32.mrb[0].mxu0
        %v2594 = vadd.f32 0.0, %v2593
        %v2595 = vpop.f32.mrb[0].mxu0
        %2596 = vmatprep.mubr.bf16.mxu0 0
        %2597 = vmatmul.mubr.bf16.gmra.mrb[0].mxu0 %v2264
        %v2598 = vpop.f32.mrb[0].mxu0
        %v2599 = vadd.f32 0.0, %v2598
        %v2600 = vpop.f32.mrb[0].mxu0
        %v2601 = vpop.f32.mrb[0].mxu0
        %v2602 = vadd.f32 0.0, %v2601
        %v2603 = vpop.f32.mrb[0].mxu0
        %2604 = vmatprep.mubr.bf16.mxu0 0
        %2605 = vmatmul.mubr.bf16.gmra.mrb[0].mxu0 %v2267
        %v2606 = vpop.f32.mrb[0].mxu0
        %v2607 = vadd.f32 0.0, %v2606
        %v2608 = vpop.f32.mrb[0].mxu0
        %v2609 = vpop.f32.mrb[0].mxu0
        %v2610 = vadd.f32 0.0, %v2609
        %v2611 = vpop.f32.mrb[0].mxu0
        %2612 = vmatprep.mubr.bf16.mxu0 0
        %2613 = vmatmul.mubr.bf16.gmra.mrb[0].mxu0 %v2270
        %v2614 = vpop.f32.mrb[0].mxu0
        %v2615 = vadd.f32 0.0, %v2614
        %v2616 = vpop.f32.mrb[0].mxu0
        %v2617 = vpop.f32.mrb[0].mxu0
        %v2618 = vadd.f32 0.0, %v2617
        %v2619 = vpop.f32.mrb[0].mxu0
        %2620 = vmatprep.mubr.bf16.mxu0 0
        %2621 = vmatmul.mubr.bf16.gmra.mrb[0].mxu0 %v2273
        %v2622 = vpop.f32.mrb[0].mxu0
        %v2623 = vadd.f32 0.0, %v2622
        %v2624 = vpop.f32.mrb[0].mxu0
        %v2625 = vpop.f32.mrb[0].mxu0
        %v2626 = vadd.f32 0.0, %v2625
        %v2627 = vpop.f32.mrb[0].mxu0
        %2628 = vmatprep.mubr.bf16.mxu0 0
        %2629 = vmatmul.mubr.bf16.gmra.mrb[0].mxu0 %v2486
        %v2630 = vpop.f32.mrb[0].mxu0
        %v2631 = vadd.f32 0.0, %v2630
        %v2632 = vpop.f32.mrb[0].mxu0
        %v2633 = vpop.f32.mrb[0].mxu0
        %v2634 = vadd.f32 0.0, %v2633
        %v2635 = vpop.f32.mrb[0].mxu0
        %2636 = vmatprep.mubr.bf16.mxu0 0
        %2637 = vmatmul.mubr.bf16.gmra.mrb[0].mxu0 %v2489
        %v2638 = vpop.f32.mrb[0].mxu0
        %v2639 = vadd.f32 0.0, %v2638
        %v2640 = vpop.f32.mrb[0].mxu0
        %v2641 = vpop.f32.mrb[0].mxu0
        %v2642 = vadd.f32 0.0, %v2641
        %v2643 = vpop.f32.mrb[0].mxu0
        %2644 = vmatprep.mubr.bf16.mxu0 0
        %2645 = vmatmul.mubr.bf16.gmra.mrb[0].mxu0 %v2492
        %v2646 = vpop.f32.mrb[0].mxu0
        %v2647 = vadd.f32 0.0, %v2646
        %v2648 = vpop.f32.mrb[0].mxu0
        %v2649 = vpop.f32.mrb[0].mxu0
        %v2650 = vadd.f32 0.0, %v2649
        %v2651 = vpop.f32.mrb[0].mxu0
        %2652 = vmatprep.mubr.bf16.mxu0 0
        %2653 = vmatmul.mubr.bf16.gmra.mrb[0].mxu0 %v2495
        %v2654 = vpop.f32.mrb[0].mxu0
        %v2655 = vadd.f32 0.0, %v2654
        %v2656 = vpop.f32.mrb[0].mxu0
        %v2657 = vpop.f32.mrb[0].mxu0
        %v2658 = vadd.f32 0.0, %v2657
        %v2659 = vpop.f32.mrb[0].mxu0
        %2660 = vdwg.mxu0
        %v2661 = vadd.f32 %v2439, %v2535
        %v2662 = vadd.f32 %v2440, %v2538
        %v2663 = vadd.f32 %v2441, %v2543
        %v2664 = vadd.f32 %v2442, %v2546
        %v2665 = vadd.f32 %v2443, %v2551
        %v2666 = vadd.f32 %v2444, %v2554
        %v2667 = vadd.f32 %v2445, %v2559
        %v2668 = vadd.f32 %v2446, %v2562
        %v2669 = vadd.f32 %v2447, %v2567
        %v2670 = vadd.f32 %v2448, %v2570
        %v2671 = vadd.f32 %v2449, %v2575
        %v2672 = vadd.f32 %v2450, %v2578
        %v2673 = vadd.f32 %v2451, %v2583
        %v2674 = vadd.f32 %v2452, %v2586
        %v2675 = vadd.f32 %v2453, %v2591
        %v2676 = vadd.f32 %v2454, %v2594
        %v2677 = vadd.f32 %v2455, %v2599
        %v2678 = vadd.f32 %v2456, %v2602
        %v2679 = vadd.f32 %v2457, %v2607
        %v2680 = vadd.f32 %v2458, %v2610
        %v2681 = vadd.f32 %v2459, %v2615
        %v2682 = vadd.f32 %v2460, %v2618
        %v2683 = vadd.f32 %v2461, %v2623
        %v2684 = vadd.f32 %v2462, %v2626
        %v2685 = vadd.f32 %v2463, %v2631
        %v2686 = vadd.f32 %v2464, %v2634
        %v2687 = vadd.f32 %v2465, %v2639
        %v2688 = vadd.f32 %v2466, %v2642
        %v2689 = vadd.f32 %v2467, %v2647
        %v2690 = vadd.f32 %v2468, %v2650
        %v2691 = vadd.f32 %v2469, %v2655
        %v2692 = vadd.f32 %v2470, %v2658
        %s2693 = scalar_lea.vmem %s333, 336
        %v2694 = vld [vmem:[%s2693] sm:$0xff]
        %v2695 = vld [vmem:[%s2693 + $0x10] sm:$0xff]
        %v2696 = vld [vmem:[%s2693 + $0x20] sm:$0xff]
        %v2697 = vld [vmem:[%s2693 + $0x30] sm:$0xff]
        %v2698 = vld [vmem:[%s2693 + $0x40] sm:$0xff]
        %v2699 = vld [vmem:[%s2693 + $0x50] sm:$0xff]
        %v2700 = vld [vmem:[%s2693 + $0x60] sm:$0xff]
        %v2701 = vld [vmem:[%s2693 + $0x70] sm:$0xff]
        %s2702 = scalar_lea.vmem %s333, 496
        %v2703 = vld [vmem:[%s2702] sm:$0xff]
        %v2704 = vld [vmem:[%s2702 + $0x10] sm:$0xff]
        %v2705 = vld [vmem:[%s2702 + $0x20] sm:$0xff]
        %v2706 = vld [vmem:[%s2702 + $0x30] sm:$0xff]
        %v2707 = vld [vmem:[%s2702 + $0x40] sm:$0xff]
        %v2708 = vld [vmem:[%s2702 + $0x50] sm:$0xff]
        %v2709 = vld [vmem:[%s2702 + $0x60] sm:$0xff]
        %v2710 = vld [vmem:[%s2702 + $0x70] sm:$0xff]
        %v2711 = vpack.c.bf16 %v2695, %v2694
        %v2712 = vpack.c.bf16 %v2697, %v2696
        %v2713 = vpack.c.bf16 %v2699, %v2698
        %v2714 = vpack.c.bf16 %v2701, %v2700
        %v2715 = vpack.c.bf16 %v2704, %v2703
        %v2716 = vpack.c.bf16 %v2706, %v2705
        %v2717 = vpack.c.bf16 %v2708, %v2707
        %v2718 = vpack.c.bf16 %v2710, %v2709
        %s2719 = scalar_lea.vmem %s1, 20
        %v2720 = vld [vmem:[%s2719] sm:$0x3]
        %v2722 = vsel %vm414, %v2711, 0
        %v2725 = vsel %vm414, %v2712, 0
        %v2728 = vsel %vm414, %v2713, 0
        %v2731 = vsel %vm414, %v2714, 0
        %v2734 = vsel %vm414, %v2715, 0
        %v2737 = vsel %vm414, %v2716, 0
        %v2740 = vsel %vm414, %v2717, 0
        %v2743 = vsel %vm414, %v2718, 0
        %v2746 = vand.u32 %v2720, %v466
        %2748 = vmatprep.subr.bf16.mxu0 0
        %2749 = vmatpush1.bf16.msra.mxu0 %v2746
        %2750 = vmatprep.subr.bf16.mxu0 0
        %2751 = vmatpush1.bf16.msra.mxu0 0
        %2752 = vmatprep.subr.bf16.mxu0 0
        %2753 = vmatpush1.bf16.msra.mxu0 0
        %2754 = vmatprep.subr.bf16.mxu0 0
        %2755 = vmatpush1.bf16.msra.mxu0 0
        %2756 = vmatprep.subr.bf16.mxu0 0
        %2757 = vmatpush1.bf16.msra.mxu0 0
        %2758 = vmatprep.subr.bf16.mxu0 0
        %2759 = vmatpush1.bf16.msra.mxu0 0
        %2760 = vmatprep.subr.bf16.mxu0 0
        %2761 = vmatpush1.bf16.msra.mxu0 0
        %2762 = vmatprep.subr.bf16.mxu0 0
        %2763 = vmatpush1.bf16.msra.mxu0 0
        %2764 = vmatprep.subr.bf16.mxu0 0
        %2765 = vmatpush1.bf16.msra.mxu0 0
        %2766 = vmatprep.subr.bf16.mxu0 0
        %2767 = vmatpush1.bf16.msra.mxu0 0
        %2768 = vmatprep.subr.bf16.mxu0 0
        %2769 = vmatpush1.bf16.msra.mxu0 0
        %2770 = vmatprep.subr.bf16.mxu0 0
        %2771 = vmatpush1.bf16.msra.mxu0 0
        %2772 = vmatprep.subr.bf16.mxu0 0
        %2773 = vmatpush1.bf16.msra.mxu0 0
        %2774 = vmatprep.subr.bf16.mxu0 0
        %2775 = vmatpush1.bf16.msra.mxu0 0
        %2776 = vmatprep.subr.bf16.mxu0 0
        %2777 = vmatpush1.bf16.msra.mxu0 0
        %2778 = vmatprep.subr.bf16.mxu0 0
        %2779 = vmatpush1.bf16.msra.mxu0 0
        %2780 = vmatprep.mubr.bf16.mxu0 0
        %2781 = vmatmul.mubr.bf16.gmra.mrb[0].mxu0 %v1586
        %v2782 = vpop.f32.mrb[0].mxu0
        %v2783 = vadd.f32 0.0, %v2782
        %v2784 = vpop.f32.mrb[0].mxu0
        %v2785 = vpop.f32.mrb[0].mxu0
        %v2786 = vadd.f32 0.0, %v2785
        %v2787 = vpop.f32.mrb[0].mxu0
        %2788 = vmatprep.mubr.bf16.mxu0 0
        %2789 = vmatmul.mubr.bf16.gmra.mrb[0].mxu0 %v1589
        %v2790 = vpop.f32.mrb[0].mxu0
        %v2791 = vadd.f32 0.0, %v2790
        %v2792 = vpop.f32.mrb[0].mxu0
        %v2793 = vpop.f32.mrb[0].mxu0
        %v2794 = vadd.f32 0.0, %v2793
        %v2795 = vpop.f32.mrb[0].mxu0
        %2796 = vmatprep.mubr.bf16.mxu0 0
        %2797 = vmatmul.mubr.bf16.gmra.mrb[0].mxu0 %v1592
        %v2798 = vpop.f32.mrb[0].mxu0
        %v2799 = vadd.f32 0.0, %v2798
        %v2800 = vpop.f32.mrb[0].mxu0
        %v2801 = vpop.f32.mrb[0].mxu0
        %v2802 = vadd.f32 0.0, %v2801
        %v2803 = vpop.f32.mrb[0].mxu0
        %2804 = vmatprep.mubr.bf16.mxu0 0
        %2805 = vmatmul.mubr.bf16.gmra.mrb[0].mxu0 %v1595
        %v2806 = vpop.f32.mrb[0].mxu0
        %v2807 = vadd.f32 0.0, %v2806
        %v2808 = vpop.f32.mrb[0].mxu0
        %v2809 = vpop.f32.mrb[0].mxu0
        %v2810 = vadd.f32 0.0, %v2809
        %v2811 = vpop.f32.mrb[0].mxu0
        %2812 = vmatprep.mubr.bf16.mxu0 0
        %2813 = vmatmul.mubr.bf16.gmra.mrb[0].mxu0 %v1598
        %v2814 = vpop.f32.mrb[0].mxu0
        %v2815 = vadd.f32 0.0, %v2814
        %v2816 = vpop.f32.mrb[0].mxu0
        %v2817 = vpop.f32.mrb[0].mxu0
        %v2818 = vadd.f32 0.0, %v2817
        %v2819 = vpop.f32.mrb[0].mxu0
        %2820 = vmatprep.mubr.bf16.mxu0 0
        %2821 = vmatmul.mubr.bf16.gmra.mrb[0].mxu0 %v1601
        %v2822 = vpop.f32.mrb[0].mxu0
        %v2823 = vadd.f32 0.0, %v2822
        %v2824 = vpop.f32.mrb[0].mxu0
        %v2825 = vpop.f32.mrb[0].mxu0
        %v2826 = vadd.f32 0.0, %v2825
        %v2827 = vpop.f32.mrb[0].mxu0
        %2828 = vmatprep.mubr.bf16.mxu0 0
        %2829 = vmatmul.mubr.bf16.gmra.mrb[0].mxu0 %v1604
        %v2830 = vpop.f32.mrb[0].mxu0
        %v2831 = vadd.f32 0.0, %v2830
        %v2832 = vpop.f32.mrb[0].mxu0
        %v2833 = vpop.f32.mrb[0].mxu0
        %v2834 = vadd.f32 0.0, %v2833
        %v2835 = vpop.f32.mrb[0].mxu0
        %2836 = vmatprep.mubr.bf16.mxu0 0
        %2837 = vmatmul.mubr.bf16.gmra.mrb[0].mxu0 %v1607
        %v2838 = vpop.f32.mrb[0].mxu0
        %v2839 = vadd.f32 0.0, %v2838
        %v2840 = vpop.f32.mrb[0].mxu0
        %v2841 = vpop.f32.mrb[0].mxu0
        %v2842 = vadd.f32 0.0, %v2841
        %v2843 = vpop.f32.mrb[0].mxu0
        %2844 = vmatprep.mubr.bf16.mxu0 0
        %2845 = vmatmul.mubr.bf16.gmra.mrb[0].mxu0 %v2722
        %v2846 = vpop.f32.mrb[0].mxu0
        %v2847 = vadd.f32 0.0, %v2846
        %v2848 = vpop.f32.mrb[0].mxu0
        %v2849 = vpop.f32.mrb[0].mxu0
        %v2850 = vadd.f32 0.0, %v2849
        %v2851 = vpop.f32.mrb[0].mxu0
        %2852 = vmatprep.mubr.bf16.mxu0 0
        %2853 = vmatmul.mubr.bf16.gmra.mrb[0].mxu0 %v2725
        %v2854 = vpop.f32.mrb[0].mxu0
        %v2855 = vadd.f32 0.0, %v2854
        %v2856 = vpop.f32.mrb[0].mxu0
        %v2857 = vpop.f32.mrb[0].mxu0
        %v2858 = vadd.f32 0.0, %v2857
        %v2859 = vpop.f32.mrb[0].mxu0
        %2860 = vmatprep.mubr.bf16.mxu0 0
        %2861 = vmatmul.mubr.bf16.gmra.mrb[0].mxu0 %v2728
        %v2862 = vpop.f32.mrb[0].mxu0
        %v2863 = vadd.f32 0.0, %v2862
        %v2864 = vpop.f32.mrb[0].mxu0
        %v2865 = vpop.f32.mrb[0].mxu0
        %v2866 = vadd.f32 0.0, %v2865
        %v2867 = vpop.f32.mrb[0].mxu0
        %2868 = vmatprep.mubr.bf16.mxu0 0
        %2869 = vmatmul.mubr.bf16.gmra.mrb[0].mxu0 %v2731
        %v2870 = vpop.f32.mrb[0].mxu0
        %v2871 = vadd.f32 0.0, %v2870
        %v2872 = vpop.f32.mrb[0].mxu0
        %v2873 = vpop.f32.mrb[0].mxu0
        %v2874 = vadd.f32 0.0, %v2873
        %v2875 = vpop.f32.mrb[0].mxu0
        %2876 = vmatprep.mubr.bf16.mxu0 0
        %2877 = vmatmul.mubr.bf16.gmra.mrb[0].mxu0 %v2734
        %v2878 = vpop.f32.mrb[0].mxu0
        %v2879 = vadd.f32 0.0, %v2878
        %v2880 = vpop.f32.mrb[0].mxu0
        %v2881 = vpop.f32.mrb[0].mxu0
        %v2882 = vadd.f32 0.0, %v2881
        %v2883 = vpop.f32.mrb[0].mxu0
        %2884 = vmatprep.mubr.bf16.mxu0 0
        %2885 = vmatmul.mubr.bf16.gmra.mrb[0].mxu0 %v2737
        %v2886 = vpop.f32.mrb[0].mxu0
        %v2887 = vadd.f32 0.0, %v2886
        %v2888 = vpop.f32.mrb[0].mxu0
        %v2889 = vpop.f32.mrb[0].mxu0
        %v2890 = vadd.f32 0.0, %v2889
        %v2891 = vpop.f32.mrb[0].mxu0
        %2892 = vmatprep.mubr.bf16.mxu0 0
        %2893 = vmatmul.mubr.bf16.gmra.mrb[0].mxu0 %v2740
        %v2894 = vpop.f32.mrb[0].mxu0
        %v2895 = vadd.f32 0.0, %v2894
        %v2896 = vpop.f32.mrb[0].mxu0
        %v2897 = vpop.f32.mrb[0].mxu0
        %v2898 = vadd.f32 0.0, %v2897
        %v2899 = vpop.f32.mrb[0].mxu0
        %2900 = vmatprep.mubr.bf16.mxu0 0
        %2901 = vmatmul.mubr.bf16.gmra.mrb[0].mxu0 %v2743
        %v2902 = vpop.f32.mrb[0].mxu0
        %v2903 = vadd.f32 0.0, %v2902
        %v2904 = vpop.f32.mrb[0].mxu0
        %v2905 = vpop.f32.mrb[0].mxu0
        %v2906 = vadd.f32 0.0, %v2905
        %v2907 = vpop.f32.mrb[0].mxu0
        %2908 = vdwg.mxu0
        %v2909 = vadd.f32 %v2661, %v2783
        %v2910 = vadd.f32 %v2662, %v2786
        %v2911 = vadd.f32 %v2663, %v2791
        %v2912 = vadd.f32 %v2664, %v2794
        %v2913 = vadd.f32 %v2665, %v2799
        %v2914 = vadd.f32 %v2666, %v2802
        %v2915 = vadd.f32 %v2667, %v2807
        %v2916 = vadd.f32 %v2668, %v2810
        %v2917 = vadd.f32 %v2669, %v2815
        %v2918 = vadd.f32 %v2670, %v2818
        %v2919 = vadd.f32 %v2671, %v2823
        %v2920 = vadd.f32 %v2672, %v2826
        %v2921 = vadd.f32 %v2673, %v2831
        %v2922 = vadd.f32 %v2674, %v2834
        %v2923 = vadd.f32 %v2675, %v2839
        %v2924 = vadd.f32 %v2676, %v2842
        %v2925 = vadd.f32 %v2677, %v2847
        %v2926 = vadd.f32 %v2678, %v2850
        %v2927 = vadd.f32 %v2679, %v2855
        %v2928 = vadd.f32 %v2680, %v2858
        %v2929 = vadd.f32 %v2681, %v2863
        %v2930 = vadd.f32 %v2682, %v2866
        %v2931 = vadd.f32 %v2683, %v2871
        %v2932 = vadd.f32 %v2684, %v2874
        %v2933 = vadd.f32 %v2685, %v2879
        %v2934 = vadd.f32 %v2686, %v2882
        %v2935 = vadd.f32 %v2687, %v2887
        %v2936 = vadd.f32 %v2688, %v2890
        %v2937 = vadd.f32 %v2689, %v2895
        %v2938 = vadd.f32 %v2690, %v2898
        %v2939 = vadd.f32 %v2691, %v2903
        %v2940 = vadd.f32 %v2692, %v2906
        %v2941 = vld [vmem:[%s2693 + $0x1] sm:$0xff]
        %v2942 = vld [vmem:[%s2693 + $0x11] sm:$0xff]
        %v2943 = vld [vmem:[%s2693 + $0x21] sm:$0xff]
        %v2944 = vld [vmem:[%s2693 + $0x31] sm:$0xff]
        %v2945 = vld [vmem:[%s2693 + $0x41] sm:$0xff]
        %v2946 = vld [vmem:[%s2693 + $0x51] sm:$0xff]
        %v2947 = vld [vmem:[%s2693 + $0x61] sm:$0xff]
        %v2948 = vld [vmem:[%s2693 + $0x71] sm:$0xff]
        %v2949 = vpack.c.bf16 %v2942, %v2941
        %v2950 = vpack.c.bf16 %v2944, %v2943
        %v2951 = vpack.c.bf16 %v2946, %v2945
        %v2952 = vpack.c.bf16 %v2948, %v2947
        %s2953 = scalar_lea.vmem %s1, 22
        %v2954 = vld [vmem:[%s2953] sm:$0x3]
        %v2956 = vsel %vm414, %v2949, 0
        %v2959 = vsel %vm414, %v2950, 0
        %v2962 = vsel %vm414, %v2951, 0
        %v2965 = vsel %vm414, %v2952, 0
        %v2968 = vand.u32 %v2954, %v466
        %2970 = vmatprep.subr.bf16.mxu0 0
        %2971 = vmatpush1.bf16.msra.mxu0 %v2968
        %2972 = vmatprep.subr.bf16.mxu0 0
        %2973 = vmatpush1.bf16.msra.mxu0 0
        %2974 = vmatprep.subr.bf16.mxu0 0
        %2975 = vmatpush1.bf16.msra.mxu0 0
        %2976 = vmatprep.subr.bf16.mxu0 0
        %2977 = vmatpush1.bf16.msra.mxu0 0
        %2978 = vmatprep.subr.bf16.mxu0 0
        %2979 = vmatpush1.bf16.msra.mxu0 0
        %2980 = vmatprep.subr.bf16.mxu0 0
        %2981 = vmatpush1.bf16.msra.mxu0 0
        %2982 = vmatprep.subr.bf16.mxu0 0
        %2983 = vmatpush1.bf16.msra.mxu0 0
        %2984 = vmatprep.subr.bf16.mxu0 0
        %2985 = vmatpush1.bf16.msra.mxu0 0
        %2986 = vmatprep.subr.bf16.mxu0 0
        %2987 = vmatpush1.bf16.msra.mxu0 0
        %2988 = vmatprep.subr.bf16.mxu0 0
        %2989 = vmatpush1.bf16.msra.mxu0 0
        %2990 = vmatprep.subr.bf16.mxu0 0
        %2991 = vmatpush1.bf16.msra.mxu0 0
        %2992 = vmatprep.subr.bf16.mxu0 0
        %2993 = vmatpush1.bf16.msra.mxu0 0
        %2994 = vmatprep.subr.bf16.mxu0 0
        %2995 = vmatpush1.bf16.msra.mxu0 0
        %2996 = vmatprep.subr.bf16.mxu0 0
        %2997 = vmatpush1.bf16.msra.mxu0 0
        %2998 = vmatprep.subr.bf16.mxu0 0
        %2999 = vmatpush1.bf16.msra.mxu0 0
        %3000 = vmatprep.subr.bf16.mxu0 0
        %3001 = vmatpush1.bf16.msra.mxu0 0
        %3002 = vmatprep.mubr.bf16.mxu0 0
        %3003 = vmatmul.mubr.bf16.gmra.mrb[0].mxu0 %v1598
        %v3004 = vpop.f32.mrb[0].mxu0
        %v3005 = vadd.f32 0.0, %v3004
        %v3006 = vpop.f32.mrb[0].mxu0
        %v3007 = vpop.f32.mrb[0].mxu0
        %v3008 = vadd.f32 0.0, %v3007
        %v3009 = vpop.f32.mrb[0].mxu0
        %3010 = vmatprep.mubr.bf16.mxu0 0
        %3011 = vmatmul.mubr.bf16.gmra.mrb[0].mxu0 %v1601
        %v3012 = vpop.f32.mrb[0].mxu0
        %v3013 = vadd.f32 0.0, %v3012
        %v3014 = vpop.f32.mrb[0].mxu0
        %v3015 = vpop.f32.mrb[0].mxu0
        %v3016 = vadd.f32 0.0, %v3015
        %v3017 = vpop.f32.mrb[0].mxu0
        %3018 = vmatprep.mubr.bf16.mxu0 0
        %3019 = vmatmul.mubr.bf16.gmra.mrb[0].mxu0 %v1604
        %v3020 = vpop.f32.mrb[0].mxu0
        %v3021 = vadd.f32 0.0, %v3020
        %v3022 = vpop.f32.mrb[0].mxu0
        %v3023 = vpop.f32.mrb[0].mxu0
        %v3024 = vadd.f32 0.0, %v3023
        %v3025 = vpop.f32.mrb[0].mxu0
        %3026 = vmatprep.mubr.bf16.mxu0 0
        %3027 = vmatmul.mubr.bf16.gmra.mrb[0].mxu0 %v1607
        %v3028 = vpop.f32.mrb[0].mxu0
        %v3029 = vadd.f32 0.0, %v3028
        %v3030 = vpop.f32.mrb[0].mxu0
        %v3031 = vpop.f32.mrb[0].mxu0
        %v3032 = vadd.f32 0.0, %v3031
        %v3033 = vpop.f32.mrb[0].mxu0
        %3034 = vmatprep.mubr.bf16.mxu0 0
        %3035 = vmatmul.mubr.bf16.gmra.mrb[0].mxu0 %v1820
        %v3036 = vpop.f32.mrb[0].mxu0
        %v3037 = vadd.f32 0.0, %v3036
        %v3038 = vpop.f32.mrb[0].mxu0
        %v3039 = vpop.f32.mrb[0].mxu0
        %v3040 = vadd.f32 0.0, %v3039
        %v3041 = vpop.f32.mrb[0].mxu0
        %3042 = vmatprep.mubr.bf16.mxu0 0
        %3043 = vmatmul.mubr.bf16.gmra.mrb[0].mxu0 %v1823
        %v3044 = vpop.f32.mrb[0].mxu0
        %v3045 = vadd.f32 0.0, %v3044
        %v3046 = vpop.f32.mrb[0].mxu0
        %v3047 = vpop.f32.mrb[0].mxu0
        %v3048 = vadd.f32 0.0, %v3047
        %v3049 = vpop.f32.mrb[0].mxu0
        %3050 = vmatprep.mubr.bf16.mxu0 0
        %3051 = vmatmul.mubr.bf16.gmra.mrb[0].mxu0 %v1826
        %v3052 = vpop.f32.mrb[0].mxu0
        %v3053 = vadd.f32 0.0, %v3052
        %v3054 = vpop.f32.mrb[0].mxu0
        %v3055 = vpop.f32.mrb[0].mxu0
        %v3056 = vadd.f32 0.0, %v3055
        %v3057 = vpop.f32.mrb[0].mxu0
        %3058 = vmatprep.mubr.bf16.mxu0 0
        %3059 = vmatmul.mubr.bf16.gmra.mrb[0].mxu0 %v1829
        %v3060 = vpop.f32.mrb[0].mxu0
        %v3061 = vadd.f32 0.0, %v3060
        %v3062 = vpop.f32.mrb[0].mxu0
        %v3063 = vpop.f32.mrb[0].mxu0
        %v3064 = vadd.f32 0.0, %v3063
        %v3065 = vpop.f32.mrb[0].mxu0
        %3066 = vmatprep.mubr.bf16.mxu0 0
        %3067 = vmatmul.mubr.bf16.gmra.mrb[0].mxu0 %v2734
        %v3068 = vpop.f32.mrb[0].mxu0
        %v3069 = vadd.f32 0.0, %v3068
        %v3070 = vpop.f32.mrb[0].mxu0
        %v3071 = vpop.f32.mrb[0].mxu0
        %v3072 = vadd.f32 0.0, %v3071
        %v3073 = vpop.f32.mrb[0].mxu0
        %3074 = vmatprep.mubr.bf16.mxu0 0
        %3075 = vmatmul.mubr.bf16.gmra.mrb[0].mxu0 %v2737
        %v3076 = vpop.f32.mrb[0].mxu0
        %v3077 = vadd.f32 0.0, %v3076
        %v3078 = vpop.f32.mrb[0].mxu0
        %v3079 = vpop.f32.mrb[0].mxu0
        %v3080 = vadd.f32 0.0, %v3079
        %v3081 = vpop.f32.mrb[0].mxu0
        %3082 = vmatprep.mubr.bf16.mxu0 0
        %3083 = vmatmul.mubr.bf16.gmra.mrb[0].mxu0 %v2740
        %v3084 = vpop.f32.mrb[0].mxu0
        %v3085 = vadd.f32 0.0, %v3084
        %v3086 = vpop.f32.mrb[0].mxu0
        %v3087 = vpop.f32.mrb[0].mxu0
        %v3088 = vadd.f32 0.0, %v3087
        %v3089 = vpop.f32.mrb[0].mxu0
        %3090 = vmatprep.mubr.bf16.mxu0 0
        %3091 = vmatmul.mubr.bf16.gmra.mrb[0].mxu0 %v2743
        %v3092 = vpop.f32.mrb[0].mxu0
        %v3093 = vadd.f32 0.0, %v3092
        %v3094 = vpop.f32.mrb[0].mxu0
        %v3095 = vpop.f32.mrb[0].mxu0
        %v3096 = vadd.f32 0.0, %v3095
        %v3097 = vpop.f32.mrb[0].mxu0
        %3098 = vmatprep.mubr.bf16.mxu0 0
        %3099 = vmatmul.mubr.bf16.gmra.mrb[0].mxu0 %v2956
        %v3100 = vpop.f32.mrb[0].mxu0
        %v3101 = vadd.f32 0.0, %v3100
        %v3102 = vpop.f32.mrb[0].mxu0
        %v3103 = vpop.f32.mrb[0].mxu0
        %v3104 = vadd.f32 0.0, %v3103
        %v3105 = vpop.f32.mrb[0].mxu0
        %3106 = vmatprep.mubr.bf16.mxu0 0
        %3107 = vmatmul.mubr.bf16.gmra.mrb[0].mxu0 %v2959
        %v3108 = vpop.f32.mrb[0].mxu0
        %v3109 = vadd.f32 0.0, %v3108
        %v3110 = vpop.f32.mrb[0].mxu0
        %v3111 = vpop.f32.mrb[0].mxu0
        %v3112 = vadd.f32 0.0, %v3111
        %v3113 = vpop.f32.mrb[0].mxu0
        %3114 = vmatprep.mubr.bf16.mxu0 0
        %3115 = vmatmul.mubr.bf16.gmra.mrb[0].mxu0 %v2962
        %v3116 = vpop.f32.mrb[0].mxu0
        %v3117 = vadd.f32 0.0, %v3116
        %v3118 = vpop.f32.mrb[0].mxu0
        %v3119 = vpop.f32.mrb[0].mxu0
        %v3120 = vadd.f32 0.0, %v3119
        %v3121 = vpop.f32.mrb[0].mxu0
        %3122 = vmatprep.mubr.bf16.mxu0 0
        %3123 = vmatmul.mubr.bf16.gmra.mrb[0].mxu0 %v2965
        %v3124 = vpop.f32.mrb[0].mxu0
        %v3125 = vadd.f32 0.0, %v3124
        %v3126 = vpop.f32.mrb[0].mxu0
        %v3127 = vpop.f32.mrb[0].mxu0
        %v3128 = vadd.f32 0.0, %v3127
        %v3129 = vpop.f32.mrb[0].mxu0
        %3130 = vdwg.mxu0
        %v3131 = vadd.f32 %v2909, %v3005
        %v3132 = vadd.f32 %v2910, %v3008
        %v3133 = vadd.f32 %v2911, %v3013
        %v3134 = vadd.f32 %v2912, %v3016
        %v3135 = vadd.f32 %v2913, %v3021
        %v3136 = vadd.f32 %v2914, %v3024
        %v3137 = vadd.f32 %v2915, %v3029
        %v3138 = vadd.f32 %v2916, %v3032
        %v3139 = vadd.f32 %v2917, %v3037
        %v3140 = vadd.f32 %v2918, %v3040
        %v3141 = vadd.f32 %v2919, %v3045
        %v3142 = vadd.f32 %v2920, %v3048
        %v3143 = vadd.f32 %v2921, %v3053
        %v3144 = vadd.f32 %v2922, %v3056
        %v3145 = vadd.f32 %v2923, %v3061
        %v3146 = vadd.f32 %v2924, %v3064
        %v3147 = vadd.f32 %v2925, %v3069
        %v3148 = vadd.f32 %v2926, %v3072
        %v3149 = vadd.f32 %v2927, %v3077
        %v3150 = vadd.f32 %v2928, %v3080
        %v3151 = vadd.f32 %v2929, %v3085
        %v3152 = vadd.f32 %v2930, %v3088
        %v3153 = vadd.f32 %v2931, %v3093
        %v3154 = vadd.f32 %v2932, %v3096
        %v3155 = vadd.f32 %v2933, %v3101
        %v3156 = vadd.f32 %v2934, %v3104
        %v3157 = vadd.f32 %v2935, %v3109
        %v3158 = vadd.f32 %v2936, %v3112
        %v3159 = vadd.f32 %v2937, %v3117
        %v3160 = vadd.f32 %v2938, %v3120
        %v3161 = vadd.f32 %v2939, %v3125
        %v3162 = vadd.f32 %v2940, %v3128
        %v3163 = vld [vmem:[%s2702 + $0x1] sm:$0xff]
        %v3164 = vld [vmem:[%s2702 + $0x11] sm:$0xff]
        %v3165 = vld [vmem:[%s2702 + $0x21] sm:$0xff]
        %v3166 = vld [vmem:[%s2702 + $0x31] sm:$0xff]
        %v3167 = vld [vmem:[%s2702 + $0x41] sm:$0xff]
        %v3168 = vld [vmem:[%s2702 + $0x51] sm:$0xff]
        %v3169 = vld [vmem:[%s2702 + $0x61] sm:$0xff]
        %v3170 = vld [vmem:[%s2702 + $0x71] sm:$0xff]
        %v3171 = vpack.c.bf16 %v3164, %v3163
        %v3172 = vpack.c.bf16 %v3166, %v3165
        %v3173 = vpack.c.bf16 %v3168, %v3167
        %v3174 = vpack.c.bf16 %v3170, %v3169
        %s3175 = scalar_lea.vmem %s1, 24
        %v3176 = vld [vmem:[%s3175] sm:$0x3]
        %v3178 = vsel %vm414, %v3171, 0
        %v3181 = vsel %vm414, %v3172, 0
        %v3184 = vsel %vm414, %v3173, 0
        %v3187 = vsel %vm414, %v3174, 0
        %v3190 = vand.u32 %v3176, %v466
        %3192 = vmatprep.subr.bf16.mxu0 0
        %3193 = vmatpush1.bf16.msra.mxu0 %v3190
        %3194 = vmatprep.subr.bf16.mxu0 0
        %3195 = vmatpush1.bf16.msra.mxu0 0
        %3196 = vmatprep.subr.bf16.mxu0 0
        %3197 = vmatpush1.bf16.msra.mxu0 0
        %3198 = vmatprep.subr.bf16.mxu0 0
        %3199 = vmatpush1.bf16.msra.mxu0 0
        %3200 = vmatprep.subr.bf16.mxu0 0
        %3201 = vmatpush1.bf16.msra.mxu0 0
        %3202 = vmatprep.subr.bf16.mxu0 0
        %3203 = vmatpush1.bf16.msra.mxu0 0
        %3204 = vmatprep.subr.bf16.mxu0 0
        %3205 = vmatpush1.bf16.msra.mxu0 0
        %3206 = vmatprep.subr.bf16.mxu0 0
        %3207 = vmatpush1.bf16.msra.mxu0 0
        %3208 = vmatprep.subr.bf16.mxu0 0
        %3209 = vmatpush1.bf16.msra.mxu0 0
        %3210 = vmatprep.subr.bf16.mxu0 0
        %3211 = vmatpush1.bf16.msra.mxu0 0
        %3212 = vmatprep.subr.bf16.mxu0 0
        %3213 = vmatpush1.bf16.msra.mxu0 0
        %3214 = vmatprep.subr.bf16.mxu0 0
        %3215 = vmatpush1.bf16.msra.mxu0 0
        %3216 = vmatprep.subr.bf16.mxu0 0
        %3217 = vmatpush1.bf16.msra.mxu0 0
        %3218 = vmatprep.subr.bf16.mxu0 0
        %3219 = vmatpush1.bf16.msra.mxu0 0
        %3220 = vmatprep.subr.bf16.mxu0 0
        %3221 = vmatpush1.bf16.msra.mxu0 0
        %3222 = vmatprep.subr.bf16.mxu0 0
        %3223 = vmatpush1.bf16.msra.mxu0 0
        %3224 = vmatprep.mubr.bf16.mxu0 0
        %3225 = vmatmul.mubr.bf16.gmra.mrb[0].mxu0 %v1820
        %v3226 = vpop.f32.mrb[0].mxu0
        %v3227 = vadd.f32 0.0, %v3226
        %v3228 = vpop.f32.mrb[0].mxu0
        %v3229 = vpop.f32.mrb[0].mxu0
        %v3230 = vadd.f32 0.0, %v3229
        %v3231 = vpop.f32.mrb[0].mxu0
        %3232 = vmatprep.mubr.bf16.mxu0 0
        %3233 = vmatmul.mubr.bf16.gmra.mrb[0].mxu0 %v1823
        %v3234 = vpop.f32.mrb[0].mxu0
        %v3235 = vadd.f32 0.0, %v3234
        %v3236 = vpop.f32.mrb[0].mxu0
        %v3237 = vpop.f32.mrb[0].mxu0
        %v3238 = vadd.f32 0.0, %v3237
        %v3239 = vpop.f32.mrb[0].mxu0
        %3240 = vmatprep.mubr.bf16.mxu0 0
        %3241 = vmatmul.mubr.bf16.gmra.mrb[0].mxu0 %v1826
        %v3242 = vpop.f32.mrb[0].mxu0
        %v3243 = vadd.f32 0.0, %v3242
        %v3244 = vpop.f32.mrb[0].mxu0
        %v3245 = vpop.f32.mrb[0].mxu0
        %v3246 = vadd.f32 0.0, %v3245
        %v3247 = vpop.f32.mrb[0].mxu0
        %3248 = vmatprep.mubr.bf16.mxu0 0
        %3249 = vmatmul.mubr.bf16.gmra.mrb[0].mxu0 %v1829
        %v3250 = vpop.f32.mrb[0].mxu0
        %v3251 = vadd.f32 0.0, %v3250
        %v3252 = vpop.f32.mrb[0].mxu0
        %v3253 = vpop.f32.mrb[0].mxu0
        %v3254 = vadd.f32 0.0, %v3253
        %v3255 = vpop.f32.mrb[0].mxu0
        %3256 = vmatprep.mubr.bf16.mxu0 0
        %3257 = vmatmul.mubr.bf16.gmra.mrb[0].mxu0 %v2042
        %v3258 = vpop.f32.mrb[0].mxu0
        %v3259 = vadd.f32 0.0, %v3258
        %v3260 = vpop.f32.mrb[0].mxu0
        %v3261 = vpop.f32.mrb[0].mxu0
        %v3262 = vadd.f32 0.0, %v3261
        %v3263 = vpop.f32.mrb[0].mxu0
        %3264 = vmatprep.mubr.bf16.mxu0 0
        %3265 = vmatmul.mubr.bf16.gmra.mrb[0].mxu0 %v2045
        %v3266 = vpop.f32.mrb[0].mxu0
        %v3267 = vadd.f32 0.0, %v3266
        %v3268 = vpop.f32.mrb[0].mxu0
        %v3269 = vpop.f32.mrb[0].mxu0
        %v3270 = vadd.f32 0.0, %v3269
        %v3271 = vpop.f32.mrb[0].mxu0
        %3272 = vmatprep.mubr.bf16.mxu0 0
        %3273 = vmatmul.mubr.bf16.gmra.mrb[0].mxu0 %v2048
        %v3274 = vpop.f32.mrb[0].mxu0
        %v3275 = vadd.f32 0.0, %v3274
        %v3276 = vpop.f32.mrb[0].mxu0
        %v3277 = vpop.f32.mrb[0].mxu0
        %v3278 = vadd.f32 0.0, %v3277
        %v3279 = vpop.f32.mrb[0].mxu0
        %3280 = vmatprep.mubr.bf16.mxu0 0
        %3281 = vmatmul.mubr.bf16.gmra.mrb[0].mxu0 %v2051
        %v3282 = vpop.f32.mrb[0].mxu0
        %v3283 = vadd.f32 0.0, %v3282
        %v3284 = vpop.f32.mrb[0].mxu0
        %v3285 = vpop.f32.mrb[0].mxu0
        %v3286 = vadd.f32 0.0, %v3285
        %v3287 = vpop.f32.mrb[0].mxu0
        %3288 = vmatprep.mubr.bf16.mxu0 0
        %3289 = vmatmul.mubr.bf16.gmra.mrb[0].mxu0 %v2956
        %v3290 = vpop.f32.mrb[0].mxu0
        %v3291 = vadd.f32 0.0, %v3290
        %v3292 = vpop.f32.mrb[0].mxu0
        %v3293 = vpop.f32.mrb[0].mxu0
        %v3294 = vadd.f32 0.0, %v3293
        %v3295 = vpop.f32.mrb[0].mxu0
        %3296 = vmatprep.mubr.bf16.mxu0 0
        %3297 = vmatmul.mubr.bf16.gmra.mrb[0].mxu0 %v2959
        %v3298 = vpop.f32.mrb[0].mxu0
        %v3299 = vadd.f32 0.0, %v3298
        %v3300 = vpop.f32.mrb[0].mxu0
        %v3301 = vpop.f32.mrb[0].mxu0
        %v3302 = vadd.f32 0.0, %v3301
        %v3303 = vpop.f32.mrb[0].mxu0
        %3304 = vmatprep.mubr.bf16.mxu0 0
        %3305 = vmatmul.mubr.bf16.gmra.mrb[0].mxu0 %v2962
        %v3306 = vpop.f32.mrb[0].mxu0
        %v3307 = vadd.f32 0.0, %v3306
        %v3308 = vpop.f32.mrb[0].mxu0
        %v3309 = vpop.f32.mrb[0].mxu0
        %v3310 = vadd.f32 0.0, %v3309
        %v3311 = vpop.f32.mrb[0].mxu0
        %3312 = vmatprep.mubr.bf16.mxu0 0
        %3313 = vmatmul.mubr.bf16.gmra.mrb[0].mxu0 %v2965
        %v3314 = vpop.f32.mrb[0].mxu0
        %v3315 = vadd.f32 0.0, %v3314
        %v3316 = vpop.f32.mrb[0].mxu0
        %v3317 = vpop.f32.mrb[0].mxu0
        %v3318 = vadd.f32 0.0, %v3317
        %v3319 = vpop.f32.mrb[0].mxu0
        %3320 = vmatprep.mubr.bf16.mxu0 0
        %3321 = vmatmul.mubr.bf16.gmra.mrb[0].mxu0 %v3178
        %v3322 = vpop.f32.mrb[0].mxu0
        %v3323 = vadd.f32 0.0, %v3322
        %v3324 = vpop.f32.mrb[0].mxu0
        %v3325 = vpop.f32.mrb[0].mxu0
        %v3326 = vadd.f32 0.0, %v3325
        %v3327 = vpop.f32.mrb[0].mxu0
        %3328 = vmatprep.mubr.bf16.mxu0 0
        %3329 = vmatmul.mubr.bf16.gmra.mrb[0].mxu0 %v3181
        %v3330 = vpop.f32.mrb[0].mxu0
        %v3331 = vadd.f32 0.0, %v3330
        %v3332 = vpop.f32.mrb[0].mxu0
        %v3333 = vpop.f32.mrb[0].mxu0
        %v3334 = vadd.f32 0.0, %v3333
        %v3335 = vpop.f32.mrb[0].mxu0
        %3336 = vmatprep.mubr.bf16.mxu0 0
        %3337 = vmatmul.mubr.bf16.gmra.mrb[0].mxu0 %v3184
        %v3338 = vpop.f32.mrb[0].mxu0
        %v3339 = vadd.f32 0.0, %v3338
        %v3340 = vpop.f32.mrb[0].mxu0
        %v3341 = vpop.f32.mrb[0].mxu0
        %v3342 = vadd.f32 0.0, %v3341
        %v3343 = vpop.f32.mrb[0].mxu0
        %3344 = vmatprep.mubr.bf16.mxu0 0
        %3345 = vmatmul.mubr.bf16.gmra.mrb[0].mxu0 %v3187
        %v3346 = vpop.f32.mrb[0].mxu0
        %v3347 = vadd.f32 0.0, %v3346
        %v3348 = vpop.f32.mrb[0].mxu0
        %v3349 = vpop.f32.mrb[0].mxu0
        %v3350 = vadd.f32 0.0, %v3349
        %v3351 = vpop.f32.mrb[0].mxu0
        %3352 = vdwg.mxu0
        %v3353 = vadd.f32 %v3131, %v3227
        %v3354 = vadd.f32 %v3132, %v3230
        %v3355 = vadd.f32 %v3133, %v3235
        %v3356 = vadd.f32 %v3134, %v3238
        %v3357 = vadd.f32 %v3135, %v3243
        %v3358 = vadd.f32 %v3136, %v3246
        %v3359 = vadd.f32 %v3137, %v3251
        %v3360 = vadd.f32 %v3138, %v3254
        %v3361 = vadd.f32 %v3139, %v3259
        %v3362 = vadd.f32 %v3140, %v3262
        %v3363 = vadd.f32 %v3141, %v3267
        %v3364 = vadd.f32 %v3142, %v3270
        %v3365 = vadd.f32 %v3143, %v3275
        %v3366 = vadd.f32 %v3144, %v3278
        %v3367 = vadd.f32 %v3145, %v3283
        %v3368 = vadd.f32 %v3146, %v3286
        %v3369 = vadd.f32 %v3147, %v3291
        %v3370 = vadd.f32 %v3148, %v3294
        %v3371 = vadd.f32 %v3149, %v3299
        %v3372 = vadd.f32 %v3150, %v3302
        %v3373 = vadd.f32 %v3151, %v3307
        %v3374 = vadd.f32 %v3152, %v3310
        %v3375 = vadd.f32 %v3153, %v3315
        %v3376 = vadd.f32 %v3154, %v3318
        %v3377 = vadd.f32 %v3155, %v3323
        %v3378 = vadd.f32 %v3156, %v3326
        %v3379 = vadd.f32 %v3157, %v3331
        %v3380 = vadd.f32 %v3158, %v3334
        %v3381 = vadd.f32 %v3159, %v3339
        %v3382 = vadd.f32 %v3160, %v3342
        %v3383 = vadd.f32 %v3161, %v3347
        %v3384 = vadd.f32 %v3162, %v3350
        %v3385 = vld [vmem:[%s2693 + $0x2] sm:$0xff]
        %v3386 = vld [vmem:[%s2693 + $0x12] sm:$0xff]
        %v3387 = vld [vmem:[%s2693 + $0x22] sm:$0xff]
        %v3388 = vld [vmem:[%s2693 + $0x32] sm:$0xff]
        %v3389 = vld [vmem:[%s2693 + $0x42] sm:$0xff]
        %v3390 = vld [vmem:[%s2693 + $0x52] sm:$0xff]
        %v3391 = vld [vmem:[%s2693 + $0x62] sm:$0xff]
        %v3392 = vld [vmem:[%s2693 + $0x72] sm:$0xff]
        %v3393 = vpack.c.bf16 %v3386, %v3385
        %v3394 = vpack.c.bf16 %v3388, %v3387
        %v3395 = vpack.c.bf16 %v3390, %v3389
        %v3396 = vpack.c.bf16 %v3392, %v3391
        %s3397 = scalar_lea.vmem %s1, 26
        %v3398 = vld [vmem:[%s3397] sm:$0x3]
        %v3400 = vsel %vm414, %v3393, 0
        %v3403 = vsel %vm414, %v3394, 0
        %v3406 = vsel %vm414, %v3395, 0
        %v3409 = vsel %vm414, %v3396, 0
        %v3412 = vand.u32 %v3398, %v466
        %3414 = vmatprep.subr.bf16.mxu0 0
        %3415 = vmatpush1.bf16.msra.mxu0 %v3412
        %3416 = vmatprep.subr.bf16.mxu0 0
        %3417 = vmatpush1.bf16.msra.mxu0 0
        %3418 = vmatprep.subr.bf16.mxu0 0
        %3419 = vmatpush1.bf16.msra.mxu0 0
        %3420 = vmatprep.subr.bf16.mxu0 0
        %3421 = vmatpush1.bf16.msra.mxu0 0
        %3422 = vmatprep.subr.bf16.mxu0 0
        %3423 = vmatpush1.bf16.msra.mxu0 0
        %3424 = vmatprep.subr.bf16.mxu0 0
        %3425 = vmatpush1.bf16.msra.mxu0 0
        %3426 = vmatprep.subr.bf16.mxu0 0
        %3427 = vmatpush1.bf16.msra.mxu0 0
        %3428 = vmatprep.subr.bf16.mxu0 0
        %3429 = vmatpush1.bf16.msra.mxu0 0
        %3430 = vmatprep.subr.bf16.mxu0 0
        %3431 = vmatpush1.bf16.msra.mxu0 0
        %3432 = vmatprep.subr.bf16.mxu0 0
        %3433 = vmatpush1.bf16.msra.mxu0 0
        %3434 = vmatprep.subr.bf16.mxu0 0
        %3435 = vmatpush1.bf16.msra.mxu0 0
        %3436 = vmatprep.subr.bf16.mxu0 0
        %3437 = vmatpush1.bf16.msra.mxu0 0
        %3438 = vmatprep.subr.bf16.mxu0 0
        %3439 = vmatpush1.bf16.msra.mxu0 0
        %3440 = vmatprep.subr.bf16.mxu0 0
        %3441 = vmatpush1.bf16.msra.mxu0 0
        %3442 = vmatprep.subr.bf16.mxu0 0
        %3443 = vmatpush1.bf16.msra.mxu0 0
        %3444 = vmatprep.subr.bf16.mxu0 0
        %3445 = vmatpush1.bf16.msra.mxu0 0
        %3446 = vmatprep.mubr.bf16.mxu0 0
        %3447 = vmatmul.mubr.bf16.gmra.mrb[0].mxu0 %v2042
        %v3448 = vpop.f32.mrb[0].mxu0
        %v3449 = vadd.f32 0.0, %v3448
        %v3450 = vpop.f32.mrb[0].mxu0
        %v3451 = vpop.f32.mrb[0].mxu0
        %v3452 = vadd.f32 0.0, %v3451
        %v3453 = vpop.f32.mrb[0].mxu0
        %3454 = vmatprep.mubr.bf16.mxu0 0
        %3455 = vmatmul.mubr.bf16.gmra.mrb[0].mxu0 %v2045
        %v3456 = vpop.f32.mrb[0].mxu0
        %v3457 = vadd.f32 0.0, %v3456
        %v3458 = vpop.f32.mrb[0].mxu0
        %v3459 = vpop.f32.mrb[0].mxu0
        %v3460 = vadd.f32 0.0, %v3459
        %v3461 = vpop.f32.mrb[0].mxu0
        %3462 = vmatprep.mubr.bf16.mxu0 0
        %3463 = vmatmul.mubr.bf16.gmra.mrb[0].mxu0 %v2048
        %v3464 = vpop.f32.mrb[0].mxu0
        %v3465 = vadd.f32 0.0, %v3464
        %v3466 = vpop.f32.mrb[0].mxu0
        %v3467 = vpop.f32.mrb[0].mxu0
        %v3468 = vadd.f32 0.0, %v3467
        %v3469 = vpop.f32.mrb[0].mxu0
        %3470 = vmatprep.mubr.bf16.mxu0 0
        %3471 = vmatmul.mubr.bf16.gmra.mrb[0].mxu0 %v2051
        %v3472 = vpop.f32.mrb[0].mxu0
        %v3473 = vadd.f32 0.0, %v3472
        %v3474 = vpop.f32.mrb[0].mxu0
        %v3475 = vpop.f32.mrb[0].mxu0
        %v3476 = vadd.f32 0.0, %v3475
        %v3477 = vpop.f32.mrb[0].mxu0
        %3478 = vmatprep.mubr.bf16.mxu0 0
        %3479 = vmatmul.mubr.bf16.gmra.mrb[0].mxu0 %v2264
        %v3480 = vpop.f32.mrb[0].mxu0
        %v3481 = vadd.f32 0.0, %v3480
        %v3482 = vpop.f32.mrb[0].mxu0
        %v3483 = vpop.f32.mrb[0].mxu0
        %v3484 = vadd.f32 0.0, %v3483
        %v3485 = vpop.f32.mrb[0].mxu0
        %3486 = vmatprep.mubr.bf16.mxu0 0
        %3487 = vmatmul.mubr.bf16.gmra.mrb[0].mxu0 %v2267
        %v3488 = vpop.f32.mrb[0].mxu0
        %v3489 = vadd.f32 0.0, %v3488
        %v3490 = vpop.f32.mrb[0].mxu0
        %v3491 = vpop.f32.mrb[0].mxu0
        %v3492 = vadd.f32 0.0, %v3491
        %v3493 = vpop.f32.mrb[0].mxu0
        %3494 = vmatprep.mubr.bf16.mxu0 0
        %3495 = vmatmul.mubr.bf16.gmra.mrb[0].mxu0 %v2270
        %v3496 = vpop.f32.mrb[0].mxu0
        %v3497 = vadd.f32 0.0, %v3496
        %v3498 = vpop.f32.mrb[0].mxu0
        %v3499 = vpop.f32.mrb[0].mxu0
        %v3500 = vadd.f32 0.0, %v3499
        %v3501 = vpop.f32.mrb[0].mxu0
        %3502 = vmatprep.mubr.bf16.mxu0 0
        %3503 = vmatmul.mubr.bf16.gmra.mrb[0].mxu0 %v2273
        %v3504 = vpop.f32.mrb[0].mxu0
        %v3505 = vadd.f32 0.0, %v3504
        %v3506 = vpop.f32.mrb[0].mxu0
        %v3507 = vpop.f32.mrb[0].mxu0
        %v3508 = vadd.f32 0.0, %v3507
        %v3509 = vpop.f32.mrb[0].mxu0
        %3510 = vmatprep.mubr.bf16.mxu0 0
        %3511 = vmatmul.mubr.bf16.gmra.mrb[0].mxu0 %v3178
        %v3512 = vpop.f32.mrb[0].mxu0
        %v3513 = vadd.f32 0.0, %v3512
        %v3514 = vpop.f32.mrb[0].mxu0
        %v3515 = vpop.f32.mrb[0].mxu0
        %v3516 = vadd.f32 0.0, %v3515
        %v3517 = vpop.f32.mrb[0].mxu0
        %3518 = vmatprep.mubr.bf16.mxu0 0
        %3519 = vmatmul.mubr.bf16.gmra.mrb[0].mxu0 %v3181
        %v3520 = vpop.f32.mrb[0].mxu0
        %v3521 = vadd.f32 0.0, %v3520
        %v3522 = vpop.f32.mrb[0].mxu0
        %v3523 = vpop.f32.mrb[0].mxu0
        %v3524 = vadd.f32 0.0, %v3523
        %v3525 = vpop.f32.mrb[0].mxu0
        %3526 = vmatprep.mubr.bf16.mxu0 0
        %3527 = vmatmul.mubr.bf16.gmra.mrb[0].mxu0 %v3184
        %v3528 = vpop.f32.mrb[0].mxu0
        %v3529 = vadd.f32 0.0, %v3528
        %v3530 = vpop.f32.mrb[0].mxu0
        %v3531 = vpop.f32.mrb[0].mxu0
        %v3532 = vadd.f32 0.0, %v3531
        %v3533 = vpop.f32.mrb[0].mxu0
        %3534 = vmatprep.mubr.bf16.mxu0 0
        %3535 = vmatmul.mubr.bf16.gmra.mrb[0].mxu0 %v3187
        %v3536 = vpop.f32.mrb[0].mxu0
        %v3537 = vadd.f32 0.0, %v3536
        %v3538 = vpop.f32.mrb[0].mxu0
        %v3539 = vpop.f32.mrb[0].mxu0
        %v3540 = vadd.f32 0.0, %v3539
        %v3541 = vpop.f32.mrb[0].mxu0
        %3542 = vmatprep.mubr.bf16.mxu0 0
        %3543 = vmatmul.mubr.bf16.gmra.mrb[0].mxu0 %v3400
        %v3544 = vpop.f32.mrb[0].mxu0
        %v3545 = vadd.f32 0.0, %v3544
        %v3546 = vpop.f32.mrb[0].mxu0
        %v3547 = vpop.f32.mrb[0].mxu0
        %v3548 = vadd.f32 0.0, %v3547
        %v3549 = vpop.f32.mrb[0].mxu0
        %3550 = vmatprep.mubr.bf16.mxu0 0
        %3551 = vmatmul.mubr.bf16.gmra.mrb[0].mxu0 %v3403
        %v3552 = vpop.f32.mrb[0].mxu0
        %v3553 = vadd.f32 0.0, %v3552
        %v3554 = vpop.f32.mrb[0].mxu0
        %v3555 = vpop.f32.mrb[0].mxu0
        %v3556 = vadd.f32 0.0, %v3555
        %v3557 = vpop.f32.mrb[0].mxu0
        %3558 = vmatprep.mubr.bf16.mxu0 0
        %3559 = vmatmul.mubr.bf16.gmra.mrb[0].mxu0 %v3406
        %v3560 = vpop.f32.mrb[0].mxu0
        %v3561 = vadd.f32 0.0, %v3560
        %v3562 = vpop.f32.mrb[0].mxu0
        %v3563 = vpop.f32.mrb[0].mxu0
        %v3564 = vadd.f32 0.0, %v3563
        %v3565 = vpop.f32.mrb[0].mxu0
        %3566 = vmatprep.mubr.bf16.mxu0 0
        %3567 = vmatmul.mubr.bf16.gmra.mrb[0].mxu0 %v3409
        %v3568 = vpop.f32.mrb[0].mxu0
        %v3569 = vadd.f32 0.0, %v3568
        %v3570 = vpop.f32.mrb[0].mxu0
        %v3571 = vpop.f32.mrb[0].mxu0
        %v3572 = vadd.f32 0.0, %v3571
        %v3573 = vpop.f32.mrb[0].mxu0
        %3574 = vdwg.mxu0
        %v3575 = vadd.f32 %v3353, %v3449
        %v3576 = vadd.f32 %v3354, %v3452
        %v3577 = vadd.f32 %v3355, %v3457
        %v3578 = vadd.f32 %v3356, %v3460
        %v3579 = vadd.f32 %v3357, %v3465
        %v3580 = vadd.f32 %v3358, %v3468
        %v3581 = vadd.f32 %v3359, %v3473
        %v3582 = vadd.f32 %v3360, %v3476
        %v3583 = vadd.f32 %v3361, %v3481
        %v3584 = vadd.f32 %v3362, %v3484
        %v3585 = vadd.f32 %v3363, %v3489
        %v3586 = vadd.f32 %v3364, %v3492
        %v3587 = vadd.f32 %v3365, %v3497
        %v3588 = vadd.f32 %v3366, %v3500
        %v3589 = vadd.f32 %v3367, %v3505
        %v3590 = vadd.f32 %v3368, %v3508
        %v3591 = vadd.f32 %v3369, %v3513
        %v3592 = vadd.f32 %v3370, %v3516
        %v3593 = vadd.f32 %v3371, %v3521
        %v3594 = vadd.f32 %v3372, %v3524
        %v3595 = vadd.f32 %v3373, %v3529
        %v3596 = vadd.f32 %v3374, %v3532
        %v3597 = vadd.f32 %v3375, %v3537
        %v3598 = vadd.f32 %v3376, %v3540
        %v3599 = vadd.f32 %v3377, %v3545
        %v3600 = vadd.f32 %v3378, %v3548
        %v3601 = vadd.f32 %v3379, %v3553
        %v3602 = vadd.f32 %v3380, %v3556
        %v3603 = vadd.f32 %v3381, %v3561
        %v3604 = vadd.f32 %v3382, %v3564
        %v3605 = vadd.f32 %v3383, %v3569
        %v3606 = vadd.f32 %v3384, %v3572
        %v3607 = vld [vmem:[%s2702 + $0x2] sm:$0xff]
        %v3608 = vld [vmem:[%s2702 + $0x12] sm:$0xff]
        %v3609 = vld [vmem:[%s2702 + $0x22] sm:$0xff]
        %v3610 = vld [vmem:[%s2702 + $0x32] sm:$0xff]
        %v3611 = vld [vmem:[%s2702 + $0x42] sm:$0xff]
        %v3612 = vld [vmem:[%s2702 + $0x52] sm:$0xff]
        %v3613 = vld [vmem:[%s2702 + $0x62] sm:$0xff]
        %v3614 = vld [vmem:[%s2702 + $0x72] sm:$0xff]
        %v3615 = vpack.c.bf16 %v3608, %v3607
        %v3616 = vpack.c.bf16 %v3610, %v3609
        %v3617 = vpack.c.bf16 %v3612, %v3611
        %v3618 = vpack.c.bf16 %v3614, %v3613
        %s3619 = scalar_lea.vmem %s1, 28
        %v3620 = vld [vmem:[%s3619] sm:$0x3]
        %v3622 = vsel %vm414, %v3615, 0
        %v3625 = vsel %vm414, %v3616, 0
        %v3628 = vsel %vm414, %v3617, 0
        %v3631 = vsel %vm414, %v3618, 0
        %v3634 = vand.u32 %v3620, %v466
        %3636 = vmatprep.subr.bf16.mxu0 0
        %3637 = vmatpush1.bf16.msra.mxu0 %v3634
        %3638 = vmatprep.subr.bf16.mxu0 0
        %3639 = vmatpush1.bf16.msra.mxu0 0
        %3640 = vmatprep.subr.bf16.mxu0 0
        %3641 = vmatpush1.bf16.msra.mxu0 0
        %3642 = vmatprep.subr.bf16.mxu0 0
        %3643 = vmatpush1.bf16.msra.mxu0 0
        %3644 = vmatprep.subr.bf16.mxu0 0
        %3645 = vmatpush1.bf16.msra.mxu0 0
        %3646 = vmatprep.subr.bf16.mxu0 0
        %3647 = vmatpush1.bf16.msra.mxu0 0
        %3648 = vmatprep.subr.bf16.mxu0 0
        %3649 = vmatpush1.bf16.msra.mxu0 0
        %3650 = vmatprep.subr.bf16.mxu0 0
        %3651 = vmatpush1.bf16.msra.mxu0 0
        %3652 = vmatprep.subr.bf16.mxu0 0
        %3653 = vmatpush1.bf16.msra.mxu0 0
        %3654 = vmatprep.subr.bf16.mxu0 0
        %3655 = vmatpush1.bf16.msra.mxu0 0
        %3656 = vmatprep.subr.bf16.mxu0 0
        %3657 = vmatpush1.bf16.msra.mxu0 0
        %3658 = vmatprep.subr.bf16.mxu0 0
        %3659 = vmatpush1.bf16.msra.mxu0 0
        %3660 = vmatprep.subr.bf16.mxu0 0
        %3661 = vmatpush1.bf16.msra.mxu0 0
        %3662 = vmatprep.subr.bf16.mxu0 0
        %3663 = vmatpush1.bf16.msra.mxu0 0
        %3664 = vmatprep.subr.bf16.mxu0 0
        %3665 = vmatpush1.bf16.msra.mxu0 0
        %3666 = vmatprep.subr.bf16.mxu0 0
        %3667 = vmatpush1.bf16.msra.mxu0 0
        %3668 = vmatprep.mubr.bf16.mxu0 0
        %3669 = vmatmul.mubr.bf16.gmra.mrb[0].mxu0 %v2264
        %v3670 = vpop.f32.mrb[0].mxu0
        %v3671 = vadd.f32 0.0, %v3670
        %v3672 = vpop.f32.mrb[0].mxu0
        %v3673 = vpop.f32.mrb[0].mxu0
        %v3674 = vadd.f32 0.0, %v3673
        %v3675 = vpop.f32.mrb[0].mxu0
        %3676 = vmatprep.mubr.bf16.mxu0 0
        %3677 = vmatmul.mubr.bf16.gmra.mrb[0].mxu0 %v2267
        %v3678 = vpop.f32.mrb[0].mxu0
        %v3679 = vadd.f32 0.0, %v3678
        %v3680 = vpop.f32.mrb[0].mxu0
        %v3681 = vpop.f32.mrb[0].mxu0
        %v3682 = vadd.f32 0.0, %v3681
        %v3683 = vpop.f32.mrb[0].mxu0
        %3684 = vmatprep.mubr.bf16.mxu0 0
        %3685 = vmatmul.mubr.bf16.gmra.mrb[0].mxu0 %v2270
        %v3686 = vpop.f32.mrb[0].mxu0
        %v3687 = vadd.f32 0.0, %v3686
        %v3688 = vpop.f32.mrb[0].mxu0
        %v3689 = vpop.f32.mrb[0].mxu0
        %v3690 = vadd.f32 0.0, %v3689
        %v3691 = vpop.f32.mrb[0].mxu0
        %3692 = vmatprep.mubr.bf16.mxu0 0
        %3693 = vmatmul.mubr.bf16.gmra.mrb[0].mxu0 %v2273
        %v3694 = vpop.f32.mrb[0].mxu0
        %v3695 = vadd.f32 0.0, %v3694
        %v3696 = vpop.f32.mrb[0].mxu0
        %v3697 = vpop.f32.mrb[0].mxu0
        %v3698 = vadd.f32 0.0, %v3697
        %v3699 = vpop.f32.mrb[0].mxu0
        %3700 = vmatprep.mubr.bf16.mxu0 0
        %3701 = vmatmul.mubr.bf16.gmra.mrb[0].mxu0 %v2486
        %v3702 = vpop.f32.mrb[0].mxu0
        %v3703 = vadd.f32 0.0, %v3702
        %v3704 = vpop.f32.mrb[0].mxu0
        %v3705 = vpop.f32.mrb[0].mxu0
        %v3706 = vadd.f32 0.0, %v3705
        %v3707 = vpop.f32.mrb[0].mxu0
        %3708 = vmatprep.mubr.bf16.mxu0 0
        %3709 = vmatmul.mubr.bf16.gmra.mrb[0].mxu0 %v2489
        %v3710 = vpop.f32.mrb[0].mxu0
        %v3711 = vadd.f32 0.0, %v3710
        %v3712 = vpop.f32.mrb[0].mxu0
        %v3713 = vpop.f32.mrb[0].mxu0
        %v3714 = vadd.f32 0.0, %v3713
        %v3715 = vpop.f32.mrb[0].mxu0
        %3716 = vmatprep.mubr.bf16.mxu0 0
        %3717 = vmatmul.mubr.bf16.gmra.mrb[0].mxu0 %v2492
        %v3718 = vpop.f32.mrb[0].mxu0
        %v3719 = vadd.f32 0.0, %v3718
        %v3720 = vpop.f32.mrb[0].mxu0
        %v3721 = vpop.f32.mrb[0].mxu0
        %v3722 = vadd.f32 0.0, %v3721
        %v3723 = vpop.f32.mrb[0].mxu0
        %3724 = vmatprep.mubr.bf16.mxu0 0
        %3725 = vmatmul.mubr.bf16.gmra.mrb[0].mxu0 %v2495
        %v3726 = vpop.f32.mrb[0].mxu0
        %v3727 = vadd.f32 0.0, %v3726
        %v3728 = vpop.f32.mrb[0].mxu0
        %v3729 = vpop.f32.mrb[0].mxu0
        %v3730 = vadd.f32 0.0, %v3729
        %v3731 = vpop.f32.mrb[0].mxu0
        %3732 = vmatprep.mubr.bf16.mxu0 0
        %3733 = vmatmul.mubr.bf16.gmra.mrb[0].mxu0 %v3400
        %v3734 = vpop.f32.mrb[0].mxu0
        %v3735 = vadd.f32 0.0, %v3734
        %v3736 = vpop.f32.mrb[0].mxu0
        %v3737 = vpop.f32.mrb[0].mxu0
        %v3738 = vadd.f32 0.0, %v3737
        %v3739 = vpop.f32.mrb[0].mxu0
        %3740 = vmatprep.mubr.bf16.mxu0 0
        %3741 = vmatmul.mubr.bf16.gmra.mrb[0].mxu0 %v3403
        %v3742 = vpop.f32.mrb[0].mxu0
        %v3743 = vadd.f32 0.0, %v3742
        %v3744 = vpop.f32.mrb[0].mxu0
        %v3745 = vpop.f32.mrb[0].mxu0
        %v3746 = vadd.f32 0.0, %v3745
        %v3747 = vpop.f32.mrb[0].mxu0
        %3748 = vmatprep.mubr.bf16.mxu0 0
        %3749 = vmatmul.mubr.bf16.gmra.mrb[0].mxu0 %v3406
        %v3750 = vpop.f32.mrb[0].mxu0
        %v3751 = vadd.f32 0.0, %v3750
        %v3752 = vpop.f32.mrb[0].mxu0
        %v3753 = vpop.f32.mrb[0].mxu0
        %v3754 = vadd.f32 0.0, %v3753
        %v3755 = vpop.f32.mrb[0].mxu0
        %3756 = vmatprep.mubr.bf16.mxu0 0
        %3757 = vmatmul.mubr.bf16.gmra.mrb[0].mxu0 %v3409
        %v3758 = vpop.f32.mrb[0].mxu0
        %v3759 = vadd.f32 0.0, %v3758
        %v3760 = vpop.f32.mrb[0].mxu0
        %v3761 = vpop.f32.mrb[0].mxu0
        %v3762 = vadd.f32 0.0, %v3761
        %v3763 = vpop.f32.mrb[0].mxu0
        %3764 = vmatprep.mubr.bf16.mxu0 0
        %3765 = vmatmul.mubr.bf16.gmra.mrb[0].mxu0 %v3622
        %v3766 = vpop.f32.mrb[0].mxu0
        %v3767 = vadd.f32 0.0, %v3766
        %v3768 = vpop.f32.mrb[0].mxu0
        %v3769 = vpop.f32.mrb[0].mxu0
        %v3770 = vadd.f32 0.0, %v3769
        %v3771 = vpop.f32.mrb[0].mxu0
        %3772 = vmatprep.mubr.bf16.mxu0 0
        %3773 = vmatmul.mubr.bf16.gmra.mrb[0].mxu0 %v3625
        %v3774 = vpop.f32.mrb[0].mxu0
        %v3775 = vadd.f32 0.0, %v3774
        %v3776 = vpop.f32.mrb[0].mxu0
        %v3777 = vpop.f32.mrb[0].mxu0
        %v3778 = vadd.f32 0.0, %v3777
        %v3779 = vpop.f32.mrb[0].mxu0
        %3780 = vmatprep.mubr.bf16.mxu0 0
        %3781 = vmatmul.mubr.bf16.gmra.mrb[0].mxu0 %v3628
        %v3782 = vpop.f32.mrb[0].mxu0
        %v3783 = vadd.f32 0.0, %v3782
        %v3784 = vpop.f32.mrb[0].mxu0
        %v3785 = vpop.f32.mrb[0].mxu0
        %v3786 = vadd.f32 0.0, %v3785
        %v3787 = vpop.f32.mrb[0].mxu0
        %3788 = vmatprep.mubr.bf16.mxu0 0
        %3789 = vmatmul.mubr.bf16.gmra.mrb[0].mxu0 %v3631
        %v3790 = vpop.f32.mrb[0].mxu0
        %v3791 = vadd.f32 0.0, %v3790
        %v3792 = vpop.f32.mrb[0].mxu0
        %v3793 = vpop.f32.mrb[0].mxu0
        %v3794 = vadd.f32 0.0, %v3793
        %v3795 = vpop.f32.mrb[0].mxu0
        %3796 = vdwg.mxu0
        %v3797 = vadd.f32 %v3575, %v3671
        %v3798 = vadd.f32 %v3576, %v3674
        %v3799 = vadd.f32 %v3577, %v3679
        %v3800 = vadd.f32 %v3578, %v3682
        %v3801 = vadd.f32 %v3579, %v3687
        %v3802 = vadd.f32 %v3580, %v3690
        %v3803 = vadd.f32 %v3581, %v3695
        %v3804 = vadd.f32 %v3582, %v3698
        %v3805 = vadd.f32 %v3583, %v3703
        %v3806 = vadd.f32 %v3584, %v3706
        %v3807 = vadd.f32 %v3585, %v3711
        %v3808 = vadd.f32 %v3586, %v3714
        %v3809 = vadd.f32 %v3587, %v3719
        %v3810 = vadd.f32 %v3588, %v3722
        %v3811 = vadd.f32 %v3589, %v3727
        %v3812 = vadd.f32 %v3590, %v3730
        %v3813 = vadd.f32 %v3591, %v3735
        %v3814 = vadd.f32 %v3592, %v3738
        %v3815 = vadd.f32 %v3593, %v3743
        %v3816 = vadd.f32 %v3594, %v3746
        %v3817 = vadd.f32 %v3595, %v3751
        %v3818 = vadd.f32 %v3596, %v3754
        %v3819 = vadd.f32 %v3597, %v3759
        %v3820 = vadd.f32 %v3598, %v3762
        %v3821 = vadd.f32 %v3599, %v3767
        %v3822 = vadd.f32 %v3600, %v3770
        %v3823 = vadd.f32 %v3601, %v3775
        %v3824 = vadd.f32 %v3602, %v3778
        %v3825 = vadd.f32 %v3603, %v3783
        %v3826 = vadd.f32 %v3604, %v3786
        %v3827 = vadd.f32 %v3605, %v3791
        %v3828 = vadd.f32 %v3606, %v3794
        %s3829 = scalar_lea.vmem %s333, 32
        %v3830 = vld [vmem:[%s3829] sm:$0xff]
        %v3831 = vld [vmem:[%s3829 + $0x10] sm:$0xff]
        %v3832 = vld [vmem:[%s3829 + $0x20] sm:$0xff]
        %v3833 = vld [vmem:[%s3829 + $0x30] sm:$0xff]
        %v3834 = vld [vmem:[%s3829 + $0x40] sm:$0xff]
        %v3835 = vld [vmem:[%s3829 + $0x50] sm:$0xff]
        %v3836 = vld [vmem:[%s3829 + $0x60] sm:$0xff]
        %v3837 = vld [vmem:[%s3829 + $0x70] sm:$0xff]
        %s3838 = scalar_lea.vmem %s333, 192
        %v3839 = vld [vmem:[%s3838] sm:$0xff]
        %v3840 = vld [vmem:[%s3838 + $0x10] sm:$0xff]
        %v3841 = vld [vmem:[%s3838 + $0x20] sm:$0xff]
        %v3842 = vld [vmem:[%s3838 + $0x30] sm:$0xff]
        %v3843 = vld [vmem:[%s3838 + $0x40] sm:$0xff]
        %v3844 = vld [vmem:[%s3838 + $0x50] sm:$0xff]
        %v3845 = vld [vmem:[%s3838 + $0x60] sm:$0xff]
        %v3846 = vld [vmem:[%s3838 + $0x70] sm:$0xff]
        %v3847 = vpack.c.bf16 %v3831, %v3830
        %v3848 = vpack.c.bf16 %v3833, %v3832
        %v3849 = vpack.c.bf16 %v3835, %v3834
        %v3850 = vpack.c.bf16 %v3837, %v3836
        %v3851 = vpack.c.bf16 %v3840, %v3839
        %v3852 = vpack.c.bf16 %v3842, %v3841
        %v3853 = vpack.c.bf16 %v3844, %v3843
        %v3854 = vpack.c.bf16 %v3846, %v3845
        %s3855 = scalar_lea.vmem %s1, 30
        %v3856 = vld [vmem:[%s3855] sm:$0x3]
        %v3858 = vsel %vm414, %v3847, 0
        %v3861 = vsel %vm414, %v3848, 0
        %v3864 = vsel %vm414, %v3849, 0
        %v3867 = vsel %vm414, %v3850, 0
        %v3870 = vsel %vm414, %v3851, 0
        %v3873 = vsel %vm414, %v3852, 0
        %v3876 = vsel %vm414, %v3853, 0
        %v3879 = vsel %vm414, %v3854, 0
        %v3882 = vand.u32 %v3856, %v466
        %3884 = vmatprep.subr.bf16.mxu0 0
        %3885 = vmatpush1.bf16.msra.mxu0 %v3882
        %3886 = vmatprep.subr.bf16.mxu0 0
        %3887 = vmatpush1.bf16.msra.mxu0 0
        %3888 = vmatprep.subr.bf16.mxu0 0
        %3889 = vmatpush1.bf16.msra.mxu0 0
        %3890 = vmatprep.subr.bf16.mxu0 0
        %3891 = vmatpush1.bf16.msra.mxu0 0
        %3892 = vmatprep.subr.bf16.mxu0 0
        %3893 = vmatpush1.bf16.msra.mxu0 0
        %3894 = vmatprep.subr.bf16.mxu0 0
        %3895 = vmatpush1.bf16.msra.mxu0 0
        %3896 = vmatprep.subr.bf16.mxu0 0
        %3897 = vmatpush1.bf16.msra.mxu0 0
        %3898 = vmatprep.subr.bf16.mxu0 0
        %3899 = vmatpush1.bf16.msra.mxu0 0
        %3900 = vmatprep.subr.bf16.mxu0 0
        %3901 = vmatpush1.bf16.msra.mxu0 0
        %3902 = vmatprep.subr.bf16.mxu0 0
        %3903 = vmatpush1.bf16.msra.mxu0 0
        %3904 = vmatprep.subr.bf16.mxu0 0
        %3905 = vmatpush1.bf16.msra.mxu0 0
        %3906 = vmatprep.subr.bf16.mxu0 0
        %3907 = vmatpush1.bf16.msra.mxu0 0
        %3908 = vmatprep.subr.bf16.mxu0 0
        %3909 = vmatpush1.bf16.msra.mxu0 0
        %3910 = vmatprep.subr.bf16.mxu0 0
        %3911 = vmatpush1.bf16.msra.mxu0 0
        %3912 = vmatprep.subr.bf16.mxu0 0
        %3913 = vmatpush1.bf16.msra.mxu0 0
        %3914 = vmatprep.subr.bf16.mxu0 0
        %3915 = vmatpush1.bf16.msra.mxu0 0
        %3916 = vmatprep.mubr.bf16.mxu0 0
        %3917 = vmatmul.mubr.bf16.gmra.mrb[0].mxu0 %v2722
        %v3918 = vpop.f32.mrb[0].mxu0
        %v3919 = vadd.f32 0.0, %v3918
        %v3920 = vpop.f32.mrb[0].mxu0
        %v3921 = vpop.f32.mrb[0].mxu0
        %v3922 = vadd.f32 0.0, %v3921
        %v3923 = vpop.f32.mrb[0].mxu0
        %3924 = vmatprep.mubr.bf16.mxu0 0
        %3925 = vmatmul.mubr.bf16.gmra.mrb[0].mxu0 %v2725
        %v3926 = vpop.f32.mrb[0].mxu0
        %v3927 = vadd.f32 0.0, %v3926
        %v3928 = vpop.f32.mrb[0].mxu0
        %v3929 = vpop.f32.mrb[0].mxu0
        %v3930 = vadd.f32 0.0, %v3929
        %v3931 = vpop.f32.mrb[0].mxu0
        %3932 = vmatprep.mubr.bf16.mxu0 0
        %3933 = vmatmul.mubr.bf16.gmra.mrb[0].mxu0 %v2728
        %v3934 = vpop.f32.mrb[0].mxu0
        %v3935 = vadd.f32 0.0, %v3934
        %v3936 = vpop.f32.mrb[0].mxu0
        %v3937 = vpop.f32.mrb[0].mxu0
        %v3938 = vadd.f32 0.0, %v3937
        %v3939 = vpop.f32.mrb[0].mxu0
        %3940 = vmatprep.mubr.bf16.mxu0 0
        %3941 = vmatmul.mubr.bf16.gmra.mrb[0].mxu0 %v2731
        %v3942 = vpop.f32.mrb[0].mxu0
        %v3943 = vadd.f32 0.0, %v3942
        %v3944 = vpop.f32.mrb[0].mxu0
        %v3945 = vpop.f32.mrb[0].mxu0
        %v3946 = vadd.f32 0.0, %v3945
        %v3947 = vpop.f32.mrb[0].mxu0
        %3948 = vmatprep.mubr.bf16.mxu0 0
        %3949 = vmatmul.mubr.bf16.gmra.mrb[0].mxu0 %v2734
        %v3950 = vpop.f32.mrb[0].mxu0
        %v3951 = vadd.f32 0.0, %v3950
        %v3952 = vpop.f32.mrb[0].mxu0
        %v3953 = vpop.f32.mrb[0].mxu0
        %v3954 = vadd.f32 0.0, %v3953
        %v3955 = vpop.f32.mrb[0].mxu0
        %3956 = vmatprep.mubr.bf16.mxu0 0
        %3957 = vmatmul.mubr.bf16.gmra.mrb[0].mxu0 %v2737
        %v3958 = vpop.f32.mrb[0].mxu0
        %v3959 = vadd.f32 0.0, %v3958
        %v3960 = vpop.f32.mrb[0].mxu0
        %v3961 = vpop.f32.mrb[0].mxu0
        %v3962 = vadd.f32 0.0, %v3961
        %v3963 = vpop.f32.mrb[0].mxu0
        %3964 = vmatprep.mubr.bf16.mxu0 0
        %3965 = vmatmul.mubr.bf16.gmra.mrb[0].mxu0 %v2740
        %v3966 = vpop.f32.mrb[0].mxu0
        %v3967 = vadd.f32 0.0, %v3966
        %v3968 = vpop.f32.mrb[0].mxu0
        %v3969 = vpop.f32.mrb[0].mxu0
        %v3970 = vadd.f32 0.0, %v3969
        %v3971 = vpop.f32.mrb[0].mxu0
        %3972 = vmatprep.mubr.bf16.mxu0 0
        %3973 = vmatmul.mubr.bf16.gmra.mrb[0].mxu0 %v2743
        %v3974 = vpop.f32.mrb[0].mxu0
        %v3975 = vadd.f32 0.0, %v3974
        %v3976 = vpop.f32.mrb[0].mxu0
        %v3977 = vpop.f32.mrb[0].mxu0
        %v3978 = vadd.f32 0.0, %v3977
        %v3979 = vpop.f32.mrb[0].mxu0
        %3980 = vmatprep.mubr.bf16.mxu0 0
        %3981 = vmatmul.mubr.bf16.gmra.mrb[0].mxu0 %v3858
        %v3982 = vpop.f32.mrb[0].mxu0
        %v3983 = vadd.f32 0.0, %v3982
        %v3984 = vpop.f32.mrb[0].mxu0
        %v3985 = vpop.f32.mrb[0].mxu0
        %v3986 = vadd.f32 0.0, %v3985
        %v3987 = vpop.f32.mrb[0].mxu0
        %3988 = vmatprep.mubr.bf16.mxu0 0
        %3989 = vmatmul.mubr.bf16.gmra.mrb[0].mxu0 %v3861
        %v3990 = vpop.f32.mrb[0].mxu0
        %v3991 = vadd.f32 0.0, %v3990
        %v3992 = vpop.f32.mrb[0].mxu0
        %v3993 = vpop.f32.mrb[0].mxu0
        %v3994 = vadd.f32 0.0, %v3993
        %v3995 = vpop.f32.mrb[0].mxu0
        %3996 = vmatprep.mubr.bf16.mxu0 0
        %3997 = vmatmul.mubr.bf16.gmra.mrb[0].mxu0 %v3864
        %v3998 = vpop.f32.mrb[0].mxu0
        %v3999 = vadd.f32 0.0, %v3998
        %v4000 = vpop.f32.mrb[0].mxu0
        %v4001 = vpop.f32.mrb[0].mxu0
        %v4002 = vadd.f32 0.0, %v4001
        %v4003 = vpop.f32.mrb[0].mxu0
        %4004 = vmatprep.mubr.bf16.mxu0 0
        %4005 = vmatmul.mubr.bf16.gmra.mrb[0].mxu0 %v3867
        %v4006 = vpop.f32.mrb[0].mxu0
        %v4007 = vadd.f32 0.0, %v4006
        %v4008 = vpop.f32.mrb[0].mxu0
        %v4009 = vpop.f32.mrb[0].mxu0
        %v4010 = vadd.f32 0.0, %v4009
        %v4011 = vpop.f32.mrb[0].mxu0
        %4012 = vmatprep.mubr.bf16.mxu0 0
        %4013 = vmatmul.mubr.bf16.gmra.mrb[0].mxu0 %v3870
        %v4014 = vpop.f32.mrb[0].mxu0
        %v4015 = vadd.f32 0.0, %v4014
        %v4016 = vpop.f32.mrb[0].mxu0
        %v4017 = vpop.f32.mrb[0].mxu0
        %v4018 = vadd.f32 0.0, %v4017
        %v4019 = vpop.f32.mrb[0].mxu0
        %4020 = vmatprep.mubr.bf16.mxu0 0
        %4021 = vmatmul.mubr.bf16.gmra.mrb[0].mxu0 %v3873
        %v4022 = vpop.f32.mrb[0].mxu0
        %v4023 = vadd.f32 0.0, %v4022
        %v4024 = vpop.f32.mrb[0].mxu0
        %v4025 = vpop.f32.mrb[0].mxu0
        %v4026 = vadd.f32 0.0, %v4025
        %v4027 = vpop.f32.mrb[0].mxu0
        %4028 = vmatprep.mubr.bf16.mxu0 0
        %4029 = vmatmul.mubr.bf16.gmra.mrb[0].mxu0 %v3876
        %v4030 = vpop.f32.mrb[0].mxu0
        %v4031 = vadd.f32 0.0, %v4030
        %v4032 = vpop.f32.mrb[0].mxu0
        %v4033 = vpop.f32.mrb[0].mxu0
        %v4034 = vadd.f32 0.0, %v4033
        %v4035 = vpop.f32.mrb[0].mxu0
        %4036 = vmatprep.mubr.bf16.mxu0 0
        %4037 = vmatmul.mubr.bf16.gmra.mrb[0].mxu0 %v3879
        %v4038 = vpop.f32.mrb[0].mxu0
        %v4039 = vadd.f32 0.0, %v4038
        %v4040 = vpop.f32.mrb[0].mxu0
        %v4041 = vpop.f32.mrb[0].mxu0
        %v4042 = vadd.f32 0.0, %v4041
        %v4043 = vpop.f32.mrb[0].mxu0
        %4044 = vdwg.mxu0
        %v4045 = vadd.f32 %v3797, %v3919
        %v4046 = vadd.f32 %v3798, %v3922
        %v4047 = vadd.f32 %v3799, %v3927
        %v4048 = vadd.f32 %v3800, %v3930
        %v4049 = vadd.f32 %v3801, %v3935
        %v4050 = vadd.f32 %v3802, %v3938
        %v4051 = vadd.f32 %v3803, %v3943
        %v4052 = vadd.f32 %v3804, %v3946
        %v4053 = vadd.f32 %v3805, %v3951
        %v4054 = vadd.f32 %v3806, %v3954
        %v4055 = vadd.f32 %v3807, %v3959
        %v4056 = vadd.f32 %v3808, %v3962
        %v4057 = vadd.f32 %v3809, %v3967
        %v4058 = vadd.f32 %v3810, %v3970
        %v4059 = vadd.f32 %v3811, %v3975
        %v4060 = vadd.f32 %v3812, %v3978
        %v4061 = vadd.f32 %v3813, %v3983
        %v4062 = vadd.f32 %v3814, %v3986
        %v4063 = vadd.f32 %v3815, %v3991
        %v4064 = vadd.f32 %v3816, %v3994
        %v4065 = vadd.f32 %v3817, %v3999
        %v4066 = vadd.f32 %v3818, %v4002
        %v4067 = vadd.f32 %v3819, %v4007
        %v4068 = vadd.f32 %v3820, %v4010
        %v4069 = vadd.f32 %v3821, %v4015
        %v4070 = vadd.f32 %v3822, %v4018
        %v4071 = vadd.f32 %v3823, %v4023
        %v4072 = vadd.f32 %v3824, %v4026
        %v4073 = vadd.f32 %v3825, %v4031
        %v4074 = vadd.f32 %v3826, %v4034
        %v4075 = vadd.f32 %v3827, %v4039
        %v4076 = vadd.f32 %v3828, %v4042
        %v4077 = vld [vmem:[%s3829 + $0x1] sm:$0xff]
        %v4078 = vld [vmem:[%s3829 + $0x11] sm:$0xff]
        %v4079 = vld [vmem:[%s3829 + $0x21] sm:$0xff]
        %v4080 = vld [vmem:[%s3829 + $0x31] sm:$0xff]
        %v4081 = vld [vmem:[%s3829 + $0x41] sm:$0xff]
        %v4082 = vld [vmem:[%s3829 + $0x51] sm:$0xff]
        %v4083 = vld [vmem:[%s3829 + $0x61] sm:$0xff]
        %v4084 = vld [vmem:[%s3829 + $0x71] sm:$0xff]
        %v4085 = vpack.c.bf16 %v4078, %v4077
        %v4086 = vpack.c.bf16 %v4080, %v4079
        %v4087 = vpack.c.bf16 %v4082, %v4081
        %v4088 = vpack.c.bf16 %v4084, %v4083
        %s4089 = scalar_lea.vmem %s1, 32
        %v4090 = vld [vmem:[%s4089] sm:$0x3]
        %v4092 = vsel %vm414, %v4085, 0
        %v4095 = vsel %vm414, %v4086, 0
        %v4098 = vsel %vm414, %v4087, 0
        %v4101 = vsel %vm414, %v4088, 0
        %v4104 = vand.u32 %v4090, %v466
        %4106 = vmatprep.subr.bf16.mxu0 0
        %4107 = vmatpush1.bf16.msra.mxu0 %v4104
        %4108 = vmatprep.subr.bf16.mxu0 0
        %4109 = vmatpush1.bf16.msra.mxu0 0
        %4110 = vmatprep.subr.bf16.mxu0 0
        %4111 = vmatpush1.bf16.msra.mxu0 0
        %4112 = vmatprep.subr.bf16.mxu0 0
        %4113 = vmatpush1.bf16.msra.mxu0 0
        %4114 = vmatprep.subr.bf16.mxu0 0
        %4115 = vmatpush1.bf16.msra.mxu0 0
        %4116 = vmatprep.subr.bf16.mxu0 0
        %4117 = vmatpush1.bf16.msra.mxu0 0
        %4118 = vmatprep.subr.bf16.mxu0 0
        %4119 = vmatpush1.bf16.msra.mxu0 0
        %4120 = vmatprep.subr.bf16.mxu0 0
        %4121 = vmatpush1.bf16.msra.mxu0 0
        %4122 = vmatprep.subr.bf16.mxu0 0
        %4123 = vmatpush1.bf16.msra.mxu0 0
        %4124 = vmatprep.subr.bf16.mxu0 0
        %4125 = vmatpush1.bf16.msra.mxu0 0
        %4126 = vmatprep.subr.bf16.mxu0 0
        %4127 = vmatpush1.bf16.msra.mxu0 0
        %4128 = vmatprep.subr.bf16.mxu0 0
        %4129 = vmatpush1.bf16.msra.mxu0 0
        %4130 = vmatprep.subr.bf16.mxu0 0
        %4131 = vmatpush1.bf16.msra.mxu0 0
        %4132 = vmatprep.subr.bf16.mxu0 0
        %4133 = vmatpush1.bf16.msra.mxu0 0
        %4134 = vmatprep.subr.bf16.mxu0 0
        %4135 = vmatpush1.bf16.msra.mxu0 0
        %4136 = vmatprep.subr.bf16.mxu0 0
        %4137 = vmatpush1.bf16.msra.mxu0 0
        %4138 = vmatprep.mubr.bf16.mxu0 0
        %4139 = vmatmul.mubr.bf16.gmra.mrb[0].mxu0 %v2734
        %v4140 = vpop.f32.mrb[0].mxu0
        %v4141 = vadd.f32 0.0, %v4140
        %v4142 = vpop.f32.mrb[0].mxu0
        %v4143 = vpop.f32.mrb[0].mxu0
        %v4144 = vadd.f32 0.0, %v4143
        %v4145 = vpop.f32.mrb[0].mxu0
        %4146 = vmatprep.mubr.bf16.mxu0 0
        %4147 = vmatmul.mubr.bf16.gmra.mrb[0].mxu0 %v2737
        %v4148 = vpop.f32.mrb[0].mxu0
        %v4149 = vadd.f32 0.0, %v4148
        %v4150 = vpop.f32.mrb[0].mxu0
        %v4151 = vpop.f32.mrb[0].mxu0
        %v4152 = vadd.f32 0.0, %v4151
        %v4153 = vpop.f32.mrb[0].mxu0
        %4154 = vmatprep.mubr.bf16.mxu0 0
        %4155 = vmatmul.mubr.bf16.gmra.mrb[0].mxu0 %v2740
        %v4156 = vpop.f32.mrb[0].mxu0
        %v4157 = vadd.f32 0.0, %v4156
        %v4158 = vpop.f32.mrb[0].mxu0
        %v4159 = vpop.f32.mrb[0].mxu0
        %v4160 = vadd.f32 0.0, %v4159
        %v4161 = vpop.f32.mrb[0].mxu0
        %4162 = vmatprep.mubr.bf16.mxu0 0
        %4163 = vmatmul.mubr.bf16.gmra.mrb[0].mxu0 %v2743
        %v4164 = vpop.f32.mrb[0].mxu0
        %v4165 = vadd.f32 0.0, %v4164
        %v4166 = vpop.f32.mrb[0].mxu0
        %v4167 = vpop.f32.mrb[0].mxu0
        %v4168 = vadd.f32 0.0, %v4167
        %v4169 = vpop.f32.mrb[0].mxu0
        %4170 = vmatprep.mubr.bf16.mxu0 0
        %4171 = vmatmul.mubr.bf16.gmra.mrb[0].mxu0 %v2956
        %v4172 = vpop.f32.mrb[0].mxu0
        %v4173 = vadd.f32 0.0, %v4172
        %v4174 = vpop.f32.mrb[0].mxu0
        %v4175 = vpop.f32.mrb[0].mxu0
        %v4176 = vadd.f32 0.0, %v4175
        %v4177 = vpop.f32.mrb[0].mxu0
        %4178 = vmatprep.mubr.bf16.mxu0 0
        %4179 = vmatmul.mubr.bf16.gmra.mrb[0].mxu0 %v2959
        %v4180 = vpop.f32.mrb[0].mxu0
        %v4181 = vadd.f32 0.0, %v4180
        %v4182 = vpop.f32.mrb[0].mxu0
        %v4183 = vpop.f32.mrb[0].mxu0
        %v4184 = vadd.f32 0.0, %v4183
        %v4185 = vpop.f32.mrb[0].mxu0
        %4186 = vmatprep.mubr.bf16.mxu0 0
        %4187 = vmatmul.mubr.bf16.gmra.mrb[0].mxu0 %v2962
        %v4188 = vpop.f32.mrb[0].mxu0
        %v4189 = vadd.f32 0.0, %v4188
        %v4190 = vpop.f32.mrb[0].mxu0
        %v4191 = vpop.f32.mrb[0].mxu0
        %v4192 = vadd.f32 0.0, %v4191
        %v4193 = vpop.f32.mrb[0].mxu0
        %4194 = vmatprep.mubr.bf16.mxu0 0
        %4195 = vmatmul.mubr.bf16.gmra.mrb[0].mxu0 %v2965
        %v4196 = vpop.f32.mrb[0].mxu0
        %v4197 = vadd.f32 0.0, %v4196
        %v4198 = vpop.f32.mrb[0].mxu0
        %v4199 = vpop.f32.mrb[0].mxu0
        %v4200 = vadd.f32 0.0, %v4199
        %v4201 = vpop.f32.mrb[0].mxu0
        %4202 = vmatprep.mubr.bf16.mxu0 0
        %4203 = vmatmul.mubr.bf16.gmra.mrb[0].mxu0 %v3870
        %v4204 = vpop.f32.mrb[0].mxu0
        %v4205 = vadd.f32 0.0, %v4204
        %v4206 = vpop.f32.mrb[0].mxu0
        %v4207 = vpop.f32.mrb[0].mxu0
        %v4208 = vadd.f32 0.0, %v4207
        %v4209 = vpop.f32.mrb[0].mxu0
        %4210 = vmatprep.mubr.bf16.mxu0 0
        %4211 = vmatmul.mubr.bf16.gmra.mrb[0].mxu0 %v3873
        %v4212 = vpop.f32.mrb[0].mxu0
        %v4213 = vadd.f32 0.0, %v4212
        %v4214 = vpop.f32.mrb[0].mxu0
        %v4215 = vpop.f32.mrb[0].mxu0
        %v4216 = vadd.f32 0.0, %v4215
        %v4217 = vpop.f32.mrb[0].mxu0
        %4218 = vmatprep.mubr.bf16.mxu0 0
        %4219 = vmatmul.mubr.bf16.gmra.mrb[0].mxu0 %v3876
        %v4220 = vpop.f32.mrb[0].mxu0
        %v4221 = vadd.f32 0.0, %v4220
        %v4222 = vpop.f32.mrb[0].mxu0
        %v4223 = vpop.f32.mrb[0].mxu0
        %v4224 = vadd.f32 0.0, %v4223
        %v4225 = vpop.f32.mrb[0].mxu0
        %4226 = vmatprep.mubr.bf16.mxu0 0
        %4227 = vmatmul.mubr.bf16.gmra.mrb[0].mxu0 %v3879
        %v4228 = vpop.f32.mrb[0].mxu0
        %v4229 = vadd.f32 0.0, %v4228
        %v4230 = vpop.f32.mrb[0].mxu0
        %v4231 = vpop.f32.mrb[0].mxu0
        %v4232 = vadd.f32 0.0, %v4231
        %v4233 = vpop.f32.mrb[0].mxu0
        %4234 = vmatprep.mubr.bf16.mxu0 0
        %4235 = vmatmul.mubr.bf16.gmra.mrb[0].mxu0 %v4092
        %v4236 = vpop.f32.mrb[0].mxu0
        %v4237 = vadd.f32 0.0, %v4236
        %v4238 = vpop.f32.mrb[0].mxu0
        %v4239 = vpop.f32.mrb[0].mxu0
        %v4240 = vadd.f32 0.0, %v4239
        %v4241 = vpop.f32.mrb[0].mxu0
        %4242 = vmatprep.mubr.bf16.mxu0 0
        %4243 = vmatmul.mubr.bf16.gmra.mrb[0].mxu0 %v4095
        %v4244 = vpop.f32.mrb[0].mxu0
        %v4245 = vadd.f32 0.0, %v4244
        %v4246 = vpop.f32.mrb[0].mxu0
        %v4247 = vpop.f32.mrb[0].mxu0
        %v4248 = vadd.f32 0.0, %v4247
        %v4249 = vpop.f32.mrb[0].mxu0
        %4250 = vmatprep.mubr.bf16.mxu0 0
        %4251 = vmatmul.mubr.bf16.gmra.mrb[0].mxu0 %v4098
        %v4252 = vpop.f32.mrb[0].mxu0
        %v4253 = vadd.f32 0.0, %v4252
        %v4254 = vpop.f32.mrb[0].mxu0
        %v4255 = vpop.f32.mrb[0].mxu0
        %v4256 = vadd.f32 0.0, %v4255
        %v4257 = vpop.f32.mrb[0].mxu0
        %4258 = vmatprep.mubr.bf16.mxu0 0
        %4259 = vmatmul.mubr.bf16.gmra.mrb[0].mxu0 %v4101
        %v4260 = vpop.f32.mrb[0].mxu0
        %v4261 = vadd.f32 0.0, %v4260
        %v4262 = vpop.f32.mrb[0].mxu0
        %v4263 = vpop.f32.mrb[0].mxu0
        %v4264 = vadd.f32 0.0, %v4263
        %v4265 = vpop.f32.mrb[0].mxu0
        %4266 = vdwg.mxu0
        %v4267 = vadd.f32 %v4045, %v4141
        %v4268 = vadd.f32 %v4046, %v4144
        %v4269 = vadd.f32 %v4047, %v4149
        %v4270 = vadd.f32 %v4048, %v4152
        %v4271 = vadd.f32 %v4049, %v4157
        %v4272 = vadd.f32 %v4050, %v4160
        %v4273 = vadd.f32 %v4051, %v4165
        %v4274 = vadd.f32 %v4052, %v4168
        %v4275 = vadd.f32 %v4053, %v4173
        %v4276 = vadd.f32 %v4054, %v4176
        %v4277 = vadd.f32 %v4055, %v4181
        %v4278 = vadd.f32 %v4056, %v4184
        %v4279 = vadd.f32 %v4057, %v4189
        %v4280 = vadd.f32 %v4058, %v4192
        %v4281 = vadd.f32 %v4059, %v4197
        %v4282 = vadd.f32 %v4060, %v4200
        %v4283 = vadd.f32 %v4061, %v4205
        %v4284 = vadd.f32 %v4062, %v4208
        %v4285 = vadd.f32 %v4063, %v4213
        %v4286 = vadd.f32 %v4064, %v4216
        %v4287 = vadd.f32 %v4065, %v4221
        %v4288 = vadd.f32 %v4066, %v4224
        %v4289 = vadd.f32 %v4067, %v4229
        %v4290 = vadd.f32 %v4068, %v4232
        %v4291 = vadd.f32 %v4069, %v4237
        %v4292 = vadd.f32 %v4070, %v4240
        %v4293 = vadd.f32 %v4071, %v4245
        %v4294 = vadd.f32 %v4072, %v4248
        %v4295 = vadd.f32 %v4073, %v4253
        %v4296 = vadd.f32 %v4074, %v4256
        %v4297 = vadd.f32 %v4075, %v4261
        %v4298 = vadd.f32 %v4076, %v4264
        %v4299 = vld [vmem:[%s3838 + $0x1] sm:$0xff]
        %v4300 = vld [vmem:[%s3838 + $0x11] sm:$0xff]
        %v4301 = vld [vmem:[%s3838 + $0x21] sm:$0xff]
        %v4302 = vld [vmem:[%s3838 + $0x31] sm:$0xff]
        %v4303 = vld [vmem:[%s3838 + $0x41] sm:$0xff]
        %v4304 = vld [vmem:[%s3838 + $0x51] sm:$0xff]
        %v4305 = vld [vmem:[%s3838 + $0x61] sm:$0xff]
        %v4306 = vld [vmem:[%s3838 + $0x71] sm:$0xff]
        %v4307 = vpack.c.bf16 %v4300, %v4299
        %v4308 = vpack.c.bf16 %v4302, %v4301
        %v4309 = vpack.c.bf16 %v4304, %v4303
        %v4310 = vpack.c.bf16 %v4306, %v4305
        %s4311 = scalar_lea.vmem %s1, 34
        %v4312 = vld [vmem:[%s4311] sm:$0x3]
        %v4314 = vsel %vm414, %v4307, 0
        %v4317 = vsel %vm414, %v4308, 0
        %v4320 = vsel %vm414, %v4309, 0
        %v4323 = vsel %vm414, %v4310, 0
        %v4326 = vand.u32 %v4312, %v466
        %4328 = vmatprep.subr.bf16.mxu0 0
        %4329 = vmatpush1.bf16.msra.mxu0 %v4326
        %4330 = vmatprep.subr.bf16.mxu0 0
        %4331 = vmatpush1.bf16.msra.mxu0 0
        %4332 = vmatprep.subr.bf16.mxu0 0
        %4333 = vmatpush1.bf16.msra.mxu0 0
        %4334 = vmatprep.subr.bf16.mxu0 0
        %4335 = vmatpush1.bf16.msra.mxu0 0
        %4336 = vmatprep.subr.bf16.mxu0 0
        %4337 = vmatpush1.bf16.msra.mxu0 0
        %4338 = vmatprep.subr.bf16.mxu0 0
        %4339 = vmatpush1.bf16.msra.mxu0 0
        %4340 = vmatprep.subr.bf16.mxu0 0
        %4341 = vmatpush1.bf16.msra.mxu0 0
        %4342 = vmatprep.subr.bf16.mxu0 0
        %4343 = vmatpush1.bf16.msra.mxu0 0
        %4344 = vmatprep.subr.bf16.mxu0 0
        %4345 = vmatpush1.bf16.msra.mxu0 0
        %4346 = vmatprep.subr.bf16.mxu0 0
        %4347 = vmatpush1.bf16.msra.mxu0 0
        %4348 = vmatprep.subr.bf16.mxu0 0
        %4349 = vmatpush1.bf16.msra.mxu0 0
        %4350 = vmatprep.subr.bf16.mxu0 0
        %4351 = vmatpush1.bf16.msra.mxu0 0
        %4352 = vmatprep.subr.bf16.mxu0 0
        %4353 = vmatpush1.bf16.msra.mxu0 0
        %4354 = vmatprep.subr.bf16.mxu0 0
        %4355 = vmatpush1.bf16.msra.mxu0 0
        %4356 = vmatprep.subr.bf16.mxu0 0
        %4357 = vmatpush1.bf16.msra.mxu0 0
        %4358 = vmatprep.subr.bf16.mxu0 0
        %4359 = vmatpush1.bf16.msra.mxu0 0
        %4360 = vmatprep.mubr.bf16.mxu0 0
        %4361 = vmatmul.mubr.bf16.gmra.mrb[0].mxu0 %v2956
        %v4362 = vpop.f32.mrb[0].mxu0
        %v4363 = vadd.f32 0.0, %v4362
        %v4364 = vpop.f32.mrb[0].mxu0
        %v4365 = vpop.f32.mrb[0].mxu0
        %v4366 = vadd.f32 0.0, %v4365
        %v4367 = vpop.f32.mrb[0].mxu0
        %4368 = vmatprep.mubr.bf16.mxu0 0
        %4369 = vmatmul.mubr.bf16.gmra.mrb[0].mxu0 %v2959
        %v4370 = vpop.f32.mrb[0].mxu0
        %v4371 = vadd.f32 0.0, %v4370
        %v4372 = vpop.f32.mrb[0].mxu0
        %v4373 = vpop.f32.mrb[0].mxu0
        %v4374 = vadd.f32 0.0, %v4373
        %v4375 = vpop.f32.mrb[0].mxu0
        %4376 = vmatprep.mubr.bf16.mxu0 0
        %4377 = vmatmul.mubr.bf16.gmra.mrb[0].mxu0 %v2962
        %v4378 = vpop.f32.mrb[0].mxu0
        %v4379 = vadd.f32 0.0, %v4378
        %v4380 = vpop.f32.mrb[0].mxu0
        %v4381 = vpop.f32.mrb[0].mxu0
        %v4382 = vadd.f32 0.0, %v4381
        %v4383 = vpop.f32.mrb[0].mxu0
        %4384 = vmatprep.mubr.bf16.mxu0 0
        %4385 = vmatmul.mubr.bf16.gmra.mrb[0].mxu0 %v2965
        %v4386 = vpop.f32.mrb[0].mxu0
        %v4387 = vadd.f32 0.0, %v4386
        %v4388 = vpop.f32.mrb[0].mxu0
        %v4389 = vpop.f32.mrb[0].mxu0
        %v4390 = vadd.f32 0.0, %v4389
        %v4391 = vpop.f32.mrb[0].mxu0
        %4392 = vmatprep.mubr.bf16.mxu0 0
        %4393 = vmatmul.mubr.bf16.gmra.mrb[0].mxu0 %v3178
        %v4394 = vpop.f32.mrb[0].mxu0
        %v4395 = vadd.f32 0.0, %v4394
        %v4396 = vpop.f32.mrb[0].mxu0
        %v4397 = vpop.f32.mrb[0].mxu0
        %v4398 = vadd.f32 0.0, %v4397
        %v4399 = vpop.f32.mrb[0].mxu0
        %4400 = vmatprep.mubr.bf16.mxu0 0
        %4401 = vmatmul.mubr.bf16.gmra.mrb[0].mxu0 %v3181
        %v4402 = vpop.f32.mrb[0].mxu0
        %v4403 = vadd.f32 0.0, %v4402
        %v4404 = vpop.f32.mrb[0].mxu0
        %v4405 = vpop.f32.mrb[0].mxu0
        %v4406 = vadd.f32 0.0, %v4405
        %v4407 = vpop.f32.mrb[0].mxu0
        %4408 = vmatprep.mubr.bf16.mxu0 0
        %4409 = vmatmul.mubr.bf16.gmra.mrb[0].mxu0 %v3184
        %v4410 = vpop.f32.mrb[0].mxu0
        %v4411 = vadd.f32 0.0, %v4410
        %v4412 = vpop.f32.mrb[0].mxu0
        %v4413 = vpop.f32.mrb[0].mxu0
        %v4414 = vadd.f32 0.0, %v4413
        %v4415 = vpop.f32.mrb[0].mxu0
        %4416 = vmatprep.mubr.bf16.mxu0 0
        %4417 = vmatmul.mubr.bf16.gmra.mrb[0].mxu0 %v3187
        %v4418 = vpop.f32.mrb[0].mxu0
        %v4419 = vadd.f32 0.0, %v4418
        %v4420 = vpop.f32.mrb[0].mxu0
        %v4421 = vpop.f32.mrb[0].mxu0
        %v4422 = vadd.f32 0.0, %v4421
        %v4423 = vpop.f32.mrb[0].mxu0
        %4424 = vmatprep.mubr.bf16.mxu0 0
        %4425 = vmatmul.mubr.bf16.gmra.mrb[0].mxu0 %v4092
        %v4426 = vpop.f32.mrb[0].mxu0
        %v4427 = vadd.f32 0.0, %v4426
        %v4428 = vpop.f32.mrb[0].mxu0
        %v4429 = vpop.f32.mrb[0].mxu0
        %v4430 = vadd.f32 0.0, %v4429
        %v4431 = vpop.f32.mrb[0].mxu0
        %4432 = vmatprep.mubr.bf16.mxu0 0
        %4433 = vmatmul.mubr.bf16.gmra.mrb[0].mxu0 %v4095
        %v4434 = vpop.f32.mrb[0].mxu0
        %v4435 = vadd.f32 0.0, %v4434
        %v4436 = vpop.f32.mrb[0].mxu0
        %v4437 = vpop.f32.mrb[0].mxu0
        %v4438 = vadd.f32 0.0, %v4437
        %v4439 = vpop.f32.mrb[0].mxu0
        %4440 = vmatprep.mubr.bf16.mxu0 0
        %4441 = vmatmul.mubr.bf16.gmra.mrb[0].mxu0 %v4098
        %v4442 = vpop.f32.mrb[0].mxu0
        %v4443 = vadd.f32 0.0, %v4442
        %v4444 = vpop.f32.mrb[0].mxu0
        %v4445 = vpop.f32.mrb[0].mxu0
        %v4446 = vadd.f32 0.0, %v4445
        %v4447 = vpop.f32.mrb[0].mxu0
        %4448 = vmatprep.mubr.bf16.mxu0 0
        %4449 = vmatmul.mubr.bf16.gmra.mrb[0].mxu0 %v4101
        %v4450 = vpop.f32.mrb[0].mxu0
        %v4451 = vadd.f32 0.0, %v4450
        %v4452 = vpop.f32.mrb[0].mxu0
        %v4453 = vpop.f32.mrb[0].mxu0
        %v4454 = vadd.f32 0.0, %v4453
        %v4455 = vpop.f32.mrb[0].mxu0
        %4456 = vmatprep.mubr.bf16.mxu0 0
        %4457 = vmatmul.mubr.bf16.gmra.mrb[0].mxu0 %v4314
        %v4458 = vpop.f32.mrb[0].mxu0
        %v4459 = vadd.f32 0.0, %v4458
        %v4460 = vpop.f32.mrb[0].mxu0
        %v4461 = vpop.f32.mrb[0].mxu0
        %v4462 = vadd.f32 0.0, %v4461
        %v4463 = vpop.f32.mrb[0].mxu0
        %4464 = vmatprep.mubr.bf16.mxu0 0
        %4465 = vmatmul.mubr.bf16.gmra.mrb[0].mxu0 %v4317
        %v4466 = vpop.f32.mrb[0].mxu0
        %v4467 = vadd.f32 0.0, %v4466
        %v4468 = vpop.f32.mrb[0].mxu0
        %v4469 = vpop.f32.mrb[0].mxu0
        %v4470 = vadd.f32 0.0, %v4469
        %v4471 = vpop.f32.mrb[0].mxu0
        %4472 = vmatprep.mubr.bf16.mxu0 0
        %4473 = vmatmul.mubr.bf16.gmra.mrb[0].mxu0 %v4320
        %v4474 = vpop.f32.mrb[0].mxu0
        %v4475 = vadd.f32 0.0, %v4474
        %v4476 = vpop.f32.mrb[0].mxu0
        %v4477 = vpop.f32.mrb[0].mxu0
        %v4478 = vadd.f32 0.0, %v4477
        %v4479 = vpop.f32.mrb[0].mxu0
        %4480 = vmatprep.mubr.bf16.mxu0 0
        %4481 = vmatmul.mubr.bf16.gmra.mrb[0].mxu0 %v4323
        %v4482 = vpop.f32.mrb[0].mxu0
        %v4483 = vadd.f32 0.0, %v4482
        %v4484 = vpop.f32.mrb[0].mxu0
        %v4485 = vpop.f32.mrb[0].mxu0
        %v4486 = vadd.f32 0.0, %v4485
        %v4487 = vpop.f32.mrb[0].mxu0
        %4488 = vdwg.mxu0
        %v4489 = vadd.f32 %v4267, %v4363
        %v4490 = vadd.f32 %v4268, %v4366
        %v4491 = vadd.f32 %v4269, %v4371
        %v4492 = vadd.f32 %v4270, %v4374
        %v4493 = vadd.f32 %v4271, %v4379
        %v4494 = vadd.f32 %v4272, %v4382
        %v4495 = vadd.f32 %v4273, %v4387
        %v4496 = vadd.f32 %v4274, %v4390
        %v4497 = vadd.f32 %v4275, %v4395
        %v4498 = vadd.f32 %v4276, %v4398
        %v4499 = vadd.f32 %v4277, %v4403
        %v4500 = vadd.f32 %v4278, %v4406
        %v4501 = vadd.f32 %v4279, %v4411
        %v4502 = vadd.f32 %v4280, %v4414
        %v4503 = vadd.f32 %v4281, %v4419
        %v4504 = vadd.f32 %v4282, %v4422
        %v4505 = vadd.f32 %v4283, %v4427
        %v4506 = vadd.f32 %v4284, %v4430
        %v4507 = vadd.f32 %v4285, %v4435
        %v4508 = vadd.f32 %v4286, %v4438
        %v4509 = vadd.f32 %v4287, %v4443
        %v4510 = vadd.f32 %v4288, %v4446
        %v4511 = vadd.f32 %v4289, %v4451
        %v4512 = vadd.f32 %v4290, %v4454
        %v4513 = vadd.f32 %v4291, %v4459
        %v4514 = vadd.f32 %v4292, %v4462
        %v4515 = vadd.f32 %v4293, %v4467
        %v4516 = vadd.f32 %v4294, %v4470
        %v4517 = vadd.f32 %v4295, %v4475
        %v4518 = vadd.f32 %v4296, %v4478
        %v4519 = vadd.f32 %v4297, %v4483
        %v4520 = vadd.f32 %v4298, %v4486
        %v4521 = vld [vmem:[%s3829 + $0x2] sm:$0xff]
        %v4522 = vld [vmem:[%s3829 + $0x12] sm:$0xff]
        %v4523 = vld [vmem:[%s3829 + $0x22] sm:$0xff]
        %v4524 = vld [vmem:[%s3829 + $0x32] sm:$0xff]
        %v4525 = vld [vmem:[%s3829 + $0x42] sm:$0xff]
        %v4526 = vld [vmem:[%s3829 + $0x52] sm:$0xff]
        %v4527 = vld [vmem:[%s3829 + $0x62] sm:$0xff]
        %v4528 = vld [vmem:[%s3829 + $0x72] sm:$0xff]
        %v4529 = vpack.c.bf16 %v4522, %v4521
        %v4530 = vpack.c.bf16 %v4524, %v4523
        %v4531 = vpack.c.bf16 %v4526, %v4525
        %v4532 = vpack.c.bf16 %v4528, %v4527
        %s4533 = scalar_lea.vmem %s1, 36
        %v4534 = vld [vmem:[%s4533] sm:$0x3]
        %v4536 = vsel %vm414, %v4529, 0
        %v4539 = vsel %vm414, %v4530, 0
        %v4542 = vsel %vm414, %v4531, 0
        %v4545 = vsel %vm414, %v4532, 0
        %v4548 = vand.u32 %v4534, %v466
        %4550 = vmatprep.subr.bf16.mxu0 0
        %4551 = vmatpush1.bf16.msra.mxu0 %v4548
        %4552 = vmatprep.subr.bf16.mxu0 0
        %4553 = vmatpush1.bf16.msra.mxu0 0
        %4554 = vmatprep.subr.bf16.mxu0 0
        %4555 = vmatpush1.bf16.msra.mxu0 0
        %4556 = vmatprep.subr.bf16.mxu0 0
        %4557 = vmatpush1.bf16.msra.mxu0 0
        %4558 = vmatprep.subr.bf16.mxu0 0
        %4559 = vmatpush1.bf16.msra.mxu0 0
        %4560 = vmatprep.subr.bf16.mxu0 0
        %4561 = vmatpush1.bf16.msra.mxu0 0
        %4562 = vmatprep.subr.bf16.mxu0 0
        %4563 = vmatpush1.bf16.msra.mxu0 0
        %4564 = vmatprep.subr.bf16.mxu0 0
        %4565 = vmatpush1.bf16.msra.mxu0 0
        %4566 = vmatprep.subr.bf16.mxu0 0
        %4567 = vmatpush1.bf16.msra.mxu0 0
        %4568 = vmatprep.subr.bf16.mxu0 0
        %4569 = vmatpush1.bf16.msra.mxu0 0
        %4570 = vmatprep.subr.bf16.mxu0 0
        %4571 = vmatpush1.bf16.msra.mxu0 0
        %4572 = vmatprep.subr.bf16.mxu0 0
        %4573 = vmatpush1.bf16.msra.mxu0 0
        %4574 = vmatprep.subr.bf16.mxu0 0
        %4575 = vmatpush1.bf16.msra.mxu0 0
        %4576 = vmatprep.subr.bf16.mxu0 0
        %4577 = vmatpush1.bf16.msra.mxu0 0
        %4578 = vmatprep.subr.bf16.mxu0 0
        %4579 = vmatpush1.bf16.msra.mxu0 0
        %4580 = vmatprep.subr.bf16.mxu0 0
        %4581 = vmatpush1.bf16.msra.mxu0 0
        %4582 = vmatprep.mubr.bf16.mxu0 0
        %4583 = vmatmul.mubr.bf16.gmra.mrb[0].mxu0 %v3178
        %v4584 = vpop.f32.mrb[0].mxu0
        %v4585 = vadd.f32 0.0, %v4584
        %v4586 = vpop.f32.mrb[0].mxu0
        %v4587 = vpop.f32.mrb[0].mxu0
        %v4588 = vadd.f32 0.0, %v4587
        %v4589 = vpop.f32.mrb[0].mxu0
        %4590 = vmatprep.mubr.bf16.mxu0 0
        %4591 = vmatmul.mubr.bf16.gmra.mrb[0].mxu0 %v3181
        %v4592 = vpop.f32.mrb[0].mxu0
        %v4593 = vadd.f32 0.0, %v4592
        %v4594 = vpop.f32.mrb[0].mxu0
        %v4595 = vpop.f32.mrb[0].mxu0
        %v4596 = vadd.f32 0.0, %v4595
        %v4597 = vpop.f32.mrb[0].mxu0
        %4598 = vmatprep.mubr.bf16.mxu0 0
        %4599 = vmatmul.mubr.bf16.gmra.mrb[0].mxu0 %v3184
        %v4600 = vpop.f32.mrb[0].mxu0
        %v4601 = vadd.f32 0.0, %v4600
        %v4602 = vpop.f32.mrb[0].mxu0
        %v4603 = vpop.f32.mrb[0].mxu0
        %v4604 = vadd.f32 0.0, %v4603
        %v4605 = vpop.f32.mrb[0].mxu0
        %4606 = vmatprep.mubr.bf16.mxu0 0
        %4607 = vmatmul.mubr.bf16.gmra.mrb[0].mxu0 %v3187
        %v4608 = vpop.f32.mrb[0].mxu0
        %v4609 = vadd.f32 0.0, %v4608
        %v4610 = vpop.f32.mrb[0].mxu0
        %v4611 = vpop.f32.mrb[0].mxu0
        %v4612 = vadd.f32 0.0, %v4611
        %v4613 = vpop.f32.mrb[0].mxu0
        %4614 = vmatprep.mubr.bf16.mxu0 0
        %4615 = vmatmul.mubr.bf16.gmra.mrb[0].mxu0 %v3400
        %v4616 = vpop.f32.mrb[0].mxu0
        %v4617 = vadd.f32 0.0, %v4616
        %v4618 = vpop.f32.mrb[0].mxu0
        %v4619 = vpop.f32.mrb[0].mxu0
        %v4620 = vadd.f32 0.0, %v4619
        %v4621 = vpop.f32.mrb[0].mxu0
        %4622 = vmatprep.mubr.bf16.mxu0 0
        %4623 = vmatmul.mubr.bf16.gmra.mrb[0].mxu0 %v3403
        %v4624 = vpop.f32.mrb[0].mxu0
        %v4625 = vadd.f32 0.0, %v4624
        %v4626 = vpop.f32.mrb[0].mxu0
        %v4627 = vpop.f32.mrb[0].mxu0
        %v4628 = vadd.f32 0.0, %v4627
        %v4629 = vpop.f32.mrb[0].mxu0
        %4630 = vmatprep.mubr.bf16.mxu0 0
        %4631 = vmatmul.mubr.bf16.gmra.mrb[0].mxu0 %v3406
        %v4632 = vpop.f32.mrb[0].mxu0
        %v4633 = vadd.f32 0.0, %v4632
        %v4634 = vpop.f32.mrb[0].mxu0
        %v4635 = vpop.f32.mrb[0].mxu0
        %v4636 = vadd.f32 0.0, %v4635
        %v4637 = vpop.f32.mrb[0].mxu0
        %4638 = vmatprep.mubr.bf16.mxu0 0
        %4639 = vmatmul.mubr.bf16.gmra.mrb[0].mxu0 %v3409
        %v4640 = vpop.f32.mrb[0].mxu0
        %v4641 = vadd.f32 0.0, %v4640
        %v4642 = vpop.f32.mrb[0].mxu0
        %v4643 = vpop.f32.mrb[0].mxu0
        %v4644 = vadd.f32 0.0, %v4643
        %v4645 = vpop.f32.mrb[0].mxu0
        %4646 = vmatprep.mubr.bf16.mxu0 0
        %4647 = vmatmul.mubr.bf16.gmra.mrb[0].mxu0 %v4314
        %v4648 = vpop.f32.mrb[0].mxu0
        %v4649 = vadd.f32 0.0, %v4648
        %v4650 = vpop.f32.mrb[0].mxu0
        %v4651 = vpop.f32.mrb[0].mxu0
        %v4652 = vadd.f32 0.0, %v4651
        %v4653 = vpop.f32.mrb[0].mxu0
        %4654 = vmatprep.mubr.bf16.mxu0 0
        %4655 = vmatmul.mubr.bf16.gmra.mrb[0].mxu0 %v4317
        %v4656 = vpop.f32.mrb[0].mxu0
        %v4657 = vadd.f32 0.0, %v4656
        %v4658 = vpop.f32.mrb[0].mxu0
        %v4659 = vpop.f32.mrb[0].mxu0
        %v4660 = vadd.f32 0.0, %v4659
        %v4661 = vpop.f32.mrb[0].mxu0
        %4662 = vmatprep.mubr.bf16.mxu0 0
        %4663 = vmatmul.mubr.bf16.gmra.mrb[0].mxu0 %v4320
        %v4664 = vpop.f32.mrb[0].mxu0
        %v4665 = vadd.f32 0.0, %v4664
        %v4666 = vpop.f32.mrb[0].mxu0
        %v4667 = vpop.f32.mrb[0].mxu0
        %v4668 = vadd.f32 0.0, %v4667
        %v4669 = vpop.f32.mrb[0].mxu0
        %4670 = vmatprep.mubr.bf16.mxu0 0
        %4671 = vmatmul.mubr.bf16.gmra.mrb[0].mxu0 %v4323
        %v4672 = vpop.f32.mrb[0].mxu0
        %v4673 = vadd.f32 0.0, %v4672
        %v4674 = vpop.f32.mrb[0].mxu0
        %v4675 = vpop.f32.mrb[0].mxu0
        %v4676 = vadd.f32 0.0, %v4675
        %v4677 = vpop.f32.mrb[0].mxu0
        %4678 = vmatprep.mubr.bf16.mxu0 0
        %4679 = vmatmul.mubr.bf16.gmra.mrb[0].mxu0 %v4536
        %v4680 = vpop.f32.mrb[0].mxu0
        %v4681 = vadd.f32 0.0, %v4680
        %v4682 = vpop.f32.mrb[0].mxu0
        %v4683 = vpop.f32.mrb[0].mxu0
        %v4684 = vadd.f32 0.0, %v4683
        %v4685 = vpop.f32.mrb[0].mxu0
        %4686 = vmatprep.mubr.bf16.mxu0 0
        %4687 = vmatmul.mubr.bf16.gmra.mrb[0].mxu0 %v4539
        %v4688 = vpop.f32.mrb[0].mxu0
        %v4689 = vadd.f32 0.0, %v4688
        %v4690 = vpop.f32.mrb[0].mxu0
        %v4691 = vpop.f32.mrb[0].mxu0
        %v4692 = vadd.f32 0.0, %v4691
        %v4693 = vpop.f32.mrb[0].mxu0
        %4694 = vmatprep.mubr.bf16.mxu0 0
        %4695 = vmatmul.mubr.bf16.gmra.mrb[0].mxu0 %v4542
        %v4696 = vpop.f32.mrb[0].mxu0
        %v4697 = vadd.f32 0.0, %v4696
        %v4698 = vpop.f32.mrb[0].mxu0
        %v4699 = vpop.f32.mrb[0].mxu0
        %v4700 = vadd.f32 0.0, %v4699
        %v4701 = vpop.f32.mrb[0].mxu0
        %4702 = vmatprep.mubr.bf16.mxu0 0
        %4703 = vmatmul.mubr.bf16.gmra.mrb[0].mxu0 %v4545
        %v4704 = vpop.f32.mrb[0].mxu0
        %v4705 = vadd.f32 0.0, %v4704
        %v4706 = vpop.f32.mrb[0].mxu0
        %v4707 = vpop.f32.mrb[0].mxu0
        %v4708 = vadd.f32 0.0, %v4707
        %v4709 = vpop.f32.mrb[0].mxu0
        %4710 = vdwg.mxu0
        %v4711 = vadd.f32 %v4489, %v4585
        %v4712 = vadd.f32 %v4490, %v4588
        %v4713 = vadd.f32 %v4491, %v4593
        %v4714 = vadd.f32 %v4492, %v4596
        %v4715 = vadd.f32 %v4493, %v4601
        %v4716 = vadd.f32 %v4494, %v4604
        %v4717 = vadd.f32 %v4495, %v4609
        %v4718 = vadd.f32 %v4496, %v4612
        %v4719 = vadd.f32 %v4497, %v4617
        %v4720 = vadd.f32 %v4498, %v4620
        %v4721 = vadd.f32 %v4499, %v4625
        %v4722 = vadd.f32 %v4500, %v4628
        %v4723 = vadd.f32 %v4501, %v4633
        %v4724 = vadd.f32 %v4502, %v4636
        %v4725 = vadd.f32 %v4503, %v4641
        %v4726 = vadd.f32 %v4504, %v4644
        %v4727 = vadd.f32 %v4505, %v4649
        %v4728 = vadd.f32 %v4506, %v4652
        %v4729 = vadd.f32 %v4507, %v4657
        %v4730 = vadd.f32 %v4508, %v4660
        %v4731 = vadd.f32 %v4509, %v4665
        %v4732 = vadd.f32 %v4510, %v4668
        %v4733 = vadd.f32 %v4511, %v4673
        %v4734 = vadd.f32 %v4512, %v4676
        %v4735 = vadd.f32 %v4513, %v4681
        %v4736 = vadd.f32 %v4514, %v4684
        %v4737 = vadd.f32 %v4515, %v4689
        %v4738 = vadd.f32 %v4516, %v4692
        %v4739 = vadd.f32 %v4517, %v4697
        %v4740 = vadd.f32 %v4518, %v4700
        %v4741 = vadd.f32 %v4519, %v4705
        %v4742 = vadd.f32 %v4520, %v4708
        %v4743 = vld [vmem:[%s3838 + $0x2] sm:$0xff]
        %v4744 = vld [vmem:[%s3838 + $0x12] sm:$0xff]
        %v4745 = vld [vmem:[%s3838 + $0x22] sm:$0xff]
        %v4746 = vld [vmem:[%s3838 + $0x32] sm:$0xff]
        %v4747 = vld [vmem:[%s3838 + $0x42] sm:$0xff]
        %v4748 = vld [vmem:[%s3838 + $0x52] sm:$0xff]
        %v4749 = vld [vmem:[%s3838 + $0x62] sm:$0xff]
        %v4750 = vld [vmem:[%s3838 + $0x72] sm:$0xff]
        %v4751 = vpack.c.bf16 %v4744, %v4743
        %v4752 = vpack.c.bf16 %v4746, %v4745
        %v4753 = vpack.c.bf16 %v4748, %v4747
        %v4754 = vpack.c.bf16 %v4750, %v4749
        %s4755 = scalar_lea.vmem %s1, 38
        %v4756 = vld [vmem:[%s4755] sm:$0x3]
        %v4758 = vsel %vm414, %v4751, 0
        %v4761 = vsel %vm414, %v4752, 0
        %v4764 = vsel %vm414, %v4753, 0
        %v4767 = vsel %vm414, %v4754, 0
        %v4770 = vand.u32 %v4756, %v466
        %4772 = vmatprep.subr.bf16.mxu0 0
        %4773 = vmatpush1.bf16.msra.mxu0 %v4770
        %4774 = vmatprep.subr.bf16.mxu0 0
        %4775 = vmatpush1.bf16.msra.mxu0 0
        %4776 = vmatprep.subr.bf16.mxu0 0
        %4777 = vmatpush1.bf16.msra.mxu0 0
        %4778 = vmatprep.subr.bf16.mxu0 0
        %4779 = vmatpush1.bf16.msra.mxu0 0
        %4780 = vmatprep.subr.bf16.mxu0 0
        %4781 = vmatpush1.bf16.msra.mxu0 0
        %4782 = vmatprep.subr.bf16.mxu0 0
        %4783 = vmatpush1.bf16.msra.mxu0 0
        %4784 = vmatprep.subr.bf16.mxu0 0
        %4785 = vmatpush1.bf16.msra.mxu0 0
        %4786 = vmatprep.subr.bf16.mxu0 0
        %4787 = vmatpush1.bf16.msra.mxu0 0
        %4788 = vmatprep.subr.bf16.mxu0 0
        %4789 = vmatpush1.bf16.msra.mxu0 0
        %4790 = vmatprep.subr.bf16.mxu0 0
        %4791 = vmatpush1.bf16.msra.mxu0 0
        %4792 = vmatprep.subr.bf16.mxu0 0
        %4793 = vmatpush1.bf16.msra.mxu0 0
        %4794 = vmatprep.subr.bf16.mxu0 0
        %4795 = vmatpush1.bf16.msra.mxu0 0
        %4796 = vmatprep.subr.bf16.mxu0 0
        %4797 = vmatpush1.bf16.msra.mxu0 0
        %4798 = vmatprep.subr.bf16.mxu0 0
        %4799 = vmatpush1.bf16.msra.mxu0 0
        %4800 = vmatprep.subr.bf16.mxu0 0
        %4801 = vmatpush1.bf16.msra.mxu0 0
        %4802 = vmatprep.subr.bf16.mxu0 0
        %4803 = vmatpush1.bf16.msra.mxu0 0
        %4804 = vmatprep.mubr.bf16.mxu0 0
        %4805 = vmatmul.mubr.bf16.gmra.mrb[0].mxu0 %v3400
        %v4806 = vpop.f32.mrb[0].mxu0
        %v4807 = vadd.f32 0.0, %v4806
        %v4808 = vpop.f32.mrb[0].mxu0
        %v4809 = vpop.f32.mrb[0].mxu0
        %v4810 = vadd.f32 0.0, %v4809
        %v4811 = vpop.f32.mrb[0].mxu0
        %4812 = vmatprep.mubr.bf16.mxu0 0
        %4813 = vmatmul.mubr.bf16.gmra.mrb[0].mxu0 %v3403
        %v4814 = vpop.f32.mrb[0].mxu0
        %v4815 = vadd.f32 0.0, %v4814
        %v4816 = vpop.f32.mrb[0].mxu0
        %v4817 = vpop.f32.mrb[0].mxu0
        %v4818 = vadd.f32 0.0, %v4817
        %v4819 = vpop.f32.mrb[0].mxu0
        %4820 = vmatprep.mubr.bf16.mxu0 0
        %4821 = vmatmul.mubr.bf16.gmra.mrb[0].mxu0 %v3406
        %v4822 = vpop.f32.mrb[0].mxu0
        %v4823 = vadd.f32 0.0, %v4822
        %v4824 = vpop.f32.mrb[0].mxu0
        %v4825 = vpop.f32.mrb[0].mxu0
        %v4826 = vadd.f32 0.0, %v4825
        %v4827 = vpop.f32.mrb[0].mxu0
        %4828 = vmatprep.mubr.bf16.mxu0 0
        %4829 = vmatmul.mubr.bf16.gmra.mrb[0].mxu0 %v3409
        %v4830 = vpop.f32.mrb[0].mxu0
        %v4831 = vadd.f32 0.0, %v4830
        %v4832 = vpop.f32.mrb[0].mxu0
        %v4833 = vpop.f32.mrb[0].mxu0
        %v4834 = vadd.f32 0.0, %v4833
        %v4835 = vpop.f32.mrb[0].mxu0
        %4836 = vmatprep.mubr.bf16.mxu0 0
        %4837 = vmatmul.mubr.bf16.gmra.mrb[0].mxu0 %v3622
        %v4838 = vpop.f32.mrb[0].mxu0
        %v4839 = vadd.f32 0.0, %v4838
        %v4840 = vpop.f32.mrb[0].mxu0
        %v4841 = vpop.f32.mrb[0].mxu0
        %v4842 = vadd.f32 0.0, %v4841
        %v4843 = vpop.f32.mrb[0].mxu0
        %4844 = vmatprep.mubr.bf16.mxu0 0
        %4845 = vmatmul.mubr.bf16.gmra.mrb[0].mxu0 %v3625
        %v4846 = vpop.f32.mrb[0].mxu0
        %v4847 = vadd.f32 0.0, %v4846
        %v4848 = vpop.f32.mrb[0].mxu0
        %v4849 = vpop.f32.mrb[0].mxu0
        %v4850 = vadd.f32 0.0, %v4849
        %v4851 = vpop.f32.mrb[0].mxu0
        %4852 = vmatprep.mubr.bf16.mxu0 0
        %4853 = vmatmul.mubr.bf16.gmra.mrb[0].mxu0 %v3628
        %v4854 = vpop.f32.mrb[0].mxu0
        %v4855 = vadd.f32 0.0, %v4854
        %v4856 = vpop.f32.mrb[0].mxu0
        %v4857 = vpop.f32.mrb[0].mxu0
        %v4858 = vadd.f32 0.0, %v4857
        %v4859 = vpop.f32.mrb[0].mxu0
        %4860 = vmatprep.mubr.bf16.mxu0 0
        %4861 = vmatmul.mubr.bf16.gmra.mrb[0].mxu0 %v3631
        %v4862 = vpop.f32.mrb[0].mxu0
        %v4863 = vadd.f32 0.0, %v4862
        %v4864 = vpop.f32.mrb[0].mxu0
        %v4865 = vpop.f32.mrb[0].mxu0
        %v4866 = vadd.f32 0.0, %v4865
        %v4867 = vpop.f32.mrb[0].mxu0
        %4868 = vmatprep.mubr.bf16.mxu0 0
        %4869 = vmatmul.mubr.bf16.gmra.mrb[0].mxu0 %v4536
        %v4870 = vpop.f32.mrb[0].mxu0
        %v4871 = vadd.f32 0.0, %v4870
        %v4872 = vpop.f32.mrb[0].mxu0
        %v4873 = vpop.f32.mrb[0].mxu0
        %v4874 = vadd.f32 0.0, %v4873
        %v4875 = vpop.f32.mrb[0].mxu0
        %4876 = vmatprep.mubr.bf16.mxu0 0
        %4877 = vmatmul.mubr.bf16.gmra.mrb[0].mxu0 %v4539
        %v4878 = vpop.f32.mrb[0].mxu0
        %v4879 = vadd.f32 0.0, %v4878
        %v4880 = vpop.f32.mrb[0].mxu0
        %v4881 = vpop.f32.mrb[0].mxu0
        %v4882 = vadd.f32 0.0, %v4881
        %v4883 = vpop.f32.mrb[0].mxu0
        %4884 = vmatprep.mubr.bf16.mxu0 0
        %4885 = vmatmul.mubr.bf16.gmra.mrb[0].mxu0 %v4542
        %v4886 = vpop.f32.mrb[0].mxu0
        %v4887 = vadd.f32 0.0, %v4886
        %v4888 = vpop.f32.mrb[0].mxu0
        %v4889 = vpop.f32.mrb[0].mxu0
        %v4890 = vadd.f32 0.0, %v4889
        %v4891 = vpop.f32.mrb[0].mxu0
        %4892 = vmatprep.mubr.bf16.mxu0 0
        %4893 = vmatmul.mubr.bf16.gmra.mrb[0].mxu0 %v4545
        %v4894 = vpop.f32.mrb[0].mxu0
        %v4895 = vadd.f32 0.0, %v4894
        %v4896 = vpop.f32.mrb[0].mxu0
        %v4897 = vpop.f32.mrb[0].mxu0
        %v4898 = vadd.f32 0.0, %v4897
        %v4899 = vpop.f32.mrb[0].mxu0
        %4900 = vmatprep.mubr.bf16.mxu0 0
        %4901 = vmatmul.mubr.bf16.gmra.mrb[0].mxu0 %v4758
        %v4902 = vpop.f32.mrb[0].mxu0
        %v4903 = vadd.f32 0.0, %v4902
        %v4904 = vpop.f32.mrb[0].mxu0
        %v4905 = vpop.f32.mrb[0].mxu0
        %v4906 = vadd.f32 0.0, %v4905
        %v4907 = vpop.f32.mrb[0].mxu0
        %4908 = vmatprep.mubr.bf16.mxu0 0
        %4909 = vmatmul.mubr.bf16.gmra.mrb[0].mxu0 %v4761
        %v4910 = vpop.f32.mrb[0].mxu0
        %v4911 = vadd.f32 0.0, %v4910
        %v4912 = vpop.f32.mrb[0].mxu0
        %v4913 = vpop.f32.mrb[0].mxu0
        %v4914 = vadd.f32 0.0, %v4913
        %v4915 = vpop.f32.mrb[0].mxu0
        %4916 = vmatprep.mubr.bf16.mxu0 0
        %4917 = vmatmul.mubr.bf16.gmra.mrb[0].mxu0 %v4764
        %v4918 = vpop.f32.mrb[0].mxu0
        %v4919 = vadd.f32 0.0, %v4918
        %v4920 = vpop.f32.mrb[0].mxu0
        %v4921 = vpop.f32.mrb[0].mxu0
        %v4922 = vadd.f32 0.0, %v4921
        %v4923 = vpop.f32.mrb[0].mxu0
        %4924 = vmatprep.mubr.bf16.mxu0 0
        %4925 = vmatmul.mubr.bf16.gmra.mrb[0].mxu0 %v4767
        %v4926 = vpop.f32.mrb[0].mxu0
        %v4927 = vadd.f32 0.0, %v4926
        %v4928 = vpop.f32.mrb[0].mxu0
        %v4929 = vpop.f32.mrb[0].mxu0
        %v4930 = vadd.f32 0.0, %v4929
        %v4931 = vpop.f32.mrb[0].mxu0
        %4932 = vdwg.mxu0
        %v4933 = vadd.f32 %v4711, %v4807
        %v4934 = vadd.f32 %v4712, %v4810
        %v4935 = vadd.f32 %v4713, %v4815
        %v4936 = vadd.f32 %v4714, %v4818
        %v4937 = vadd.f32 %v4715, %v4823
        %v4938 = vadd.f32 %v4716, %v4826
        %v4939 = vadd.f32 %v4717, %v4831
        %v4940 = vadd.f32 %v4718, %v4834
        %v4941 = vadd.f32 %v4719, %v4839
        %v4942 = vadd.f32 %v4720, %v4842
        %v4943 = vadd.f32 %v4721, %v4847
        %v4944 = vadd.f32 %v4722, %v4850
        %v4945 = vadd.f32 %v4723, %v4855
        %v4946 = vadd.f32 %v4724, %v4858
        %v4947 = vadd.f32 %v4725, %v4863
        %v4948 = vadd.f32 %v4726, %v4866
        %v4949 = vadd.f32 %v4727, %v4871
        %v4950 = vadd.f32 %v4728, %v4874
        %v4951 = vadd.f32 %v4729, %v4879
        %v4952 = vadd.f32 %v4730, %v4882
        %v4953 = vadd.f32 %v4731, %v4887
        %v4954 = vadd.f32 %v4732, %v4890
        %v4955 = vadd.f32 %v4733, %v4895
        %v4956 = vadd.f32 %v4734, %v4898
        %v4957 = vadd.f32 %v4735, %v4903
        %v4958 = vadd.f32 %v4736, %v4906
        %v4959 = vadd.f32 %v4737, %v4911
        %v4960 = vadd.f32 %v4738, %v4914
        %v4961 = vadd.f32 %v4739, %v4919
        %v4962 = vadd.f32 %v4740, %v4922
        %v4963 = vadd.f32 %v4741, %v4927
        %v4964 = vadd.f32 %v4742, %v4930
        %s4965 = scalar_lea.vmem %s333, 352
        %v4966 = vld [vmem:[%s4965] sm:$0xff]
        %v4967 = vld [vmem:[%s4965 + $0x10] sm:$0xff]
        %v4968 = vld [vmem:[%s4965 + $0x20] sm:$0xff]
        %v4969 = vld [vmem:[%s4965 + $0x30] sm:$0xff]
        %v4970 = vld [vmem:[%s4965 + $0x40] sm:$0xff]
        %v4971 = vld [vmem:[%s4965 + $0x50] sm:$0xff]
        %v4972 = vld [vmem:[%s4965 + $0x60] sm:$0xff]
        %v4973 = vld [vmem:[%s4965 + $0x70] sm:$0xff]
        %s4974 = scalar_lea.vmem %s333, 512
        %v4975 = vld [vmem:[%s4974] sm:$0xff]
        %v4976 = vld [vmem:[%s4974 + $0x10] sm:$0xff]
        %v4977 = vld [vmem:[%s4974 + $0x20] sm:$0xff]
        %v4978 = vld [vmem:[%s4974 + $0x30] sm:$0xff]
        %v4979 = vld [vmem:[%s4974 + $0x40] sm:$0xff]
        %v4980 = vld [vmem:[%s4974 + $0x50] sm:$0xff]
        %v4981 = vld [vmem:[%s4974 + $0x60] sm:$0xff]
        %v4982 = vld [vmem:[%s4974 + $0x70] sm:$0xff]
        %v4983 = vpack.c.bf16 %v4967, %v4966
        %v4984 = vpack.c.bf16 %v4969, %v4968
        %v4985 = vpack.c.bf16 %v4971, %v4970
        %v4986 = vpack.c.bf16 %v4973, %v4972
        %v4987 = vpack.c.bf16 %v4976, %v4975
        %v4988 = vpack.c.bf16 %v4978, %v4977
        %v4989 = vpack.c.bf16 %v4980, %v4979
        %v4990 = vpack.c.bf16 %v4982, %v4981
        %s4991 = scalar_lea.vmem %s1, 40
        %v4992 = vld [vmem:[%s4991] sm:$0x3]
        %v4994 = vsel %vm414, %v4983, 0
        %v4997 = vsel %vm414, %v4984, 0
        %v5000 = vsel %vm414, %v4985, 0
        %v5003 = vsel %vm414, %v4986, 0
        %v5006 = vsel %vm414, %v4987, 0
        %v5009 = vsel %vm414, %v4988, 0
        %v5012 = vsel %vm414, %v4989, 0
        %v5015 = vsel %vm414, %v4990, 0
        %v5018 = vand.u32 %v4992, %v466
        %5020 = vmatprep.subr.bf16.mxu0 0
        %5021 = vmatpush1.bf16.msra.mxu0 %v5018
        %5022 = vmatprep.subr.bf16.mxu0 0
        %5023 = vmatpush1.bf16.msra.mxu0 0
        %5024 = vmatprep.subr.bf16.mxu0 0
        %5025 = vmatpush1.bf16.msra.mxu0 0
        %5026 = vmatprep.subr.bf16.mxu0 0
        %5027 = vmatpush1.bf16.msra.mxu0 0
        %5028 = vmatprep.subr.bf16.mxu0 0
        %5029 = vmatpush1.bf16.msra.mxu0 0
        %5030 = vmatprep.subr.bf16.mxu0 0
        %5031 = vmatpush1.bf16.msra.mxu0 0
        %5032 = vmatprep.subr.bf16.mxu0 0
        %5033 = vmatpush1.bf16.msra.mxu0 0
        %5034 = vmatprep.subr.bf16.mxu0 0
        %5035 = vmatpush1.bf16.msra.mxu0 0
        %5036 = vmatprep.subr.bf16.mxu0 0
        %5037 = vmatpush1.bf16.msra.mxu0 0
        %5038 = vmatprep.subr.bf16.mxu0 0
        %5039 = vmatpush1.bf16.msra.mxu0 0
        %5040 = vmatprep.subr.bf16.mxu0 0
        %5041 = vmatpush1.bf16.msra.mxu0 0
        %5042 = vmatprep.subr.bf16.mxu0 0
        %5043 = vmatpush1.bf16.msra.mxu0 0
        %5044 = vmatprep.subr.bf16.mxu0 0
        %5045 = vmatpush1.bf16.msra.mxu0 0
        %5046 = vmatprep.subr.bf16.mxu0 0
        %5047 = vmatpush1.bf16.msra.mxu0 0
        %5048 = vmatprep.subr.bf16.mxu0 0
        %5049 = vmatpush1.bf16.msra.mxu0 0
        %5050 = vmatprep.subr.bf16.mxu0 0
        %5051 = vmatpush1.bf16.msra.mxu0 0
        %5052 = vmatprep.mubr.bf16.mxu0 0
        %5053 = vmatmul.mubr.bf16.gmra.mrb[0].mxu0 %v3858
        %v5054 = vpop.f32.mrb[0].mxu0
        %v5055 = vadd.f32 0.0, %v5054
        %v5056 = vpop.f32.mrb[0].mxu0
        %v5057 = vpop.f32.mrb[0].mxu0
        %v5058 = vadd.f32 0.0, %v5057
        %v5059 = vpop.f32.mrb[0].mxu0
        %5060 = vmatprep.mubr.bf16.mxu0 0
        %5061 = vmatmul.mubr.bf16.gmra.mrb[0].mxu0 %v3861
        %v5062 = vpop.f32.mrb[0].mxu0
        %v5063 = vadd.f32 0.0, %v5062
        %v5064 = vpop.f32.mrb[0].mxu0
        %v5065 = vpop.f32.mrb[0].mxu0
        %v5066 = vadd.f32 0.0, %v5065
        %v5067 = vpop.f32.mrb[0].mxu0
        %5068 = vmatprep.mubr.bf16.mxu0 0
        %5069 = vmatmul.mubr.bf16.gmra.mrb[0].mxu0 %v3864
        %v5070 = vpop.f32.mrb[0].mxu0
        %v5071 = vadd.f32 0.0, %v5070
        %v5072 = vpop.f32.mrb[0].mxu0
        %v5073 = vpop.f32.mrb[0].mxu0
        %v5074 = vadd.f32 0.0, %v5073
        %v5075 = vpop.f32.mrb[0].mxu0
        %5076 = vmatprep.mubr.bf16.mxu0 0
        %5077 = vmatmul.mubr.bf16.gmra.mrb[0].mxu0 %v3867
        %v5078 = vpop.f32.mrb[0].mxu0
        %v5079 = vadd.f32 0.0, %v5078
        %v5080 = vpop.f32.mrb[0].mxu0
        %v5081 = vpop.f32.mrb[0].mxu0
        %v5082 = vadd.f32 0.0, %v5081
        %v5083 = vpop.f32.mrb[0].mxu0
        %5084 = vmatprep.mubr.bf16.mxu0 0
        %5085 = vmatmul.mubr.bf16.gmra.mrb[0].mxu0 %v3870
        %v5086 = vpop.f32.mrb[0].mxu0
        %v5087 = vadd.f32 0.0, %v5086
        %v5088 = vpop.f32.mrb[0].mxu0
        %v5089 = vpop.f32.mrb[0].mxu0
        %v5090 = vadd.f32 0.0, %v5089
        %v5091 = vpop.f32.mrb[0].mxu0
        %5092 = vmatprep.mubr.bf16.mxu0 0
        %5093 = vmatmul.mubr.bf16.gmra.mrb[0].mxu0 %v3873
        %v5094 = vpop.f32.mrb[0].mxu0
        %v5095 = vadd.f32 0.0, %v5094
        %v5096 = vpop.f32.mrb[0].mxu0
        %v5097 = vpop.f32.mrb[0].mxu0
        %v5098 = vadd.f32 0.0, %v5097
        %v5099 = vpop.f32.mrb[0].mxu0
        %5100 = vmatprep.mubr.bf16.mxu0 0
        %5101 = vmatmul.mubr.bf16.gmra.mrb[0].mxu0 %v3876
        %v5102 = vpop.f32.mrb[0].mxu0
        %v5103 = vadd.f32 0.0, %v5102
        %v5104 = vpop.f32.mrb[0].mxu0
        %v5105 = vpop.f32.mrb[0].mxu0
        %v5106 = vadd.f32 0.0, %v5105
        %v5107 = vpop.f32.mrb[0].mxu0
        %5108 = vmatprep.mubr.bf16.mxu0 0
        %5109 = vmatmul.mubr.bf16.gmra.mrb[0].mxu0 %v3879
        %v5110 = vpop.f32.mrb[0].mxu0
        %v5111 = vadd.f32 0.0, %v5110
        %v5112 = vpop.f32.mrb[0].mxu0
        %v5113 = vpop.f32.mrb[0].mxu0
        %v5114 = vadd.f32 0.0, %v5113
        %v5115 = vpop.f32.mrb[0].mxu0
        %5116 = vmatprep.mubr.bf16.mxu0 0
        %5117 = vmatmul.mubr.bf16.gmra.mrb[0].mxu0 %v4994
        %v5118 = vpop.f32.mrb[0].mxu0
        %v5119 = vadd.f32 0.0, %v5118
        %v5120 = vpop.f32.mrb[0].mxu0
        %v5121 = vpop.f32.mrb[0].mxu0
        %v5122 = vadd.f32 0.0, %v5121
        %v5123 = vpop.f32.mrb[0].mxu0
        %5124 = vmatprep.mubr.bf16.mxu0 0
        %5125 = vmatmul.mubr.bf16.gmra.mrb[0].mxu0 %v4997
        %v5126 = vpop.f32.mrb[0].mxu0
        %v5127 = vadd.f32 0.0, %v5126
        %v5128 = vpop.f32.mrb[0].mxu0
        %v5129 = vpop.f32.mrb[0].mxu0
        %v5130 = vadd.f32 0.0, %v5129
        %v5131 = vpop.f32.mrb[0].mxu0
        %5132 = vmatprep.mubr.bf16.mxu0 0
        %5133 = vmatmul.mubr.bf16.gmra.mrb[0].mxu0 %v5000
        %v5134 = vpop.f32.mrb[0].mxu0
        %v5135 = vadd.f32 0.0, %v5134
        %v5136 = vpop.f32.mrb[0].mxu0
        %v5137 = vpop.f32.mrb[0].mxu0
        %v5138 = vadd.f32 0.0, %v5137
        %v5139 = vpop.f32.mrb[0].mxu0
        %5140 = vmatprep.mubr.bf16.mxu0 0
        %5141 = vmatmul.mubr.bf16.gmra.mrb[0].mxu0 %v5003
        %v5142 = vpop.f32.mrb[0].mxu0
        %v5143 = vadd.f32 0.0, %v5142
        %v5144 = vpop.f32.mrb[0].mxu0
        %v5145 = vpop.f32.mrb[0].mxu0
        %v5146 = vadd.f32 0.0, %v5145
        %v5147 = vpop.f32.mrb[0].mxu0
        %5148 = vmatprep.mubr.bf16.mxu0 0
        %5149 = vmatmul.mubr.bf16.gmra.mrb[0].mxu0 %v5006
        %v5150 = vpop.f32.mrb[0].mxu0
        %v5151 = vadd.f32 0.0, %v5150
        %v5152 = vpop.f32.mrb[0].mxu0
        %v5153 = vpop.f32.mrb[0].mxu0
        %v5154 = vadd.f32 0.0, %v5153
        %v5155 = vpop.f32.mrb[0].mxu0
        %5156 = vmatprep.mubr.bf16.mxu0 0
        %5157 = vmatmul.mubr.bf16.gmra.mrb[0].mxu0 %v5009
        %v5158 = vpop.f32.mrb[0].mxu0
        %v5159 = vadd.f32 0.0, %v5158
        %v5160 = vpop.f32.mrb[0].mxu0
        %v5161 = vpop.f32.mrb[0].mxu0
        %v5162 = vadd.f32 0.0, %v5161
        %v5163 = vpop.f32.mrb[0].mxu0
        %5164 = vmatprep.mubr.bf16.mxu0 0
        %5165 = vmatmul.mubr.bf16.gmra.mrb[0].mxu0 %v5012
        %v5166 = vpop.f32.mrb[0].mxu0
        %v5167 = vadd.f32 0.0, %v5166
        %v5168 = vpop.f32.mrb[0].mxu0
        %v5169 = vpop.f32.mrb[0].mxu0
        %v5170 = vadd.f32 0.0, %v5169
        %v5171 = vpop.f32.mrb[0].mxu0
        %5172 = vmatprep.mubr.bf16.mxu0 0
        %5173 = vmatmul.mubr.bf16.gmra.mrb[0].mxu0 %v5015
        %v5174 = vpop.f32.mrb[0].mxu0
        %v5175 = vadd.f32 0.0, %v5174
        %v5176 = vpop.f32.mrb[0].mxu0
        %v5177 = vpop.f32.mrb[0].mxu0
        %v5178 = vadd.f32 0.0, %v5177
        %v5179 = vpop.f32.mrb[0].mxu0
        %5180 = vdwg.mxu0
        %v5181 = vadd.f32 %v4933, %v5055
        %v5182 = vadd.f32 %v4934, %v5058
        %v5183 = vadd.f32 %v4935, %v5063
        %v5184 = vadd.f32 %v4936, %v5066
        %v5185 = vadd.f32 %v4937, %v5071
        %v5186 = vadd.f32 %v4938, %v5074
        %v5187 = vadd.f32 %v4939, %v5079
        %v5188 = vadd.f32 %v4940, %v5082
        %v5189 = vadd.f32 %v4941, %v5087
        %v5190 = vadd.f32 %v4942, %v5090
        %v5191 = vadd.f32 %v4943, %v5095
        %v5192 = vadd.f32 %v4944, %v5098
        %v5193 = vadd.f32 %v4945, %v5103
        %v5194 = vadd.f32 %v4946, %v5106
        %v5195 = vadd.f32 %v4947, %v5111
        %v5196 = vadd.f32 %v4948, %v5114
        %v5197 = vadd.f32 %v4949, %v5119
        %v5198 = vadd.f32 %v4950, %v5122
        %v5199 = vadd.f32 %v4951, %v5127
        %v5200 = vadd.f32 %v4952, %v5130
        %v5201 = vadd.f32 %v4953, %v5135
        %v5202 = vadd.f32 %v4954, %v5138
        %v5203 = vadd.f32 %v4955, %v5143
        %v5204 = vadd.f32 %v4956, %v5146
        %v5205 = vadd.f32 %v4957, %v5151
        %v5206 = vadd.f32 %v4958, %v5154
        %v5207 = vadd.f32 %v4959, %v5159
        %v5208 = vadd.f32 %v4960, %v5162
        %v5209 = vadd.f32 %v4961, %v5167
        %v5210 = vadd.f32 %v4962, %v5170
        %v5211 = vadd.f32 %v4963, %v5175
        %v5212 = vadd.f32 %v4964, %v5178
        %v5213 = vld [vmem:[%s4965 + $0x1] sm:$0xff]
        %v5214 = vld [vmem:[%s4965 + $0x11] sm:$0xff]
        %v5215 = vld [vmem:[%s4965 + $0x21] sm:$0xff]
        %v5216 = vld [vmem:[%s4965 + $0x31] sm:$0xff]
        %v5217 = vld [vmem:[%s4965 + $0x41] sm:$0xff]
        %v5218 = vld [vmem:[%s4965 + $0x51] sm:$0xff]
        %v5219 = vld [vmem:[%s4965 + $0x61] sm:$0xff]
        %v5220 = vld [vmem:[%s4965 + $0x71] sm:$0xff]
        %v5221 = vpack.c.bf16 %v5214, %v5213
        %v5222 = vpack.c.bf16 %v5216, %v5215
        %v5223 = vpack.c.bf16 %v5218, %v5217
        %v5224 = vpack.c.bf16 %v5220, %v5219
        %s5225 = scalar_lea.vmem %s1, 42
        %v5226 = vld [vmem:[%s5225] sm:$0x3]
        %v5228 = vsel %vm414, %v5221, 0
        %v5231 = vsel %vm414, %v5222, 0
        %v5234 = vsel %vm414, %v5223, 0
        %v5237 = vsel %vm414, %v5224, 0
        %v5240 = vand.u32 %v5226, %v466
        %5242 = vmatprep.subr.bf16.mxu0 0
        %5243 = vmatpush1.bf16.msra.mxu0 %v5240
        %5244 = vmatprep.subr.bf16.mxu0 0
        %5245 = vmatpush1.bf16.msra.mxu0 0
        %5246 = vmatprep.subr.bf16.mxu0 0
        %5247 = vmatpush1.bf16.msra.mxu0 0
        %5248 = vmatprep.subr.bf16.mxu0 0
        %5249 = vmatpush1.bf16.msra.mxu0 0
        %5250 = vmatprep.subr.bf16.mxu0 0
        %5251 = vmatpush1.bf16.msra.mxu0 0
        %5252 = vmatprep.subr.bf16.mxu0 0
        %5253 = vmatpush1.bf16.msra.mxu0 0
        %5254 = vmatprep.subr.bf16.mxu0 0
        %5255 = vmatpush1.bf16.msra.mxu0 0
        %5256 = vmatprep.subr.bf16.mxu0 0
        %5257 = vmatpush1.bf16.msra.mxu0 0
        %5258 = vmatprep.subr.bf16.mxu0 0
        %5259 = vmatpush1.bf16.msra.mxu0 0
        %5260 = vmatprep.subr.bf16.mxu0 0
        %5261 = vmatpush1.bf16.msra.mxu0 0
        %5262 = vmatprep.subr.bf16.mxu0 0
        %5263 = vmatpush1.bf16.msra.mxu0 0
        %5264 = vmatprep.subr.bf16.mxu0 0
        %5265 = vmatpush1.bf16.msra.mxu0 0
        %5266 = vmatprep.subr.bf16.mxu0 0
        %5267 = vmatpush1.bf16.msra.mxu0 0
        %5268 = vmatprep.subr.bf16.mxu0 0
        %5269 = vmatpush1.bf16.msra.mxu0 0
        %5270 = vmatprep.subr.bf16.mxu0 0
        %5271 = vmatpush1.bf16.msra.mxu0 0
        %5272 = vmatprep.subr.bf16.mxu0 0
        %5273 = vmatpush1.bf16.msra.mxu0 0
        %5274 = vmatprep.mubr.bf16.mxu0 0
        %5275 = vmatmul.mubr.bf16.gmra.mrb[0].mxu0 %v3870
        %v5276 = vpop.f32.mrb[0].mxu0
        %v5277 = vadd.f32 0.0, %v5276
        %v5278 = vpop.f32.mrb[0].mxu0
        %v5279 = vpop.f32.mrb[0].mxu0
        %v5280 = vadd.f32 0.0, %v5279
        %v5281 = vpop.f32.mrb[0].mxu0
        %5282 = vmatprep.mubr.bf16.mxu0 0
        %5283 = vmatmul.mubr.bf16.gmra.mrb[0].mxu0 %v3873
        %v5284 = vpop.f32.mrb[0].mxu0
        %v5285 = vadd.f32 0.0, %v5284
        %v5286 = vpop.f32.mrb[0].mxu0
        %v5287 = vpop.f32.mrb[0].mxu0
        %v5288 = vadd.f32 0.0, %v5287
        %v5289 = vpop.f32.mrb[0].mxu0
        %5290 = vmatprep.mubr.bf16.mxu0 0
        %5291 = vmatmul.mubr.bf16.gmra.mrb[0].mxu0 %v3876
        %v5292 = vpop.f32.mrb[0].mxu0
        %v5293 = vadd.f32 0.0, %v5292
        %v5294 = vpop.f32.mrb[0].mxu0
        %v5295 = vpop.f32.mrb[0].mxu0
        %v5296 = vadd.f32 0.0, %v5295
        %v5297 = vpop.f32.mrb[0].mxu0
        %5298 = vmatprep.mubr.bf16.mxu0 0
        %5299 = vmatmul.mubr.bf16.gmra.mrb[0].mxu0 %v3879
        %v5300 = vpop.f32.mrb[0].mxu0
        %v5301 = vadd.f32 0.0, %v5300
        %v5302 = vpop.f32.mrb[0].mxu0
        %v5303 = vpop.f32.mrb[0].mxu0
        %v5304 = vadd.f32 0.0, %v5303
        %v5305 = vpop.f32.mrb[0].mxu0
        %5306 = vmatprep.mubr.bf16.mxu0 0
        %5307 = vmatmul.mubr.bf16.gmra.mrb[0].mxu0 %v4092
        %v5308 = vpop.f32.mrb[0].mxu0
        %v5309 = vadd.f32 0.0, %v5308
        %v5310 = vpop.f32.mrb[0].mxu0
        %v5311 = vpop.f32.mrb[0].mxu0
        %v5312 = vadd.f32 0.0, %v5311
        %v5313 = vpop.f32.mrb[0].mxu0
        %5314 = vmatprep.mubr.bf16.mxu0 0
        %5315 = vmatmul.mubr.bf16.gmra.mrb[0].mxu0 %v4095
        %v5316 = vpop.f32.mrb[0].mxu0
        %v5317 = vadd.f32 0.0, %v5316
        %v5318 = vpop.f32.mrb[0].mxu0
        %v5319 = vpop.f32.mrb[0].mxu0
        %v5320 = vadd.f32 0.0, %v5319
        %v5321 = vpop.f32.mrb[0].mxu0
        %5322 = vmatprep.mubr.bf16.mxu0 0
        %5323 = vmatmul.mubr.bf16.gmra.mrb[0].mxu0 %v4098
        %v5324 = vpop.f32.mrb[0].mxu0
        %v5325 = vadd.f32 0.0, %v5324
        %v5326 = vpop.f32.mrb[0].mxu0
        %v5327 = vpop.f32.mrb[0].mxu0
        %v5328 = vadd.f32 0.0, %v5327
        %v5329 = vpop.f32.mrb[0].mxu0
        %5330 = vmatprep.mubr.bf16.mxu0 0
        %5331 = vmatmul.mubr.bf16.gmra.mrb[0].mxu0 %v4101
        %v5332 = vpop.f32.mrb[0].mxu0
        %v5333 = vadd.f32 0.0, %v5332
        %v5334 = vpop.f32.mrb[0].mxu0
        %v5335 = vpop.f32.mrb[0].mxu0
        %v5336 = vadd.f32 0.0, %v5335
        %v5337 = vpop.f32.mrb[0].mxu0
        %5338 = vmatprep.mubr.bf16.mxu0 0
        %5339 = vmatmul.mubr.bf16.gmra.mrb[0].mxu0 %v5006
        %v5340 = vpop.f32.mrb[0].mxu0
        %v5341 = vadd.f32 0.0, %v5340
        %v5342 = vpop.f32.mrb[0].mxu0
        %v5343 = vpop.f32.mrb[0].mxu0
        %v5344 = vadd.f32 0.0, %v5343
        %v5345 = vpop.f32.mrb[0].mxu0
        %5346 = vmatprep.mubr.bf16.mxu0 0
        %5347 = vmatmul.mubr.bf16.gmra.mrb[0].mxu0 %v5009
        %v5348 = vpop.f32.mrb[0].mxu0
        %v5349 = vadd.f32 0.0, %v5348
        %v5350 = vpop.f32.mrb[0].mxu0
        %v5351 = vpop.f32.mrb[0].mxu0
        %v5352 = vadd.f32 0.0, %v5351
        %v5353 = vpop.f32.mrb[0].mxu0
        %5354 = vmatprep.mubr.bf16.mxu0 0
        %5355 = vmatmul.mubr.bf16.gmra.mrb[0].mxu0 %v5012
        %v5356 = vpop.f32.mrb[0].mxu0
        %v5357 = vadd.f32 0.0, %v5356
        %v5358 = vpop.f32.mrb[0].mxu0
        %v5359 = vpop.f32.mrb[0].mxu0
        %v5360 = vadd.f32 0.0, %v5359
        %v5361 = vpop.f32.mrb[0].mxu0
        %5362 = vmatprep.mubr.bf16.mxu0 0
        %5363 = vmatmul.mubr.bf16.gmra.mrb[0].mxu0 %v5015
        %v5364 = vpop.f32.mrb[0].mxu0
        %v5365 = vadd.f32 0.0, %v5364
        %v5366 = vpop.f32.mrb[0].mxu0
        %v5367 = vpop.f32.mrb[0].mxu0
        %v5368 = vadd.f32 0.0, %v5367
        %v5369 = vpop.f32.mrb[0].mxu0
        %5370 = vmatprep.mubr.bf16.mxu0 0
        %5371 = vmatmul.mubr.bf16.gmra.mrb[0].mxu0 %v5228
        %v5372 = vpop.f32.mrb[0].mxu0
        %v5373 = vadd.f32 0.0, %v5372
        %v5374 = vpop.f32.mrb[0].mxu0
        %v5375 = vpop.f32.mrb[0].mxu0
        %v5376 = vadd.f32 0.0, %v5375
        %v5377 = vpop.f32.mrb[0].mxu0
        %5378 = vmatprep.mubr.bf16.mxu0 0
        %5379 = vmatmul.mubr.bf16.gmra.mrb[0].mxu0 %v5231
        %v5380 = vpop.f32.mrb[0].mxu0
        %v5381 = vadd.f32 0.0, %v5380
        %v5382 = vpop.f32.mrb[0].mxu0
        %v5383 = vpop.f32.mrb[0].mxu0
        %v5384 = vadd.f32 0.0, %v5383
        %v5385 = vpop.f32.mrb[0].mxu0
        %5386 = vmatprep.mubr.bf16.mxu0 0
        %5387 = vmatmul.mubr.bf16.gmra.mrb[0].mxu0 %v5234
        %v5388 = vpop.f32.mrb[0].mxu0
        %v5389 = vadd.f32 0.0, %v5388
        %v5390 = vpop.f32.mrb[0].mxu0
        %v5391 = vpop.f32.mrb[0].mxu0
        %v5392 = vadd.f32 0.0, %v5391
        %v5393 = vpop.f32.mrb[0].mxu0
        %5394 = vmatprep.mubr.bf16.mxu0 0
        %5395 = vmatmul.mubr.bf16.gmra.mrb[0].mxu0 %v5237
        %v5396 = vpop.f32.mrb[0].mxu0
        %v5397 = vadd.f32 0.0, %v5396
        %v5398 = vpop.f32.mrb[0].mxu0
        %v5399 = vpop.f32.mrb[0].mxu0
        %v5400 = vadd.f32 0.0, %v5399
        %v5401 = vpop.f32.mrb[0].mxu0
        %5402 = vdwg.mxu0
        %v5403 = vadd.f32 %v5181, %v5277
        %v5404 = vadd.f32 %v5182, %v5280
        %v5405 = vadd.f32 %v5183, %v5285
        %v5406 = vadd.f32 %v5184, %v5288
        %v5407 = vadd.f32 %v5185, %v5293
        %v5408 = vadd.f32 %v5186, %v5296
        %v5409 = vadd.f32 %v5187, %v5301
        %v5410 = vadd.f32 %v5188, %v5304
        %v5411 = vadd.f32 %v5189, %v5309
        %v5412 = vadd.f32 %v5190, %v5312
        %v5413 = vadd.f32 %v5191, %v5317
        %v5414 = vadd.f32 %v5192, %v5320
        %v5415 = vadd.f32 %v5193, %v5325
        %v5416 = vadd.f32 %v5194, %v5328
        %v5417 = vadd.f32 %v5195, %v5333
        %v5418 = vadd.f32 %v5196, %v5336
        %v5419 = vadd.f32 %v5197, %v5341
        %v5420 = vadd.f32 %v5198, %v5344
        %v5421 = vadd.f32 %v5199, %v5349
        %v5422 = vadd.f32 %v5200, %v5352
        %v5423 = vadd.f32 %v5201, %v5357
        %v5424 = vadd.f32 %v5202, %v5360
        %v5425 = vadd.f32 %v5203, %v5365
        %v5426 = vadd.f32 %v5204, %v5368
        %v5427 = vadd.f32 %v5205, %v5373
        %v5428 = vadd.f32 %v5206, %v5376
        %v5429 = vadd.f32 %v5207, %v5381
        %v5430 = vadd.f32 %v5208, %v5384
        %v5431 = vadd.f32 %v5209, %v5389
        %v5432 = vadd.f32 %v5210, %v5392
        %v5433 = vadd.f32 %v5211, %v5397
        %v5434 = vadd.f32 %v5212, %v5400
        %v5435 = vld [vmem:[%s4974 + $0x1] sm:$0xff]
        %v5436 = vld [vmem:[%s4974 + $0x11] sm:$0xff]
        %v5437 = vld [vmem:[%s4974 + $0x21] sm:$0xff]
        %v5438 = vld [vmem:[%s4974 + $0x31] sm:$0xff]
        %v5439 = vld [vmem:[%s4974 + $0x41] sm:$0xff]
        %v5440 = vld [vmem:[%s4974 + $0x51] sm:$0xff]
        %v5441 = vld [vmem:[%s4974 + $0x61] sm:$0xff]
        %v5442 = vld [vmem:[%s4974 + $0x71] sm:$0xff]
        %v5443 = vpack.c.bf16 %v5436, %v5435
        %v5444 = vpack.c.bf16 %v5438, %v5437
        %v5445 = vpack.c.bf16 %v5440, %v5439
        %v5446 = vpack.c.bf16 %v5442, %v5441
        %s5447 = scalar_lea.vmem %s1, 44
        %v5448 = vld [vmem:[%s5447] sm:$0x3]
        %v5450 = vsel %vm414, %v5443, 0
        %v5453 = vsel %vm414, %v5444, 0
        %v5456 = vsel %vm414, %v5445, 0
        %v5459 = vsel %vm414, %v5446, 0
        %v5462 = vand.u32 %v5448, %v466
        %5464 = vmatprep.subr.bf16.mxu0 0
        %5465 = vmatpush1.bf16.msra.mxu0 %v5462
        %5466 = vmatprep.subr.bf16.mxu0 0
        %5467 = vmatpush1.bf16.msra.mxu0 0
        %5468 = vmatprep.subr.bf16.mxu0 0
        %5469 = vmatpush1.bf16.msra.mxu0 0
        %5470 = vmatprep.subr.bf16.mxu0 0
        %5471 = vmatpush1.bf16.msra.mxu0 0
        %5472 = vmatprep.subr.bf16.mxu0 0
        %5473 = vmatpush1.bf16.msra.mxu0 0
        %5474 = vmatprep.subr.bf16.mxu0 0
        %5475 = vmatpush1.bf16.msra.mxu0 0
        %5476 = vmatprep.subr.bf16.mxu0 0
        %5477 = vmatpush1.bf16.msra.mxu0 0
        %5478 = vmatprep.subr.bf16.mxu0 0
        %5479 = vmatpush1.bf16.msra.mxu0 0
        %5480 = vmatprep.subr.bf16.mxu0 0
        %5481 = vmatpush1.bf16.msra.mxu0 0
        %5482 = vmatprep.subr.bf16.mxu0 0
        %5483 = vmatpush1.bf16.msra.mxu0 0
        %5484 = vmatprep.subr.bf16.mxu0 0
        %5485 = vmatpush1.bf16.msra.mxu0 0
        %5486 = vmatprep.subr.bf16.mxu0 0
        %5487 = vmatpush1.bf16.msra.mxu0 0
        %5488 = vmatprep.subr.bf16.mxu0 0
        %5489 = vmatpush1.bf16.msra.mxu0 0
        %5490 = vmatprep.subr.bf16.mxu0 0
        %5491 = vmatpush1.bf16.msra.mxu0 0
        %5492 = vmatprep.subr.bf16.mxu0 0
        %5493 = vmatpush1.bf16.msra.mxu0 0
        %5494 = vmatprep.subr.bf16.mxu0 0
        %5495 = vmatpush1.bf16.msra.mxu0 0
        %5496 = vmatprep.mubr.bf16.mxu0 0
        %5497 = vmatmul.mubr.bf16.gmra.mrb[0].mxu0 %v4092
        %v5498 = vpop.f32.mrb[0].mxu0
        %v5499 = vadd.f32 0.0, %v5498
        %v5500 = vpop.f32.mrb[0].mxu0
        %v5501 = vpop.f32.mrb[0].mxu0
        %v5502 = vadd.f32 0.0, %v5501
        %v5503 = vpop.f32.mrb[0].mxu0
        %5504 = vmatprep.mubr.bf16.mxu0 0
        %5505 = vmatmul.mubr.bf16.gmra.mrb[0].mxu0 %v4095
        %v5506 = vpop.f32.mrb[0].mxu0
        %v5507 = vadd.f32 0.0, %v5506
        %v5508 = vpop.f32.mrb[0].mxu0
        %v5509 = vpop.f32.mrb[0].mxu0
        %v5510 = vadd.f32 0.0, %v5509
        %v5511 = vpop.f32.mrb[0].mxu0
        %5512 = vmatprep.mubr.bf16.mxu0 0
        %5513 = vmatmul.mubr.bf16.gmra.mrb[0].mxu0 %v4098
        %v5514 = vpop.f32.mrb[0].mxu0
        %v5515 = vadd.f32 0.0, %v5514
        %v5516 = vpop.f32.mrb[0].mxu0
        %v5517 = vpop.f32.mrb[0].mxu0
        %v5518 = vadd.f32 0.0, %v5517
        %v5519 = vpop.f32.mrb[0].mxu0
        %5520 = vmatprep.mubr.bf16.mxu0 0
        %5521 = vmatmul.mubr.bf16.gmra.mrb[0].mxu0 %v4101
        %v5522 = vpop.f32.mrb[0].mxu0
        %v5523 = vadd.f32 0.0, %v5522
        %v5524 = vpop.f32.mrb[0].mxu0
        %v5525 = vpop.f32.mrb[0].mxu0
        %v5526 = vadd.f32 0.0, %v5525
        %v5527 = vpop.f32.mrb[0].mxu0
        %5528 = vmatprep.mubr.bf16.mxu0 0
        %5529 = vmatmul.mubr.bf16.gmra.mrb[0].mxu0 %v4314
        %v5530 = vpop.f32.mrb[0].mxu0
        %v5531 = vadd.f32 0.0, %v5530
        %v5532 = vpop.f32.mrb[0].mxu0
        %v5533 = vpop.f32.mrb[0].mxu0
        %v5534 = vadd.f32 0.0, %v5533
        %v5535 = vpop.f32.mrb[0].mxu0
        %5536 = vmatprep.mubr.bf16.mxu0 0
        %5537 = vmatmul.mubr.bf16.gmra.mrb[0].mxu0 %v4317
        %v5538 = vpop.f32.mrb[0].mxu0
        %v5539 = vadd.f32 0.0, %v5538
        %v5540 = vpop.f32.mrb[0].mxu0
        %v5541 = vpop.f32.mrb[0].mxu0
        %v5542 = vadd.f32 0.0, %v5541
        %v5543 = vpop.f32.mrb[0].mxu0
        %5544 = vmatprep.mubr.bf16.mxu0 0
        %5545 = vmatmul.mubr.bf16.gmra.mrb[0].mxu0 %v4320
        %v5546 = vpop.f32.mrb[0].mxu0
        %v5547 = vadd.f32 0.0, %v5546
        %v5548 = vpop.f32.mrb[0].mxu0
        %v5549 = vpop.f32.mrb[0].mxu0
        %v5550 = vadd.f32 0.0, %v5549
        %v5551 = vpop.f32.mrb[0].mxu0
        %5552 = vmatprep.mubr.bf16.mxu0 0
        %5553 = vmatmul.mubr.bf16.gmra.mrb[0].mxu0 %v4323
        %v5554 = vpop.f32.mrb[0].mxu0
        %v5555 = vadd.f32 0.0, %v5554
        %v5556 = vpop.f32.mrb[0].mxu0
        %v5557 = vpop.f32.mrb[0].mxu0
        %v5558 = vadd.f32 0.0, %v5557
        %v5559 = vpop.f32.mrb[0].mxu0
        %5560 = vmatprep.mubr.bf16.mxu0 0
        %5561 = vmatmul.mubr.bf16.gmra.mrb[0].mxu0 %v5228
        %v5562 = vpop.f32.mrb[0].mxu0
        %v5563 = vadd.f32 0.0, %v5562
        %v5564 = vpop.f32.mrb[0].mxu0
        %v5565 = vpop.f32.mrb[0].mxu0
        %v5566 = vadd.f32 0.0, %v5565
        %v5567 = vpop.f32.mrb[0].mxu0
        %5568 = vmatprep.mubr.bf16.mxu0 0
        %5569 = vmatmul.mubr.bf16.gmra.mrb[0].mxu0 %v5231
        %v5570 = vpop.f32.mrb[0].mxu0
        %v5571 = vadd.f32 0.0, %v5570
        %v5572 = vpop.f32.mrb[0].mxu0
        %v5573 = vpop.f32.mrb[0].mxu0
        %v5574 = vadd.f32 0.0, %v5573
        %v5575 = vpop.f32.mrb[0].mxu0
        %5576 = vmatprep.mubr.bf16.mxu0 0
        %5577 = vmatmul.mubr.bf16.gmra.mrb[0].mxu0 %v5234
        %v5578 = vpop.f32.mrb[0].mxu0
        %v5579 = vadd.f32 0.0, %v5578
        %v5580 = vpop.f32.mrb[0].mxu0
        %v5581 = vpop.f32.mrb[0].mxu0
        %v5582 = vadd.f32 0.0, %v5581
        %v5583 = vpop.f32.mrb[0].mxu0
        %5584 = vmatprep.mubr.bf16.mxu0 0
        %5585 = vmatmul.mubr.bf16.gmra.mrb[0].mxu0 %v5237
        %v5586 = vpop.f32.mrb[0].mxu0
        %v5587 = vadd.f32 0.0, %v5586
        %v5588 = vpop.f32.mrb[0].mxu0
        %v5589 = vpop.f32.mrb[0].mxu0
        %v5590 = vadd.f32 0.0, %v5589
        %v5591 = vpop.f32.mrb[0].mxu0
        %5592 = vmatprep.mubr.bf16.mxu0 0
        %5593 = vmatmul.mubr.bf16.gmra.mrb[0].mxu0 %v5450
        %v5594 = vpop.f32.mrb[0].mxu0
        %v5595 = vadd.f32 0.0, %v5594
        %v5596 = vpop.f32.mrb[0].mxu0
        %v5597 = vpop.f32.mrb[0].mxu0
        %v5598 = vadd.f32 0.0, %v5597
        %v5599 = vpop.f32.mrb[0].mxu0
        %5600 = vmatprep.mubr.bf16.mxu0 0
        %5601 = vmatmul.mubr.bf16.gmra.mrb[0].mxu0 %v5453
        %v5602 = vpop.f32.mrb[0].mxu0
        %v5603 = vadd.f32 0.0, %v5602
        %v5604 = vpop.f32.mrb[0].mxu0
        %v5605 = vpop.f32.mrb[0].mxu0
        %v5606 = vadd.f32 0.0, %v5605
        %v5607 = vpop.f32.mrb[0].mxu0
        %5608 = vmatprep.mubr.bf16.mxu0 0
        %5609 = vmatmul.mubr.bf16.gmra.mrb[0].mxu0 %v5456
        %v5610 = vpop.f32.mrb[0].mxu0
        %v5611 = vadd.f32 0.0, %v5610
        %v5612 = vpop.f32.mrb[0].mxu0
        %v5613 = vpop.f32.mrb[0].mxu0
        %v5614 = vadd.f32 0.0, %v5613
        %v5615 = vpop.f32.mrb[0].mxu0
        %5616 = vmatprep.mubr.bf16.mxu0 0
        %5617 = vmatmul.mubr.bf16.gmra.mrb[0].mxu0 %v5459
        %v5618 = vpop.f32.mrb[0].mxu0
        %v5619 = vadd.f32 0.0, %v5618
        %v5620 = vpop.f32.mrb[0].mxu0
        %v5621 = vpop.f32.mrb[0].mxu0
        %v5622 = vadd.f32 0.0, %v5621
        %v5623 = vpop.f32.mrb[0].mxu0
        %5624 = vdwg.mxu0
        %v5625 = vadd.f32 %v5403, %v5499
        %v5626 = vadd.f32 %v5404, %v5502
        %v5627 = vadd.f32 %v5405, %v5507
        %v5628 = vadd.f32 %v5406, %v5510
        %v5629 = vadd.f32 %v5407, %v5515
        %v5630 = vadd.f32 %v5408, %v5518
        %v5631 = vadd.f32 %v5409, %v5523
        %v5632 = vadd.f32 %v5410, %v5526
        %v5633 = vadd.f32 %v5411, %v5531
        %v5634 = vadd.f32 %v5412, %v5534
        %v5635 = vadd.f32 %v5413, %v5539
        %v5636 = vadd.f32 %v5414, %v5542
        %v5637 = vadd.f32 %v5415, %v5547
        %v5638 = vadd.f32 %v5416, %v5550
        %v5639 = vadd.f32 %v5417, %v5555
        %v5640 = vadd.f32 %v5418, %v5558
        %v5641 = vadd.f32 %v5419, %v5563
        %v5642 = vadd.f32 %v5420, %v5566
        %v5643 = vadd.f32 %v5421, %v5571
        %v5644 = vadd.f32 %v5422, %v5574
        %v5645 = vadd.f32 %v5423, %v5579
        %v5646 = vadd.f32 %v5424, %v5582
        %v5647 = vadd.f32 %v5425, %v5587
        %v5648 = vadd.f32 %v5426, %v5590
        %v5649 = vadd.f32 %v5427, %v5595
        %v5650 = vadd.f32 %v5428, %v5598
        %v5651 = vadd.f32 %v5429, %v5603
        %v5652 = vadd.f32 %v5430, %v5606
        %v5653 = vadd.f32 %v5431, %v5611
        %v5654 = vadd.f32 %v5432, %v5614
        %v5655 = vadd.f32 %v5433, %v5619
        %v5656 = vadd.f32 %v5434, %v5622
        %v5657 = vld [vmem:[%s4965 + $0x2] sm:$0xff]
        %v5658 = vld [vmem:[%s4965 + $0x12] sm:$0xff]
        %v5659 = vld [vmem:[%s4965 + $0x22] sm:$0xff]
        %v5660 = vld [vmem:[%s4965 + $0x32] sm:$0xff]
        %v5661 = vld [vmem:[%s4965 + $0x42] sm:$0xff]
        %v5662 = vld [vmem:[%s4965 + $0x52] sm:$0xff]
        %v5663 = vld [vmem:[%s4965 + $0x62] sm:$0xff]
        %v5664 = vld [vmem:[%s4965 + $0x72] sm:$0xff]
        %v5665 = vpack.c.bf16 %v5658, %v5657
        %v5666 = vpack.c.bf16 %v5660, %v5659
        %v5667 = vpack.c.bf16 %v5662, %v5661
        %v5668 = vpack.c.bf16 %v5664, %v5663
        %s5669 = scalar_lea.vmem %s1, 46
        %v5670 = vld [vmem:[%s5669] sm:$0x3]
        %v5672 = vsel %vm414, %v5665, 0
        %v5675 = vsel %vm414, %v5666, 0
        %v5678 = vsel %vm414, %v5667, 0
        %v5681 = vsel %vm414, %v5668, 0
        %v5684 = vand.u32 %v5670, %v466
        %5686 = vmatprep.subr.bf16.mxu0 0
        %5687 = vmatpush1.bf16.msra.mxu0 %v5684
        %5688 = vmatprep.subr.bf16.mxu0 0
        %5689 = vmatpush1.bf16.msra.mxu0 0
        %5690 = vmatprep.subr.bf16.mxu0 0
        %5691 = vmatpush1.bf16.msra.mxu0 0
        %5692 = vmatprep.subr.bf16.mxu0 0
        %5693 = vmatpush1.bf16.msra.mxu0 0
        %5694 = vmatprep.subr.bf16.mxu0 0
        %5695 = vmatpush1.bf16.msra.mxu0 0
        %5696 = vmatprep.subr.bf16.mxu0 0
        %5697 = vmatpush1.bf16.msra.mxu0 0
        %5698 = vmatprep.subr.bf16.mxu0 0
        %5699 = vmatpush1.bf16.msra.mxu0 0
        %5700 = vmatprep.subr.bf16.mxu0 0
        %5701 = vmatpush1.bf16.msra.mxu0 0
        %5702 = vmatprep.subr.bf16.mxu0 0
        %5703 = vmatpush1.bf16.msra.mxu0 0
        %5704 = vmatprep.subr.bf16.mxu0 0
        %5705 = vmatpush1.bf16.msra.mxu0 0
        %5706 = vmatprep.subr.bf16.mxu0 0
        %5707 = vmatpush1.bf16.msra.mxu0 0
        %5708 = vmatprep.subr.bf16.mxu0 0
        %5709 = vmatpush1.bf16.msra.mxu0 0
        %5710 = vmatprep.subr.bf16.mxu0 0
        %5711 = vmatpush1.bf16.msra.mxu0 0
        %5712 = vmatprep.subr.bf16.mxu0 0
        %5713 = vmatpush1.bf16.msra.mxu0 0
        %5714 = vmatprep.subr.bf16.mxu0 0
        %5715 = vmatpush1.bf16.msra.mxu0 0
        %5716 = vmatprep.subr.bf16.mxu0 0
        %5717 = vmatpush1.bf16.msra.mxu0 0
        %5718 = vmatprep.mubr.bf16.mxu0 0
        %5719 = vmatmul.mubr.bf16.gmra.mrb[0].mxu0 %v4314
        %v5720 = vpop.f32.mrb[0].mxu0
        %v5721 = vadd.f32 0.0, %v5720
        %v5722 = vpop.f32.mrb[0].mxu0
        %v5723 = vpop.f32.mrb[0].mxu0
        %v5724 = vadd.f32 0.0, %v5723
        %v5725 = vpop.f32.mrb[0].mxu0
        %5726 = vmatprep.mubr.bf16.mxu0 0
        %5727 = vmatmul.mubr.bf16.gmra.mrb[0].mxu0 %v4317
        %v5728 = vpop.f32.mrb[0].mxu0
        %v5729 = vadd.f32 0.0, %v5728
        %v5730 = vpop.f32.mrb[0].mxu0
        %v5731 = vpop.f32.mrb[0].mxu0
        %v5732 = vadd.f32 0.0, %v5731
        %v5733 = vpop.f32.mrb[0].mxu0
        %5734 = vmatprep.mubr.bf16.mxu0 0
        %5735 = vmatmul.mubr.bf16.gmra.mrb[0].mxu0 %v4320
        %v5736 = vpop.f32.mrb[0].mxu0
        %v5737 = vadd.f32 0.0, %v5736
        %v5738 = vpop.f32.mrb[0].mxu0
        %v5739 = vpop.f32.mrb[0].mxu0
        %v5740 = vadd.f32 0.0, %v5739
        %v5741 = vpop.f32.mrb[0].mxu0
        %5742 = vmatprep.mubr.bf16.mxu0 0
        %5743 = vmatmul.mubr.bf16.gmra.mrb[0].mxu0 %v4323
        %v5744 = vpop.f32.mrb[0].mxu0
        %v5745 = vadd.f32 0.0, %v5744
        %v5746 = vpop.f32.mrb[0].mxu0
        %v5747 = vpop.f32.mrb[0].mxu0
        %v5748 = vadd.f32 0.0, %v5747
        %v5749 = vpop.f32.mrb[0].mxu0
        %5750 = vmatprep.mubr.bf16.mxu0 0
        %5751 = vmatmul.mubr.bf16.gmra.mrb[0].mxu0 %v4536
        %v5752 = vpop.f32.mrb[0].mxu0
        %v5753 = vadd.f32 0.0, %v5752
        %v5754 = vpop.f32.mrb[0].mxu0
        %v5755 = vpop.f32.mrb[0].mxu0
        %v5756 = vadd.f32 0.0, %v5755
        %v5757 = vpop.f32.mrb[0].mxu0
        %5758 = vmatprep.mubr.bf16.mxu0 0
        %5759 = vmatmul.mubr.bf16.gmra.mrb[0].mxu0 %v4539
        %v5760 = vpop.f32.mrb[0].mxu0
        %v5761 = vadd.f32 0.0, %v5760
        %v5762 = vpop.f32.mrb[0].mxu0
        %v5763 = vpop.f32.mrb[0].mxu0
        %v5764 = vadd.f32 0.0, %v5763
        %v5765 = vpop.f32.mrb[0].mxu0
        %5766 = vmatprep.mubr.bf16.mxu0 0
        %5767 = vmatmul.mubr.bf16.gmra.mrb[0].mxu0 %v4542
        %v5768 = vpop.f32.mrb[0].mxu0
        %v5769 = vadd.f32 0.0, %v5768
        %v5770 = vpop.f32.mrb[0].mxu0
        %v5771 = vpop.f32.mrb[0].mxu0
        %v5772 = vadd.f32 0.0, %v5771
        %v5773 = vpop.f32.mrb[0].mxu0
        %5774 = vmatprep.mubr.bf16.mxu0 0
        %5775 = vmatmul.mubr.bf16.gmra.mrb[0].mxu0 %v4545
        %v5776 = vpop.f32.mrb[0].mxu0
        %v5777 = vadd.f32 0.0, %v5776
        %v5778 = vpop.f32.mrb[0].mxu0
        %v5779 = vpop.f32.mrb[0].mxu0
        %v5780 = vadd.f32 0.0, %v5779
        %v5781 = vpop.f32.mrb[0].mxu0
        %5782 = vmatprep.mubr.bf16.mxu0 0
        %5783 = vmatmul.mubr.bf16.gmra.mrb[0].mxu0 %v5450
        %v5784 = vpop.f32.mrb[0].mxu0
        %v5785 = vadd.f32 0.0, %v5784
        %v5786 = vpop.f32.mrb[0].mxu0
        %v5787 = vpop.f32.mrb[0].mxu0
        %v5788 = vadd.f32 0.0, %v5787
        %v5789 = vpop.f32.mrb[0].mxu0
        %5790 = vmatprep.mubr.bf16.mxu0 0
        %5791 = vmatmul.mubr.bf16.gmra.mrb[0].mxu0 %v5453
        %v5792 = vpop.f32.mrb[0].mxu0
        %v5793 = vadd.f32 0.0, %v5792
        %v5794 = vpop.f32.mrb[0].mxu0
        %v5795 = vpop.f32.mrb[0].mxu0
        %v5796 = vadd.f32 0.0, %v5795
        %v5797 = vpop.f32.mrb[0].mxu0
        %5798 = vmatprep.mubr.bf16.mxu0 0
        %5799 = vmatmul.mubr.bf16.gmra.mrb[0].mxu0 %v5456
        %v5800 = vpop.f32.mrb[0].mxu0
        %v5801 = vadd.f32 0.0, %v5800
        %v5802 = vpop.f32.mrb[0].mxu0
        %v5803 = vpop.f32.mrb[0].mxu0
        %v5804 = vadd.f32 0.0, %v5803
        %v5805 = vpop.f32.mrb[0].mxu0
        %5806 = vmatprep.mubr.bf16.mxu0 0
        %5807 = vmatmul.mubr.bf16.gmra.mrb[0].mxu0 %v5459
        %v5808 = vpop.f32.mrb[0].mxu0
        %v5809 = vadd.f32 0.0, %v5808
        %v5810 = vpop.f32.mrb[0].mxu0
        %v5811 = vpop.f32.mrb[0].mxu0
        %v5812 = vadd.f32 0.0, %v5811
        %v5813 = vpop.f32.mrb[0].mxu0
        %5814 = vmatprep.mubr.bf16.mxu0 0
        %5815 = vmatmul.mubr.bf16.gmra.mrb[0].mxu0 %v5672
        %v5816 = vpop.f32.mrb[0].mxu0
        %v5817 = vadd.f32 0.0, %v5816
        %v5818 = vpop.f32.mrb[0].mxu0
        %v5819 = vpop.f32.mrb[0].mxu0
        %v5820 = vadd.f32 0.0, %v5819
        %v5821 = vpop.f32.mrb[0].mxu0
        %5822 = vmatprep.mubr.bf16.mxu0 0
        %5823 = vmatmul.mubr.bf16.gmra.mrb[0].mxu0 %v5675
        %v5824 = vpop.f32.mrb[0].mxu0
        %v5825 = vadd.f32 0.0, %v5824
        %v5826 = vpop.f32.mrb[0].mxu0
        %v5827 = vpop.f32.mrb[0].mxu0
        %v5828 = vadd.f32 0.0, %v5827
        %v5829 = vpop.f32.mrb[0].mxu0
        %5830 = vmatprep.mubr.bf16.mxu0 0
        %5831 = vmatmul.mubr.bf16.gmra.mrb[0].mxu0 %v5678
        %v5832 = vpop.f32.mrb[0].mxu0
        %v5833 = vadd.f32 0.0, %v5832
        %v5834 = vpop.f32.mrb[0].mxu0
        %v5835 = vpop.f32.mrb[0].mxu0
        %v5836 = vadd.f32 0.0, %v5835
        %v5837 = vpop.f32.mrb[0].mxu0
        %5838 = vmatprep.mubr.bf16.mxu0 0
        %5839 = vmatmul.mubr.bf16.gmra.mrb[0].mxu0 %v5681
        %v5840 = vpop.f32.mrb[0].mxu0
        %v5841 = vadd.f32 0.0, %v5840
        %v5842 = vpop.f32.mrb[0].mxu0
        %v5843 = vpop.f32.mrb[0].mxu0
        %v5844 = vadd.f32 0.0, %v5843
        %v5845 = vpop.f32.mrb[0].mxu0
        %5846 = vdwg.mxu0
        %v5847 = vadd.f32 %v5625, %v5721
        %v5848 = vadd.f32 %v5626, %v5724
        %v5849 = vadd.f32 %v5627, %v5729
        %v5850 = vadd.f32 %v5628, %v5732
        %v5851 = vadd.f32 %v5629, %v5737
        %v5852 = vadd.f32 %v5630, %v5740
        %v5853 = vadd.f32 %v5631, %v5745
        %v5854 = vadd.f32 %v5632, %v5748
        %v5855 = vadd.f32 %v5633, %v5753
        %v5856 = vadd.f32 %v5634, %v5756
        %v5857 = vadd.f32 %v5635, %v5761
        %v5858 = vadd.f32 %v5636, %v5764
        %v5859 = vadd.f32 %v5637, %v5769
        %v5860 = vadd.f32 %v5638, %v5772
        %v5861 = vadd.f32 %v5639, %v5777
        %v5862 = vadd.f32 %v5640, %v5780
        %v5863 = vadd.f32 %v5641, %v5785
        %v5864 = vadd.f32 %v5642, %v5788
        %v5865 = vadd.f32 %v5643, %v5793
        %v5866 = vadd.f32 %v5644, %v5796
        %v5867 = vadd.f32 %v5645, %v5801
        %v5868 = vadd.f32 %v5646, %v5804
        %v5869 = vadd.f32 %v5647, %v5809
        %v5870 = vadd.f32 %v5648, %v5812
        %v5871 = vadd.f32 %v5649, %v5817
        %v5872 = vadd.f32 %v5650, %v5820
        %v5873 = vadd.f32 %v5651, %v5825
        %v5874 = vadd.f32 %v5652, %v5828
        %v5875 = vadd.f32 %v5653, %v5833
        %v5876 = vadd.f32 %v5654, %v5836
        %v5877 = vadd.f32 %v5655, %v5841
        %v5878 = vadd.f32 %v5656, %v5844
        %v5879 = vld [vmem:[%s4974 + $0x2] sm:$0xff]
        %v5880 = vld [vmem:[%s4974 + $0x12] sm:$0xff]
        %v5881 = vld [vmem:[%s4974 + $0x22] sm:$0xff]
        %v5882 = vld [vmem:[%s4974 + $0x32] sm:$0xff]
        %v5883 = vld [vmem:[%s4974 + $0x42] sm:$0xff]
        %v5884 = vld [vmem:[%s4974 + $0x52] sm:$0xff]
        %v5885 = vld [vmem:[%s4974 + $0x62] sm:$0xff]
        %v5886 = vld [vmem:[%s4974 + $0x72] sm:$0xff]
        %v5887 = vpack.c.bf16 %v5880, %v5879
        %v5888 = vpack.c.bf16 %v5882, %v5881
        %v5889 = vpack.c.bf16 %v5884, %v5883
        %v5890 = vpack.c.bf16 %v5886, %v5885
        %s5891 = scalar_lea.vmem %s1, 48
        %v5892 = vld [vmem:[%s5891] sm:$0x3]
        %v5894 = vsel %vm414, %v5887, 0
        %v5897 = vsel %vm414, %v5888, 0
        %v5900 = vsel %vm414, %v5889, 0
        %v5903 = vsel %vm414, %v5890, 0
        %v5906 = vand.u32 %v5892, %v466
        %5908 = vmatprep.subr.bf16.mxu0 0
        %5909 = vmatpush1.bf16.msra.mxu0 %v5906
        %5910 = vmatprep.subr.bf16.mxu0 0
        %5911 = vmatpush1.bf16.msra.mxu0 0
        %5912 = vmatprep.subr.bf16.mxu0 0
        %5913 = vmatpush1.bf16.msra.mxu0 0
        %5914 = vmatprep.subr.bf16.mxu0 0
        %5915 = vmatpush1.bf16.msra.mxu0 0
        %5916 = vmatprep.subr.bf16.mxu0 0
        %5917 = vmatpush1.bf16.msra.mxu0 0
        %5918 = vmatprep.subr.bf16.mxu0 0
        %5919 = vmatpush1.bf16.msra.mxu0 0
        %5920 = vmatprep.subr.bf16.mxu0 0
        %5921 = vmatpush1.bf16.msra.mxu0 0
        %5922 = vmatprep.subr.bf16.mxu0 0
        %5923 = vmatpush1.bf16.msra.mxu0 0
        %5924 = vmatprep.subr.bf16.mxu0 0
        %5925 = vmatpush1.bf16.msra.mxu0 0
        %5926 = vmatprep.subr.bf16.mxu0 0
        %5927 = vmatpush1.bf16.msra.mxu0 0
        %5928 = vmatprep.subr.bf16.mxu0 0
        %5929 = vmatpush1.bf16.msra.mxu0 0
        %5930 = vmatprep.subr.bf16.mxu0 0
        %5931 = vmatpush1.bf16.msra.mxu0 0
        %5932 = vmatprep.subr.bf16.mxu0 0
        %5933 = vmatpush1.bf16.msra.mxu0 0
        %5934 = vmatprep.subr.bf16.mxu0 0
        %5935 = vmatpush1.bf16.msra.mxu0 0
        %5936 = vmatprep.subr.bf16.mxu0 0
        %5937 = vmatpush1.bf16.msra.mxu0 0
        %5938 = vmatprep.subr.bf16.mxu0 0
        %5939 = vmatpush1.bf16.msra.mxu0 0
        %5940 = vmatprep.mubr.bf16.mxu0 0
        %5941 = vmatmul.mubr.bf16.gmra.mrb[0].mxu0 %v4536
        %v5942 = vpop.f32.mrb[0].mxu0
        %v5943 = vadd.f32 0.0, %v5942
        %v5944 = vpop.f32.mrb[0].mxu0
        %v5945 = vpop.f32.mrb[0].mxu0
        %v5946 = vadd.f32 0.0, %v5945
        %v5947 = vpop.f32.mrb[0].mxu0
        %5948 = vmatprep.mubr.bf16.mxu0 0
        %5949 = vmatmul.mubr.bf16.gmra.mrb[0].mxu0 %v4539
        %v5950 = vpop.f32.mrb[0].mxu0
        %v5951 = vadd.f32 0.0, %v5950
        %v5952 = vpop.f32.mrb[0].mxu0
        %v5953 = vpop.f32.mrb[0].mxu0
        %v5954 = vadd.f32 0.0, %v5953
        %v5955 = vpop.f32.mrb[0].mxu0
        %5956 = vmatprep.mubr.bf16.mxu0 0
        %5957 = vmatmul.mubr.bf16.gmra.mrb[0].mxu0 %v4542
        %v5958 = vpop.f32.mrb[0].mxu0
        %v5959 = vadd.f32 0.0, %v5958
        %v5960 = vpop.f32.mrb[0].mxu0
        %v5961 = vpop.f32.mrb[0].mxu0
        %v5962 = vadd.f32 0.0, %v5961
        %v5963 = vpop.f32.mrb[0].mxu0
        %5964 = vmatprep.mubr.bf16.mxu0 0
        %5965 = vmatmul.mubr.bf16.gmra.mrb[0].mxu0 %v4545
        %v5966 = vpop.f32.mrb[0].mxu0
        %v5967 = vadd.f32 0.0, %v5966
        %v5968 = vpop.f32.mrb[0].mxu0
        %v5969 = vpop.f32.mrb[0].mxu0
        %v5970 = vadd.f32 0.0, %v5969
        %v5971 = vpop.f32.mrb[0].mxu0
        %5972 = vmatprep.mubr.bf16.mxu0 0
        %5973 = vmatmul.mubr.bf16.gmra.mrb[0].mxu0 %v4758
        %v5974 = vpop.f32.mrb[0].mxu0
        %v5975 = vadd.f32 0.0, %v5974
        %v5976 = vpop.f32.mrb[0].mxu0
        %v5977 = vpop.f32.mrb[0].mxu0
        %v5978 = vadd.f32 0.0, %v5977
        %v5979 = vpop.f32.mrb[0].mxu0
        %5980 = vmatprep.mubr.bf16.mxu0 0
        %5981 = vmatmul.mubr.bf16.gmra.mrb[0].mxu0 %v4761
        %v5982 = vpop.f32.mrb[0].mxu0
        %v5983 = vadd.f32 0.0, %v5982
        %v5984 = vpop.f32.mrb[0].mxu0
        %v5985 = vpop.f32.mrb[0].mxu0
        %v5986 = vadd.f32 0.0, %v5985
        %v5987 = vpop.f32.mrb[0].mxu0
        %5988 = vmatprep.mubr.bf16.mxu0 0
        %5989 = vmatmul.mubr.bf16.gmra.mrb[0].mxu0 %v4764
        %v5990 = vpop.f32.mrb[0].mxu0
        %v5991 = vadd.f32 0.0, %v5990
        %v5992 = vpop.f32.mrb[0].mxu0
        %v5993 = vpop.f32.mrb[0].mxu0
        %v5994 = vadd.f32 0.0, %v5993
        %v5995 = vpop.f32.mrb[0].mxu0
        %5996 = vmatprep.mubr.bf16.mxu0 0
        %5997 = vmatmul.mubr.bf16.gmra.mrb[0].mxu0 %v4767
        %v5998 = vpop.f32.mrb[0].mxu0
        %v5999 = vadd.f32 0.0, %v5998
        %v6000 = vpop.f32.mrb[0].mxu0
        %v6001 = vpop.f32.mrb[0].mxu0
        %v6002 = vadd.f32 0.0, %v6001
        %v6003 = vpop.f32.mrb[0].mxu0
        %6004 = vmatprep.mubr.bf16.mxu0 0
        %6005 = vmatmul.mubr.bf16.gmra.mrb[0].mxu0 %v5672
        %v6006 = vpop.f32.mrb[0].mxu0
        %v6007 = vadd.f32 0.0, %v6006
        %v6008 = vpop.f32.mrb[0].mxu0
        %v6009 = vpop.f32.mrb[0].mxu0
        %v6010 = vadd.f32 0.0, %v6009
        %v6011 = vpop.f32.mrb[0].mxu0
        %6012 = vmatprep.mubr.bf16.mxu0 0
        %6013 = vmatmul.mubr.bf16.gmra.mrb[0].mxu0 %v5675
        %v6014 = vpop.f32.mrb[0].mxu0
        %v6015 = vadd.f32 0.0, %v6014
        %v6016 = vpop.f32.mrb[0].mxu0
        %v6017 = vpop.f32.mrb[0].mxu0
        %v6018 = vadd.f32 0.0, %v6017
        %v6019 = vpop.f32.mrb[0].mxu0
        %6020 = vmatprep.mubr.bf16.mxu0 0
        %6021 = vmatmul.mubr.bf16.gmra.mrb[0].mxu0 %v5678
        %v6022 = vpop.f32.mrb[0].mxu0
        %v6023 = vadd.f32 0.0, %v6022
        %v6024 = vpop.f32.mrb[0].mxu0
        %v6025 = vpop.f32.mrb[0].mxu0
        %v6026 = vadd.f32 0.0, %v6025
        %v6027 = vpop.f32.mrb[0].mxu0
        %6028 = vmatprep.mubr.bf16.mxu0 0
        %6029 = vmatmul.mubr.bf16.gmra.mrb[0].mxu0 %v5681
        %v6030 = vpop.f32.mrb[0].mxu0
        %v6031 = vadd.f32 0.0, %v6030
        %v6032 = vpop.f32.mrb[0].mxu0
        %v6033 = vpop.f32.mrb[0].mxu0
        %v6034 = vadd.f32 0.0, %v6033
        %v6035 = vpop.f32.mrb[0].mxu0
        %6036 = vmatprep.mubr.bf16.mxu0 0
        %6037 = vmatmul.mubr.bf16.gmra.mrb[0].mxu0 %v5894
        %v6038 = vpop.f32.mrb[0].mxu0
        %v6039 = vadd.f32 0.0, %v6038
        %v6040 = vpop.f32.mrb[0].mxu0
        %v6041 = vpop.f32.mrb[0].mxu0
        %v6042 = vadd.f32 0.0, %v6041
        %v6043 = vpop.f32.mrb[0].mxu0
        %6044 = vmatprep.mubr.bf16.mxu0 0
        %6045 = vmatmul.mubr.bf16.gmra.mrb[0].mxu0 %v5897
        %v6046 = vpop.f32.mrb[0].mxu0
        %v6047 = vadd.f32 0.0, %v6046
        %v6048 = vpop.f32.mrb[0].mxu0
        %v6049 = vpop.f32.mrb[0].mxu0
        %v6050 = vadd.f32 0.0, %v6049
        %v6051 = vpop.f32.mrb[0].mxu0
        %6052 = vmatprep.mubr.bf16.mxu0 0
        %6053 = vmatmul.mubr.bf16.gmra.mrb[0].mxu0 %v5900
        %v6054 = vpop.f32.mrb[0].mxu0
        %v6055 = vadd.f32 0.0, %v6054
        %v6056 = vpop.f32.mrb[0].mxu0
        %v6057 = vpop.f32.mrb[0].mxu0
        %v6058 = vadd.f32 0.0, %v6057
        %v6059 = vpop.f32.mrb[0].mxu0
        %6060 = vmatprep.mubr.bf16.mxu0 0
        %6061 = vmatmul.mubr.bf16.gmra.mrb[0].mxu0 %v5903
        %v6062 = vpop.f32.mrb[0].mxu0
        %v6063 = vadd.f32 0.0, %v6062
        %v6064 = vpop.f32.mrb[0].mxu0
        %v6065 = vpop.f32.mrb[0].mxu0
        %v6066 = vadd.f32 0.0, %v6065
        %v6067 = vpop.f32.mrb[0].mxu0
        %6068 = vdwg.mxu0
        %v6069 = vadd.f32 %v5847, %v5943
        %v6070 = vadd.f32 %v5848, %v5946
        %v6071 = vadd.f32 %v5849, %v5951
        %v6072 = vadd.f32 %v5850, %v5954
        %v6073 = vadd.f32 %v5851, %v5959
        %v6074 = vadd.f32 %v5852, %v5962
        %v6075 = vadd.f32 %v5853, %v5967
        %v6076 = vadd.f32 %v5854, %v5970
        %v6077 = vadd.f32 %v5855, %v5975
        %v6078 = vadd.f32 %v5856, %v5978
        %v6079 = vadd.f32 %v5857, %v5983
        %v6080 = vadd.f32 %v5858, %v5986
        %v6081 = vadd.f32 %v5859, %v5991
        %v6082 = vadd.f32 %v5860, %v5994
        %v6083 = vadd.f32 %v5861, %v5999
        %v6084 = vadd.f32 %v5862, %v6002
        %v6085 = vadd.f32 %v5863, %v6007
        %v6086 = vadd.f32 %v5864, %v6010
        %v6087 = vadd.f32 %v5865, %v6015
        %v6088 = vadd.f32 %v5866, %v6018
        %v6089 = vadd.f32 %v5867, %v6023
        %v6090 = vadd.f32 %v5868, %v6026
        %v6091 = vadd.f32 %v5869, %v6031
        %v6092 = vadd.f32 %v5870, %v6034
        %v6093 = vadd.f32 %v5871, %v6039
        %v6094 = vadd.f32 %v5872, %v6042
        %v6095 = vadd.f32 %v5873, %v6047
        %v6096 = vadd.f32 %v5874, %v6050
        %v6097 = vadd.f32 %v5875, %v6055
        %v6098 = vadd.f32 %v5876, %v6058
        %v6099 = vadd.f32 %v5877, %v6063
        %v6100 = vadd.f32 %v5878, %v6066
        %v6101 = vld [vmem:[%s2] sm:$0x1]
        %v6103 = vlaneseq
        %v6104 = vshrl.u32 %v6103, 7
        %v6105 = vsub.s32 0, %v6104
        %v6106 = vrot.slane %v6101, %v6105
        %v6108 = vadd.f32 %v6069, %v6106
        %v6109 = vadd.f32 %v6070, %v6106
        %v6110 = vadd.f32 %v6071, %v6106
        %v6111 = vadd.f32 %v6072, %v6106
        %v6112 = vadd.f32 %v6073, %v6106
        %v6113 = vadd.f32 %v6074, %v6106
        %v6114 = vadd.f32 %v6075, %v6106
        %v6115 = vadd.f32 %v6076, %v6106
        %v6116 = vadd.f32 %v6077, %v6106
        %v6117 = vadd.f32 %v6078, %v6106
        %v6118 = vadd.f32 %v6079, %v6106
        %v6119 = vadd.f32 %v6080, %v6106
        %v6120 = vadd.f32 %v6081, %v6106
        %v6121 = vadd.f32 %v6082, %v6106
        %v6122 = vadd.f32 %v6083, %v6106
        %v6123 = vadd.f32 %v6084, %v6106
        %v6124 = vadd.f32 %v6085, %v6106
        %v6125 = vadd.f32 %v6086, %v6106
        %v6126 = vadd.f32 %v6087, %v6106
        %v6127 = vadd.f32 %v6088, %v6106
        %v6128 = vadd.f32 %v6089, %v6106
        %v6129 = vadd.f32 %v6090, %v6106
        %v6130 = vadd.f32 %v6091, %v6106
        %v6131 = vadd.f32 %v6092, %v6106
        %v6132 = vadd.f32 %v6093, %v6106
        %v6133 = vadd.f32 %v6094, %v6106
        %v6134 = vadd.f32 %v6095, %v6106
        %v6135 = vadd.f32 %v6096, %v6106
        %v6136 = vadd.f32 %v6097, %v6106
        %v6137 = vadd.f32 %v6098, %v6106
        %v6138 = vadd.f32 %v6099, %v6106
        %v6139 = vadd.f32 %v6100, %v6106
        %v6140 = vmax.f32 %v6108, 0.0
        %v6141 = vmax.f32 %v6109, 0.0
        %v6142 = vmax.f32 %v6110, 0.0
        %v6143 = vmax.f32 %v6111, 0.0
        %v6144 = vmax.f32 %v6112, 0.0
        %v6145 = vmax.f32 %v6113, 0.0
        %v6146 = vmax.f32 %v6114, 0.0
        %v6147 = vmax.f32 %v6115, 0.0
        %v6148 = vmax.f32 %v6116, 0.0
        %v6149 = vmax.f32 %v6117, 0.0
        %v6150 = vmax.f32 %v6118, 0.0
        %v6151 = vmax.f32 %v6119, 0.0
        %v6152 = vmax.f32 %v6120, 0.0
        %v6153 = vmax.f32 %v6121, 0.0
        %v6154 = vmax.f32 %v6122, 0.0
        %v6155 = vmax.f32 %v6123, 0.0
        %v6156 = vmax.f32 %v6124, 0.0
        %v6157 = vmax.f32 %v6125, 0.0
        %v6158 = vmax.f32 %v6126, 0.0
        %v6159 = vmax.f32 %v6127, 0.0
        %v6160 = vmax.f32 %v6128, 0.0
        %v6161 = vmax.f32 %v6129, 0.0
        %v6162 = vmax.f32 %v6130, 0.0
        %v6163 = vmax.f32 %v6131, 0.0
        %v6164 = vmax.f32 %v6132, 0.0
        %v6165 = vmax.f32 %v6133, 0.0
        %v6166 = vmax.f32 %v6134, 0.0
        %v6167 = vmax.f32 %v6135, 0.0
        %v6168 = vmax.f32 %v6136, 0.0
        %v6169 = vmax.f32 %v6137, 0.0
        %v6170 = vmax.f32 %v6138, 0.0
        %v6171 = vmax.f32 %v6139, 0.0
        %v6172 = vmax.f32 %v6140, %v6148
        %v6173 = vmax.f32 %v6141, %v6149
        %v6174 = vmax.f32 %v6142, %v6150
        %v6175 = vmax.f32 %v6143, %v6151
        %v6176 = vmax.f32 %v6144, %v6152
        %v6177 = vmax.f32 %v6145, %v6153
        %v6178 = vmax.f32 %v6146, %v6154
        %v6179 = vmax.f32 %v6147, %v6155
        %v6180 = vmax.f32 %v6156, %v6164
        %v6181 = vmax.f32 %v6157, %v6165
        %v6182 = vmax.f32 %v6158, %v6166
        %v6183 = vmax.f32 %v6159, %v6167
        %v6184 = vmax.f32 %v6160, %v6168
        %v6185 = vmax.f32 %v6161, %v6169
        %v6186 = vmax.f32 %v6162, %v6170
        %v6187 = vmax.f32 %v6163, %v6171
        %v6188 = vmax.f32 %v6172, %v6180
        %v6189 = vmax.f32 %v6173, %v6181
        %v6190 = vmax.f32 %v6174, %v6182
        %v6191 = vmax.f32 %v6175, %v6183
        %v6192 = vmax.f32 %v6176, %v6184
        %v6193 = vmax.f32 %v6177, %v6185
        %v6194 = vmax.f32 %v6178, %v6186
        %v6195 = vmax.f32 %v6179, %v6187
        %vm6196 = vcmask 261120
        %6197 = vst.msk [vmem:[#allocation2] sm:$0xff] %vm6196, 0.0
        %vm6198 = vcmask 257024
        %6199 = vst.msk [vmem:[#allocation2 + $0x8] sm:$0xf] %vm6198, 0.0
        %6200 = vst.msk [vmem:[#allocation2 + $0x10] sm:$0xff] %vm6196, 0.0
        %6201 = vst.msk [vmem:[#allocation2 + $0x18] sm:$0xf] %vm6198, 0.0
        %6202 = vst.msk [vmem:[#allocation2 + $0x20] sm:$0xff] %vm6196, 0.0
        %6203 = vst.msk [vmem:[#allocation2 + $0x28] sm:$0xf] %vm6198, 0.0
        %6204 = vst.msk [vmem:[#allocation2 + $0x30] sm:$0xff] %vm6196, 0.0
        %6205 = vst.msk [vmem:[#allocation2 + $0x38] sm:$0xf] %vm6198, 0.0
        %6206 = vst.msk [vmem:[#allocation2 + $0x40] sm:$0xff] %vm6196, 0.0
        %6207 = vst.msk [vmem:[#allocation2 + $0x48] sm:$0xf] %vm6198, 0.0
        %6208 = vst.msk [vmem:[#allocation2 + $0x50] sm:$0xff] %vm6196, 0.0
        %6209 = vst.msk [vmem:[#allocation2 + $0x58] sm:$0xf] %vm6198, 0.0
        %6210 = vst.msk [vmem:[#allocation2 + $0x60] sm:$0xff] %vm6196, 0.0
        %6211 = vst.msk [vmem:[#allocation2 + $0x68] sm:$0xf] %vm6198, 0.0
        %6212 = vst.msk [vmem:[#allocation2 + $0x70] sm:$0xff] %vm6196, 0.0
        %6213 = vst.msk [vmem:[#allocation2 + $0x78] sm:$0xf] %vm6198, 0.0
        %6214 = vst.msk [vmem:[#allocation2 + $0x80] sm:$0xff] %vm6196, 0.0
        %6215 = vst.msk [vmem:[#allocation2 + $0x88] sm:$0xf] %vm6198, 0.0
        %6216 = vst.msk [vmem:[#allocation2 + $0x90] sm:$0xff] %vm6196, 0.0
        %6217 = vst.msk [vmem:[#allocation2 + $0x98] sm:$0xf] %vm6198, 0.0
        %6218 = vst.msk [vmem:[#allocation2 + $0xa0] sm:$0xff] %vm6196, 0.0
        %6219 = vst.msk [vmem:[#allocation2 + $0xa8] sm:$0xf] %vm6198, 0.0
        %6220 = vst.msk [vmem:[#allocation2 + $0xb0] sm:$0xff] %vm6196, 0.0
        %6221 = vst.msk [vmem:[#allocation2 + $0xb8] sm:$0xf] %vm6198, 0.0
        %s6222 = scalar_lea.vmem [#allocation2], 32
        %6223 = vst.msk [vmem:[%s6222 + $0x2] sm:$0xff] %vm6196, %v6188
        %6224 = vst.msk [vmem:[%s6222 + $0x12] sm:$0xff] %vm6196, %v6189
        %6225 = vst.msk [vmem:[%s6222 + $0x22] sm:$0xff] %vm6196, %v6190
        %6226 = vst.msk [vmem:[%s6222 + $0x32] sm:$0xff] %vm6196, %v6191
        %6227 = vst.msk [vmem:[%s6222 + $0x42] sm:$0xff] %vm6196, %v6192
        %6228 = vst.msk [vmem:[%s6222 + $0x52] sm:$0xff] %vm6196, %v6193
        %6229 = vst.msk [vmem:[%s6222 + $0x62] sm:$0xff] %vm6196, %v6194
        %6230 = vst.msk [vmem:[%s6222 + $0x72] sm:$0xff] %vm6196, %v6195
        %v6231 = vld [vmem:[#allocation2] sm:$0xff]
        %v6232 = vld [vmem:[#allocation2 + $0x10] sm:$0xff]
        %v6233 = vld [vmem:[#allocation2 + $0x20] sm:$0xff]
        %v6234 = vld [vmem:[#allocation2 + $0x30] sm:$0xff]
        %v6235 = vld [vmem:[#allocation2 + $0x40] sm:$0xff]
        %v6236 = vld [vmem:[#allocation2 + $0x50] sm:$0xff]
        %v6237 = vld [vmem:[#allocation2 + $0x60] sm:$0xff]
        %v6238 = vld [vmem:[#allocation2 + $0x70] sm:$0xff]
        %v6239 = vpack.c.bf16 %v6232, %v6231
        %v6240 = vpack.c.bf16 %v6234, %v6233
        %v6241 = vpack.c.bf16 %v6236, %v6235
        %v6242 = vpack.c.bf16 %v6238, %v6237
        %v6243 = vld [vmem:[%s3] sm:$0xf]
        %v6244 = vld [vmem:[%s3 + $0x4] sm:$0xf]
        %v6245 = vld [vmem:[%s3 + $0x8] sm:$0xf]
        %v6246 = vld [vmem:[%s3 + $0xc] sm:$0xf]
        %v6247 = vld [vmem:[#allocation2 + $0x1] sm:$0xff]
        %v6248 = vld [vmem:[#allocation2 + $0x11] sm:$0xff]
        %v6249 = vld [vmem:[#allocation2 + $0x21] sm:$0xff]
        %v6250 = vld [vmem:[#allocation2 + $0x31] sm:$0xff]
        %v6251 = vld [vmem:[#allocation2 + $0x41] sm:$0xff]
        %v6252 = vld [vmem:[#allocation2 + $0x51] sm:$0xff]
        %v6253 = vld [vmem:[#allocation2 + $0x61] sm:$0xff]
        %v6254 = vld [vmem:[#allocation2 + $0x71] sm:$0xff]
        %v6255 = vpack.c.bf16 %v6248, %v6247
        %v6256 = vpack.c.bf16 %v6250, %v6249
        %v6257 = vpack.c.bf16 %v6252, %v6251
        %v6258 = vpack.c.bf16 %v6254, %v6253
        %s6259 = scalar_lea.vmem %s3, 16
        %v6260 = vld [vmem:[%s6259] sm:$0xf]
        %v6261 = vld [vmem:[%s6259 + $0x4] sm:$0xf]
        %v6262 = vld [vmem:[%s6259 + $0x8] sm:$0xf]
        %v6263 = vld [vmem:[%s6259 + $0xc] sm:$0xf]
        %v6268 = vunpack.c.l.b16 %v6260
        %v6269 = vunpack.c.l.b16 %v6261
        %v6270 = vunpack.c.l.b16 %v6262
        %v6271 = vunpack.c.l.b16 %v6263
        %v6272 = vpack.c.b16 %v6269, %v6268
        %v6273 = vpack.c.b16 %v6271, %v6270
        %v6277 = vsel %vm6196, %v6255, 0
        %v6280 = vsel %vm6196, %v6256, 0
        %v6283 = vsel %vm6196, %v6257, 0
        %v6286 = vsel %vm6196, %v6258, 0
        %6288 = vmatprep.subr.bf16.mxu0 0
        %6289 = vmatpush1.bf16.msra.mxu0 %v6272
        %6290 = vmatprep.subr.bf16.mxu0 0
        %6291 = vmatpush1.bf16.msra.mxu0 %v6273
        %6292 = vmatprep.subr.bf16.mxu0 0
        %6293 = vmatpush1.bf16.msra.mxu0 0
        %6294 = vmatprep.subr.bf16.mxu0 0
        %6295 = vmatpush1.bf16.msra.mxu0 0
        %6296 = vmatprep.subr.bf16.mxu0 0
        %6297 = vmatpush1.bf16.msra.mxu0 0
        %6298 = vmatprep.subr.bf16.mxu0 0
        %6299 = vmatpush1.bf16.msra.mxu0 0
        %6300 = vmatprep.subr.bf16.mxu0 0
        %6301 = vmatpush1.bf16.msra.mxu0 0
        %6302 = vmatprep.subr.bf16.mxu0 0
        %6303 = vmatpush1.bf16.msra.mxu0 0
        %6304 = vmatprep.subr.bf16.mxu0 0
        %6305 = vmatpush1.bf16.msra.mxu0 0
        %6306 = vmatprep.subr.bf16.mxu0 0
        %6307 = vmatpush1.bf16.msra.mxu0 0
        %6308 = vmatprep.subr.bf16.mxu0 0
        %6309 = vmatpush1.bf16.msra.mxu0 0
        %6310 = vmatprep.subr.bf16.mxu0 0
        %6311 = vmatpush1.bf16.msra.mxu0 0
        %6312 = vmatprep.subr.bf16.mxu0 0
        %6313 = vmatpush1.bf16.msra.mxu0 0
        %6314 = vmatprep.subr.bf16.mxu0 0
        %6315 = vmatpush1.bf16.msra.mxu0 0
        %6316 = vmatprep.subr.bf16.mxu0 0
        %6317 = vmatpush1.bf16.msra.mxu0 0
        %6318 = vmatprep.subr.bf16.mxu0 0
        %6319 = vmatpush1.bf16.msra.mxu0 0
        %6320 = vmatprep.mubr.bf16.mxu0 0
        %6321 = vmatmul.mubr.bf16.gmra.mrb[0].mxu0 %v6277
        %v6322 = vpop.f32.mrb[0].mxu0
        %v6323 = vadd.f32 0.0, %v6322
        %v6324 = vpop.f32.mrb[0].mxu0
        %v6325 = vpop.f32.mrb[0].mxu0
        %v6326 = vadd.f32 0.0, %v6325
        %v6327 = vpop.f32.mrb[0].mxu0
        %6328 = vmatprep.mubr.bf16.mxu0 0
        %6329 = vmatmul.mubr.bf16.gmra.mrb[0].mxu0 %v6280
        %v6330 = vpop.f32.mrb[0].mxu0
        %v6331 = vadd.f32 0.0, %v6330
        %v6332 = vpop.f32.mrb[0].mxu0
        %v6333 = vpop.f32.mrb[0].mxu0
        %v6334 = vadd.f32 0.0, %v6333
        %v6335 = vpop.f32.mrb[0].mxu0
        %6336 = vmatprep.mubr.bf16.mxu0 0
        %6337 = vmatmul.mubr.bf16.gmra.mrb[0].mxu0 %v6283
        %v6338 = vpop.f32.mrb[0].mxu0
        %v6339 = vadd.f32 0.0, %v6338
        %v6340 = vpop.f32.mrb[0].mxu0
        %v6341 = vpop.f32.mrb[0].mxu0
        %v6342 = vadd.f32 0.0, %v6341
        %v6343 = vpop.f32.mrb[0].mxu0
        %6344 = vmatprep.mubr.bf16.mxu0 0
        %6345 = vmatmul.mubr.bf16.gmra.mrb[0].mxu0 %v6286
        %v6346 = vpop.f32.mrb[0].mxu0
        %v6347 = vadd.f32 0.0, %v6346
        %v6348 = vpop.f32.mrb[0].mxu0
        %v6349 = vpop.f32.mrb[0].mxu0
        %v6350 = vadd.f32 0.0, %v6349
        %v6351 = vpop.f32.mrb[0].mxu0
        %6352 = vdwg.mxu0
        %v6357 = vunpack.c.l.b16 %v6243
        %v6358 = vunpack.c.l.b16 %v6244
        %v6359 = vunpack.c.l.b16 %v6245
        %v6360 = vunpack.c.l.b16 %v6246
        %v6361 = vpack.c.b16 %v6358, %v6357
        %v6362 = vpack.c.b16 %v6360, %v6359
        %v6366 = vsel %vm6196, %v6239, 0
        %v6369 = vsel %vm6196, %v6240, 0
        %v6372 = vsel %vm6196, %v6241, 0
        %v6375 = vsel %vm6196, %v6242, 0
        %6377 = vmatprep.subr.bf16.mxu0 0
        %6378 = vmatpush1.bf16.msra.mxu0 %v6361
        %6379 = vmatprep.subr.bf16.mxu0 0
        %6380 = vmatpush1.bf16.msra.mxu0 %v6362
        %6381 = vmatprep.subr.bf16.mxu0 0
        %6382 = vmatpush1.bf16.msra.mxu0 0
        %6383 = vmatprep.subr.bf16.mxu0 0
        %6384 = vmatpush1.bf16.msra.mxu0 0
        %6385 = vmatprep.subr.bf16.mxu0 0
        %6386 = vmatpush1.bf16.msra.mxu0 0
        %6387 = vmatprep.subr.bf16.mxu0 0
        %6388 = vmatpush1.bf16.msra.mxu0 0
        %6389 = vmatprep.subr.bf16.mxu0 0
        %6390 = vmatpush1.bf16.msra.mxu0 0
        %6391 = vmatprep.subr.bf16.mxu0 0
        %6392 = vmatpush1.bf16.msra.mxu0 0
        %6393 = vmatprep.subr.bf16.mxu0 0
        %6394 = vmatpush1.bf16.msra.mxu0 0
        %6395 = vmatprep.subr.bf16.mxu0 0
        %6396 = vmatpush1.bf16.msra.mxu0 0
        %6397 = vmatprep.subr.bf16.mxu0 0
        %6398 = vmatpush1.bf16.msra.mxu0 0
        %6399 = vmatprep.subr.bf16.mxu0 0
        %6400 = vmatpush1.bf16.msra.mxu0 0
        %6401 = vmatprep.subr.bf16.mxu0 0
        %6402 = vmatpush1.bf16.msra.mxu0 0
        %6403 = vmatprep.subr.bf16.mxu0 0
        %6404 = vmatpush1.bf16.msra.mxu0 0
        %6405 = vmatprep.subr.bf16.mxu0 0
        %6406 = vmatpush1.bf16.msra.mxu0 0
        %6407 = vmatprep.subr.bf16.mxu0 0
        %6408 = vmatpush1.bf16.msra.mxu0 0
        %6409 = vmatprep.mubr.bf16.mxu0 0
        %6410 = vmatmul.mubr.bf16.gmra.mrb[0].mxu0 %v6366
        %v6411 = vpop.f32.mrb[0].mxu0
        %v6412 = vadd.f32 %v6323, %v6411
        %v6413 = vpop.f32.mrb[0].mxu0
        %v6414 = vpop.f32.mrb[0].mxu0
        %v6415 = vadd.f32 %v6326, %v6414
        %v6416 = vpop.f32.mrb[0].mxu0
        %6417 = vmatprep.mubr.bf16.mxu0 0
        %6418 = vmatmul.mubr.bf16.gmra.mrb[0].mxu0 %v6369
        %v6419 = vpop.f32.mrb[0].mxu0
        %v6420 = vadd.f32 %v6331, %v6419
        %v6421 = vpop.f32.mrb[0].mxu0
        %v6422 = vpop.f32.mrb[0].mxu0
        %v6423 = vadd.f32 %v6334, %v6422
        %v6424 = vpop.f32.mrb[0].mxu0
        %6425 = vmatprep.mubr.bf16.mxu0 0
        %6426 = vmatmul.mubr.bf16.gmra.mrb[0].mxu0 %v6372
        %v6427 = vpop.f32.mrb[0].mxu0
        %v6428 = vadd.f32 %v6339, %v6427
        %v6429 = vpop.f32.mrb[0].mxu0
        %v6430 = vpop.f32.mrb[0].mxu0
        %v6431 = vadd.f32 %v6342, %v6430
        %v6432 = vpop.f32.mrb[0].mxu0
        %6433 = vmatprep.mubr.bf16.mxu0 0
        %6434 = vmatmul.mubr.bf16.gmra.mrb[0].mxu0 %v6375
        %v6435 = vpop.f32.mrb[0].mxu0
        %v6436 = vadd.f32 %v6347, %v6435
        %v6437 = vpop.f32.mrb[0].mxu0
        %v6438 = vpop.f32.mrb[0].mxu0
        %v6439 = vadd.f32 %v6350, %v6438
        %v6440 = vpop.f32.mrb[0].mxu0
        %6441 = vdwg.mxu0
        %v6442 = vld [vmem:[#allocation2 + $0x2] sm:$0xff]
        %v6443 = vld [vmem:[#allocation2 + $0x12] sm:$0xff]
        %v6444 = vld [vmem:[#allocation2 + $0x22] sm:$0xff]
        %v6445 = vld [vmem:[#allocation2 + $0x32] sm:$0xff]
        %v6446 = vld [vmem:[#allocation2 + $0x42] sm:$0xff]
        %v6447 = vld [vmem:[#allocation2 + $0x52] sm:$0xff]
        %v6448 = vld [vmem:[#allocation2 + $0x62] sm:$0xff]
        %v6449 = vld [vmem:[#allocation2 + $0x72] sm:$0xff]
        %v6450 = vpack.c.bf16 %v6443, %v6442
        %v6451 = vpack.c.bf16 %v6445, %v6444
        %v6452 = vpack.c.bf16 %v6447, %v6446
        %v6453 = vpack.c.bf16 %v6449, %v6448
        %s6454 = scalar_lea.vmem %s3, 32
        %v6455 = vld [vmem:[%s6454] sm:$0xf]
        %v6456 = vld [vmem:[%s6454 + $0x4] sm:$0xf]
        %v6457 = vld [vmem:[%s6454 + $0x8] sm:$0xf]
        %v6458 = vld [vmem:[%s6454 + $0xc] sm:$0xf]
        %v6463 = vunpack.c.l.b16 %v6455
        %v6464 = vunpack.c.l.b16 %v6456
        %v6465 = vunpack.c.l.b16 %v6457
        %v6466 = vunpack.c.l.b16 %v6458
        %v6467 = vpack.c.b16 %v6464, %v6463
        %v6468 = vpack.c.b16 %v6466, %v6465
        %v6472 = vsel %vm6196, %v6450, 0
        %v6475 = vsel %vm6196, %v6451, 0
        %v6478 = vsel %vm6196, %v6452, 0
        %v6481 = vsel %vm6196, %v6453, 0
        %6483 = vmatprep.subr.bf16.mxu0 0
        %6484 = vmatpush1.bf16.msra.mxu0 %v6467
        %6485 = vmatprep.subr.bf16.mxu0 0
        %6486 = vmatpush1.bf16.msra.mxu0 %v6468
        %6487 = vmatprep.subr.bf16.mxu0 0
        %6488 = vmatpush1.bf16.msra.mxu0 0
        %6489 = vmatprep.subr.bf16.mxu0 0
        %6490 = vmatpush1.bf16.msra.mxu0 0
        %6491 = vmatprep.subr.bf16.mxu0 0
        %6492 = vmatpush1.bf16.msra.mxu0 0
        %6493 = vmatprep.subr.bf16.mxu0 0
        %6494 = vmatpush1.bf16.msra.mxu0 0
        %6495 = vmatprep.subr.bf16.mxu0 0
        %6496 = vmatpush1.bf16.msra.mxu0 0
        %6497 = vmatprep.subr.bf16.mxu0 0
        %6498 = vmatpush1.bf16.msra.mxu0 0
        %6499 = vmatprep.subr.bf16.mxu0 0
        %6500 = vmatpush1.bf16.msra.mxu0 0
        %6501 = vmatprep.subr.bf16.mxu0 0
        %6502 = vmatpush1.bf16.msra.mxu0 0
        %6503 = vmatprep.subr.bf16.mxu0 0
        %6504 = vmatpush1.bf16.msra.mxu0 0
        %6505 = vmatprep.subr.bf16.mxu0 0
        %6506 = vmatpush1.bf16.msra.mxu0 0
        %6507 = vmatprep.subr.bf16.mxu0 0
        %6508 = vmatpush1.bf16.msra.mxu0 0
        %6509 = vmatprep.subr.bf16.mxu0 0
        %6510 = vmatpush1.bf16.msra.mxu0 0
        %6511 = vmatprep.subr.bf16.mxu0 0
        %6512 = vmatpush1.bf16.msra.mxu0 0
        %6513 = vmatprep.subr.bf16.mxu0 0
        %6514 = vmatpush1.bf16.msra.mxu0 0
        %6515 = vmatprep.mubr.bf16.mxu0 0
        %6516 = vmatmul.mubr.bf16.gmra.mrb[0].mxu0 %v6472
        %v6517 = vpop.f32.mrb[0].mxu0
        %v6518 = vadd.f32 0.0, %v6517
        %v6519 = vpop.f32.mrb[0].mxu0
        %v6520 = vpop.f32.mrb[0].mxu0
        %v6521 = vadd.f32 0.0, %v6520
        %v6522 = vpop.f32.mrb[0].mxu0
        %6523 = vmatprep.mubr.bf16.mxu0 0
        %6524 = vmatmul.mubr.bf16.gmra.mrb[0].mxu0 %v6475
        %v6525 = vpop.f32.mrb[0].mxu0
        %v6526 = vadd.f32 0.0, %v6525
        %v6527 = vpop.f32.mrb[0].mxu0
        %v6528 = vpop.f32.mrb[0].mxu0
        %v6529 = vadd.f32 0.0, %v6528
        %v6530 = vpop.f32.mrb[0].mxu0
        %6531 = vmatprep.mubr.bf16.mxu0 0
        %6532 = vmatmul.mubr.bf16.gmra.mrb[0].mxu0 %v6478
        %v6533 = vpop.f32.mrb[0].mxu0
        %v6534 = vadd.f32 0.0, %v6533
        %v6535 = vpop.f32.mrb[0].mxu0
        %v6536 = vpop.f32.mrb[0].mxu0
        %v6537 = vadd.f32 0.0, %v6536
        %v6538 = vpop.f32.mrb[0].mxu0
        %6539 = vmatprep.mubr.bf16.mxu0 0
        %6540 = vmatmul.mubr.bf16.gmra.mrb[0].mxu0 %v6481
        %v6541 = vpop.f32.mrb[0].mxu0
        %v6542 = vadd.f32 0.0, %v6541
        %v6543 = vpop.f32.mrb[0].mxu0
        %v6544 = vpop.f32.mrb[0].mxu0
        %v6545 = vadd.f32 0.0, %v6544
        %v6546 = vpop.f32.mrb[0].mxu0
        %6547 = vdwg.mxu0
        %v6548 = vadd.f32 %v6412, %v6518
        %v6549 = vadd.f32 %v6415, %v6521
        %v6550 = vadd.f32 %v6420, %v6526
        %v6551 = vadd.f32 %v6423, %v6529
        %v6552 = vadd.f32 %v6428, %v6534
        %v6553 = vadd.f32 %v6431, %v6537
        %v6554 = vadd.f32 %v6436, %v6542
        %v6555 = vadd.f32 %v6439, %v6545
        %v6556 = vld [vmem:[#allocation2 + $0x3] sm:$0xff]
        %v6557 = vld [vmem:[#allocation2 + $0x13] sm:$0xff]
        %v6558 = vld [vmem:[#allocation2 + $0x23] sm:$0xff]
        %v6559 = vld [vmem:[#allocation2 + $0x33] sm:$0xff]
        %v6560 = vld [vmem:[#allocation2 + $0x43] sm:$0xff]
        %v6561 = vld [vmem:[#allocation2 + $0x53] sm:$0xff]
        %v6562 = vld [vmem:[#allocation2 + $0x63] sm:$0xff]
        %v6563 = vld [vmem:[#allocation2 + $0x73] sm:$0xff]
        %v6564 = vpack.c.bf16 %v6557, %v6556
        %v6565 = vpack.c.bf16 %v6559, %v6558
        %v6566 = vpack.c.bf16 %v6561, %v6560
        %v6567 = vpack.c.bf16 %v6563, %v6562
        %s6568 = scalar_lea.vmem %s3, 48
        %v6569 = vld [vmem:[%s6568] sm:$0xf]
        %v6570 = vld [vmem:[%s6568 + $0x4] sm:$0xf]
        %v6571 = vld [vmem:[%s6568 + $0x8] sm:$0xf]
        %v6572 = vld [vmem:[%s6568 + $0xc] sm:$0xf]
        %v6577 = vunpack.c.l.b16 %v6569
        %v6578 = vunpack.c.l.b16 %v6570
        %v6579 = vunpack.c.l.b16 %v6571
        %v6580 = vunpack.c.l.b16 %v6572
        %v6581 = vpack.c.b16 %v6578, %v6577
        %v6582 = vpack.c.b16 %v6580, %v6579
        %v6586 = vsel %vm6196, %v6564, 0
        %v6589 = vsel %vm6196, %v6565, 0
        %v6592 = vsel %vm6196, %v6566, 0
        %v6595 = vsel %vm6196, %v6567, 0
        %6597 = vmatprep.subr.bf16.mxu0 0
        %6598 = vmatpush1.bf16.msra.mxu0 %v6581
        %6599 = vmatprep.subr.bf16.mxu0 0
        %6600 = vmatpush1.bf16.msra.mxu0 %v6582
        %6601 = vmatprep.subr.bf16.mxu0 0
        %6602 = vmatpush1.bf16.msra.mxu0 0
        %6603 = vmatprep.subr.bf16.mxu0 0
        %6604 = vmatpush1.bf16.msra.mxu0 0
        %6605 = vmatprep.subr.bf16.mxu0 0
        %6606 = vmatpush1.bf16.msra.mxu0 0
        %6607 = vmatprep.subr.bf16.mxu0 0
        %6608 = vmatpush1.bf16.msra.mxu0 0
        %6609 = vmatprep.subr.bf16.mxu0 0
        %6610 = vmatpush1.bf16.msra.mxu0 0
        %6611 = vmatprep.subr.bf16.mxu0 0
        %6612 = vmatpush1.bf16.msra.mxu0 0
        %6613 = vmatprep.subr.bf16.mxu0 0
        %6614 = vmatpush1.bf16.msra.mxu0 0
        %6615 = vmatprep.subr.bf16.mxu0 0
        %6616 = vmatpush1.bf16.msra.mxu0 0
        %6617 = vmatprep.subr.bf16.mxu0 0
        %6618 = vmatpush1.bf16.msra.mxu0 0
        %6619 = vmatprep.subr.bf16.mxu0 0
        %6620 = vmatpush1.bf16.msra.mxu0 0
        %6621 = vmatprep.subr.bf16.mxu0 0
        %6622 = vmatpush1.bf16.msra.mxu0 0
        %6623 = vmatprep.subr.bf16.mxu0 0
        %6624 = vmatpush1.bf16.msra.mxu0 0
        %6625 = vmatprep.subr.bf16.mxu0 0
        %6626 = vmatpush1.bf16.msra.mxu0 0
        %6627 = vmatprep.subr.bf16.mxu0 0
        %6628 = vmatpush1.bf16.msra.mxu0 0
        %6629 = vmatprep.mubr.bf16.mxu0 0
        %6630 = vmatmul.mubr.bf16.gmra.mrb[0].mxu0 %v6586
        %v6631 = vpop.f32.mrb[0].mxu0
        %v6632 = vadd.f32 0.0, %v6631
        %v6633 = vpop.f32.mrb[0].mxu0
        %v6634 = vpop.f32.mrb[0].mxu0
        %v6635 = vadd.f32 0.0, %v6634
        %v6636 = vpop.f32.mrb[0].mxu0
        %6637 = vmatprep.mubr.bf16.mxu0 0
        %6638 = vmatmul.mubr.bf16.gmra.mrb[0].mxu0 %v6589
        %v6639 = vpop.f32.mrb[0].mxu0
        %v6640 = vadd.f32 0.0, %v6639
        %v6641 = vpop.f32.mrb[0].mxu0
        %v6642 = vpop.f32.mrb[0].mxu0
        %v6643 = vadd.f32 0.0, %v6642
        %v6644 = vpop.f32.mrb[0].mxu0
        %6645 = vmatprep.mubr.bf16.mxu0 0
        %6646 = vmatmul.mubr.bf16.gmra.mrb[0].mxu0 %v6592
        %v6647 = vpop.f32.mrb[0].mxu0
        %v6648 = vadd.f32 0.0, %v6647
        %v6649 = vpop.f32.mrb[0].mxu0
        %v6650 = vpop.f32.mrb[0].mxu0
        %v6651 = vadd.f32 0.0, %v6650
        %v6652 = vpop.f32.mrb[0].mxu0
        %6653 = vmatprep.mubr.bf16.mxu0 0
        %6654 = vmatmul.mubr.bf16.gmra.mrb[0].mxu0 %v6595
        %v6655 = vpop.f32.mrb[0].mxu0
        %v6656 = vadd.f32 0.0, %v6655
        %v6657 = vpop.f32.mrb[0].mxu0
        %v6658 = vpop.f32.mrb[0].mxu0
        %v6659 = vadd.f32 0.0, %v6658
        %v6660 = vpop.f32.mrb[0].mxu0
        %6661 = vdwg.mxu0
        %v6662 = vadd.f32 %v6548, %v6632
        %v6663 = vadd.f32 %v6549, %v6635
        %v6664 = vadd.f32 %v6550, %v6640
        %v6665 = vadd.f32 %v6551, %v6643
        %v6666 = vadd.f32 %v6552, %v6648
        %v6667 = vadd.f32 %v6553, %v6651
        %v6668 = vadd.f32 %v6554, %v6656
        %v6669 = vadd.f32 %v6555, %v6659
        %v6670 = vld [vmem:[#allocation2 + $0x4] sm:$0xff]
        %v6671 = vld [vmem:[#allocation2 + $0x14] sm:$0xff]
        %v6672 = vld [vmem:[#allocation2 + $0x24] sm:$0xff]
        %v6673 = vld [vmem:[#allocation2 + $0x34] sm:$0xff]
        %v6674 = vld [vmem:[#allocation2 + $0x44] sm:$0xff]
        %v6675 = vld [vmem:[#allocation2 + $0x54] sm:$0xff]
        %v6676 = vld [vmem:[#allocation2 + $0x64] sm:$0xff]
        %v6677 = vld [vmem:[#allocation2 + $0x74] sm:$0xff]
        %v6678 = vpack.c.bf16 %v6671, %v6670
        %v6679 = vpack.c.bf16 %v6673, %v6672
        %v6680 = vpack.c.bf16 %v6675, %v6674
        %v6681 = vpack.c.bf16 %v6677, %v6676
        %s6682 = scalar_lea.vmem %s3, 64
        %v6683 = vld [vmem:[%s6682] sm:$0xf]
        %v6684 = vld [vmem:[%s6682 + $0x4] sm:$0xf]
        %v6685 = vld [vmem:[%s6682 + $0x8] sm:$0xf]
        %v6686 = vld [vmem:[%s6682 + $0xc] sm:$0xf]
        %v6691 = vunpack.c.l.b16 %v6683
        %v6692 = vunpack.c.l.b16 %v6684
        %v6693 = vunpack.c.l.b16 %v6685
        %v6694 = vunpack.c.l.b16 %v6686
        %v6695 = vpack.c.b16 %v6692, %v6691
        %v6696 = vpack.c.b16 %v6694, %v6693
        %v6700 = vsel %vm6196, %v6678, 0
        %v6703 = vsel %vm6196, %v6679, 0
        %v6706 = vsel %vm6196, %v6680, 0
        %v6709 = vsel %vm6196, %v6681, 0
        %6711 = vmatprep.subr.bf16.mxu0 0
        %6712 = vmatpush1.bf16.msra.mxu0 %v6695
        %6713 = vmatprep.subr.bf16.mxu0 0
        %6714 = vmatpush1.bf16.msra.mxu0 %v6696
        %6715 = vmatprep.subr.bf16.mxu0 0
        %6716 = vmatpush1.bf16.msra.mxu0 0
        %6717 = vmatprep.subr.bf16.mxu0 0
        %6718 = vmatpush1.bf16.msra.mxu0 0
        %6719 = vmatprep.subr.bf16.mxu0 0
        %6720 = vmatpush1.bf16.msra.mxu0 0
        %6721 = vmatprep.subr.bf16.mxu0 0
        %6722 = vmatpush1.bf16.msra.mxu0 0
        %6723 = vmatprep.subr.bf16.mxu0 0
        %6724 = vmatpush1.bf16.msra.mxu0 0
        %6725 = vmatprep.subr.bf16.mxu0 0
        %6726 = vmatpush1.bf16.msra.mxu0 0
        %6727 = vmatprep.subr.bf16.mxu0 0
        %6728 = vmatpush1.bf16.msra.mxu0 0
        %6729 = vmatprep.subr.bf16.mxu0 0
        %6730 = vmatpush1.bf16.msra.mxu0 0
        %6731 = vmatprep.subr.bf16.mxu0 0
        %6732 = vmatpush1.bf16.msra.mxu0 0
        %6733 = vmatprep.subr.bf16.mxu0 0
        %6734 = vmatpush1.bf16.msra.mxu0 0
        %6735 = vmatprep.subr.bf16.mxu0 0
        %6736 = vmatpush1.bf16.msra.mxu0 0
        %6737 = vmatprep.subr.bf16.mxu0 0
        %6738 = vmatpush1.bf16.msra.mxu0 0
        %6739 = vmatprep.subr.bf16.mxu0 0
        %6740 = vmatpush1.bf16.msra.mxu0 0
        %6741 = vmatprep.subr.bf16.mxu0 0
        %6742 = vmatpush1.bf16.msra.mxu0 0
        %6743 = vmatprep.mubr.bf16.mxu0 0
        %6744 = vmatmul.mubr.bf16.gmra.mrb[0].mxu0 %v6700
        %v6745 = vpop.f32.mrb[0].mxu0
        %v6746 = vadd.f32 0.0, %v6745
        %v6747 = vpop.f32.mrb[0].mxu0
        %v6748 = vpop.f32.mrb[0].mxu0
        %v6749 = vadd.f32 0.0, %v6748
        %v6750 = vpop.f32.mrb[0].mxu0
        %6751 = vmatprep.mubr.bf16.mxu0 0
        %6752 = vmatmul.mubr.bf16.gmra.mrb[0].mxu0 %v6703
        %v6753 = vpop.f32.mrb[0].mxu0
        %v6754 = vadd.f32 0.0, %v6753
        %v6755 = vpop.f32.mrb[0].mxu0
        %v6756 = vpop.f32.mrb[0].mxu0
        %v6757 = vadd.f32 0.0, %v6756
        %v6758 = vpop.f32.mrb[0].mxu0
        %6759 = vmatprep.mubr.bf16.mxu0 0
        %6760 = vmatmul.mubr.bf16.gmra.mrb[0].mxu0 %v6706
        %v6761 = vpop.f32.mrb[0].mxu0
        %v6762 = vadd.f32 0.0, %v6761
        %v6763 = vpop.f32.mrb[0].mxu0
        %v6764 = vpop.f32.mrb[0].mxu0
        %v6765 = vadd.f32 0.0, %v6764
        %v6766 = vpop.f32.mrb[0].mxu0
        %6767 = vmatprep.mubr.bf16.mxu0 0
        %6768 = vmatmul.mubr.bf16.gmra.mrb[0].mxu0 %v6709
        %v6769 = vpop.f32.mrb[0].mxu0
        %v6770 = vadd.f32 0.0, %v6769
        %v6771 = vpop.f32.mrb[0].mxu0
        %v6772 = vpop.f32.mrb[0].mxu0
        %v6773 = vadd.f32 0.0, %v6772
        %v6774 = vpop.f32.mrb[0].mxu0
        %6775 = vdwg.mxu0
        %v6776 = vadd.f32 %v6662, %v6746
        %v6777 = vadd.f32 %v6663, %v6749
        %v6778 = vadd.f32 %v6664, %v6754
        %v6779 = vadd.f32 %v6665, %v6757
        %v6780 = vadd.f32 %v6666, %v6762
        %v6781 = vadd.f32 %v6667, %v6765
        %v6782 = vadd.f32 %v6668, %v6770
        %v6783 = vadd.f32 %v6669, %v6773
        %s6784 = scalar_lea.vmem [#allocation2], 16
        %v6785 = vld [vmem:[%s6784] sm:$0xff]
        %v6786 = vld [vmem:[%s6784 + $0x10] sm:$0xff]
        %v6787 = vld [vmem:[%s6784 + $0x20] sm:$0xff]
        %v6788 = vld [vmem:[%s6784 + $0x30] sm:$0xff]
        %v6789 = vld [vmem:[%s6784 + $0x40] sm:$0xff]
        %v6790 = vld [vmem:[%s6784 + $0x50] sm:$0xff]
        %v6791 = vld [vmem:[%s6784 + $0x60] sm:$0xff]
        %v6792 = vld [vmem:[%s6784 + $0x70] sm:$0xff]
        %v6793 = vpack.c.bf16 %v6786, %v6785
        %v6794 = vpack.c.bf16 %v6788, %v6787
        %v6795 = vpack.c.bf16 %v6790, %v6789
        %v6796 = vpack.c.bf16 %v6792, %v6791
        %s6797 = scalar_lea.vmem %s3, 80
        %v6798 = vld [vmem:[%s6797] sm:$0xf]
        %v6799 = vld [vmem:[%s6797 + $0x4] sm:$0xf]
        %v6800 = vld [vmem:[%s6797 + $0x8] sm:$0xf]
        %v6801 = vld [vmem:[%s6797 + $0xc] sm:$0xf]
        %v6806 = vunpack.c.l.b16 %v6798
        %v6807 = vunpack.c.l.b16 %v6799
        %v6808 = vunpack.c.l.b16 %v6800
        %v6809 = vunpack.c.l.b16 %v6801
        %v6810 = vpack.c.b16 %v6807, %v6806
        %v6811 = vpack.c.b16 %v6809, %v6808
        %v6815 = vsel %vm6196, %v6793, 0
        %v6818 = vsel %vm6196, %v6794, 0
        %v6821 = vsel %vm6196, %v6795, 0
        %v6824 = vsel %vm6196, %v6796, 0
        %6826 = vmatprep.subr.bf16.mxu0 0
        %6827 = vmatpush1.bf16.msra.mxu0 %v6810
        %6828 = vmatprep.subr.bf16.mxu0 0
        %6829 = vmatpush1.bf16.msra.mxu0 %v6811
        %6830 = vmatprep.subr.bf16.mxu0 0
        %6831 = vmatpush1.bf16.msra.mxu0 0
        %6832 = vmatprep.subr.bf16.mxu0 0
        %6833 = vmatpush1.bf16.msra.mxu0 0
        %6834 = vmatprep.subr.bf16.mxu0 0
        %6835 = vmatpush1.bf16.msra.mxu0 0
        %6836 = vmatprep.subr.bf16.mxu0 0
        %6837 = vmatpush1.bf16.msra.mxu0 0
        %6838 = vmatprep.subr.bf16.mxu0 0
        %6839 = vmatpush1.bf16.msra.mxu0 0
        %6840 = vmatprep.subr.bf16.mxu0 0
        %6841 = vmatpush1.bf16.msra.mxu0 0
        %6842 = vmatprep.subr.bf16.mxu0 0
        %6843 = vmatpush1.bf16.msra.mxu0 0
        %6844 = vmatprep.subr.bf16.mxu0 0
        %6845 = vmatpush1.bf16.msra.mxu0 0
        %6846 = vmatprep.subr.bf16.mxu0 0
        %6847 = vmatpush1.bf16.msra.mxu0 0
        %6848 = vmatprep.subr.bf16.mxu0 0
        %6849 = vmatpush1.bf16.msra.mxu0 0
        %6850 = vmatprep.subr.bf16.mxu0 0
        %6851 = vmatpush1.bf16.msra.mxu0 0
        %6852 = vmatprep.subr.bf16.mxu0 0
        %6853 = vmatpush1.bf16.msra.mxu0 0
        %6854 = vmatprep.subr.bf16.mxu0 0
        %6855 = vmatpush1.bf16.msra.mxu0 0
        %6856 = vmatprep.subr.bf16.mxu0 0
        %6857 = vmatpush1.bf16.msra.mxu0 0
        %6858 = vmatprep.mubr.bf16.mxu0 0
        %6859 = vmatmul.mubr.bf16.gmra.mrb[0].mxu0 %v6815
        %v6860 = vpop.f32.mrb[0].mxu0
        %v6861 = vadd.f32 0.0, %v6860
        %v6862 = vpop.f32.mrb[0].mxu0
        %v6863 = vpop.f32.mrb[0].mxu0
        %v6864 = vadd.f32 0.0, %v6863
        %v6865 = vpop.f32.mrb[0].mxu0
        %6866 = vmatprep.mubr.bf16.mxu0 0
        %6867 = vmatmul.mubr.bf16.gmra.mrb[0].mxu0 %v6818
        %v6868 = vpop.f32.mrb[0].mxu0
        %v6869 = vadd.f32 0.0, %v6868
        %v6870 = vpop.f32.mrb[0].mxu0
        %v6871 = vpop.f32.mrb[0].mxu0
        %v6872 = vadd.f32 0.0, %v6871
        %v6873 = vpop.f32.mrb[0].mxu0
        %6874 = vmatprep.mubr.bf16.mxu0 0
        %6875 = vmatmul.mubr.bf16.gmra.mrb[0].mxu0 %v6821
        %v6876 = vpop.f32.mrb[0].mxu0
        %v6877 = vadd.f32 0.0, %v6876
        %v6878 = vpop.f32.mrb[0].mxu0
        %v6879 = vpop.f32.mrb[0].mxu0
        %v6880 = vadd.f32 0.0, %v6879
        %v6881 = vpop.f32.mrb[0].mxu0
        %6882 = vmatprep.mubr.bf16.mxu0 0
        %6883 = vmatmul.mubr.bf16.gmra.mrb[0].mxu0 %v6824
        %v6884 = vpop.f32.mrb[0].mxu0
        %v6885 = vadd.f32 0.0, %v6884
        %v6886 = vpop.f32.mrb[0].mxu0
        %v6887 = vpop.f32.mrb[0].mxu0
        %v6888 = vadd.f32 0.0, %v6887
        %v6889 = vpop.f32.mrb[0].mxu0
        %6890 = vdwg.mxu0
        %v6891 = vadd.f32 %v6776, %v6861
        %v6892 = vadd.f32 %v6777, %v6864
        %v6893 = vadd.f32 %v6778, %v6869
        %v6894 = vadd.f32 %v6779, %v6872
        %v6895 = vadd.f32 %v6780, %v6877
        %v6896 = vadd.f32 %v6781, %v6880
        %v6897 = vadd.f32 %v6782, %v6885
        %v6898 = vadd.f32 %v6783, %v6888
        %v6899 = vld [vmem:[%s6784 + $0x1] sm:$0xff]
        %v6900 = vld [vmem:[%s6784 + $0x11] sm:$0xff]
        %v6901 = vld [vmem:[%s6784 + $0x21] sm:$0xff]
        %v6902 = vld [vmem:[%s6784 + $0x31] sm:$0xff]
        %v6903 = vld [vmem:[%s6784 + $0x41] sm:$0xff]
        %v6904 = vld [vmem:[%s6784 + $0x51] sm:$0xff]
        %v6905 = vld [vmem:[%s6784 + $0x61] sm:$0xff]
        %v6906 = vld [vmem:[%s6784 + $0x71] sm:$0xff]
        %v6907 = vpack.c.bf16 %v6900, %v6899
        %v6908 = vpack.c.bf16 %v6902, %v6901
        %v6909 = vpack.c.bf16 %v6904, %v6903
        %v6910 = vpack.c.bf16 %v6906, %v6905
        %s6911 = scalar_lea.vmem %s3, 96
        %v6912 = vld [vmem:[%s6911] sm:$0xf]
        %v6913 = vld [vmem:[%s6911 + $0x4] sm:$0xf]
        %v6914 = vld [vmem:[%s6911 + $0x8] sm:$0xf]
        %v6915 = vld [vmem:[%s6911 + $0xc] sm:$0xf]
        %v6920 = vunpack.c.l.b16 %v6912
        %v6921 = vunpack.c.l.b16 %v6913
        %v6922 = vunpack.c.l.b16 %v6914
        %v6923 = vunpack.c.l.b16 %v6915
        %v6924 = vpack.c.b16 %v6921, %v6920
        %v6925 = vpack.c.b16 %v6923, %v6922
        %v6929 = vsel %vm6196, %v6907, 0
        %v6932 = vsel %vm6196, %v6908, 0
        %v6935 = vsel %vm6196, %v6909, 0
        %v6938 = vsel %vm6196, %v6910, 0
        %6940 = vmatprep.subr.bf16.mxu0 0
        %6941 = vmatpush1.bf16.msra.mxu0 %v6924
        %6942 = vmatprep.subr.bf16.mxu0 0
        %6943 = vmatpush1.bf16.msra.mxu0 %v6925
        %6944 = vmatprep.subr.bf16.mxu0 0
        %6945 = vmatpush1.bf16.msra.mxu0 0
        %6946 = vmatprep.subr.bf16.mxu0 0
        %6947 = vmatpush1.bf16.msra.mxu0 0
        %6948 = vmatprep.subr.bf16.mxu0 0
        %6949 = vmatpush1.bf16.msra.mxu0 0
        %6950 = vmatprep.subr.bf16.mxu0 0
        %6951 = vmatpush1.bf16.msra.mxu0 0
        %6952 = vmatprep.subr.bf16.mxu0 0
        %6953 = vmatpush1.bf16.msra.mxu0 0
        %6954 = vmatprep.subr.bf16.mxu0 0
        %6955 = vmatpush1.bf16.msra.mxu0 0
        %6956 = vmatprep.subr.bf16.mxu0 0
        %6957 = vmatpush1.bf16.msra.mxu0 0
        %6958 = vmatprep.subr.bf16.mxu0 0
        %6959 = vmatpush1.bf16.msra.mxu0 0
        %6960 = vmatprep.subr.bf16.mxu0 0
        %6961 = vmatpush1.bf16.msra.mxu0 0
        %6962 = vmatprep.subr.bf16.mxu0 0
        %6963 = vmatpush1.bf16.msra.mxu0 0
        %6964 = vmatprep.subr.bf16.mxu0 0
        %6965 = vmatpush1.bf16.msra.mxu0 0
        %6966 = vmatprep.subr.bf16.mxu0 0
        %6967 = vmatpush1.bf16.msra.mxu0 0
        %6968 = vmatprep.subr.bf16.mxu0 0
        %6969 = vmatpush1.bf16.msra.mxu0 0
        %6970 = vmatprep.subr.bf16.mxu0 0
        %6971 = vmatpush1.bf16.msra.mxu0 0
        %6972 = vmatprep.mubr.bf16.mxu0 0
        %6973 = vmatmul.mubr.bf16.gmra.mrb[0].mxu0 %v6929
        %v6974 = vpop.f32.mrb[0].mxu0
        %v6975 = vadd.f32 0.0, %v6974
        %v6976 = vpop.f32.mrb[0].mxu0
        %v6977 = vpop.f32.mrb[0].mxu0
        %v6978 = vadd.f32 0.0, %v6977
        %v6979 = vpop.f32.mrb[0].mxu0
        %6980 = vmatprep.mubr.bf16.mxu0 0
        %6981 = vmatmul.mubr.bf16.gmra.mrb[0].mxu0 %v6932
        %v6982 = vpop.f32.mrb[0].mxu0
        %v6983 = vadd.f32 0.0, %v6982
        %v6984 = vpop.f32.mrb[0].mxu0
        %v6985 = vpop.f32.mrb[0].mxu0
        %v6986 = vadd.f32 0.0, %v6985
        %v6987 = vpop.f32.mrb[0].mxu0
        %6988 = vmatprep.mubr.bf16.mxu0 0
        %6989 = vmatmul.mubr.bf16.gmra.mrb[0].mxu0 %v6935
        %v6990 = vpop.f32.mrb[0].mxu0
        %v6991 = vadd.f32 0.0, %v6990
        %v6992 = vpop.f32.mrb[0].mxu0
        %v6993 = vpop.f32.mrb[0].mxu0
        %v6994 = vadd.f32 0.0, %v6993
        %v6995 = vpop.f32.mrb[0].mxu0
        %6996 = vmatprep.mubr.bf16.mxu0 0
        %6997 = vmatmul.mubr.bf16.gmra.mrb[0].mxu0 %v6938
        %v6998 = vpop.f32.mrb[0].mxu0
        %v6999 = vadd.f32 0.0, %v6998
        %v7000 = vpop.f32.mrb[0].mxu0
        %v7001 = vpop.f32.mrb[0].mxu0
        %v7002 = vadd.f32 0.0, %v7001
        %v7003 = vpop.f32.mrb[0].mxu0
        %7004 = vdwg.mxu0
        %v7005 = vadd.f32 %v6891, %v6975
        %v7006 = vadd.f32 %v6892, %v6978
        %v7007 = vadd.f32 %v6893, %v6983
        %v7008 = vadd.f32 %v6894, %v6986
        %v7009 = vadd.f32 %v6895, %v6991
        %v7010 = vadd.f32 %v6896, %v6994
        %v7011 = vadd.f32 %v6897, %v6999
        %v7012 = vadd.f32 %v6898, %v7002
        %v7013 = vld [vmem:[%s6784 + $0x2] sm:$0xff]
        %v7014 = vld [vmem:[%s6784 + $0x12] sm:$0xff]
        %v7015 = vld [vmem:[%s6784 + $0x22] sm:$0xff]
        %v7016 = vld [vmem:[%s6784 + $0x32] sm:$0xff]
        %v7017 = vld [vmem:[%s6784 + $0x42] sm:$0xff]
        %v7018 = vld [vmem:[%s6784 + $0x52] sm:$0xff]
        %v7019 = vld [vmem:[%s6784 + $0x62] sm:$0xff]
        %v7020 = vld [vmem:[%s6784 + $0x72] sm:$0xff]
        %v7021 = vpack.c.bf16 %v7014, %v7013
        %v7022 = vpack.c.bf16 %v7016, %v7015
        %v7023 = vpack.c.bf16 %v7018, %v7017
        %v7024 = vpack.c.bf16 %v7020, %v7019
        %s7025 = scalar_lea.vmem %s3, 112
        %v7026 = vld [vmem:[%s7025] sm:$0xf]
        %v7027 = vld [vmem:[%s7025 + $0x4] sm:$0xf]
        %v7028 = vld [vmem:[%s7025 + $0x8] sm:$0xf]
        %v7029 = vld [vmem:[%s7025 + $0xc] sm:$0xf]
        %v7034 = vunpack.c.l.b16 %v7026
        %v7035 = vunpack.c.l.b16 %v7027
        %v7036 = vunpack.c.l.b16 %v7028
        %v7037 = vunpack.c.l.b16 %v7029
        %v7038 = vpack.c.b16 %v7035, %v7034
        %v7039 = vpack.c.b16 %v7037, %v7036
        %v7043 = vsel %vm6196, %v7021, 0
        %v7046 = vsel %vm6196, %v7022, 0
        %v7049 = vsel %vm6196, %v7023, 0
        %v7052 = vsel %vm6196, %v7024, 0
        %7054 = vmatprep.subr.bf16.mxu0 0
        %7055 = vmatpush1.bf16.msra.mxu0 %v7038
        %7056 = vmatprep.subr.bf16.mxu0 0
        %7057 = vmatpush1.bf16.msra.mxu0 %v7039
        %7058 = vmatprep.subr.bf16.mxu0 0
        %7059 = vmatpush1.bf16.msra.mxu0 0
        %7060 = vmatprep.subr.bf16.mxu0 0
        %7061 = vmatpush1.bf16.msra.mxu0 0
        %7062 = vmatprep.subr.bf16.mxu0 0
        %7063 = vmatpush1.bf16.msra.mxu0 0
        %7064 = vmatprep.subr.bf16.mxu0 0
        %7065 = vmatpush1.bf16.msra.mxu0 0
        %7066 = vmatprep.subr.bf16.mxu0 0
        %7067 = vmatpush1.bf16.msra.mxu0 0
        %7068 = vmatprep.subr.bf16.mxu0 0
        %7069 = vmatpush1.bf16.msra.mxu0 0
        %7070 = vmatprep.subr.bf16.mxu0 0
        %7071 = vmatpush1.bf16.msra.mxu0 0
        %7072 = vmatprep.subr.bf16.mxu0 0
        %7073 = vmatpush1.bf16.msra.mxu0 0
        %7074 = vmatprep.subr.bf16.mxu0 0
        %7075 = vmatpush1.bf16.msra.mxu0 0
        %7076 = vmatprep.subr.bf16.mxu0 0
        %7077 = vmatpush1.bf16.msra.mxu0 0
        %7078 = vmatprep.subr.bf16.mxu0 0
        %7079 = vmatpush1.bf16.msra.mxu0 0
        %7080 = vmatprep.subr.bf16.mxu0 0
        %7081 = vmatpush1.bf16.msra.mxu0 0
        %7082 = vmatprep.subr.bf16.mxu0 0
        %7083 = vmatpush1.bf16.msra.mxu0 0
        %7084 = vmatprep.subr.bf16.mxu0 0
        %7085 = vmatpush1.bf16.msra.mxu0 0
        %7086 = vmatprep.mubr.bf16.mxu0 0
        %7087 = vmatmul.mubr.bf16.gmra.mrb[0].mxu0 %v7043
        %v7088 = vpop.f32.mrb[0].mxu0
        %v7089 = vadd.f32 0.0, %v7088
        %v7090 = vpop.f32.mrb[0].mxu0
        %v7091 = vpop.f32.mrb[0].mxu0
        %v7092 = vadd.f32 0.0, %v7091
        %v7093 = vpop.f32.mrb[0].mxu0
        %7094 = vmatprep.mubr.bf16.mxu0 0
        %7095 = vmatmul.mubr.bf16.gmra.mrb[0].mxu0 %v7046
        %v7096 = vpop.f32.mrb[0].mxu0
        %v7097 = vadd.f32 0.0, %v7096
        %v7098 = vpop.f32.mrb[0].mxu0
        %v7099 = vpop.f32.mrb[0].mxu0
        %v7100 = vadd.f32 0.0, %v7099
        %v7101 = vpop.f32.mrb[0].mxu0
        %7102 = vmatprep.mubr.bf16.mxu0 0
        %7103 = vmatmul.mubr.bf16.gmra.mrb[0].mxu0 %v7049
        %v7104 = vpop.f32.mrb[0].mxu0
        %v7105 = vadd.f32 0.0, %v7104
        %v7106 = vpop.f32.mrb[0].mxu0
        %v7107 = vpop.f32.mrb[0].mxu0
        %v7108 = vadd.f32 0.0, %v7107
        %v7109 = vpop.f32.mrb[0].mxu0
        %7110 = vmatprep.mubr.bf16.mxu0 0
        %7111 = vmatmul.mubr.bf16.gmra.mrb[0].mxu0 %v7052
        %v7112 = vpop.f32.mrb[0].mxu0
        %v7113 = vadd.f32 0.0, %v7112
        %v7114 = vpop.f32.mrb[0].mxu0
        %v7115 = vpop.f32.mrb[0].mxu0
        %v7116 = vadd.f32 0.0, %v7115
        %v7117 = vpop.f32.mrb[0].mxu0
        %7118 = vdwg.mxu0
        %v7119 = vadd.f32 %v7005, %v7089
        %v7120 = vadd.f32 %v7006, %v7092
        %v7121 = vadd.f32 %v7007, %v7097
        %v7122 = vadd.f32 %v7008, %v7100
        %v7123 = vadd.f32 %v7009, %v7105
        %v7124 = vadd.f32 %v7010, %v7108
        %v7125 = vadd.f32 %v7011, %v7113
        %v7126 = vadd.f32 %v7012, %v7116
        %v7127 = vld [vmem:[%s6784 + $0x3] sm:$0xff]
        %v7128 = vld [vmem:[%s6784 + $0x13] sm:$0xff]
        %v7129 = vld [vmem:[%s6784 + $0x23] sm:$0xff]
        %v7130 = vld [vmem:[%s6784 + $0x33] sm:$0xff]
        %v7131 = vld [vmem:[%s6784 + $0x43] sm:$0xff]
        %v7132 = vld [vmem:[%s6784 + $0x53] sm:$0xff]
        %v7133 = vld [vmem:[%s6784 + $0x63] sm:$0xff]
        %v7134 = vld [vmem:[%s6784 + $0x73] sm:$0xff]
        %v7135 = vpack.c.bf16 %v7128, %v7127
        %v7136 = vpack.c.bf16 %v7130, %v7129
        %v7137 = vpack.c.bf16 %v7132, %v7131
        %v7138 = vpack.c.bf16 %v7134, %v7133
        %s7139 = scalar_lea.vmem %s3, 128
        %v7140 = vld [vmem:[%s7139] sm:$0xf]
        %v7141 = vld [vmem:[%s7139 + $0x4] sm:$0xf]
        %v7142 = vld [vmem:[%s7139 + $0x8] sm:$0xf]
        %v7143 = vld [vmem:[%s7139 + $0xc] sm:$0xf]
        %v7148 = vunpack.c.l.b16 %v7140
        %v7149 = vunpack.c.l.b16 %v7141
        %v7150 = vunpack.c.l.b16 %v7142
        %v7151 = vunpack.c.l.b16 %v7143
        %v7152 = vpack.c.b16 %v7149, %v7148
        %v7153 = vpack.c.b16 %v7151, %v7150
        %v7157 = vsel %vm6196, %v7135, 0
        %v7160 = vsel %vm6196, %v7136, 0
        %v7163 = vsel %vm6196, %v7137, 0
        %v7166 = vsel %vm6196, %v7138, 0
        %7168 = vmatprep.subr.bf16.mxu0 0
        %7169 = vmatpush1.bf16.msra.mxu0 %v7152
        %7170 = vmatprep.subr.bf16.mxu0 0
        %7171 = vmatpush1.bf16.msra.mxu0 %v7153
        %7172 = vmatprep.subr.bf16.mxu0 0
        %7173 = vmatpush1.bf16.msra.mxu0 0
        %7174 = vmatprep.subr.bf16.mxu0 0
        %7175 = vmatpush1.bf16.msra.mxu0 0
        %7176 = vmatprep.subr.bf16.mxu0 0
        %7177 = vmatpush1.bf16.msra.mxu0 0
        %7178 = vmatprep.subr.bf16.mxu0 0
        %7179 = vmatpush1.bf16.msra.mxu0 0
        %7180 = vmatprep.subr.bf16.mxu0 0
        %7181 = vmatpush1.bf16.msra.mxu0 0
        %7182 = vmatprep.subr.bf16.mxu0 0
        %7183 = vmatpush1.bf16.msra.mxu0 0
        %7184 = vmatprep.subr.bf16.mxu0 0
        %7185 = vmatpush1.bf16.msra.mxu0 0
        %7186 = vmatprep.subr.bf16.mxu0 0
        %7187 = vmatpush1.bf16.msra.mxu0 0
        %7188 = vmatprep.subr.bf16.mxu0 0
        %7189 = vmatpush1.bf16.msra.mxu0 0
        %7190 = vmatprep.subr.bf16.mxu0 0
        %7191 = vmatpush1.bf16.msra.mxu0 0
        %7192 = vmatprep.subr.bf16.mxu0 0
        %7193 = vmatpush1.bf16.msra.mxu0 0
        %7194 = vmatprep.subr.bf16.mxu0 0
        %7195 = vmatpush1.bf16.msra.mxu0 0
        %7196 = vmatprep.subr.bf16.mxu0 0
        %7197 = vmatpush1.bf16.msra.mxu0 0
        %7198 = vmatprep.subr.bf16.mxu0 0
        %7199 = vmatpush1.bf16.msra.mxu0 0
        %7200 = vmatprep.mubr.bf16.mxu0 0
        %7201 = vmatmul.mubr.bf16.gmra.mrb[0].mxu0 %v7157
        %v7202 = vpop.f32.mrb[0].mxu0
        %v7203 = vadd.f32 0.0, %v7202
        %v7204 = vpop.f32.mrb[0].mxu0
        %v7205 = vpop.f32.mrb[0].mxu0
        %v7206 = vadd.f32 0.0, %v7205
        %v7207 = vpop.f32.mrb[0].mxu0
        %7208 = vmatprep.mubr.bf16.mxu0 0
        %7209 = vmatmul.mubr.bf16.gmra.mrb[0].mxu0 %v7160
        %v7210 = vpop.f32.mrb[0].mxu0
        %v7211 = vadd.f32 0.0, %v7210
        %v7212 = vpop.f32.mrb[0].mxu0
        %v7213 = vpop.f32.mrb[0].mxu0
        %v7214 = vadd.f32 0.0, %v7213
        %v7215 = vpop.f32.mrb[0].mxu0
        %7216 = vmatprep.mubr.bf16.mxu0 0
        %7217 = vmatmul.mubr.bf16.gmra.mrb[0].mxu0 %v7163
        %v7218 = vpop.f32.mrb[0].mxu0
        %v7219 = vadd.f32 0.0, %v7218
        %v7220 = vpop.f32.mrb[0].mxu0
        %v7221 = vpop.f32.mrb[0].mxu0
        %v7222 = vadd.f32 0.0, %v7221
        %v7223 = vpop.f32.mrb[0].mxu0
        %7224 = vmatprep.mubr.bf16.mxu0 0
        %7225 = vmatmul.mubr.bf16.gmra.mrb[0].mxu0 %v7166
        %v7226 = vpop.f32.mrb[0].mxu0
        %v7227 = vadd.f32 0.0, %v7226
        %v7228 = vpop.f32.mrb[0].mxu0
        %v7229 = vpop.f32.mrb[0].mxu0
        %v7230 = vadd.f32 0.0, %v7229
        %v7231 = vpop.f32.mrb[0].mxu0
        %7232 = vdwg.mxu0
        %v7233 = vadd.f32 %v7119, %v7203
        %v7234 = vadd.f32 %v7120, %v7206
        %v7235 = vadd.f32 %v7121, %v7211
        %v7236 = vadd.f32 %v7122, %v7214
        %v7237 = vadd.f32 %v7123, %v7219
        %v7238 = vadd.f32 %v7124, %v7222
        %v7239 = vadd.f32 %v7125, %v7227
        %v7240 = vadd.f32 %v7126, %v7230
        %v7241 = vld [vmem:[%s6784 + $0x4] sm:$0xff]
        %v7242 = vld [vmem:[%s6784 + $0x14] sm:$0xff]
        %v7243 = vld [vmem:[%s6784 + $0x24] sm:$0xff]
        %v7244 = vld [vmem:[%s6784 + $0x34] sm:$0xff]
        %v7245 = vld [vmem:[%s6784 + $0x44] sm:$0xff]
        %v7246 = vld [vmem:[%s6784 + $0x54] sm:$0xff]
        %v7247 = vld [vmem:[%s6784 + $0x64] sm:$0xff]
        %v7248 = vld [vmem:[%s6784 + $0x74] sm:$0xff]
        %v7249 = vpack.c.bf16 %v7242, %v7241
        %v7250 = vpack.c.bf16 %v7244, %v7243
        %v7251 = vpack.c.bf16 %v7246, %v7245
        %v7252 = vpack.c.bf16 %v7248, %v7247
        %s7253 = scalar_lea.vmem %s3, 144
        %v7254 = vld [vmem:[%s7253] sm:$0xf]
        %v7255 = vld [vmem:[%s7253 + $0x4] sm:$0xf]
        %v7256 = vld [vmem:[%s7253 + $0x8] sm:$0xf]
        %v7257 = vld [vmem:[%s7253 + $0xc] sm:$0xf]
        %v7262 = vunpack.c.l.b16 %v7254
        %v7263 = vunpack.c.l.b16 %v7255
        %v7264 = vunpack.c.l.b16 %v7256
        %v7265 = vunpack.c.l.b16 %v7257
        %v7266 = vpack.c.b16 %v7263, %v7262
        %v7267 = vpack.c.b16 %v7265, %v7264
        %v7271 = vsel %vm6196, %v7249, 0
        %v7274 = vsel %vm6196, %v7250, 0
        %v7277 = vsel %vm6196, %v7251, 0
        %v7280 = vsel %vm6196, %v7252, 0
        %7282 = vmatprep.subr.bf16.mxu0 0
        %7283 = vmatpush1.bf16.msra.mxu0 %v7266
        %7284 = vmatprep.subr.bf16.mxu0 0
        %7285 = vmatpush1.bf16.msra.mxu0 %v7267
        %7286 = vmatprep.subr.bf16.mxu0 0
        %7287 = vmatpush1.bf16.msra.mxu0 0
        %7288 = vmatprep.subr.bf16.mxu0 0
        %7289 = vmatpush1.bf16.msra.mxu0 0
        %7290 = vmatprep.subr.bf16.mxu0 0
        %7291 = vmatpush1.bf16.msra.mxu0 0
        %7292 = vmatprep.subr.bf16.mxu0 0
        %7293 = vmatpush1.bf16.msra.mxu0 0
        %7294 = vmatprep.subr.bf16.mxu0 0
        %7295 = vmatpush1.bf16.msra.mxu0 0
        %7296 = vmatprep.subr.bf16.mxu0 0
        %7297 = vmatpush1.bf16.msra.mxu0 0
        %7298 = vmatprep.subr.bf16.mxu0 0
        %7299 = vmatpush1.bf16.msra.mxu0 0
        %7300 = vmatprep.subr.bf16.mxu0 0
        %7301 = vmatpush1.bf16.msra.mxu0 0
        %7302 = vmatprep.subr.bf16.mxu0 0
        %7303 = vmatpush1.bf16.msra.mxu0 0
        %7304 = vmatprep.subr.bf16.mxu0 0
        %7305 = vmatpush1.bf16.msra.mxu0 0
        %7306 = vmatprep.subr.bf16.mxu0 0
        %7307 = vmatpush1.bf16.msra.mxu0 0
        %7308 = vmatprep.subr.bf16.mxu0 0
        %7309 = vmatpush1.bf16.msra.mxu0 0
        %7310 = vmatprep.subr.bf16.mxu0 0
        %7311 = vmatpush1.bf16.msra.mxu0 0
        %7312 = vmatprep.subr.bf16.mxu0 0
        %7313 = vmatpush1.bf16.msra.mxu0 0
        %7314 = vmatprep.mubr.bf16.mxu0 0
        %7315 = vmatmul.mubr.bf16.gmra.mrb[0].mxu0 %v7271
        %v7316 = vpop.f32.mrb[0].mxu0
        %v7317 = vadd.f32 0.0, %v7316
        %v7318 = vpop.f32.mrb[0].mxu0
        %v7319 = vpop.f32.mrb[0].mxu0
        %v7320 = vadd.f32 0.0, %v7319
        %v7321 = vpop.f32.mrb[0].mxu0
        %7322 = vmatprep.mubr.bf16.mxu0 0
        %7323 = vmatmul.mubr.bf16.gmra.mrb[0].mxu0 %v7274
        %v7324 = vpop.f32.mrb[0].mxu0
        %v7325 = vadd.f32 0.0, %v7324
        %v7326 = vpop.f32.mrb[0].mxu0
        %v7327 = vpop.f32.mrb[0].mxu0
        %v7328 = vadd.f32 0.0, %v7327
        %v7329 = vpop.f32.mrb[0].mxu0
        %7330 = vmatprep.mubr.bf16.mxu0 0
        %7331 = vmatmul.mubr.bf16.gmra.mrb[0].mxu0 %v7277
        %v7332 = vpop.f32.mrb[0].mxu0
        %v7333 = vadd.f32 0.0, %v7332
        %v7334 = vpop.f32.mrb[0].mxu0
        %v7335 = vpop.f32.mrb[0].mxu0
        %v7336 = vadd.f32 0.0, %v7335
        %v7337 = vpop.f32.mrb[0].mxu0
        %7338 = vmatprep.mubr.bf16.mxu0 0
        %7339 = vmatmul.mubr.bf16.gmra.mrb[0].mxu0 %v7280
        %v7340 = vpop.f32.mrb[0].mxu0
        %v7341 = vadd.f32 0.0, %v7340
        %v7342 = vpop.f32.mrb[0].mxu0
        %v7343 = vpop.f32.mrb[0].mxu0
        %v7344 = vadd.f32 0.0, %v7343
        %v7345 = vpop.f32.mrb[0].mxu0
        %7346 = vdwg.mxu0
        %v7347 = vadd.f32 %v7233, %v7317
        %v7348 = vadd.f32 %v7234, %v7320
        %v7349 = vadd.f32 %v7235, %v7325
        %v7350 = vadd.f32 %v7236, %v7328
        %v7351 = vadd.f32 %v7237, %v7333
        %v7352 = vadd.f32 %v7238, %v7336
        %v7353 = vadd.f32 %v7239, %v7341
        %v7354 = vadd.f32 %v7240, %v7344
        %v7355 = vld [vmem:[%s6222] sm:$0xff]
        %v7356 = vld [vmem:[%s6222 + $0x10] sm:$0xff]
        %v7357 = vld [vmem:[%s6222 + $0x20] sm:$0xff]
        %v7358 = vld [vmem:[%s6222 + $0x30] sm:$0xff]
        %v7359 = vld [vmem:[%s6222 + $0x40] sm:$0xff]
        %v7360 = vld [vmem:[%s6222 + $0x50] sm:$0xff]
        %v7361 = vld [vmem:[%s6222 + $0x60] sm:$0xff]
        %v7362 = vld [vmem:[%s6222 + $0x70] sm:$0xff]
        %v7363 = vpack.c.bf16 %v7356, %v7355
        %v7364 = vpack.c.bf16 %v7358, %v7357
        %v7365 = vpack.c.bf16 %v7360, %v7359
        %v7366 = vpack.c.bf16 %v7362, %v7361
        %s7367 = scalar_lea.vmem %s3, 160
        %v7368 = vld [vmem:[%s7367] sm:$0xf]
        %v7369 = vld [vmem:[%s7367 + $0x4] sm:$0xf]
        %v7370 = vld [vmem:[%s7367 + $0x8] sm:$0xf]
        %v7371 = vld [vmem:[%s7367 + $0xc] sm:$0xf]
        %v7376 = vunpack.c.l.b16 %v7368
        %v7377 = vunpack.c.l.b16 %v7369
        %v7378 = vunpack.c.l.b16 %v7370
        %v7379 = vunpack.c.l.b16 %v7371
        %v7380 = vpack.c.b16 %v7377, %v7376
        %v7381 = vpack.c.b16 %v7379, %v7378
        %v7385 = vsel %vm6196, %v7363, 0
        %v7388 = vsel %vm6196, %v7364, 0
        %v7391 = vsel %vm6196, %v7365, 0
        %v7394 = vsel %vm6196, %v7366, 0
        %7396 = vmatprep.subr.bf16.mxu0 0
        %7397 = vmatpush1.bf16.msra.mxu0 %v7380
        %7398 = vmatprep.subr.bf16.mxu0 0
        %7399 = vmatpush1.bf16.msra.mxu0 %v7381
        %7400 = vmatprep.subr.bf16.mxu0 0
        %7401 = vmatpush1.bf16.msra.mxu0 0
        %7402 = vmatprep.subr.bf16.mxu0 0
        %7403 = vmatpush1.bf16.msra.mxu0 0
        %7404 = vmatprep.subr.bf16.mxu0 0
        %7405 = vmatpush1.bf16.msra.mxu0 0
        %7406 = vmatprep.subr.bf16.mxu0 0
        %7407 = vmatpush1.bf16.msra.mxu0 0
        %7408 = vmatprep.subr.bf16.mxu0 0
        %7409 = vmatpush1.bf16.msra.mxu0 0
        %7410 = vmatprep.subr.bf16.mxu0 0
        %7411 = vmatpush1.bf16.msra.mxu0 0
        %7412 = vmatprep.subr.bf16.mxu0 0
        %7413 = vmatpush1.bf16.msra.mxu0 0
        %7414 = vmatprep.subr.bf16.mxu0 0
        %7415 = vmatpush1.bf16.msra.mxu0 0
        %7416 = vmatprep.subr.bf16.mxu0 0
        %7417 = vmatpush1.bf16.msra.mxu0 0
        %7418 = vmatprep.subr.bf16.mxu0 0
        %7419 = vmatpush1.bf16.msra.mxu0 0
        %7420 = vmatprep.subr.bf16.mxu0 0
        %7421 = vmatpush1.bf16.msra.mxu0 0
        %7422 = vmatprep.subr.bf16.mxu0 0
        %7423 = vmatpush1.bf16.msra.mxu0 0
        %7424 = vmatprep.subr.bf16.mxu0 0
        %7425 = vmatpush1.bf16.msra.mxu0 0
        %7426 = vmatprep.subr.bf16.mxu0 0
        %7427 = vmatpush1.bf16.msra.mxu0 0
        %7428 = vmatprep.mubr.bf16.mxu0 0
        %7429 = vmatmul.mubr.bf16.gmra.mrb[0].mxu0 %v7385
        %v7430 = vpop.f32.mrb[0].mxu0
        %v7431 = vadd.f32 0.0, %v7430
        %v7432 = vpop.f32.mrb[0].mxu0
        %v7433 = vpop.f32.mrb[0].mxu0
        %v7434 = vadd.f32 0.0, %v7433
        %v7435 = vpop.f32.mrb[0].mxu0
        %7436 = vmatprep.mubr.bf16.mxu0 0
        %7437 = vmatmul.mubr.bf16.gmra.mrb[0].mxu0 %v7388
        %v7438 = vpop.f32.mrb[0].mxu0
        %v7439 = vadd.f32 0.0, %v7438
        %v7440 = vpop.f32.mrb[0].mxu0
        %v7441 = vpop.f32.mrb[0].mxu0
        %v7442 = vadd.f32 0.0, %v7441
        %v7443 = vpop.f32.mrb[0].mxu0
        %7444 = vmatprep.mubr.bf16.mxu0 0
        %7445 = vmatmul.mubr.bf16.gmra.mrb[0].mxu0 %v7391
        %v7446 = vpop.f32.mrb[0].mxu0
        %v7447 = vadd.f32 0.0, %v7446
        %v7448 = vpop.f32.mrb[0].mxu0
        %v7449 = vpop.f32.mrb[0].mxu0
        %v7450 = vadd.f32 0.0, %v7449
        %v7451 = vpop.f32.mrb[0].mxu0
        %7452 = vmatprep.mubr.bf16.mxu0 0
        %7453 = vmatmul.mubr.bf16.gmra.mrb[0].mxu0 %v7394
        %v7454 = vpop.f32.mrb[0].mxu0
        %v7455 = vadd.f32 0.0, %v7454
        %v7456 = vpop.f32.mrb[0].mxu0
        %v7457 = vpop.f32.mrb[0].mxu0
        %v7458 = vadd.f32 0.0, %v7457
        %v7459 = vpop.f32.mrb[0].mxu0
        %7460 = vdwg.mxu0
        %v7461 = vadd.f32 %v7347, %v7431
        %v7462 = vadd.f32 %v7348, %v7434
        %v7463 = vadd.f32 %v7349, %v7439
        %v7464 = vadd.f32 %v7350, %v7442
        %v7465 = vadd.f32 %v7351, %v7447
        %v7466 = vadd.f32 %v7352, %v7450
        %v7467 = vadd.f32 %v7353, %v7455
        %v7468 = vadd.f32 %v7354, %v7458
        %v7469 = vld [vmem:[%s6222 + $0x1] sm:$0xff]
        %v7470 = vld [vmem:[%s6222 + $0x11] sm:$0xff]
        %v7471 = vld [vmem:[%s6222 + $0x21] sm:$0xff]
        %v7472 = vld [vmem:[%s6222 + $0x31] sm:$0xff]
        %v7473 = vld [vmem:[%s6222 + $0x41] sm:$0xff]
        %v7474 = vld [vmem:[%s6222 + $0x51] sm:$0xff]
        %v7475 = vld [vmem:[%s6222 + $0x61] sm:$0xff]
        %v7476 = vld [vmem:[%s6222 + $0x71] sm:$0xff]
        %v7477 = vpack.c.bf16 %v7470, %v7469
        %v7478 = vpack.c.bf16 %v7472, %v7471
        %v7479 = vpack.c.bf16 %v7474, %v7473
        %v7480 = vpack.c.bf16 %v7476, %v7475
        %s7481 = scalar_lea.vmem %s3, 176
        %v7482 = vld [vmem:[%s7481] sm:$0xf]
        %v7483 = vld [vmem:[%s7481 + $0x4] sm:$0xf]
        %v7484 = vld [vmem:[%s7481 + $0x8] sm:$0xf]
        %v7485 = vld [vmem:[%s7481 + $0xc] sm:$0xf]
        %v7490 = vunpack.c.l.b16 %v7482
        %v7491 = vunpack.c.l.b16 %v7483
        %v7492 = vunpack.c.l.b16 %v7484
        %v7493 = vunpack.c.l.b16 %v7485
        %v7494 = vpack.c.b16 %v7491, %v7490
        %v7495 = vpack.c.b16 %v7493, %v7492
        %v7499 = vsel %vm6196, %v7477, 0
        %v7502 = vsel %vm6196, %v7478, 0
        %v7505 = vsel %vm6196, %v7479, 0
        %v7508 = vsel %vm6196, %v7480, 0
        %7510 = vmatprep.subr.bf16.mxu0 0
        %7511 = vmatpush1.bf16.msra.mxu0 %v7494
        %7512 = vmatprep.subr.bf16.mxu0 0
        %7513 = vmatpush1.bf16.msra.mxu0 %v7495
        %7514 = vmatprep.subr.bf16.mxu0 0
        %7515 = vmatpush1.bf16.msra.mxu0 0
        %7516 = vmatprep.subr.bf16.mxu0 0
        %7517 = vmatpush1.bf16.msra.mxu0 0
        %7518 = vmatprep.subr.bf16.mxu0 0
        %7519 = vmatpush1.bf16.msra.mxu0 0
        %7520 = vmatprep.subr.bf16.mxu0 0
        %7521 = vmatpush1.bf16.msra.mxu0 0
        %7522 = vmatprep.subr.bf16.mxu0 0
        %7523 = vmatpush1.bf16.msra.mxu0 0
        %7524 = vmatprep.subr.bf16.mxu0 0
        %7525 = vmatpush1.bf16.msra.mxu0 0
        %7526 = vmatprep.subr.bf16.mxu0 0
        %7527 = vmatpush1.bf16.msra.mxu0 0
        %7528 = vmatprep.subr.bf16.mxu0 0
        %7529 = vmatpush1.bf16.msra.mxu0 0
        %7530 = vmatprep.subr.bf16.mxu0 0
        %7531 = vmatpush1.bf16.msra.mxu0 0
        %7532 = vmatprep.subr.bf16.mxu0 0
        %7533 = vmatpush1.bf16.msra.mxu0 0
        %7534 = vmatprep.subr.bf16.mxu0 0
        %7535 = vmatpush1.bf16.msra.mxu0 0
        %7536 = vmatprep.subr.bf16.mxu0 0
        %7537 = vmatpush1.bf16.msra.mxu0 0
        %7538 = vmatprep.subr.bf16.mxu0 0
        %7539 = vmatpush1.bf16.msra.mxu0 0
        %7540 = vmatprep.subr.bf16.mxu0 0
        %7541 = vmatpush1.bf16.msra.mxu0 0
        %7542 = vmatprep.mubr.bf16.mxu0 0
        %7543 = vmatmul.mubr.bf16.gmra.mrb[0].mxu0 %v7499
        %v7544 = vpop.f32.mrb[0].mxu0
        %v7545 = vadd.f32 0.0, %v7544
        %v7546 = vpop.f32.mrb[0].mxu0
        %v7547 = vpop.f32.mrb[0].mxu0
        %v7548 = vadd.f32 0.0, %v7547
        %v7549 = vpop.f32.mrb[0].mxu0
        %7550 = vmatprep.mubr.bf16.mxu0 0
        %7551 = vmatmul.mubr.bf16.gmra.mrb[0].mxu0 %v7502
        %v7552 = vpop.f32.mrb[0].mxu0
        %v7553 = vadd.f32 0.0, %v7552
        %v7554 = vpop.f32.mrb[0].mxu0
        %v7555 = vpop.f32.mrb[0].mxu0
        %v7556 = vadd.f32 0.0, %v7555
        %v7557 = vpop.f32.mrb[0].mxu0
        %7558 = vmatprep.mubr.bf16.mxu0 0
        %7559 = vmatmul.mubr.bf16.gmra.mrb[0].mxu0 %v7505
        %v7560 = vpop.f32.mrb[0].mxu0
        %v7561 = vadd.f32 0.0, %v7560
        %v7562 = vpop.f32.mrb[0].mxu0
        %v7563 = vpop.f32.mrb[0].mxu0
        %v7564 = vadd.f32 0.0, %v7563
        %v7565 = vpop.f32.mrb[0].mxu0
        %7566 = vmatprep.mubr.bf16.mxu0 0
        %7567 = vmatmul.mubr.bf16.gmra.mrb[0].mxu0 %v7508
        %v7568 = vpop.f32.mrb[0].mxu0
        %v7569 = vadd.f32 0.0, %v7568
        %v7570 = vpop.f32.mrb[0].mxu0
        %v7571 = vpop.f32.mrb[0].mxu0
        %v7572 = vadd.f32 0.0, %v7571
        %v7573 = vpop.f32.mrb[0].mxu0
        %7574 = vdwg.mxu0
        %v7575 = vadd.f32 %v7461, %v7545
        %v7576 = vadd.f32 %v7462, %v7548
        %v7577 = vadd.f32 %v7463, %v7553
        %v7578 = vadd.f32 %v7464, %v7556
        %v7579 = vadd.f32 %v7465, %v7561
        %v7580 = vadd.f32 %v7466, %v7564
        %v7581 = vadd.f32 %v7467, %v7569
        %v7582 = vadd.f32 %v7468, %v7572
        %v7583 = vld [vmem:[%s6222 + $0x2] sm:$0xff]
        %v7584 = vld [vmem:[%s6222 + $0x12] sm:$0xff]
        %v7585 = vld [vmem:[%s6222 + $0x22] sm:$0xff]
        %v7586 = vld [vmem:[%s6222 + $0x32] sm:$0xff]
        %v7587 = vld [vmem:[%s6222 + $0x42] sm:$0xff]
        %v7588 = vld [vmem:[%s6222 + $0x52] sm:$0xff]
        %v7589 = vld [vmem:[%s6222 + $0x62] sm:$0xff]
        %v7590 = vld [vmem:[%s6222 + $0x72] sm:$0xff]
        %v7591 = vpack.c.bf16 %v7584, %v7583
        %v7592 = vpack.c.bf16 %v7586, %v7585
        %v7593 = vpack.c.bf16 %v7588, %v7587
        %v7594 = vpack.c.bf16 %v7590, %v7589
        %s7595 = scalar_lea.vmem %s3, 192
        %v7596 = vld [vmem:[%s7595] sm:$0xf]
        %v7597 = vld [vmem:[%s7595 + $0x4] sm:$0xf]
        %v7598 = vld [vmem:[%s7595 + $0x8] sm:$0xf]
        %v7599 = vld [vmem:[%s7595 + $0xc] sm:$0xf]
        %v7604 = vunpack.c.l.b16 %v7596
        %v7605 = vunpack.c.l.b16 %v7597
        %v7606 = vunpack.c.l.b16 %v7598
        %v7607 = vunpack.c.l.b16 %v7599
        %v7608 = vpack.c.b16 %v7605, %v7604
        %v7609 = vpack.c.b16 %v7607, %v7606
        %v7613 = vsel %vm6196, %v7591, 0
        %v7616 = vsel %vm6196, %v7592, 0
        %v7619 = vsel %vm6196, %v7593, 0
        %v7622 = vsel %vm6196, %v7594, 0
        %7624 = vmatprep.subr.bf16.mxu0 0
        %7625 = vmatpush1.bf16.msra.mxu0 %v7608
        %7626 = vmatprep.subr.bf16.mxu0 0
        %7627 = vmatpush1.bf16.msra.mxu0 %v7609
        %7628 = vmatprep.subr.bf16.mxu0 0
        %7629 = vmatpush1.bf16.msra.mxu0 0
        %7630 = vmatprep.subr.bf16.mxu0 0
        %7631 = vmatpush1.bf16.msra.mxu0 0
        %7632 = vmatprep.subr.bf16.mxu0 0
        %7633 = vmatpush1.bf16.msra.mxu0 0
        %7634 = vmatprep.subr.bf16.mxu0 0
        %7635 = vmatpush1.bf16.msra.mxu0 0
        %7636 = vmatprep.subr.bf16.mxu0 0
        %7637 = vmatpush1.bf16.msra.mxu0 0
        %7638 = vmatprep.subr.bf16.mxu0 0
        %7639 = vmatpush1.bf16.msra.mxu0 0
        %7640 = vmatprep.subr.bf16.mxu0 0
        %7641 = vmatpush1.bf16.msra.mxu0 0
        %7642 = vmatprep.subr.bf16.mxu0 0
        %7643 = vmatpush1.bf16.msra.mxu0 0
        %7644 = vmatprep.subr.bf16.mxu0 0
        %7645 = vmatpush1.bf16.msra.mxu0 0
        %7646 = vmatprep.subr.bf16.mxu0 0
        %7647 = vmatpush1.bf16.msra.mxu0 0
        %7648 = vmatprep.subr.bf16.mxu0 0
        %7649 = vmatpush1.bf16.msra.mxu0 0
        %7650 = vmatprep.subr.bf16.mxu0 0
        %7651 = vmatpush1.bf16.msra.mxu0 0
        %7652 = vmatprep.subr.bf16.mxu0 0
        %7653 = vmatpush1.bf16.msra.mxu0 0
        %7654 = vmatprep.subr.bf16.mxu0 0
        %7655 = vmatpush1.bf16.msra.mxu0 0
        %7656 = vmatprep.mubr.bf16.mxu0 0
        %7657 = vmatmul.mubr.bf16.gmra.mrb[0].mxu0 %v7613
        %v7658 = vpop.f32.mrb[0].mxu0
        %v7659 = vadd.f32 0.0, %v7658
        %v7660 = vpop.f32.mrb[0].mxu0
        %v7661 = vpop.f32.mrb[0].mxu0
        %v7662 = vadd.f32 0.0, %v7661
        %v7663 = vpop.f32.mrb[0].mxu0
        %7664 = vmatprep.mubr.bf16.mxu0 0
        %7665 = vmatmul.mubr.bf16.gmra.mrb[0].mxu0 %v7616
        %v7666 = vpop.f32.mrb[0].mxu0
        %v7667 = vadd.f32 0.0, %v7666
        %v7668 = vpop.f32.mrb[0].mxu0
        %v7669 = vpop.f32.mrb[0].mxu0
        %v7670 = vadd.f32 0.0, %v7669
        %v7671 = vpop.f32.mrb[0].mxu0
        %7672 = vmatprep.mubr.bf16.mxu0 0
        %7673 = vmatmul.mubr.bf16.gmra.mrb[0].mxu0 %v7619
        %v7674 = vpop.f32.mrb[0].mxu0
        %v7675 = vadd.f32 0.0, %v7674
        %v7676 = vpop.f32.mrb[0].mxu0
        %v7677 = vpop.f32.mrb[0].mxu0
        %v7678 = vadd.f32 0.0, %v7677
        %v7679 = vpop.f32.mrb[0].mxu0
        %7680 = vmatprep.mubr.bf16.mxu0 0
        %7681 = vmatmul.mubr.bf16.gmra.mrb[0].mxu0 %v7622
        %v7682 = vpop.f32.mrb[0].mxu0
        %v7683 = vadd.f32 0.0, %v7682
        %v7684 = vpop.f32.mrb[0].mxu0
        %v7685 = vpop.f32.mrb[0].mxu0
        %v7686 = vadd.f32 0.0, %v7685
        %v7687 = vpop.f32.mrb[0].mxu0
        %7688 = vdwg.mxu0
        %v7689 = vadd.f32 %v7575, %v7659
        %v7690 = vadd.f32 %v7576, %v7662
        %v7691 = vadd.f32 %v7577, %v7667
        %v7692 = vadd.f32 %v7578, %v7670
        %v7693 = vadd.f32 %v7579, %v7675
        %v7694 = vadd.f32 %v7580, %v7678
        %v7695 = vadd.f32 %v7581, %v7683
        %v7696 = vadd.f32 %v7582, %v7686
        %v7697 = vld [vmem:[%s6222 + $0x3] sm:$0xff]
        %v7698 = vld [vmem:[%s6222 + $0x13] sm:$0xff]
        %v7699 = vld [vmem:[%s6222 + $0x23] sm:$0xff]
        %v7700 = vld [vmem:[%s6222 + $0x33] sm:$0xff]
        %v7701 = vld [vmem:[%s6222 + $0x43] sm:$0xff]
        %v7702 = vld [vmem:[%s6222 + $0x53] sm:$0xff]
        %v7703 = vld [vmem:[%s6222 + $0x63] sm:$0xff]
        %v7704 = vld [vmem:[%s6222 + $0x73] sm:$0xff]
        %v7705 = vpack.c.bf16 %v7698, %v7697
        %v7706 = vpack.c.bf16 %v7700, %v7699
        %v7707 = vpack.c.bf16 %v7702, %v7701
        %v7708 = vpack.c.bf16 %v7704, %v7703
        %s7709 = scalar_lea.vmem %s3, 208
        %v7710 = vld [vmem:[%s7709] sm:$0xf]
        %v7711 = vld [vmem:[%s7709 + $0x4] sm:$0xf]
        %v7712 = vld [vmem:[%s7709 + $0x8] sm:$0xf]
        %v7713 = vld [vmem:[%s7709 + $0xc] sm:$0xf]
        %v7718 = vunpack.c.l.b16 %v7710
        %v7719 = vunpack.c.l.b16 %v7711
        %v7720 = vunpack.c.l.b16 %v7712
        %v7721 = vunpack.c.l.b16 %v7713
        %v7722 = vpack.c.b16 %v7719, %v7718
        %v7723 = vpack.c.b16 %v7721, %v7720
        %v7727 = vsel %vm6196, %v7705, 0
        %v7730 = vsel %vm6196, %v7706, 0
        %v7733 = vsel %vm6196, %v7707, 0
        %v7736 = vsel %vm6196, %v7708, 0
        %7738 = vmatprep.subr.bf16.mxu0 0
        %7739 = vmatpush1.bf16.msra.mxu0 %v7722
        %7740 = vmatprep.subr.bf16.mxu0 0
        %7741 = vmatpush1.bf16.msra.mxu0 %v7723
        %7742 = vmatprep.subr.bf16.mxu0 0
        %7743 = vmatpush1.bf16.msra.mxu0 0
        %7744 = vmatprep.subr.bf16.mxu0 0
        %7745 = vmatpush1.bf16.msra.mxu0 0
        %7746 = vmatprep.subr.bf16.mxu0 0
        %7747 = vmatpush1.bf16.msra.mxu0 0
        %7748 = vmatprep.subr.bf16.mxu0 0
        %7749 = vmatpush1.bf16.msra.mxu0 0
        %7750 = vmatprep.subr.bf16.mxu0 0
        %7751 = vmatpush1.bf16.msra.mxu0 0
        %7752 = vmatprep.subr.bf16.mxu0 0
        %7753 = vmatpush1.bf16.msra.mxu0 0
        %7754 = vmatprep.subr.bf16.mxu0 0
        %7755 = vmatpush1.bf16.msra.mxu0 0
        %7756 = vmatprep.subr.bf16.mxu0 0
        %7757 = vmatpush1.bf16.msra.mxu0 0
        %7758 = vmatprep.subr.bf16.mxu0 0
        %7759 = vmatpush1.bf16.msra.mxu0 0
        %7760 = vmatprep.subr.bf16.mxu0 0
        %7761 = vmatpush1.bf16.msra.mxu0 0
        %7762 = vmatprep.subr.bf16.mxu0 0
        %7763 = vmatpush1.bf16.msra.mxu0 0
        %7764 = vmatprep.subr.bf16.mxu0 0
        %7765 = vmatpush1.bf16.msra.mxu0 0
        %7766 = vmatprep.subr.bf16.mxu0 0
        %7767 = vmatpush1.bf16.msra.mxu0 0
        %7768 = vmatprep.subr.bf16.mxu0 0
        %7769 = vmatpush1.bf16.msra.mxu0 0
        %7770 = vmatprep.mubr.bf16.mxu0 0
        %7771 = vmatmul.mubr.bf16.gmra.mrb[0].mxu0 %v7727
        %v7772 = vpop.f32.mrb[0].mxu0
        %v7773 = vadd.f32 0.0, %v7772
        %v7774 = vpop.f32.mrb[0].mxu0
        %v7775 = vpop.f32.mrb[0].mxu0
        %v7776 = vadd.f32 0.0, %v7775
        %v7777 = vpop.f32.mrb[0].mxu0
        %7778 = vmatprep.mubr.bf16.mxu0 0
        %7779 = vmatmul.mubr.bf16.gmra.mrb[0].mxu0 %v7730
        %v7780 = vpop.f32.mrb[0].mxu0
        %v7781 = vadd.f32 0.0, %v7780
        %v7782 = vpop.f32.mrb[0].mxu0
        %v7783 = vpop.f32.mrb[0].mxu0
        %v7784 = vadd.f32 0.0, %v7783
        %v7785 = vpop.f32.mrb[0].mxu0
        %7786 = vmatprep.mubr.bf16.mxu0 0
        %7787 = vmatmul.mubr.bf16.gmra.mrb[0].mxu0 %v7733
        %v7788 = vpop.f32.mrb[0].mxu0
        %v7789 = vadd.f32 0.0, %v7788
        %v7790 = vpop.f32.mrb[0].mxu0
        %v7791 = vpop.f32.mrb[0].mxu0
        %v7792 = vadd.f32 0.0, %v7791
        %v7793 = vpop.f32.mrb[0].mxu0
        %7794 = vmatprep.mubr.bf16.mxu0 0
        %7795 = vmatmul.mubr.bf16.gmra.mrb[0].mxu0 %v7736
        %v7796 = vpop.f32.mrb[0].mxu0
        %v7797 = vadd.f32 0.0, %v7796
        %v7798 = vpop.f32.mrb[0].mxu0
        %v7799 = vpop.f32.mrb[0].mxu0
        %v7800 = vadd.f32 0.0, %v7799
        %v7801 = vpop.f32.mrb[0].mxu0
        %7802 = vdwg.mxu0
        %v7803 = vadd.f32 %v7689, %v7773
        %v7804 = vadd.f32 %v7690, %v7776
        %v7805 = vadd.f32 %v7691, %v7781
        %v7806 = vadd.f32 %v7692, %v7784
        %v7807 = vadd.f32 %v7693, %v7789
        %v7808 = vadd.f32 %v7694, %v7792
        %v7809 = vadd.f32 %v7695, %v7797
        %v7810 = vadd.f32 %v7696, %v7800
        %v7811 = vld [vmem:[%s6222 + $0x4] sm:$0xff]
        %v7812 = vld [vmem:[%s6222 + $0x14] sm:$0xff]
        %v7813 = vld [vmem:[%s6222 + $0x24] sm:$0xff]
        %v7814 = vld [vmem:[%s6222 + $0x34] sm:$0xff]
        %v7815 = vld [vmem:[%s6222 + $0x44] sm:$0xff]
        %v7816 = vld [vmem:[%s6222 + $0x54] sm:$0xff]
        %v7817 = vld [vmem:[%s6222 + $0x64] sm:$0xff]
        %v7818 = vld [vmem:[%s6222 + $0x74] sm:$0xff]
        %v7819 = vpack.c.bf16 %v7812, %v7811
        %v7820 = vpack.c.bf16 %v7814, %v7813
        %v7821 = vpack.c.bf16 %v7816, %v7815
        %v7822 = vpack.c.bf16 %v7818, %v7817
        %s7823 = scalar_lea.vmem %s3, 224
        %v7824 = vld [vmem:[%s7823] sm:$0xf]
        %v7825 = vld [vmem:[%s7823 + $0x4] sm:$0xf]
        %v7826 = vld [vmem:[%s7823 + $0x8] sm:$0xf]
        %v7827 = vld [vmem:[%s7823 + $0xc] sm:$0xf]
        %v7832 = vunpack.c.l.b16 %v7824
        %v7833 = vunpack.c.l.b16 %v7825
        %v7834 = vunpack.c.l.b16 %v7826
        %v7835 = vunpack.c.l.b16 %v7827
        %v7836 = vpack.c.b16 %v7833, %v7832
        %v7837 = vpack.c.b16 %v7835, %v7834
        %v7841 = vsel %vm6196, %v7819, 0
        %v7844 = vsel %vm6196, %v7820, 0
        %v7847 = vsel %vm6196, %v7821, 0
        %v7850 = vsel %vm6196, %v7822, 0
        %7852 = vmatprep.subr.bf16.mxu0 0
        %7853 = vmatpush1.bf16.msra.mxu0 %v7836
        %7854 = vmatprep.subr.bf16.mxu0 0
        %7855 = vmatpush1.bf16.msra.mxu0 %v7837
        %7856 = vmatprep.subr.bf16.mxu0 0
        %7857 = vmatpush1.bf16.msra.mxu0 0
        %7858 = vmatprep.subr.bf16.mxu0 0
        %7859 = vmatpush1.bf16.msra.mxu0 0
        %7860 = vmatprep.subr.bf16.mxu0 0
        %7861 = vmatpush1.bf16.msra.mxu0 0
        %7862 = vmatprep.subr.bf16.mxu0 0
        %7863 = vmatpush1.bf16.msra.mxu0 0
        %7864 = vmatprep.subr.bf16.mxu0 0
        %7865 = vmatpush1.bf16.msra.mxu0 0
        %7866 = vmatprep.subr.bf16.mxu0 0
        %7867 = vmatpush1.bf16.msra.mxu0 0
        %7868 = vmatprep.subr.bf16.mxu0 0
        %7869 = vmatpush1.bf16.msra.mxu0 0
        %7870 = vmatprep.subr.bf16.mxu0 0
        %7871 = vmatpush1.bf16.msra.mxu0 0
        %7872 = vmatprep.subr.bf16.mxu0 0
        %7873 = vmatpush1.bf16.msra.mxu0 0
        %7874 = vmatprep.subr.bf16.mxu0 0
        %7875 = vmatpush1.bf16.msra.mxu0 0
        %7876 = vmatprep.subr.bf16.mxu0 0
        %7877 = vmatpush1.bf16.msra.mxu0 0
        %7878 = vmatprep.subr.bf16.mxu0 0
        %7879 = vmatpush1.bf16.msra.mxu0 0
        %7880 = vmatprep.subr.bf16.mxu0 0
        %7881 = vmatpush1.bf16.msra.mxu0 0
        %7882 = vmatprep.subr.bf16.mxu0 0
        %7883 = vmatpush1.bf16.msra.mxu0 0
        %7884 = vmatprep.mubr.bf16.mxu0 0
        %7885 = vmatmul.mubr.bf16.gmra.mrb[0].mxu0 %v7841
        %v7886 = vpop.f32.mrb[0].mxu0
        %v7887 = vadd.f32 0.0, %v7886
        %v7888 = vpop.f32.mrb[0].mxu0
        %v7889 = vpop.f32.mrb[0].mxu0
        %v7890 = vadd.f32 0.0, %v7889
        %v7891 = vpop.f32.mrb[0].mxu0
        %7892 = vmatprep.mubr.bf16.mxu0 0
        %7893 = vmatmul.mubr.bf16.gmra.mrb[0].mxu0 %v7844
        %v7894 = vpop.f32.mrb[0].mxu0
        %v7895 = vadd.f32 0.0, %v7894
        %v7896 = vpop.f32.mrb[0].mxu0
        %v7897 = vpop.f32.mrb[0].mxu0
        %v7898 = vadd.f32 0.0, %v7897
        %v7899 = vpop.f32.mrb[0].mxu0
        %7900 = vmatprep.mubr.bf16.mxu0 0
        %7901 = vmatmul.mubr.bf16.gmra.mrb[0].mxu0 %v7847
        %v7902 = vpop.f32.mrb[0].mxu0
        %v7903 = vadd.f32 0.0, %v7902
        %v7904 = vpop.f32.mrb[0].mxu0
        %v7905 = vpop.f32.mrb[0].mxu0
        %v7906 = vadd.f32 0.0, %v7905
        %v7907 = vpop.f32.mrb[0].mxu0
        %7908 = vmatprep.mubr.bf16.mxu0 0
        %7909 = vmatmul.mubr.bf16.gmra.mrb[0].mxu0 %v7850
        %v7910 = vpop.f32.mrb[0].mxu0
        %v7911 = vadd.f32 0.0, %v7910
        %v7912 = vpop.f32.mrb[0].mxu0
        %v7913 = vpop.f32.mrb[0].mxu0
        %v7914 = vadd.f32 0.0, %v7913
        %v7915 = vpop.f32.mrb[0].mxu0
        %7916 = vdwg.mxu0
        %v7917 = vadd.f32 %v7803, %v7887
        %v7918 = vadd.f32 %v7804, %v7890
        %v7919 = vadd.f32 %v7805, %v7895
        %v7920 = vadd.f32 %v7806, %v7898
        %v7921 = vadd.f32 %v7807, %v7903
        %v7922 = vadd.f32 %v7808, %v7906
        %v7923 = vadd.f32 %v7809, %v7911
        %v7924 = vadd.f32 %v7810, %v7914
        %s7925 = scalar_lea.vmem [#allocation2], 48
        %v7926 = vld [vmem:[%s7925] sm:$0xff]
        %v7927 = vld [vmem:[%s7925 + $0x10] sm:$0xff]
        %v7928 = vld [vmem:[%s7925 + $0x20] sm:$0xff]
        %v7929 = vld [vmem:[%s7925 + $0x30] sm:$0xff]
        %v7930 = vld [vmem:[%s7925 + $0x40] sm:$0xff]
        %v7931 = vld [vmem:[%s7925 + $0x50] sm:$0xff]
        %v7932 = vld [vmem:[%s7925 + $0x60] sm:$0xff]
        %v7933 = vld [vmem:[%s7925 + $0x70] sm:$0xff]
        %v7934 = vpack.c.bf16 %v7927, %v7926
        %v7935 = vpack.c.bf16 %v7929, %v7928
        %v7936 = vpack.c.bf16 %v7931, %v7930
        %v7937 = vpack.c.bf16 %v7933, %v7932
        %s7938 = scalar_lea.vmem %s3, 240
        %v7939 = vld [vmem:[%s7938] sm:$0xf]
        %v7940 = vld [vmem:[%s7938 + $0x4] sm:$0xf]
        %v7941 = vld [vmem:[%s7938 + $0x8] sm:$0xf]
        %v7942 = vld [vmem:[%s7938 + $0xc] sm:$0xf]
        %v7947 = vunpack.c.l.b16 %v7939
        %v7948 = vunpack.c.l.b16 %v7940
        %v7949 = vunpack.c.l.b16 %v7941
        %v7950 = vunpack.c.l.b16 %v7942
        %v7951 = vpack.c.b16 %v7948, %v7947
        %v7952 = vpack.c.b16 %v7950, %v7949
        %v7956 = vsel %vm6196, %v7934, 0
        %v7959 = vsel %vm6196, %v7935, 0
        %v7962 = vsel %vm6196, %v7936, 0
        %v7965 = vsel %vm6196, %v7937, 0
        %7967 = vmatprep.subr.bf16.mxu0 0
        %7968 = vmatpush1.bf16.msra.mxu0 %v7951
        %7969 = vmatprep.subr.bf16.mxu0 0
        %7970 = vmatpush1.bf16.msra.mxu0 %v7952
        %7971 = vmatprep.subr.bf16.mxu0 0
        %7972 = vmatpush1.bf16.msra.mxu0 0
        %7973 = vmatprep.subr.bf16.mxu0 0
        %7974 = vmatpush1.bf16.msra.mxu0 0
        %7975 = vmatprep.subr.bf16.mxu0 0
        %7976 = vmatpush1.bf16.msra.mxu0 0
        %7977 = vmatprep.subr.bf16.mxu0 0
        %7978 = vmatpush1.bf16.msra.mxu0 0
        %7979 = vmatprep.subr.bf16.mxu0 0
        %7980 = vmatpush1.bf16.msra.mxu0 0
        %7981 = vmatprep.subr.bf16.mxu0 0
        %7982 = vmatpush1.bf16.msra.mxu0 0
        %7983 = vmatprep.subr.bf16.mxu0 0
        %7984 = vmatpush1.bf16.msra.mxu0 0
        %7985 = vmatprep.subr.bf16.mxu0 0
        %7986 = vmatpush1.bf16.msra.mxu0 0
        %7987 = vmatprep.subr.bf16.mxu0 0
        %7988 = vmatpush1.bf16.msra.mxu0 0
        %7989 = vmatprep.subr.bf16.mxu0 0
        %7990 = vmatpush1.bf16.msra.mxu0 0
        %7991 = vmatprep.subr.bf16.mxu0 0
        %7992 = vmatpush1.bf16.msra.mxu0 0
        %7993 = vmatprep.subr.bf16.mxu0 0
        %7994 = vmatpush1.bf16.msra.mxu0 0
        %7995 = vmatprep.subr.bf16.mxu0 0
        %7996 = vmatpush1.bf16.msra.mxu0 0
        %7997 = vmatprep.subr.bf16.mxu0 0
        %7998 = vmatpush1.bf16.msra.mxu0 0
        %7999 = vmatprep.mubr.bf16.mxu0 0
        %8000 = vmatmul.mubr.bf16.gmra.mrb[0].mxu0 %v7956
        %v8001 = vpop.f32.mrb[0].mxu0
        %v8002 = vadd.f32 0.0, %v8001
        %v8003 = vpop.f32.mrb[0].mxu0
        %v8004 = vpop.f32.mrb[0].mxu0
        %v8005 = vadd.f32 0.0, %v8004
        %v8006 = vpop.f32.mrb[0].mxu0
        %8007 = vmatprep.mubr.bf16.mxu0 0
        %8008 = vmatmul.mubr.bf16.gmra.mrb[0].mxu0 %v7959
        %v8009 = vpop.f32.mrb[0].mxu0
        %v8010 = vadd.f32 0.0, %v8009
        %v8011 = vpop.f32.mrb[0].mxu0
        %v8012 = vpop.f32.mrb[0].mxu0
        %v8013 = vadd.f32 0.0, %v8012
        %v8014 = vpop.f32.mrb[0].mxu0
        %8015 = vmatprep.mubr.bf16.mxu0 0
        %8016 = vmatmul.mubr.bf16.gmra.mrb[0].mxu0 %v7962
        %v8017 = vpop.f32.mrb[0].mxu0
        %v8018 = vadd.f32 0.0, %v8017
        %v8019 = vpop.f32.mrb[0].mxu0
        %v8020 = vpop.f32.mrb[0].mxu0
        %v8021 = vadd.f32 0.0, %v8020
        %v8022 = vpop.f32.mrb[0].mxu0
        %8023 = vmatprep.mubr.bf16.mxu0 0
        %8024 = vmatmul.mubr.bf16.gmra.mrb[0].mxu0 %v7965
        %v8025 = vpop.f32.mrb[0].mxu0
        %v8026 = vadd.f32 0.0, %v8025
        %v8027 = vpop.f32.mrb[0].mxu0
        %v8028 = vpop.f32.mrb[0].mxu0
        %v8029 = vadd.f32 0.0, %v8028
        %v8030 = vpop.f32.mrb[0].mxu0
        %8031 = vdwg.mxu0
        %v8032 = vadd.f32 %v7917, %v8002
        %v8033 = vadd.f32 %v7918, %v8005
        %v8034 = vadd.f32 %v7919, %v8010
        %v8035 = vadd.f32 %v7920, %v8013
        %v8036 = vadd.f32 %v7921, %v8018
        %v8037 = vadd.f32 %v7922, %v8021
        %v8038 = vadd.f32 %v7923, %v8026
        %v8039 = vadd.f32 %v7924, %v8029
        %v8040 = vld [vmem:[%s7925 + $0x1] sm:$0xff]
        %v8041 = vld [vmem:[%s7925 + $0x11] sm:$0xff]
        %v8042 = vld [vmem:[%s7925 + $0x21] sm:$0xff]
        %v8043 = vld [vmem:[%s7925 + $0x31] sm:$0xff]
        %v8044 = vld [vmem:[%s7925 + $0x41] sm:$0xff]
        %v8045 = vld [vmem:[%s7925 + $0x51] sm:$0xff]
        %v8046 = vld [vmem:[%s7925 + $0x61] sm:$0xff]
        %v8047 = vld [vmem:[%s7925 + $0x71] sm:$0xff]
        %v8048 = vpack.c.bf16 %v8041, %v8040
        %v8049 = vpack.c.bf16 %v8043, %v8042
        %v8050 = vpack.c.bf16 %v8045, %v8044
        %v8051 = vpack.c.bf16 %v8047, %v8046
        %s8052 = scalar_lea.vmem %s3, 256
        %v8053 = vld [vmem:[%s8052] sm:$0xf]
        %v8054 = vld [vmem:[%s8052 + $0x4] sm:$0xf]
        %v8055 = vld [vmem:[%s8052 + $0x8] sm:$0xf]
        %v8056 = vld [vmem:[%s8052 + $0xc] sm:$0xf]
        %v8061 = vunpack.c.l.b16 %v8053
        %v8062 = vunpack.c.l.b16 %v8054
        %v8063 = vunpack.c.l.b16 %v8055
        %v8064 = vunpack.c.l.b16 %v8056
        %v8065 = vpack.c.b16 %v8062, %v8061
        %v8066 = vpack.c.b16 %v8064, %v8063
        %v8070 = vsel %vm6196, %v8048, 0
        %v8073 = vsel %vm6196, %v8049, 0
        %v8076 = vsel %vm6196, %v8050, 0
        %v8079 = vsel %vm6196, %v8051, 0
        %8081 = vmatprep.subr.bf16.mxu0 0
        %8082 = vmatpush1.bf16.msra.mxu0 %v8065
        %8083 = vmatprep.subr.bf16.mxu0 0
        %8084 = vmatpush1.bf16.msra.mxu0 %v8066
        %8085 = vmatprep.subr.bf16.mxu0 0
        %8086 = vmatpush1.bf16.msra.mxu0 0
        %8087 = vmatprep.subr.bf16.mxu0 0
        %8088 = vmatpush1.bf16.msra.mxu0 0
        %8089 = vmatprep.subr.bf16.mxu0 0
        %8090 = vmatpush1.bf16.msra.mxu0 0
        %8091 = vmatprep.subr.bf16.mxu0 0
        %8092 = vmatpush1.bf16.msra.mxu0 0
        %8093 = vmatprep.subr.bf16.mxu0 0
        %8094 = vmatpush1.bf16.msra.mxu0 0
        %8095 = vmatprep.subr.bf16.mxu0 0
        %8096 = vmatpush1.bf16.msra.mxu0 0
        %8097 = vmatprep.subr.bf16.mxu0 0
        %8098 = vmatpush1.bf16.msra.mxu0 0
        %8099 = vmatprep.subr.bf16.mxu0 0
        %8100 = vmatpush1.bf16.msra.mxu0 0
        %8101 = vmatprep.subr.bf16.mxu0 0
        %8102 = vmatpush1.bf16.msra.mxu0 0
        %8103 = vmatprep.subr.bf16.mxu0 0
        %8104 = vmatpush1.bf16.msra.mxu0 0
        %8105 = vmatprep.subr.bf16.mxu0 0
        %8106 = vmatpush1.bf16.msra.mxu0 0
        %8107 = vmatprep.subr.bf16.mxu0 0
        %8108 = vmatpush1.bf16.msra.mxu0 0
        %8109 = vmatprep.subr.bf16.mxu0 0
        %8110 = vmatpush1.bf16.msra.mxu0 0
        %8111 = vmatprep.subr.bf16.mxu0 0
        %8112 = vmatpush1.bf16.msra.mxu0 0
        %8113 = vmatprep.mubr.bf16.mxu0 0
        %8114 = vmatmul.mubr.bf16.gmra.mrb[0].mxu0 %v8070
        %v8115 = vpop.f32.mrb[0].mxu0
        %v8116 = vadd.f32 0.0, %v8115
        %v8117 = vpop.f32.mrb[0].mxu0
        %v8118 = vpop.f32.mrb[0].mxu0
        %v8119 = vadd.f32 0.0, %v8118
        %v8120 = vpop.f32.mrb[0].mxu0
        %8121 = vmatprep.mubr.bf16.mxu0 0
        %8122 = vmatmul.mubr.bf16.gmra.mrb[0].mxu0 %v8073
        %v8123 = vpop.f32.mrb[0].mxu0
        %v8124 = vadd.f32 0.0, %v8123
        %v8125 = vpop.f32.mrb[0].mxu0
        %v8126 = vpop.f32.mrb[0].mxu0
        %v8127 = vadd.f32 0.0, %v8126
        %v8128 = vpop.f32.mrb[0].mxu0
        %8129 = vmatprep.mubr.bf16.mxu0 0
        %8130 = vmatmul.mubr.bf16.gmra.mrb[0].mxu0 %v8076
        %v8131 = vpop.f32.mrb[0].mxu0
        %v8132 = vadd.f32 0.0, %v8131
        %v8133 = vpop.f32.mrb[0].mxu0
        %v8134 = vpop.f32.mrb[0].mxu0
        %v8135 = vadd.f32 0.0, %v8134
        %v8136 = vpop.f32.mrb[0].mxu0
        %8137 = vmatprep.mubr.bf16.mxu0 0
        %8138 = vmatmul.mubr.bf16.gmra.mrb[0].mxu0 %v8079
        %v8139 = vpop.f32.mrb[0].mxu0
        %v8140 = vadd.f32 0.0, %v8139
        %v8141 = vpop.f32.mrb[0].mxu0
        %v8142 = vpop.f32.mrb[0].mxu0
        %v8143 = vadd.f32 0.0, %v8142
        %v8144 = vpop.f32.mrb[0].mxu0
        %8145 = vdwg.mxu0
        %v8146 = vadd.f32 %v8032, %v8116
        %v8147 = vadd.f32 %v8033, %v8119
        %v8148 = vadd.f32 %v8034, %v8124
        %v8149 = vadd.f32 %v8035, %v8127
        %v8150 = vadd.f32 %v8036, %v8132
        %v8151 = vadd.f32 %v8037, %v8135
        %v8152 = vadd.f32 %v8038, %v8140
        %v8153 = vadd.f32 %v8039, %v8143
        %v8154 = vld [vmem:[%s7925 + $0x2] sm:$0xff]
        %v8155 = vld [vmem:[%s7925 + $0x12] sm:$0xff]
        %v8156 = vld [vmem:[%s7925 + $0x22] sm:$0xff]
        %v8157 = vld [vmem:[%s7925 + $0x32] sm:$0xff]
        %v8158 = vld [vmem:[%s7925 + $0x42] sm:$0xff]
        %v8159 = vld [vmem:[%s7925 + $0x52] sm:$0xff]
        %v8160 = vld [vmem:[%s7925 + $0x62] sm:$0xff]
        %v8161 = vld [vmem:[%s7925 + $0x72] sm:$0xff]
        %v8162 = vpack.c.bf16 %v8155, %v8154
        %v8163 = vpack.c.bf16 %v8157, %v8156
        %v8164 = vpack.c.bf16 %v8159, %v8158
        %v8165 = vpack.c.bf16 %v8161, %v8160
        %s8166 = scalar_lea.vmem %s3, 272
        %v8167 = vld [vmem:[%s8166] sm:$0xf]
        %v8168 = vld [vmem:[%s8166 + $0x4] sm:$0xf]
        %v8169 = vld [vmem:[%s8166 + $0x8] sm:$0xf]
        %v8170 = vld [vmem:[%s8166 + $0xc] sm:$0xf]
        %v8175 = vunpack.c.l.b16 %v8167
        %v8176 = vunpack.c.l.b16 %v8168
        %v8177 = vunpack.c.l.b16 %v8169
        %v8178 = vunpack.c.l.b16 %v8170
        %v8179 = vpack.c.b16 %v8176, %v8175
        %v8180 = vpack.c.b16 %v8178, %v8177
        %v8184 = vsel %vm6196, %v8162, 0
        %v8187 = vsel %vm6196, %v8163, 0
        %v8190 = vsel %vm6196, %v8164, 0
        %v8193 = vsel %vm6196, %v8165, 0
        %8195 = vmatprep.subr.bf16.mxu0 0
        %8196 = vmatpush1.bf16.msra.mxu0 %v8179
        %8197 = vmatprep.subr.bf16.mxu0 0
        %8198 = vmatpush1.bf16.msra.mxu0 %v8180
        %8199 = vmatprep.subr.bf16.mxu0 0
        %8200 = vmatpush1.bf16.msra.mxu0 0
        %8201 = vmatprep.subr.bf16.mxu0 0
        %8202 = vmatpush1.bf16.msra.mxu0 0
        %8203 = vmatprep.subr.bf16.mxu0 0
        %8204 = vmatpush1.bf16.msra.mxu0 0
        %8205 = vmatprep.subr.bf16.mxu0 0
        %8206 = vmatpush1.bf16.msra.mxu0 0
        %8207 = vmatprep.subr.bf16.mxu0 0
        %8208 = vmatpush1.bf16.msra.mxu0 0
        %8209 = vmatprep.subr.bf16.mxu0 0
        %8210 = vmatpush1.bf16.msra.mxu0 0
        %8211 = vmatprep.subr.bf16.mxu0 0
        %8212 = vmatpush1.bf16.msra.mxu0 0
        %8213 = vmatprep.subr.bf16.mxu0 0
        %8214 = vmatpush1.bf16.msra.mxu0 0
        %8215 = vmatprep.subr.bf16.mxu0 0
        %8216 = vmatpush1.bf16.msra.mxu0 0
        %8217 = vmatprep.subr.bf16.mxu0 0
        %8218 = vmatpush1.bf16.msra.mxu0 0
        %8219 = vmatprep.subr.bf16.mxu0 0
        %8220 = vmatpush1.bf16.msra.mxu0 0
        %8221 = vmatprep.subr.bf16.mxu0 0
        %8222 = vmatpush1.bf16.msra.mxu0 0
        %8223 = vmatprep.subr.bf16.mxu0 0
        %8224 = vmatpush1.bf16.msra.mxu0 0
        %8225 = vmatprep.subr.bf16.mxu0 0
        %8226 = vmatpush1.bf16.msra.mxu0 0
        %8227 = vmatprep.mubr.bf16.mxu0 0
        %8228 = vmatmul.mubr.bf16.gmra.mrb[0].mxu0 %v8184
        %v8229 = vpop.f32.mrb[0].mxu0
        %v8230 = vadd.f32 0.0, %v8229
        %v8231 = vpop.f32.mrb[0].mxu0
        %v8232 = vpop.f32.mrb[0].mxu0
        %v8233 = vadd.f32 0.0, %v8232
        %v8234 = vpop.f32.mrb[0].mxu0
        %8235 = vmatprep.mubr.bf16.mxu0 0
        %8236 = vmatmul.mubr.bf16.gmra.mrb[0].mxu0 %v8187
        %v8237 = vpop.f32.mrb[0].mxu0
        %v8238 = vadd.f32 0.0, %v8237
        %v8239 = vpop.f32.mrb[0].mxu0
        %v8240 = vpop.f32.mrb[0].mxu0
        %v8241 = vadd.f32 0.0, %v8240
        %v8242 = vpop.f32.mrb[0].mxu0
        %8243 = vmatprep.mubr.bf16.mxu0 0
        %8244 = vmatmul.mubr.bf16.gmra.mrb[0].mxu0 %v8190
        %v8245 = vpop.f32.mrb[0].mxu0
        %v8246 = vadd.f32 0.0, %v8245
        %v8247 = vpop.f32.mrb[0].mxu0
        %v8248 = vpop.f32.mrb[0].mxu0
        %v8249 = vadd.f32 0.0, %v8248
        %v8250 = vpop.f32.mrb[0].mxu0
        %8251 = vmatprep.mubr.bf16.mxu0 0
        %8252 = vmatmul.mubr.bf16.gmra.mrb[0].mxu0 %v8193
        %v8253 = vpop.f32.mrb[0].mxu0
        %v8254 = vadd.f32 0.0, %v8253
        %v8255 = vpop.f32.mrb[0].mxu0
        %v8256 = vpop.f32.mrb[0].mxu0
        %v8257 = vadd.f32 0.0, %v8256
        %v8258 = vpop.f32.mrb[0].mxu0
        %8259 = vdwg.mxu0
        %v8260 = vadd.f32 %v8146, %v8230
        %v8261 = vadd.f32 %v8147, %v8233
        %v8262 = vadd.f32 %v8148, %v8238
        %v8263 = vadd.f32 %v8149, %v8241
        %v8264 = vadd.f32 %v8150, %v8246
        %v8265 = vadd.f32 %v8151, %v8249
        %v8266 = vadd.f32 %v8152, %v8254
        %v8267 = vadd.f32 %v8153, %v8257
        %v8268 = vld [vmem:[%s7925 + $0x3] sm:$0xff]
        %v8269 = vld [vmem:[%s7925 + $0x13] sm:$0xff]
        %v8270 = vld [vmem:[%s7925 + $0x23] sm:$0xff]
        %v8271 = vld [vmem:[%s7925 + $0x33] sm:$0xff]
        %v8272 = vld [vmem:[%s7925 + $0x43] sm:$0xff]
        %v8273 = vld [vmem:[%s7925 + $0x53] sm:$0xff]
        %v8274 = vld [vmem:[%s7925 + $0x63] sm:$0xff]
        %v8275 = vld [vmem:[%s7925 + $0x73] sm:$0xff]
        %v8276 = vpack.c.bf16 %v8269, %v8268
        %v8277 = vpack.c.bf16 %v8271, %v8270
        %v8278 = vpack.c.bf16 %v8273, %v8272
        %v8279 = vpack.c.bf16 %v8275, %v8274
        %s8280 = scalar_lea.vmem %s3, 288
        %v8281 = vld [vmem:[%s8280] sm:$0xf]
        %v8282 = vld [vmem:[%s8280 + $0x4] sm:$0xf]
        %v8283 = vld [vmem:[%s8280 + $0x8] sm:$0xf]
        %v8284 = vld [vmem:[%s8280 + $0xc] sm:$0xf]
        %v8289 = vunpack.c.l.b16 %v8281
        %v8290 = vunpack.c.l.b16 %v8282
        %v8291 = vunpack.c.l.b16 %v8283
        %v8292 = vunpack.c.l.b16 %v8284
        %v8293 = vpack.c.b16 %v8290, %v8289
        %v8294 = vpack.c.b16 %v8292, %v8291
        %v8298 = vsel %vm6196, %v8276, 0
        %v8301 = vsel %vm6196, %v8277, 0
        %v8304 = vsel %vm6196, %v8278, 0
        %v8307 = vsel %vm6196, %v8279, 0
        %8309 = vmatprep.subr.bf16.mxu0 0
        %8310 = vmatpush1.bf16.msra.mxu0 %v8293
        %8311 = vmatprep.subr.bf16.mxu0 0
        %8312 = vmatpush1.bf16.msra.mxu0 %v8294
        %8313 = vmatprep.subr.bf16.mxu0 0
        %8314 = vmatpush1.bf16.msra.mxu0 0
        %8315 = vmatprep.subr.bf16.mxu0 0
        %8316 = vmatpush1.bf16.msra.mxu0 0
        %8317 = vmatprep.subr.bf16.mxu0 0
        %8318 = vmatpush1.bf16.msra.mxu0 0
        %8319 = vmatprep.subr.bf16.mxu0 0
        %8320 = vmatpush1.bf16.msra.mxu0 0
        %8321 = vmatprep.subr.bf16.mxu0 0
        %8322 = vmatpush1.bf16.msra.mxu0 0
        %8323 = vmatprep.subr.bf16.mxu0 0
        %8324 = vmatpush1.bf16.msra.mxu0 0
        %8325 = vmatprep.subr.bf16.mxu0 0
        %8326 = vmatpush1.bf16.msra.mxu0 0
        %8327 = vmatprep.subr.bf16.mxu0 0
        %8328 = vmatpush1.bf16.msra.mxu0 0
        %8329 = vmatprep.subr.bf16.mxu0 0
        %8330 = vmatpush1.bf16.msra.mxu0 0
        %8331 = vmatprep.subr.bf16.mxu0 0
        %8332 = vmatpush1.bf16.msra.mxu0 0
        %8333 = vmatprep.subr.bf16.mxu0 0
        %8334 = vmatpush1.bf16.msra.mxu0 0
        %8335 = vmatprep.subr.bf16.mxu0 0
        %8336 = vmatpush1.bf16.msra.mxu0 0
        %8337 = vmatprep.subr.bf16.mxu0 0
        %8338 = vmatpush1.bf16.msra.mxu0 0
        %8339 = vmatprep.subr.bf16.mxu0 0
        %8340 = vmatpush1.bf16.msra.mxu0 0
        %8341 = vmatprep.mubr.bf16.mxu0 0
        %8342 = vmatmul.mubr.bf16.gmra.mrb[0].mxu0 %v8298
        %v8343 = vpop.f32.mrb[0].mxu0
        %v8344 = vadd.f32 0.0, %v8343
        %v8345 = vpop.f32.mrb[0].mxu0
        %v8346 = vpop.f32.mrb[0].mxu0
        %v8347 = vadd.f32 0.0, %v8346
        %v8348 = vpop.f32.mrb[0].mxu0
        %8349 = vmatprep.mubr.bf16.mxu0 0
        %8350 = vmatmul.mubr.bf16.gmra.mrb[0].mxu0 %v8301
        %v8351 = vpop.f32.mrb[0].mxu0
        %v8352 = vadd.f32 0.0, %v8351
        %v8353 = vpop.f32.mrb[0].mxu0
        %v8354 = vpop.f32.mrb[0].mxu0
        %v8355 = vadd.f32 0.0, %v8354
        %v8356 = vpop.f32.mrb[0].mxu0
        %8357 = vmatprep.mubr.bf16.mxu0 0
        %8358 = vmatmul.mubr.bf16.gmra.mrb[0].mxu0 %v8304
        %v8359 = vpop.f32.mrb[0].mxu0
        %v8360 = vadd.f32 0.0, %v8359
        %v8361 = vpop.f32.mrb[0].mxu0
        %v8362 = vpop.f32.mrb[0].mxu0
        %v8363 = vadd.f32 0.0, %v8362
        %v8364 = vpop.f32.mrb[0].mxu0
        %8365 = vmatprep.mubr.bf16.mxu0 0
        %8366 = vmatmul.mubr.bf16.gmra.mrb[0].mxu0 %v8307
        %v8367 = vpop.f32.mrb[0].mxu0
        %v8368 = vadd.f32 0.0, %v8367
        %v8369 = vpop.f32.mrb[0].mxu0
        %v8370 = vpop.f32.mrb[0].mxu0
        %v8371 = vadd.f32 0.0, %v8370
        %v8372 = vpop.f32.mrb[0].mxu0
        %8373 = vdwg.mxu0
        %v8374 = vadd.f32 %v8260, %v8344
        %v8375 = vadd.f32 %v8261, %v8347
        %v8376 = vadd.f32 %v8262, %v8352
        %v8377 = vadd.f32 %v8263, %v8355
        %v8378 = vadd.f32 %v8264, %v8360
        %v8379 = vadd.f32 %v8265, %v8363
        %v8380 = vadd.f32 %v8266, %v8368
        %v8381 = vadd.f32 %v8267, %v8371
        %v8382 = vld [vmem:[%s7925 + $0x4] sm:$0xff]
        %v8383 = vld [vmem:[%s7925 + $0x14] sm:$0xff]
        %v8384 = vld [vmem:[%s7925 + $0x24] sm:$0xff]
        %v8385 = vld [vmem:[%s7925 + $0x34] sm:$0xff]
        %v8386 = vld [vmem:[%s7925 + $0x44] sm:$0xff]
        %v8387 = vld [vmem:[%s7925 + $0x54] sm:$0xff]
        %v8388 = vld [vmem:[%s7925 + $0x64] sm:$0xff]
        %v8389 = vld [vmem:[%s7925 + $0x74] sm:$0xff]
        %v8390 = vpack.c.bf16 %v8383, %v8382
        %v8391 = vpack.c.bf16 %v8385, %v8384
        %v8392 = vpack.c.bf16 %v8387, %v8386
        %v8393 = vpack.c.bf16 %v8389, %v8388
        %s8394 = scalar_lea.vmem %s3, 304
        %v8395 = vld [vmem:[%s8394] sm:$0xf]
        %v8396 = vld [vmem:[%s8394 + $0x4] sm:$0xf]
        %v8397 = vld [vmem:[%s8394 + $0x8] sm:$0xf]
        %v8398 = vld [vmem:[%s8394 + $0xc] sm:$0xf]
        %v8403 = vunpack.c.l.b16 %v8395
        %v8404 = vunpack.c.l.b16 %v8396
        %v8405 = vunpack.c.l.b16 %v8397
        %v8406 = vunpack.c.l.b16 %v8398
        %v8407 = vpack.c.b16 %v8404, %v8403
        %v8408 = vpack.c.b16 %v8406, %v8405
        %v8412 = vsel %vm6196, %v8390, 0
        %v8415 = vsel %vm6196, %v8391, 0
        %v8418 = vsel %vm6196, %v8392, 0
        %v8421 = vsel %vm6196, %v8393, 0
        %8423 = vmatprep.subr.bf16.mxu0 0
        %8424 = vmatpush1.bf16.msra.mxu0 %v8407
        %8425 = vmatprep.subr.bf16.mxu0 0
        %8426 = vmatpush1.bf16.msra.mxu0 %v8408
        %8427 = vmatprep.subr.bf16.mxu0 0
        %8428 = vmatpush1.bf16.msra.mxu0 0
        %8429 = vmatprep.subr.bf16.mxu0 0
        %8430 = vmatpush1.bf16.msra.mxu0 0
        %8431 = vmatprep.subr.bf16.mxu0 0
        %8432 = vmatpush1.bf16.msra.mxu0 0
        %8433 = vmatprep.subr.bf16.mxu0 0
        %8434 = vmatpush1.bf16.msra.mxu0 0
        %8435 = vmatprep.subr.bf16.mxu0 0
        %8436 = vmatpush1.bf16.msra.mxu0 0
        %8437 = vmatprep.subr.bf16.mxu0 0
        %8438 = vmatpush1.bf16.msra.mxu0 0
        %8439 = vmatprep.subr.bf16.mxu0 0
        %8440 = vmatpush1.bf16.msra.mxu0 0
        %8441 = vmatprep.subr.bf16.mxu0 0
        %8442 = vmatpush1.bf16.msra.mxu0 0
        %8443 = vmatprep.subr.bf16.mxu0 0
        %8444 = vmatpush1.bf16.msra.mxu0 0
        %8445 = vmatprep.subr.bf16.mxu0 0
        %8446 = vmatpush1.bf16.msra.mxu0 0
        %8447 = vmatprep.subr.bf16.mxu0 0
        %8448 = vmatpush1.bf16.msra.mxu0 0
        %8449 = vmatprep.subr.bf16.mxu0 0
        %8450 = vmatpush1.bf16.msra.mxu0 0
        %8451 = vmatprep.subr.bf16.mxu0 0
        %8452 = vmatpush1.bf16.msra.mxu0 0
        %8453 = vmatprep.subr.bf16.mxu0 0
        %8454 = vmatpush1.bf16.msra.mxu0 0
        %8455 = vmatprep.mubr.bf16.mxu0 0
        %8456 = vmatmul.mubr.bf16.gmra.mrb[0].mxu0 %v8412
        %v8457 = vpop.f32.mrb[0].mxu0
        %v8458 = vadd.f32 0.0, %v8457
        %v8459 = vpop.f32.mrb[0].mxu0
        %v8460 = vpop.f32.mrb[0].mxu0
        %v8461 = vadd.f32 0.0, %v8460
        %v8462 = vpop.f32.mrb[0].mxu0
        %8463 = vmatprep.mubr.bf16.mxu0 0
        %8464 = vmatmul.mubr.bf16.gmra.mrb[0].mxu0 %v8415
        %v8465 = vpop.f32.mrb[0].mxu0
        %v8466 = vadd.f32 0.0, %v8465
        %v8467 = vpop.f32.mrb[0].mxu0
        %v8468 = vpop.f32.mrb[0].mxu0
        %v8469 = vadd.f32 0.0, %v8468
        %v8470 = vpop.f32.mrb[0].mxu0
        %8471 = vmatprep.mubr.bf16.mxu0 0
        %8472 = vmatmul.mubr.bf16.gmra.mrb[0].mxu0 %v8418
        %v8473 = vpop.f32.mrb[0].mxu0
        %v8474 = vadd.f32 0.0, %v8473
        %v8475 = vpop.f32.mrb[0].mxu0
        %v8476 = vpop.f32.mrb[0].mxu0
        %v8477 = vadd.f32 0.0, %v8476
        %v8478 = vpop.f32.mrb[0].mxu0
        %8479 = vmatprep.mubr.bf16.mxu0 0
        %8480 = vmatmul.mubr.bf16.gmra.mrb[0].mxu0 %v8421
        %v8481 = vpop.f32.mrb[0].mxu0
        %v8482 = vadd.f32 0.0, %v8481
        %v8483 = vpop.f32.mrb[0].mxu0
        %v8484 = vpop.f32.mrb[0].mxu0
        %v8485 = vadd.f32 0.0, %v8484
        %v8486 = vpop.f32.mrb[0].mxu0
        %8487 = vdwg.mxu0
        %v8488 = vadd.f32 %v8374, %v8458
        %v8489 = vadd.f32 %v8375, %v8461
        %v8490 = vadd.f32 %v8376, %v8466
        %v8491 = vadd.f32 %v8377, %v8469
        %v8492 = vadd.f32 %v8378, %v8474
        %v8493 = vadd.f32 %v8379, %v8477
        %v8494 = vadd.f32 %v8380, %v8482
        %v8495 = vadd.f32 %v8381, %v8485
        %s8496 = scalar_lea.vmem [#allocation2], 64
        %v8497 = vld [vmem:[%s8496] sm:$0xff]
        %v8498 = vld [vmem:[%s8496 + $0x10] sm:$0xff]
        %v8499 = vld [vmem:[%s8496 + $0x20] sm:$0xff]
        %v8500 = vld [vmem:[%s8496 + $0x30] sm:$0xff]
        %v8501 = vld [vmem:[%s8496 + $0x40] sm:$0xff]
        %v8502 = vld [vmem:[%s8496 + $0x50] sm:$0xff]
        %v8503 = vld [vmem:[%s8496 + $0x60] sm:$0xff]
        %v8504 = vld [vmem:[%s8496 + $0x70] sm:$0xff]
        %v8505 = vpack.c.bf16 %v8498, %v8497
        %v8506 = vpack.c.bf16 %v8500, %v8499
        %v8507 = vpack.c.bf16 %v8502, %v8501
        %v8508 = vpack.c.bf16 %v8504, %v8503
        %s8509 = scalar_lea.vmem %s3, 320
        %v8510 = vld [vmem:[%s8509] sm:$0xf]
        %v8511 = vld [vmem:[%s8509 + $0x4] sm:$0xf]
        %v8512 = vld [vmem:[%s8509 + $0x8] sm:$0xf]
        %v8513 = vld [vmem:[%s8509 + $0xc] sm:$0xf]
        %v8518 = vunpack.c.l.b16 %v8510
        %v8519 = vunpack.c.l.b16 %v8511
        %v8520 = vunpack.c.l.b16 %v8512
        %v8521 = vunpack.c.l.b16 %v8513
        %v8522 = vpack.c.b16 %v8519, %v8518
        %v8523 = vpack.c.b16 %v8521, %v8520
        %v8527 = vsel %vm6196, %v8505, 0
        %v8530 = vsel %vm6196, %v8506, 0
        %v8533 = vsel %vm6196, %v8507, 0
        %v8536 = vsel %vm6196, %v8508, 0
        %8538 = vmatprep.subr.bf16.mxu0 0
        %8539 = vmatpush1.bf16.msra.mxu0 %v8522
        %8540 = vmatprep.subr.bf16.mxu0 0
        %8541 = vmatpush1.bf16.msra.mxu0 %v8523
        %8542 = vmatprep.subr.bf16.mxu0 0
        %8543 = vmatpush1.bf16.msra.mxu0 0
        %8544 = vmatprep.subr.bf16.mxu0 0
        %8545 = vmatpush1.bf16.msra.mxu0 0
        %8546 = vmatprep.subr.bf16.mxu0 0
        %8547 = vmatpush1.bf16.msra.mxu0 0
        %8548 = vmatprep.subr.bf16.mxu0 0
        %8549 = vmatpush1.bf16.msra.mxu0 0
        %8550 = vmatprep.subr.bf16.mxu0 0
        %8551 = vmatpush1.bf16.msra.mxu0 0
        %8552 = vmatprep.subr.bf16.mxu0 0
        %8553 = vmatpush1.bf16.msra.mxu0 0
        %8554 = vmatprep.subr.bf16.mxu0 0
        %8555 = vmatpush1.bf16.msra.mxu0 0
        %8556 = vmatprep.subr.bf16.mxu0 0
        %8557 = vmatpush1.bf16.msra.mxu0 0
        %8558 = vmatprep.subr.bf16.mxu0 0
        %8559 = vmatpush1.bf16.msra.mxu0 0
        %8560 = vmatprep.subr.bf16.mxu0 0
        %8561 = vmatpush1.bf16.msra.mxu0 0
        %8562 = vmatprep.subr.bf16.mxu0 0
        %8563 = vmatpush1.bf16.msra.mxu0 0
        %8564 = vmatprep.subr.bf16.mxu0 0
        %8565 = vmatpush1.bf16.msra.mxu0 0
        %8566 = vmatprep.subr.bf16.mxu0 0
        %8567 = vmatpush1.bf16.msra.mxu0 0
        %8568 = vmatprep.subr.bf16.mxu0 0
        %8569 = vmatpush1.bf16.msra.mxu0 0
        %8570 = vmatprep.mubr.bf16.mxu0 0
        %8571 = vmatmul.mubr.bf16.gmra.mrb[0].mxu0 %v8527
        %v8572 = vpop.f32.mrb[0].mxu0
        %v8573 = vadd.f32 0.0, %v8572
        %v8574 = vpop.f32.mrb[0].mxu0
        %v8575 = vpop.f32.mrb[0].mxu0
        %v8576 = vadd.f32 0.0, %v8575
        %v8577 = vpop.f32.mrb[0].mxu0
        %8578 = vmatprep.mubr.bf16.mxu0 0
        %8579 = vmatmul.mubr.bf16.gmra.mrb[0].mxu0 %v8530
        %v8580 = vpop.f32.mrb[0].mxu0
        %v8581 = vadd.f32 0.0, %v8580
        %v8582 = vpop.f32.mrb[0].mxu0
        %v8583 = vpop.f32.mrb[0].mxu0
        %v8584 = vadd.f32 0.0, %v8583
        %v8585 = vpop.f32.mrb[0].mxu0
        %8586 = vmatprep.mubr.bf16.mxu0 0
        %8587 = vmatmul.mubr.bf16.gmra.mrb[0].mxu0 %v8533
        %v8588 = vpop.f32.mrb[0].mxu0
        %v8589 = vadd.f32 0.0, %v8588
        %v8590 = vpop.f32.mrb[0].mxu0
        %v8591 = vpop.f32.mrb[0].mxu0
        %v8592 = vadd.f32 0.0, %v8591
        %v8593 = vpop.f32.mrb[0].mxu0
        %8594 = vmatprep.mubr.bf16.mxu0 0
        %8595 = vmatmul.mubr.bf16.gmra.mrb[0].mxu0 %v8536
        %v8596 = vpop.f32.mrb[0].mxu0
        %v8597 = vadd.f32 0.0, %v8596
        %v8598 = vpop.f32.mrb[0].mxu0
        %v8599 = vpop.f32.mrb[0].mxu0
        %v8600 = vadd.f32 0.0, %v8599
        %v8601 = vpop.f32.mrb[0].mxu0
        %8602 = vdwg.mxu0
        %v8603 = vadd.f32 %v8488, %v8573
        %v8604 = vadd.f32 %v8489, %v8576
        %v8605 = vadd.f32 %v8490, %v8581
        %v8606 = vadd.f32 %v8491, %v8584
        %v8607 = vadd.f32 %v8492, %v8589
        %v8608 = vadd.f32 %v8493, %v8592
        %v8609 = vadd.f32 %v8494, %v8597
        %v8610 = vadd.f32 %v8495, %v8600
        %v8611 = vld [vmem:[%s8496 + $0x1] sm:$0xff]
        %v8612 = vld [vmem:[%s8496 + $0x11] sm:$0xff]
        %v8613 = vld [vmem:[%s8496 + $0x21] sm:$0xff]
        %v8614 = vld [vmem:[%s8496 + $0x31] sm:$0xff]
        %v8615 = vld [vmem:[%s8496 + $0x41] sm:$0xff]
        %v8616 = vld [vmem:[%s8496 + $0x51] sm:$0xff]
        %v8617 = vld [vmem:[%s8496 + $0x61] sm:$0xff]
        %v8618 = vld [vmem:[%s8496 + $0x71] sm:$0xff]
        %v8619 = vpack.c.bf16 %v8612, %v8611
        %v8620 = vpack.c.bf16 %v8614, %v8613
        %v8621 = vpack.c.bf16 %v8616, %v8615
        %v8622 = vpack.c.bf16 %v8618, %v8617
        %s8623 = scalar_lea.vmem %s3, 336
        %v8624 = vld [vmem:[%s8623] sm:$0xf]
        %v8625 = vld [vmem:[%s8623 + $0x4] sm:$0xf]
        %v8626 = vld [vmem:[%s8623 + $0x8] sm:$0xf]
        %v8627 = vld [vmem:[%s8623 + $0xc] sm:$0xf]
        %v8632 = vunpack.c.l.b16 %v8624
        %v8633 = vunpack.c.l.b16 %v8625
        %v8634 = vunpack.c.l.b16 %v8626
        %v8635 = vunpack.c.l.b16 %v8627
        %v8636 = vpack.c.b16 %v8633, %v8632
        %v8637 = vpack.c.b16 %v8635, %v8634
        %v8641 = vsel %vm6196, %v8619, 0
        %v8644 = vsel %vm6196, %v8620, 0
        %v8647 = vsel %vm6196, %v8621, 0
        %v8650 = vsel %vm6196, %v8622, 0
        %8652 = vmatprep.subr.bf16.mxu0 0
        %8653 = vmatpush1.bf16.msra.mxu0 %v8636
        %8654 = vmatprep.subr.bf16.mxu0 0
        %8655 = vmatpush1.bf16.msra.mxu0 %v8637
        %8656 = vmatprep.subr.bf16.mxu0 0
        %8657 = vmatpush1.bf16.msra.mxu0 0
        %8658 = vmatprep.subr.bf16.mxu0 0
        %8659 = vmatpush1.bf16.msra.mxu0 0
        %8660 = vmatprep.subr.bf16.mxu0 0
        %8661 = vmatpush1.bf16.msra.mxu0 0
        %8662 = vmatprep.subr.bf16.mxu0 0
        %8663 = vmatpush1.bf16.msra.mxu0 0
        %8664 = vmatprep.subr.bf16.mxu0 0
        %8665 = vmatpush1.bf16.msra.mxu0 0
        %8666 = vmatprep.subr.bf16.mxu0 0
        %8667 = vmatpush1.bf16.msra.mxu0 0
        %8668 = vmatprep.subr.bf16.mxu0 0
        %8669 = vmatpush1.bf16.msra.mxu0 0
        %8670 = vmatprep.subr.bf16.mxu0 0
        %8671 = vmatpush1.bf16.msra.mxu0 0
        %8672 = vmatprep.subr.bf16.mxu0 0
        %8673 = vmatpush1.bf16.msra.mxu0 0
        %8674 = vmatprep.subr.bf16.mxu0 0
        %8675 = vmatpush1.bf16.msra.mxu0 0
        %8676 = vmatprep.subr.bf16.mxu0 0
        %8677 = vmatpush1.bf16.msra.mxu0 0
        %8678 = vmatprep.subr.bf16.mxu0 0
        %8679 = vmatpush1.bf16.msra.mxu0 0
        %8680 = vmatprep.subr.bf16.mxu0 0
        %8681 = vmatpush1.bf16.msra.mxu0 0
        %8682 = vmatprep.subr.bf16.mxu0 0
        %8683 = vmatpush1.bf16.msra.mxu0 0
        %8684 = vmatprep.mubr.bf16.mxu0 0
        %8685 = vmatmul.mubr.bf16.gmra.mrb[0].mxu0 %v8641
        %v8686 = vpop.f32.mrb[0].mxu0
        %v8687 = vadd.f32 0.0, %v8686
        %v8688 = vpop.f32.mrb[0].mxu0
        %v8689 = vpop.f32.mrb[0].mxu0
        %v8690 = vadd.f32 0.0, %v8689
        %v8691 = vpop.f32.mrb[0].mxu0
        %8692 = vmatprep.mubr.bf16.mxu0 0
        %8693 = vmatmul.mubr.bf16.gmra.mrb[0].mxu0 %v8644
        %v8694 = vpop.f32.mrb[0].mxu0
        %v8695 = vadd.f32 0.0, %v8694
        %v8696 = vpop.f32.mrb[0].mxu0
        %v8697 = vpop.f32.mrb[0].mxu0
        %v8698 = vadd.f32 0.0, %v8697
        %v8699 = vpop.f32.mrb[0].mxu0
        %8700 = vmatprep.mubr.bf16.mxu0 0
        %8701 = vmatmul.mubr.bf16.gmra.mrb[0].mxu0 %v8647
        %v8702 = vpop.f32.mrb[0].mxu0
        %v8703 = vadd.f32 0.0, %v8702
        %v8704 = vpop.f32.mrb[0].mxu0
        %v8705 = vpop.f32.mrb[0].mxu0
        %v8706 = vadd.f32 0.0, %v8705
        %v8707 = vpop.f32.mrb[0].mxu0
        %8708 = vmatprep.mubr.bf16.mxu0 0
        %8709 = vmatmul.mubr.bf16.gmra.mrb[0].mxu0 %v8650
        %v8710 = vpop.f32.mrb[0].mxu0
        %v8711 = vadd.f32 0.0, %v8710
        %v8712 = vpop.f32.mrb[0].mxu0
        %v8713 = vpop.f32.mrb[0].mxu0
        %v8714 = vadd.f32 0.0, %v8713
        %v8715 = vpop.f32.mrb[0].mxu0
        %8716 = vdwg.mxu0
        %v8717 = vadd.f32 %v8603, %v8687
        %v8718 = vadd.f32 %v8604, %v8690
        %v8719 = vadd.f32 %v8605, %v8695
        %v8720 = vadd.f32 %v8606, %v8698
        %v8721 = vadd.f32 %v8607, %v8703
        %v8722 = vadd.f32 %v8608, %v8706
        %v8723 = vadd.f32 %v8609, %v8711
        %v8724 = vadd.f32 %v8610, %v8714
        %v8725 = vld [vmem:[%s8496 + $0x2] sm:$0xff]
        %v8726 = vld [vmem:[%s8496 + $0x12] sm:$0xff]
        %v8727 = vld [vmem:[%s8496 + $0x22] sm:$0xff]
        %v8728 = vld [vmem:[%s8496 + $0x32] sm:$0xff]
        %v8729 = vld [vmem:[%s8496 + $0x42] sm:$0xff]
        %v8730 = vld [vmem:[%s8496 + $0x52] sm:$0xff]
        %v8731 = vld [vmem:[%s8496 + $0x62] sm:$0xff]
        %v8732 = vld [vmem:[%s8496 + $0x72] sm:$0xff]
        %v8733 = vpack.c.bf16 %v8726, %v8725
        %v8734 = vpack.c.bf16 %v8728, %v8727
        %v8735 = vpack.c.bf16 %v8730, %v8729
        %v8736 = vpack.c.bf16 %v8732, %v8731
        %s8737 = scalar_lea.vmem %s3, 352
        %v8738 = vld [vmem:[%s8737] sm:$0xf]
        %v8739 = vld [vmem:[%s8737 + $0x4] sm:$0xf]
        %v8740 = vld [vmem:[%s8737 + $0x8] sm:$0xf]
        %v8741 = vld [vmem:[%s8737 + $0xc] sm:$0xf]
        %v8746 = vunpack.c.l.b16 %v8738
        %v8747 = vunpack.c.l.b16 %v8739
        %v8748 = vunpack.c.l.b16 %v8740
        %v8749 = vunpack.c.l.b16 %v8741
        %v8750 = vpack.c.b16 %v8747, %v8746
        %v8751 = vpack.c.b16 %v8749, %v8748
        %v8755 = vsel %vm6196, %v8733, 0
        %v8758 = vsel %vm6196, %v8734, 0
        %v8761 = vsel %vm6196, %v8735, 0
        %v8764 = vsel %vm6196, %v8736, 0
        %8766 = vmatprep.subr.bf16.mxu0 0
        %8767 = vmatpush1.bf16.msra.mxu0 %v8750
        %8768 = vmatprep.subr.bf16.mxu0 0
        %8769 = vmatpush1.bf16.msra.mxu0 %v8751
        %8770 = vmatprep.subr.bf16.mxu0 0
        %8771 = vmatpush1.bf16.msra.mxu0 0
        %8772 = vmatprep.subr.bf16.mxu0 0
        %8773 = vmatpush1.bf16.msra.mxu0 0
        %8774 = vmatprep.subr.bf16.mxu0 0
        %8775 = vmatpush1.bf16.msra.mxu0 0
        %8776 = vmatprep.subr.bf16.mxu0 0
        %8777 = vmatpush1.bf16.msra.mxu0 0
        %8778 = vmatprep.subr.bf16.mxu0 0
        %8779 = vmatpush1.bf16.msra.mxu0 0
        %8780 = vmatprep.subr.bf16.mxu0 0
        %8781 = vmatpush1.bf16.msra.mxu0 0
        %8782 = vmatprep.subr.bf16.mxu0 0
        %8783 = vmatpush1.bf16.msra.mxu0 0
        %8784 = vmatprep.subr.bf16.mxu0 0
        %8785 = vmatpush1.bf16.msra.mxu0 0
        %8786 = vmatprep.subr.bf16.mxu0 0
        %8787 = vmatpush1.bf16.msra.mxu0 0
        %8788 = vmatprep.subr.bf16.mxu0 0
        %8789 = vmatpush1.bf16.msra.mxu0 0
        %8790 = vmatprep.subr.bf16.mxu0 0
        %8791 = vmatpush1.bf16.msra.mxu0 0
        %8792 = vmatprep.subr.bf16.mxu0 0
        %8793 = vmatpush1.bf16.msra.mxu0 0
        %8794 = vmatprep.subr.bf16.mxu0 0
        %8795 = vmatpush1.bf16.msra.mxu0 0
        %8796 = vmatprep.subr.bf16.mxu0 0
        %8797 = vmatpush1.bf16.msra.mxu0 0
        %8798 = vmatprep.mubr.bf16.mxu0 0
        %8799 = vmatmul.mubr.bf16.gmra.mrb[0].mxu0 %v8755
        %v8800 = vpop.f32.mrb[0].mxu0
        %v8801 = vadd.f32 0.0, %v8800
        %v8802 = vpop.f32.mrb[0].mxu0
        %v8803 = vpop.f32.mrb[0].mxu0
        %v8804 = vadd.f32 0.0, %v8803
        %v8805 = vpop.f32.mrb[0].mxu0
        %8806 = vmatprep.mubr.bf16.mxu0 0
        %8807 = vmatmul.mubr.bf16.gmra.mrb[0].mxu0 %v8758
        %v8808 = vpop.f32.mrb[0].mxu0
        %v8809 = vadd.f32 0.0, %v8808
        %v8810 = vpop.f32.mrb[0].mxu0
        %v8811 = vpop.f32.mrb[0].mxu0
        %v8812 = vadd.f32 0.0, %v8811
        %v8813 = vpop.f32.mrb[0].mxu0
        %8814 = vmatprep.mubr.bf16.mxu0 0
        %8815 = vmatmul.mubr.bf16.gmra.mrb[0].mxu0 %v8761
        %v8816 = vpop.f32.mrb[0].mxu0
        %v8817 = vadd.f32 0.0, %v8816
        %v8818 = vpop.f32.mrb[0].mxu0
        %v8819 = vpop.f32.mrb[0].mxu0
        %v8820 = vadd.f32 0.0, %v8819
        %v8821 = vpop.f32.mrb[0].mxu0
        %8822 = vmatprep.mubr.bf16.mxu0 0
        %8823 = vmatmul.mubr.bf16.gmra.mrb[0].mxu0 %v8764
        %v8824 = vpop.f32.mrb[0].mxu0
        %v8825 = vadd.f32 0.0, %v8824
        %v8826 = vpop.f32.mrb[0].mxu0
        %v8827 = vpop.f32.mrb[0].mxu0
        %v8828 = vadd.f32 0.0, %v8827
        %v8829 = vpop.f32.mrb[0].mxu0
        %8830 = vdwg.mxu0
        %v8831 = vadd.f32 %v8717, %v8801
        %v8832 = vadd.f32 %v8718, %v8804
        %v8833 = vadd.f32 %v8719, %v8809
        %v8834 = vadd.f32 %v8720, %v8812
        %v8835 = vadd.f32 %v8721, %v8817
        %v8836 = vadd.f32 %v8722, %v8820
        %v8837 = vadd.f32 %v8723, %v8825
        %v8838 = vadd.f32 %v8724, %v8828
        %v8839 = vld [vmem:[%s8496 + $0x3] sm:$0xff]
        %v8840 = vld [vmem:[%s8496 + $0x13] sm:$0xff]
        %v8841 = vld [vmem:[%s8496 + $0x23] sm:$0xff]
        %v8842 = vld [vmem:[%s8496 + $0x33] sm:$0xff]
        %v8843 = vld [vmem:[%s8496 + $0x43] sm:$0xff]
        %v8844 = vld [vmem:[%s8496 + $0x53] sm:$0xff]
        %v8845 = vld [vmem:[%s8496 + $0x63] sm:$0xff]
        %v8846 = vld [vmem:[%s8496 + $0x73] sm:$0xff]
        %v8847 = vpack.c.bf16 %v8840, %v8839
        %v8848 = vpack.c.bf16 %v8842, %v8841
        %v8849 = vpack.c.bf16 %v8844, %v8843
        %v8850 = vpack.c.bf16 %v8846, %v8845
        %s8851 = scalar_lea.vmem %s3, 368
        %v8852 = vld [vmem:[%s8851] sm:$0xf]
        %v8853 = vld [vmem:[%s8851 + $0x4] sm:$0xf]
        %v8854 = vld [vmem:[%s8851 + $0x8] sm:$0xf]
        %v8855 = vld [vmem:[%s8851 + $0xc] sm:$0xf]
        %v8860 = vunpack.c.l.b16 %v8852
        %v8861 = vunpack.c.l.b16 %v8853
        %v8862 = vunpack.c.l.b16 %v8854
        %v8863 = vunpack.c.l.b16 %v8855
        %v8864 = vpack.c.b16 %v8861, %v8860
        %v8865 = vpack.c.b16 %v8863, %v8862
        %v8869 = vsel %vm6196, %v8847, 0
        %v8872 = vsel %vm6196, %v8848, 0
        %v8875 = vsel %vm6196, %v8849, 0
        %v8878 = vsel %vm6196, %v8850, 0
        %8880 = vmatprep.subr.bf16.mxu0 0
        %8881 = vmatpush1.bf16.msra.mxu0 %v8864
        %8882 = vmatprep.subr.bf16.mxu0 0
        %8883 = vmatpush1.bf16.msra.mxu0 %v8865
        %8884 = vmatprep.subr.bf16.mxu0 0
        %8885 = vmatpush1.bf16.msra.mxu0 0
        %8886 = vmatprep.subr.bf16.mxu0 0
        %8887 = vmatpush1.bf16.msra.mxu0 0
        %8888 = vmatprep.subr.bf16.mxu0 0
        %8889 = vmatpush1.bf16.msra.mxu0 0
        %8890 = vmatprep.subr.bf16.mxu0 0
        %8891 = vmatpush1.bf16.msra.mxu0 0
        %8892 = vmatprep.subr.bf16.mxu0 0
        %8893 = vmatpush1.bf16.msra.mxu0 0
        %8894 = vmatprep.subr.bf16.mxu0 0
        %8895 = vmatpush1.bf16.msra.mxu0 0
        %8896 = vmatprep.subr.bf16.mxu0 0
        %8897 = vmatpush1.bf16.msra.mxu0 0
        %8898 = vmatprep.subr.bf16.mxu0 0
        %8899 = vmatpush1.bf16.msra.mxu0 0
        %8900 = vmatprep.subr.bf16.mxu0 0
        %8901 = vmatpush1.bf16.msra.mxu0 0
        %8902 = vmatprep.subr.bf16.mxu0 0
        %8903 = vmatpush1.bf16.msra.mxu0 0
        %8904 = vmatprep.subr.bf16.mxu0 0
        %8905 = vmatpush1.bf16.msra.mxu0 0
        %8906 = vmatprep.subr.bf16.mxu0 0
        %8907 = vmatpush1.bf16.msra.mxu0 0
        %8908 = vmatprep.subr.bf16.mxu0 0
        %8909 = vmatpush1.bf16.msra.mxu0 0
        %8910 = vmatprep.subr.bf16.mxu0 0
        %8911 = vmatpush1.bf16.msra.mxu0 0
        %8912 = vmatprep.mubr.bf16.mxu0 0
        %8913 = vmatmul.mubr.bf16.gmra.mrb[0].mxu0 %v8869
        %v8914 = vpop.f32.mrb[0].mxu0
        %v8915 = vadd.f32 0.0, %v8914
        %v8916 = vpop.f32.mrb[0].mxu0
        %v8917 = vpop.f32.mrb[0].mxu0
        %v8918 = vadd.f32 0.0, %v8917
        %v8919 = vpop.f32.mrb[0].mxu0
        %8920 = vmatprep.mubr.bf16.mxu0 0
        %8921 = vmatmul.mubr.bf16.gmra.mrb[0].mxu0 %v8872
        %v8922 = vpop.f32.mrb[0].mxu0
        %v8923 = vadd.f32 0.0, %v8922
        %v8924 = vpop.f32.mrb[0].mxu0
        %v8925 = vpop.f32.mrb[0].mxu0
        %v8926 = vadd.f32 0.0, %v8925
        %v8927 = vpop.f32.mrb[0].mxu0
        %8928 = vmatprep.mubr.bf16.mxu0 0
        %8929 = vmatmul.mubr.bf16.gmra.mrb[0].mxu0 %v8875
        %v8930 = vpop.f32.mrb[0].mxu0
        %v8931 = vadd.f32 0.0, %v8930
        %v8932 = vpop.f32.mrb[0].mxu0
        %v8933 = vpop.f32.mrb[0].mxu0
        %v8934 = vadd.f32 0.0, %v8933
        %v8935 = vpop.f32.mrb[0].mxu0
        %8936 = vmatprep.mubr.bf16.mxu0 0
        %8937 = vmatmul.mubr.bf16.gmra.mrb[0].mxu0 %v8878
        %v8938 = vpop.f32.mrb[0].mxu0
        %v8939 = vadd.f32 0.0, %v8938
        %v8940 = vpop.f32.mrb[0].mxu0
        %v8941 = vpop.f32.mrb[0].mxu0
        %v8942 = vadd.f32 0.0, %v8941
        %v8943 = vpop.f32.mrb[0].mxu0
        %8944 = vdwg.mxu0
        %v8945 = vadd.f32 %v8831, %v8915
        %v8946 = vadd.f32 %v8832, %v8918
        %v8947 = vadd.f32 %v8833, %v8923
        %v8948 = vadd.f32 %v8834, %v8926
        %v8949 = vadd.f32 %v8835, %v8931
        %v8950 = vadd.f32 %v8836, %v8934
        %v8951 = vadd.f32 %v8837, %v8939
        %v8952 = vadd.f32 %v8838, %v8942
        %v8953 = vld [vmem:[%s8496 + $0x4] sm:$0xff]
        %v8954 = vld [vmem:[%s8496 + $0x14] sm:$0xff]
        %v8955 = vld [vmem:[%s8496 + $0x24] sm:$0xff]
        %v8956 = vld [vmem:[%s8496 + $0x34] sm:$0xff]
        %v8957 = vld [vmem:[%s8496 + $0x44] sm:$0xff]
        %v8958 = vld [vmem:[%s8496 + $0x54] sm:$0xff]
        %v8959 = vld [vmem:[%s8496 + $0x64] sm:$0xff]
        %v8960 = vld [vmem:[%s8496 + $0x74] sm:$0xff]
        %v8961 = vpack.c.bf16 %v8954, %v8953
        %v8962 = vpack.c.bf16 %v8956, %v8955
        %v8963 = vpack.c.bf16 %v8958, %v8957
        %v8964 = vpack.c.bf16 %v8960, %v8959
        %s8965 = scalar_lea.vmem %s3, 384
        %v8966 = vld [vmem:[%s8965] sm:$0xf]
        %v8967 = vld [vmem:[%s8965 + $0x4] sm:$0xf]
        %v8968 = vld [vmem:[%s8965 + $0x8] sm:$0xf]
        %v8969 = vld [vmem:[%s8965 + $0xc] sm:$0xf]
        %v8974 = vunpack.c.l.b16 %v8966
        %v8975 = vunpack.c.l.b16 %v8967
        %v8976 = vunpack.c.l.b16 %v8968
        %v8977 = vunpack.c.l.b16 %v8969
        %v8978 = vpack.c.b16 %v8975, %v8974
        %v8979 = vpack.c.b16 %v8977, %v8976
        %v8983 = vsel %vm6196, %v8961, 0
        %v8986 = vsel %vm6196, %v8962, 0
        %v8989 = vsel %vm6196, %v8963, 0
        %v8992 = vsel %vm6196, %v8964, 0
        %8994 = vmatprep.subr.bf16.mxu0 0
        %8995 = vmatpush1.bf16.msra.mxu0 %v8978
        %8996 = vmatprep.subr.bf16.mxu0 0
        %8997 = vmatpush1.bf16.msra.mxu0 %v8979
        %8998 = vmatprep.subr.bf16.mxu0 0
        %8999 = vmatpush1.bf16.msra.mxu0 0
        %9000 = vmatprep.subr.bf16.mxu0 0
        %9001 = vmatpush1.bf16.msra.mxu0 0
        %9002 = vmatprep.subr.bf16.mxu0 0
        %9003 = vmatpush1.bf16.msra.mxu0 0
        %9004 = vmatprep.subr.bf16.mxu0 0
        %9005 = vmatpush1.bf16.msra.mxu0 0
        %9006 = vmatprep.subr.bf16.mxu0 0
        %9007 = vmatpush1.bf16.msra.mxu0 0
        %9008 = vmatprep.subr.bf16.mxu0 0
        %9009 = vmatpush1.bf16.msra.mxu0 0
        %9010 = vmatprep.subr.bf16.mxu0 0
        %9011 = vmatpush1.bf16.msra.mxu0 0
        %9012 = vmatprep.subr.bf16.mxu0 0
        %9013 = vmatpush1.bf16.msra.mxu0 0
        %9014 = vmatprep.subr.bf16.mxu0 0
        %9015 = vmatpush1.bf16.msra.mxu0 0
        %9016 = vmatprep.subr.bf16.mxu0 0
        %9017 = vmatpush1.bf16.msra.mxu0 0
        %9018 = vmatprep.subr.bf16.mxu0 0
        %9019 = vmatpush1.bf16.msra.mxu0 0
        %9020 = vmatprep.subr.bf16.mxu0 0
        %9021 = vmatpush1.bf16.msra.mxu0 0
        %9022 = vmatprep.subr.bf16.mxu0 0
        %9023 = vmatpush1.bf16.msra.mxu0 0
        %9024 = vmatprep.subr.bf16.mxu0 0
        %9025 = vmatpush1.bf16.msra.mxu0 0
        %9026 = vmatprep.mubr.bf16.mxu0 0
        %9027 = vmatmul.mubr.bf16.gmra.mrb[0].mxu0 %v8983
        %v9028 = vpop.f32.mrb[0].mxu0
        %v9029 = vadd.f32 0.0, %v9028
        %v9030 = vpop.f32.mrb[0].mxu0
        %v9031 = vpop.f32.mrb[0].mxu0
        %v9032 = vadd.f32 0.0, %v9031
        %v9033 = vpop.f32.mrb[0].mxu0
        %9034 = vmatprep.mubr.bf16.mxu0 0
        %9035 = vmatmul.mubr.bf16.gmra.mrb[0].mxu0 %v8986
        %v9036 = vpop.f32.mrb[0].mxu0
        %v9037 = vadd.f32 0.0, %v9036
        %v9038 = vpop.f32.mrb[0].mxu0
        %v9039 = vpop.f32.mrb[0].mxu0
        %v9040 = vadd.f32 0.0, %v9039
        %v9041 = vpop.f32.mrb[0].mxu0
        %9042 = vmatprep.mubr.bf16.mxu0 0
        %9043 = vmatmul.mubr.bf16.gmra.mrb[0].mxu0 %v8989
        %v9044 = vpop.f32.mrb[0].mxu0
        %v9045 = vadd.f32 0.0, %v9044
        %v9046 = vpop.f32.mrb[0].mxu0
        %v9047 = vpop.f32.mrb[0].mxu0
        %v9048 = vadd.f32 0.0, %v9047
        %v9049 = vpop.f32.mrb[0].mxu0
        %9050 = vmatprep.mubr.bf16.mxu0 0
        %9051 = vmatmul.mubr.bf16.gmra.mrb[0].mxu0 %v8992
        %v9052 = vpop.f32.mrb[0].mxu0
        %v9053 = vadd.f32 0.0, %v9052
        %v9054 = vpop.f32.mrb[0].mxu0
        %v9055 = vpop.f32.mrb[0].mxu0
        %v9056 = vadd.f32 0.0, %v9055
        %v9057 = vpop.f32.mrb[0].mxu0
        %9058 = vdwg.mxu0
        %v9059 = vadd.f32 %v8945, %v9029
        %v9060 = vadd.f32 %v8946, %v9032
        %v9061 = vadd.f32 %v8947, %v9037
        %v9062 = vadd.f32 %v8948, %v9040
        %v9063 = vadd.f32 %v8949, %v9045
        %v9064 = vadd.f32 %v8950, %v9048
        %v9065 = vadd.f32 %v8951, %v9053
        %v9066 = vadd.f32 %v8952, %v9056
        %v9067 = vld [vmem:[%s4] sm:$0x1]
        %v9069 = vlaneseq
        %v9070 = vshrl.u32 %v9069, 7
        %v9071 = vsub.s32 0, %v9070
        %v9072 = vrot.slane %v9067, %v9071
        %v9074 = vadd.f32 %v9059, %v9072
        %v9075 = vadd.f32 %v9060, %v9072
        %v9076 = vadd.f32 %v9061, %v9072
        %v9077 = vadd.f32 %v9062, %v9072
        %v9078 = vadd.f32 %v9063, %v9072
        %v9079 = vadd.f32 %v9064, %v9072
        %v9080 = vadd.f32 %v9065, %v9072
        %v9081 = vadd.f32 %v9066, %v9072
        %v9082 = vmax.f32 %v9074, 0.0
        %v9083 = vmax.f32 %v9075, 0.0
        %v9084 = vmax.f32 %v9076, 0.0
        %v9085 = vmax.f32 %v9077, 0.0
        %v9086 = vmax.f32 %v9078, 0.0
        %v9087 = vmax.f32 %v9079, 0.0
        %v9088 = vmax.f32 %v9080, 0.0
        %v9089 = vmax.f32 %v9081, 0.0
        %vm9090 = vcmask 523264
        %v9091 = vsel %vm9090, %v9082, 0.0
        %v9092 = vsel %vm9090, %v9083, 0.0
        %v9093 = vadd.f32 %v9091, %v9092
        %v9094 = vsel %vm9090, %v9084, 0.0
        %v9095 = vadd.f32 %v9093, %v9094
        %v9096 = vsel %vm9090, %v9085, 0.0
        %v9097 = vadd.f32 %v9095, %v9096
        %v9098 = vsel %vm9090, %v9086, 0.0
        %v9099 = vadd.f32 %v9097, %v9098
        %v9100 = vsel %vm9090, %v9087, 0.0
        %v9101 = vadd.f32 %v9099, %v9100
        %v9102 = vsel %vm9090, %v9088, 0.0
        %v9103 = vadd.f32 %v9101, %v9102
        %v9104 = vsel %vm9090, %v9089, 0.0
        %v9105 = vadd.f32 %v9103, %v9104
        %v9106 = vrot.slane %v9105, 4
        %v9107 = vadd.f32 %v9105, %v9106
        %v9108 = vrot.slane %v9107, 2
        %v9109 = vadd.f32 %v9107, %v9108
        %v9110 = vrot.slane %v9109, 1
        %v9111 = vadd.f32 %v9109, %v9110
        %v9112 = vrcp.pop 64.0
        %v9113 = vmul.f32 %v9111, %v9112
        %v9114 = vld [vmem:[%s5] sm:$0xff]
        %v9115 = vld [vmem:[%s5 + $0x8] sm:$0xff]
        %v9116 = vld [vmem:[%s5 + $0x10] sm:$0xff]
        %v9117 = vld [vmem:[%s5 + $0x18] sm:$0xff]
        %v9118 = vld [vmem:[%s5 + $0x20] sm:$0xff]
        %v9119 = vld [vmem:[%s5 + $0x28] sm:$0xff]
        %v9120 = vld [vmem:[%s5 + $0x30] sm:$0xff]
        %v9121 = vld [vmem:[%s5 + $0x38] sm:$0xff]
        %v9122 = vld [vmem:[%s6] sm:$0x1]
        %v9124 = vsel %vm9090, %v9113, 0
        %9126 = vmatprep.subr.mxu0 0.0
        %9127 = vmatpush1.msra.mxu0 %v9114
        %9128 = vmatprep.subr.mxu0 0.0
        %9129 = vmatpush1.msra.mxu0 %v9115
        %9130 = vmatprep.subr.mxu0 0.0
        %9131 = vmatpush1.msra.mxu0 %v9116
        %9132 = vmatprep.subr.mxu0 0.0
        %9133 = vmatpush1.msra.mxu0 %v9117
        %9134 = vmatprep.subr.mxu0 0.0
        %9135 = vmatpush1.msra.mxu0 %v9118
        %9136 = vmatprep.subr.mxu0 0.0
        %9137 = vmatpush1.msra.mxu0 %v9119
        %9138 = vmatprep.subr.mxu0 0.0
        %9139 = vmatpush1.msra.mxu0 %v9120
        %9140 = vmatprep.subr.mxu0 0.0
        %9141 = vmatpush1.msra.mxu0 %v9121
        %9142 = vmatprep.subr.mxu0 0.0
        %9143 = vmatpush1.msra.mxu0 0.0
        %9144 = vmatprep.subr.mxu0 0.0
        %9145 = vmatpush1.msra.mxu0 0.0
        %9146 = vmatprep.subr.mxu0 0.0
        %9147 = vmatpush1.msra.mxu0 0.0
        %9148 = vmatprep.subr.mxu0 0.0
        %9149 = vmatpush1.msra.mxu0 0.0
        %9150 = vmatprep.subr.mxu0 0.0
        %9151 = vmatpush1.msra.mxu0 0.0
        %9152 = vmatprep.subr.mxu0 0.0
        %9153 = vmatpush1.msra.mxu0 0.0
        %9154 = vmatprep.subr.mxu0 0.0
        %9155 = vmatpush1.msra.mxu0 0.0
        %9156 = vmatprep.subr.mxu0 0.0
        %9157 = vmatpush1.msra.mxu0 0.0
        %9158 = vmatprep.subr.mxu0 0.0
        %9159 = vmatpush1.msra.mxu0 0.0
        %9160 = vmatprep.subr.mxu0 0.0
        %9161 = vmatpush1.msra.mxu0 0.0
        %9162 = vmatprep.subr.mxu0 0.0
        %9163 = vmatpush1.msra.mxu0 0.0
        %9164 = vmatprep.subr.mxu0 0.0
        %9165 = vmatpush1.msra.mxu0 0.0
        %9166 = vmatprep.subr.mxu0 0.0
        %9167 = vmatpush1.msra.mxu0 0.0
        %9168 = vmatprep.subr.mxu0 0.0
        %9169 = vmatpush1.msra.mxu0 0.0
        %9170 = vmatprep.subr.mxu0 0.0
        %9171 = vmatpush1.msra.mxu0 0.0
        %9172 = vmatprep.subr.mxu0 0.0
        %9173 = vmatpush1.msra.mxu0 0.0
        %9174 = vmatprep.subr.mxu0 0.0
        %9175 = vmatpush1.msra.mxu0 0.0
        %9176 = vmatprep.subr.mxu0 0.0
        %9177 = vmatpush1.msra.mxu0 0.0
        %9178 = vmatprep.subr.mxu0 0.0
        %9179 = vmatpush1.msra.mxu0 0.0
        %9180 = vmatprep.subr.mxu0 0.0
        %9181 = vmatpush1.msra.mxu0 0.0
        %9182 = vmatprep.subr.mxu0 0.0
        %9183 = vmatpush1.msra.mxu0 0.0
        %9184 = vmatprep.subr.mxu0 0.0
        %9185 = vmatpush1.msra.mxu0 0.0
        %9186 = vmatprep.subr.mxu0 0.0
        %9187 = vmatpush1.msra.mxu0 0.0
        %9188 = vmatprep.subr.mxu0 0.0
        %9189 = vmatpush1.msra.mxu0 0.0
        %9190 = vmatprep.mubr.f32.mxu0 0.0
        %9191 = vmatmul.mubr.f32.gmra.mrb[0].mxu0 %v9124
        %v9192 = vpop.f32.mrb[0].mxu0
        %v9193 = vadd.f32 %v9122, %v9192
        %v9194 = vpop.f32.mrb[0].mxu0
        %9195 = vdwg.mxu0
        %v9196 = vld [vmem:[%s7] sm:$0xff]
        %v9197 = vld [vmem:[%s7 + $0x8] sm:$0xff]
        %v9198 = vld [vmem:[%s7 + $0x10] sm:$0xff]
        %v9199 = vld [vmem:[%s7 + $0x18] sm:$0xff]
        %v9200 = vld [vmem:[%s7 + $0x20] sm:$0xff]
        %v9201 = vld [vmem:[%s7 + $0x28] sm:$0xff]
        %v9202 = vld [vmem:[%s7 + $0x30] sm:$0xff]
        %v9203 = vld [vmem:[%s7 + $0x38] sm:$0xff]
        %v9204 = vld [vmem:[%s7 + $0x40] sm:$0xff]
        %v9205 = vld [vmem:[%s7 + $0x48] sm:$0xff]
        %v9206 = vld [vmem:[%s7 + $0x50] sm:$0xff]
        %v9207 = vld [vmem:[%s7 + $0x58] sm:$0xff]
        %v9208 = vld [vmem:[%s7 + $0x60] sm:$0xf]
        %v9209 = vld [vmem:[%s8] sm:$0x1]
        %vm9210 = vcmask 818176
        %v9212 = vsel %vm9210, %v9193, 0
        %vm9214 = vcmask 1043456
        %v9216 = vsel %vm9214, %v9208, 0
        %9218 = vmatprep.subr.mxu0 0.0
        %9219 = vmatpush1.msra.mxu0 %v9196
        %9220 = vmatprep.subr.mxu0 0.0
        %9221 = vmatpush1.msra.mxu0 %v9197
        %9222 = vmatprep.subr.mxu0 0.0
        %9223 = vmatpush1.msra.mxu0 %v9198
        %9224 = vmatprep.subr.mxu0 0.0
        %9225 = vmatpush1.msra.mxu0 %v9199
        %9226 = vmatprep.subr.mxu0 0.0
        %9227 = vmatpush1.msra.mxu0 %v9200
        %9228 = vmatprep.subr.mxu0 0.0
        %9229 = vmatpush1.msra.mxu0 %v9201
        %9230 = vmatprep.subr.mxu0 0.0
        %9231 = vmatpush1.msra.mxu0 %v9202
        %9232 = vmatprep.subr.mxu0 0.0
        %9233 = vmatpush1.msra.mxu0 %v9203
        %9234 = vmatprep.subr.mxu0 0.0
        %9235 = vmatpush1.msra.mxu0 %v9204
        %9236 = vmatprep.subr.mxu0 0.0
        %9237 = vmatpush1.msra.mxu0 %v9205
        %9238 = vmatprep.subr.mxu0 0.0
        %9239 = vmatpush1.msra.mxu0 %v9206
        %9240 = vmatprep.subr.mxu0 0.0
        %9241 = vmatpush1.msra.mxu0 %v9207
        %9242 = vmatprep.subr.mxu0 0.0
        %9243 = vmatpush1.msra.mxu0 %v9216
        %9244 = vmatprep.subr.mxu0 0.0
        %9245 = vmatpush1.msra.mxu0 0.0
        %9246 = vmatprep.subr.mxu0 0.0
        %9247 = vmatpush1.msra.mxu0 0.0
        %9248 = vmatprep.subr.mxu0 0.0
        %9249 = vmatpush1.msra.mxu0 0.0
        %9250 = vmatprep.subr.mxu0 0.0
        %9251 = vmatpush1.msra.mxu0 0.0
        %9252 = vmatprep.subr.mxu0 0.0
        %9253 = vmatpush1.msra.mxu0 0.0
        %9254 = vmatprep.subr.mxu0 0.0
        %9255 = vmatpush1.msra.mxu0 0.0
        %9256 = vmatprep.subr.mxu0 0.0
        %9257 = vmatpush1.msra.mxu0 0.0
        %9258 = vmatprep.subr.mxu0 0.0
        %9259 = vmatpush1.msra.mxu0 0.0
        %9260 = vmatprep.subr.mxu0 0.0
        %9261 = vmatpush1.msra.mxu0 0.0
        %9262 = vmatprep.subr.mxu0 0.0
        %9263 = vmatpush1.msra.mxu0 0.0
        %9264 = vmatprep.subr.mxu0 0.0
        %9265 = vmatpush1.msra.mxu0 0.0
        %9266 = vmatprep.subr.mxu0 0.0
        %9267 = vmatpush1.msra.mxu0 0.0
        %9268 = vmatprep.subr.mxu0 0.0
        %9269 = vmatpush1.msra.mxu0 0.0
        %9270 = vmatprep.subr.mxu0 0.0
        %9271 = vmatpush1.msra.mxu0 0.0
        %9272 = vmatprep.subr.mxu0 0.0
        %9273 = vmatpush1.msra.mxu0 0.0
        %9274 = vmatprep.subr.mxu0 0.0
        %9275 = vmatpush1.msra.mxu0 0.0
        %9276 = vmatprep.subr.mxu0 0.0
        %9277 = vmatpush1.msra.mxu0 0.0
        %9278 = vmatprep.subr.mxu0 0.0
        %9279 = vmatpush1.msra.mxu0 0.0
        %9280 = vmatprep.subr.mxu0 0.0
        %9281 = vmatpush1.msra.mxu0 0.0
        %9282 = vmatprep.mubr.f32.mxu0 0.0
        %9283 = vmatmul.mubr.f32.gmra.mrb[0].mxu0 %v9212
        %v9284 = vpop.f32.mrb[0].mxu0
        %v9285 = vadd.f32 %v9209, %v9284
        %v9286 = vpop.f32.mrb[0].mxu0
        %9287 = vdwg.mxu0
        %vm9288 = vcmask 516096
        %9289 = vst.msk [vmem:[%s327] sm:$0x1] %vm9288, %v9285
        %s9290 = sand.u32 %s225, 1
        %s9291 = scalar_lea.sflag [#allocation4], %s9290
        %s9292 = sand.u32 %s225, 1
        %s9293 = scalar_lea.vmem [#allocation3], %s9292
        // Predicated region
        $region57: #{my_model_forward.1} parent=55 // pred_check
          %p9294 = pneg %p235
        $region58: #{my_model_forward.1} parent=55 // pred_check_branch
          %9296 = sbr.rel (%p9294) target = $region60
        $region59: #{my_model_forward.1} parent=55 // pred_region
          %s9298 = ssub.s32 16, 16
          %9299 = vsyncadd %s9291, %s9298
          %s9300 = smul.addr %s23, 16
          %s9301 = scalar_lea.hbm %s9, %s9300
          %s9303 = sshll.u32 %s9293, 4
          %s9304 = int_to_ptr.vmem [resolvable:$true] %s9303
          %9306 = dma.vmem_to_hbm [thread:$0]  %s9304, 16, %s9301, %s9291
        $region60: #{my_model_forward.1} parent=55 // pred_fallthru
          _
      $region56: #{my_model_forward.1} parent=5 // pred_fallthru
        _
      %p9307 = scmp.le.s32.totalorder 2, %s18
      // Predicated region
      $region61: #{my_model_forward.1} parent=5 // pred_check
        %p9308 = pneg %p9307
      $region62: #{my_model_forward.1} parent=5 // pred_check_branch
        %9310 = sbr.rel (%p9308) target = $region64
      $region63: #{my_model_forward.1} parent=5 // pred_region
        %s9311 = ssub.s32 %s18, 2
        // Predicated region
        $region65: #{my_model_forward.1} parent=63 // pred_check
          %p9312 = pneg %p241
        $region66: #{my_model_forward.1} parent=63 // pred_check_branch
          %9314 = sbr.rel (%p9312) target = $region68
        $region67: #{my_model_forward.1} parent=63 // pred_region
          %s9315 = sand.u32 %s226, 1
          %s9316 = scalar_lea.sflag [#allocation4], %s9315
          %s9317 = sand.u32 %s226, 1
          %s9318 = scalar_lea.vmem [#allocation3], %s9317
          %9319 = dma.done %s9316, 16
        $region68: #{my_model_forward.1} parent=63 // pred_fallthru
          _
      $region64: #{my_model_forward.1} parent=5 // pred_fallthru
        _
    $region6: #{my_model_forward.1} parent=1 // loop_footer
      %s22 = sadd.s32 1, %s18
    $region7: #{my_model_forward.1} parent=1 // loop_footer_branch
      %17 = sbr.rel target = $region3
    $region8: #{my_model_forward.1} parent=1 // loop_exit
      _
    %9320 = vsyncpa [#allocation4], 1
    %s9321 = scalar_lea.sflag [#allocation4], 1
    %9322 = vsyncpa %s9321, 1

</llo_original>
